<compile_context>
chip_gen: v7x
topology: tpu7x:2x2x1
jax: 0.10.0
libtpu: 0.0.40
codegen_flags: <defaults>
</compile_context>

<pallas_src>
import math

import jax
import jax.numpy as jnp
from jax import lax
from jax.experimental import pallas as pl
from jax.experimental.pallas import tpu as pltpu


# --------------------------------------------------------------------------- #
# Kernel factory (static shape params captured by closure)
# --------------------------------------------------------------------------- #
def make_mamba_kernel(TL, D, K, N):
    assert TL % 8 == 0
    assert K - 1 <= 8            # conv context carried as one 8-row tail buffer
    assert D % 128 == 0          # lane-dense channel axis
    ND = N * D

    def kernel(
        x_ref,        # (TL, D)      f32   input tile
        adj_ref,      # (D, D)       bf16  temp_adj_padded
        w_in_ref,     # (D, 2D)      bf16  fused in_proj
        w_conv_ref,   # (K, D)       f32   depthwise taps, w_conv[j, c] = torch_w[c, 0, j]
        b_conv_ref,   # (1, D)       f32
        w_dt_ref,     # (D, D)       bf16  fused x_proj[:, :R] @ dt_proj
        b_dt_ref,     # (1, D)       f32
        w_bc_ref,     # (D, 2*N*D)   bf16  B/C columns replicated across D lanes
        a_ref,        # (1, N*D)     f32   (-exp(A_log)).T flattened (block k = A[:, k])
        d_vec_ref,    # (1, D)       f32   skip parameter D
        w_out_ref,    # (D, D)       bf16  out_proj
        o_ref,        # (TL, D)      f32   output tile
        state_scr,    # (1, N*D)     f32   SSM state carried across grid steps
        tail_scr,     # (8, D)       f32   last 8 rows of previous tile's xp (conv ctx)
    ):
        f32 = jnp.float32
        bf16 = jnp.bfloat16
        pid = pl.program_id(0)

        @pl.when(pid == 0)
        def _():
            state_scr[...] = jnp.zeros_like(state_scr)
            tail_scr[...] = jnp.zeros_like(tail_scr)     # causal zero padding

        def sigmoid(v):                                  # single EUP push (tanh)
            return 0.5 * jnp.tanh(0.5 * v) + 0.5

        x = x_ref[...]                                               # (TL, D)

        # ---- fused in_proj (bias=False): one lane-dense bf16 MXU matmul ----
        xr = jnp.dot(x.astype(bf16), w_in_ref[...],
                     preferred_element_type=f32)                     # (TL, 2D)
        xp = xr[:, :D]
        res = xr[:, D:]

        # ---- depthwise causal conv1d (aligned concat + pltpu.roll shifts) ----
        xp_ext = jnp.concatenate([tail_scr[...], xp], axis=0)        # (TL+8, D)
        tail_scr[...] = xp[TL - 8:, :]                               # next tile's ctx
        conv = jnp.broadcast_to(b_conv_ref[...], (TL, D))
        for j in range(K):                                           # K static taps
            s = (K - 1) - j                                          # out[t] += w[j]*x[t-s]
            if s == 0:
                term = xp
            else:
                term = pltpu.roll(xp_ext, shift=s, axis=0)[8:8 + TL, :]
            conv = conv + term * w_conv_ref[j:j + 1, :]
        xs = conv * sigmoid(conv)                                    # SiLU
        xs_bf = xs.astype(bf16)

        # ---- delta = softplus(xs @ (x_proj[:, :R] @ dt_proj) + b_dt) ----
        d_raw = jnp.dot(xs_bf, w_dt_ref[...],
                        preferred_element_type=f32) + b_dt_ref[...]  # (TL, D)
        delta = jnp.maximum(d_raw, 0.0) + jnp.log(1.0 + jnp.exp(-jnp.abs(d_raw)))

        # ---- delta_p = delta @ temp_adj_padded (single bf16 MXU pass) ----
        delta_p = jnp.dot(delta.astype(bf16), adj_ref[...],
                          preferred_element_type=f32)                # (TL, D)

        # ---- B/C emitted already lane-broadcast by the MXU ----
        bc = jnp.dot(xs_bf, w_bc_ref[...], preferred_element_type=f32)  # (TL, 2ND)
        b_rep = bc[:, :ND]
        c_rep = bc[:, ND:]

        # ---- dense selective scan: log-depth Hillis-Steele over sublanes ----
        dp_rep = jnp.tile(delta_p, (1, N))                           # (TL, ND)
        a_el = jnp.exp(dp_rep * a_ref[...])                          # dA
        b_el = jnp.tile(delta_p * xs, (1, N)) * b_rep                # dBu

        row = lax.broadcasted_iota(jnp.int32, (TL, ND), 0)
        s = 1
        while s < TL:                                                # log2(TL) steps
            a_sh = pltpu.roll(a_el, shift=s, axis=0)
            b_sh = pltpu.roll(b_el, shift=s, axis=0)
            keep = row >= s
            a_prev = jnp.where(keep, a_sh, 1.0)                      # identity fill
            b_prev = jnp.where(keep, b_sh, 0.0)
            b_el = a_el * b_prev + b_el                              # compose (a,b)
            a_el = a_el * a_prev
            s *= 2

        state = b_el + a_el * state_scr[...]                         # apply carried init
        state_scr[...] = state[TL - 1:TL, :]                         # carry across tiles

        sc = state * c_rep                                           # (TL, ND)
        y = sc[:, :D]
        for k in range(1, N):                                        # sum lane blocks
            y = y + sc[:, k * D:(k + 1) * D]

        # ---- skip, gate with silu(res), out_proj, zero non-finite ----
        y = y + xs * d_vec_ref[...]
        y = y * (res * sigmoid(res))
        out = jnp.dot(y.astype(bf16), w_out_ref[...], preferred_element_type=f32)
        o_ref[...] = jnp.where(jnp.isfinite(out), out, 0.0)

    return kernel


# --------------------------------------------------------------------------- #
# Wrapper (plain-JAX glue: parameter fusing / replication / adjacency padding)
# --------------------------------------------------------------------------- #
def build_adj(dis_dense, d_model):
    ta = dis_dense
    if ta.shape[0] >= d_model:
        ta = ta[:d_model, :d_model]
    padded = jnp.ones((d_model, d_model), jnp.float32)
    padded = padded.at[:ta.shape[0], :ta.shape[1]].set(ta)
    return padded


def mamba_block_forward(x, dis_dense, params, dt_rank, d_state, *, tile_l=256):
    """Pallas implementation of MambaBlock.forward (the `mixer` in ResidualBlock)."""
    L, D = x.shape
    R, N = dt_rank, d_state
    K = params["conv_w"].shape[1]
    TL = tile_l
    assert TL % 8 == 0 and D % 128 == 0 and K - 1 <= 8

    # pad the sequence to a multiple of TL (padded rows are causal-safe, sliced off)
    Lp = ((L + TL - 1) // TL) * TL
    x_in = x if Lp == L else jnp.zeros((Lp, D), jnp.float32).at[:L].set(x)

    hp = jax.lax.Precision.HIGHEST
    adj = build_adj(dis_dense, D).astype(jnp.bfloat16)               # (D, D)
    w_in = params["w_in"].astype(jnp.bfloat16)                       # (D, 2D)
    w_conv = params["conv_w"].T.astype(jnp.float32)                  # (K, D)
    b_conv = params["conv_b"][None, :].astype(jnp.float32)           # (1, D)
    # fuse x_proj[:, :R] @ dt_proj into one (D, D) weight
    w_dt_eff = jnp.dot(params["w_xp"][:, :R], params["w_dt"],
                       precision=hp).astype(jnp.bfloat16)            # (D, D)
    b_dt = params["b_dt"][None, :].astype(jnp.float32)               # (1, D)
    # B/C columns replicated across D lanes so the MXU emits them broadcast
    w_bc_rep = jnp.repeat(params["w_xp"][:, R:R + 2 * N], D,
                          axis=1).astype(jnp.bfloat16)               # (D, 2*N*D)
    a_rep = (-jnp.exp(params["A_log"])).T.reshape(1, N * D).astype(jnp.float32)
    d_vec = params["D"][None, :].astype(jnp.float32)                 # (1, D)
    w_out = params["w_out"].astype(jnp.bfloat16)                     # (D, D)

    const2 = lambda i: (0, 0)
    in_specs = [
        pl.BlockSpec((TL, D), lambda i: (i, 0)),        # x
        pl.BlockSpec((D, D), const2),                   # adj
        pl.BlockSpec((D, 2 * D), const2),               # w_in
        pl.BlockSpec((K, D), const2),                   # w_conv
        pl.BlockSpec((1, D), const2),                   # b_conv
        pl.BlockSpec((D, D), const2),                   # w_dt_eff
        pl.BlockSpec((1, D), const2),                   # b_dt
        pl.BlockSpec((D, 2 * N * D), const2),           # w_bc_rep
        pl.BlockSpec((1, N * D), const2),               # -exp(A_log).T flattened
        pl.BlockSpec((1, D), const2),                   # D (skip)
        pl.BlockSpec((D, D), const2),                   # w_out
    ]
    out_specs = pl.BlockSpec((TL, D), lambda i: (i, 0))

    kernel = make_mamba_kernel(TL=TL, D=D, K=K, N=N)
    out = pl.pallas_call(
        kernel,
        grid=(Lp // TL,),
        in_specs=in_specs,
        out_specs=out_specs,
        out_shape=jax.ShapeDtypeStruct((Lp, D), jnp.float32),
        scratch_shapes=[
            pltpu.VMEM((1, N * D), jnp.float32),    # recurrent SSM state
            pltpu.VMEM((8, D), jnp.float32),        # conv tail (last 8 rows of xp)
        ],
        compiler_params=pltpu.CompilerParams(
            dimension_semantics=("arbitrary",),     # state carried across steps
            vmem_limit_bytes=32 * 1024 * 1024,
        ),
    )(x_in, adj, w_in, w_conv, b_conv, w_dt_eff, b_dt, w_bc_rep,
      a_rep, d_vec, w_out)
    return out[:L]


# --------------------------------------------------------------------------- #
# Pure-JAX reference (mirrors the PyTorch forward) for verification
# --------------------------------------------------------------------------- #
def reference_forward(x, dis_dense, p, dt_rank, d_state):
    hp = jax.lax.Precision.HIGHEST
    L, D = x.shape
    K = p["conv_w"].shape[1]

    xr = jnp.dot(x, p["w_in"], precision=hp)
    xp, res = xr[:, :D], xr[:, D:]

    # depthwise causal conv1d (NCW, padding=K-1, keep first L outputs)
    xt = xp.T                                              # (D, L)
    xt_pad = jnp.pad(xt, ((0, 0), (K - 1, 0)))
    conv = jnp.zeros((D, L), jnp.float32)
    for j in range(K):
        conv = conv + p["conv_w"][:, j:j + 1] * xt_pad[:, j:j + L]
    conv = conv + p["conv_b"][:, None]
    xs = jax.nn.silu(conv.T)                               # (L, D)

    x_dbl = jnp.dot(xs, p["w_xp"], precision=hp)
    dlow = x_dbl[:, :dt_rank]
    B = x_dbl[:, dt_rank:dt_rank + d_state]
    C = x_dbl[:, dt_rank + d_state:]
    delta = jax.nn.softplus(jnp.dot(dlow, p["w_dt"], precision=hp) + p["b_dt"])

    A = -jnp.exp(p["A_log"])                               # (D, N)
    adj = build_adj(dis_dense, D)
    delta_p = jnp.dot(delta, adj, precision=hp)

    dA = jnp.exp(delta_p[:, :, None] * A[None, :, :])      # (L, D, N)
    dBu = delta_p[:, :, None] * B[:, None, :] * xs[:, :, None]

    def step(state, inp):
        dA_t, dBu_t, C_t = inp
        state = dA_t * state + dBu_t
        return state, jnp.sum(state * C_t[None, :], axis=-1)

    _, ys = jax.lax.scan(step, jnp.zeros((D, d_state), jnp.float32), (dA, dBu, C))
    y = ys + xs * p["D"]
    y = y * jax.nn.silu(res)
    out = jnp.dot(y, p["w_out"], precision=hp)
    return jnp.where(jnp.isfinite(out), out, 0.0)


# --------------------------------------------------------------------------- #
def init_params(key, d_model, d_conv, dt_rank, d_state):
    ks = jax.random.split(key, 7)
    s = 1.0 / math.sqrt(d_model)
    return {
        "w_in": jax.random.uniform(ks[0], (d_model, 2 * d_model),
                                   jnp.float32, -s, s),
        "conv_w": jax.random.uniform(ks[1], (d_model, d_conv),
                                     jnp.float32, -0.5, 0.5),
        "conv_b": jax.random.uniform(ks[2], (d_model,), jnp.float32, -0.5, 0.5),
        # slightly larger-than-default x_proj scale so B/C (and hence the
        # recurrent state carried across tiles) contribute visibly.
        "w_xp": jax.random.uniform(ks[3], (d_model, dt_rank + 2 * d_state),
                                   jnp.float32, -0.5, 0.5),
        "w_dt": jax.random.uniform(ks[4], (dt_rank, d_model),
                                   jnp.float32, -0.7, 0.7),
        "b_dt": jax.random.uniform(ks[5], (d_model,), jnp.float32, -0.7, 0.7),
        "A_log": jnp.log(jnp.broadcast_to(
            jnp.arange(1, d_state + 1, dtype=jnp.float32)[None, :],
            (d_model, d_state))),
        "D": jnp.ones((d_model,), jnp.float32),
        "w_out": jax.random.uniform(ks[6], (d_model, d_model),
                                    jnp.float32, -s, s),
    }


if __name__ == "__main__":
    d_model = 128                      # module default (lane-dense on TPU)
    seq_len = 384                      # 2 sequence tiles of 256 (2nd is padded)
    d_conv = 4
    d_state = 2
    dt_rank = math.ceil(d_model / 16)  # 'auto' -> 8

    key = jax.random.PRNGKey(0)
    kx, kd, kp = jax.random.split(key, 3)
    x = jax.random.normal(kx, (seq_len, d_model), jnp.float32)
    # dis_dense stands in for the (num_nodes x num_nodes) radius-graph distance
    # matrix; small non-negative entries keep the SSM well-conditioned so the
    # cross-tile state carry is genuinely exercised by the test.
    dis_dense = jax.random.uniform(kd, (seq_len, seq_len), jnp.float32,
                                   minval=0.0, maxval=0.08 / d_model)
    params = init_params(kp, d_model, d_conv, dt_rank, d_state)

    out = mamba_block_forward(x, dis_dense, params, dt_rank, d_state, tile_l=256)
    out = jax.block_until_ready(out)

    ref = reference_forward(x, dis_dense, params, dt_rank, d_state)
    ref = jax.block_until_ready(ref)

    assert out.shape == (seq_len, d_model)
    assert bool(jnp.all(jnp.isfinite(out)))
    max_err = float(jnp.max(jnp.abs(out - ref)))
    assert bool(jnp.allclose(out, ref, atol=2e-2, rtol=2e-2)), max_err

    print("KERNEL_OK")
</pallas_src>

<mosaic_0001>
module attributes {stable_mosaic.version = 11 : i64} {
  func.func @kernel(%arg0: i32, %arg1: memref<256x128xf32, #tpu.memory_space<vmem>>, %arg2: memref<128x128xbf16, #tpu.memory_space<vmem>>, %arg3: memref<128x256xbf16, #tpu.memory_space<vmem>>, %arg4: memref<4x128xf32, #tpu.memory_space<vmem>>, %arg5: memref<1x128xf32, #tpu.memory_space<vmem>>, %arg6: memref<128x128xbf16, #tpu.memory_space<vmem>>, %arg7: memref<1x128xf32, #tpu.memory_space<vmem>>, %arg8: memref<128x512xbf16, #tpu.memory_space<vmem>>, %arg9: memref<1x256xf32, #tpu.memory_space<vmem>>, %arg10: memref<1x128xf32, #tpu.memory_space<vmem>>, %arg11: memref<128x128xbf16, #tpu.memory_space<vmem>>, %arg12: memref<256x128xf32, #tpu.memory_space<vmem>>, %arg13: memref<1x256xf32, #tpu.memory_space<vmem>>, %arg14: memref<8x128xf32, #tpu.memory_space<vmem>>) attributes {dimension_semantics = [#tpu.dimension_semantics<arbitrary>], iteration_bounds = array<i64: 2>, scalar_prefetch = 0 : i64, scratch_operands = 2 : i64, tpu.core_type = #tpu.core_type<tc>, window_params = [{transform_indices = @transform_0, window_bounds = array<i64: 256, 128>}, {pipeline_mode = #tpu.pipeline_mode<synchronous>, transform_indices = @transform_1, window_bounds = array<i64: 128, 128>}, {pipeline_mode = #tpu.pipeline_mode<synchronous>, transform_indices = @transform_2, window_bounds = array<i64: 128, 256>}, {pipeline_mode = #tpu.pipeline_mode<synchronous>, transform_indices = @transform_3, window_bounds = array<i64: 4, 128>}, {pipeline_mode = #tpu.pipeline_mode<synchronous>, transform_indices = @transform_4, window_bounds = array<i64: 1, 128>}, {pipeline_mode = #tpu.pipeline_mode<synchronous>, transform_indices = @transform_5, window_bounds = array<i64: 128, 128>}, {pipeline_mode = #tpu.pipeline_mode<synchronous>, transform_indices = @transform_6, window_bounds = array<i64: 1, 128>}, {pipeline_mode = #tpu.pipeline_mode<synchronous>, transform_indices = @transform_7, window_bounds = array<i64: 128, 512>}, {pipeline_mode = #tpu.pipeline_mode<synchronous>, transform_indices = @transform_8, window_bounds = array<i64: 1, 256>}, {pipeline_mode = #tpu.pipeline_mode<synchronous>, transform_indices = @transform_9, window_bounds = array<i64: 1, 128>}, {pipeline_mode = #tpu.pipeline_mode<synchronous>, transform_indices = @transform_10, window_bounds = array<i64: 128, 128>}, {transform_indices = @transform_11, window_bounds = array<i64: 256, 128>}]} {
    %c0_i32 = arith.constant 0 : i32
    %0 = arith.cmpi eq, %arg0, %c0_i32 : i32
    %1 = arith.extui %0 : i1 to i32
    %c0_i32_0 = arith.constant 0 : i32
    %2 = arith.cmpi ne, %1, %c0_i32_0 : i32
    scf.if %2 {
      %cst_84 = arith.constant 0.000000e+00 : f32
      %197 = vector.broadcast %cst_84 : f32 to vector<1x256xf32>
      %c0_85 = arith.constant 0 : index
      %c0_86 = arith.constant 0 : index
      %198 = vector.load %arg13[%c0_85, %c0_86] : memref<1x256xf32, #tpu.memory_space<vmem>>, vector<1x256xf32>
      tpu.vector_store %arg13[%c0_85, %c0_86], %197 {strides = array<i32>} : memref<1x256xf32, #tpu.memory_space<vmem>>, vector<1x256xf32>,
      %cst_87 = arith.constant 0.000000e+00 : f32
      %199 = vector.broadcast %cst_87 : f32 to vector<8x128xf32>
      %c0_88 = arith.constant 0 : index
      %c0_89 = arith.constant 0 : index
      %200 = vector.load %arg14[%c0_88, %c0_89] : memref<8x128xf32, #tpu.memory_space<vmem>>, vector<8x128xf32>
      tpu.vector_store %arg14[%c0_88, %c0_89], %199 {strides = array<i32>} : memref<8x128xf32, #tpu.memory_space<vmem>>, vector<8x128xf32>,
    } else {
    }
    %c0 = arith.constant 0 : index
    %c0_1 = arith.constant 0 : index
    %3 = vector.load %arg1[%c0, %c0_1] : memref<256x128xf32, #tpu.memory_space<vmem>>, vector<256x128xf32>
    %4 = arith.truncf %3 : vector<256x128xf32> to vector<256x128xbf16>
    %c0_2 = arith.constant 0 : index
    %c0_3 = arith.constant 0 : index
    %5 = vector.load %arg3[%c0_2, %c0_3] : memref<128x256xbf16, #tpu.memory_space<vmem>>, vector<128x256xbf16>
    %cst = arith.constant dense<0.000000e+00> : vector<256x256xf32>
    %6 = tpu.matmul %4, %5, %cst {dimension_numbers = #tpu.dot_dimension_numbers<[1], [0], [0], [1], [0, 0, 1, 1], [], []>} : vector<256x128xbf16>, vector<128x256xbf16>, vector<256x256xf32> -> vector<256x256xf32>
    %7 = vector.extract_strided_slice %6 {offsets = [0, 0], sizes = [256, 128], strides = [1, 1]} : vector<256x256xf32> to vector<256x128xf32>
    %8 = vector.extract_strided_slice %6 {offsets = [0, 128], sizes = [256, 128], strides = [1, 1]} : vector<256x256xf32> to vector<256x128xf32>
    %c0_4 = arith.constant 0 : index
    %c0_5 = arith.constant 0 : index
    %9 = vector.load %arg14[%c0_4, %c0_5] : memref<8x128xf32, #tpu.memory_space<vmem>>, vector<8x128xf32>
    %10 = tpu.concatenate %9, %7 in 0 : vector<8x128xf32>, vector<256x128xf32> -> vector<264x128xf32>
    %11 = vector.extract_strided_slice %7 {offsets = [248, 0], sizes = [8, 128], strides = [1, 1]} : vector<256x128xf32> to vector<8x128xf32>
    %c0_6 = arith.constant 0 : index
    %c0_7 = arith.constant 0 : index
    %12 = vector.load %arg14[%c0_6, %c0_7] : memref<8x128xf32, #tpu.memory_space<vmem>>, vector<8x128xf32>
    tpu.vector_store %arg14[%c0_6, %c0_7], %11 {strides = array<i32>} : memref<8x128xf32, #tpu.memory_space<vmem>>, vector<8x128xf32>,
    %c0_8 = arith.constant 0 : index
    %c0_9 = arith.constant 0 : index
    %13 = vector.load %arg5[%c0_8, %c0_9] : memref<1x128xf32, #tpu.memory_space<vmem>>, vector<1x128xf32>
    %14 = vector.shape_cast %13 : vector<1x128xf32> to vector<1x128xf32>
    %15 = vector.broadcast %14 : vector<1x128xf32> to vector<256x128xf32>
    %c3_i32 = arith.constant 3 : i32
    %16 = tpu.dynamic_rotate %10 by %c3_i32 dim 0 : vector<264x128xf32>, i32 -> vector<264x128xf32>
    %17 = vector.extract_strided_slice %16 {offsets = [8, 0], sizes = [256, 128], strides = [1, 1]} : vector<264x128xf32> to vector<256x128xf32>
    %c0_10 = arith.constant 0 : index
    %c0_11 = arith.constant 0 : index
    %18 = vector.load %arg4[%c0_10, %c0_11] : memref<4x128xf32, #tpu.memory_space<vmem>>, vector<1x128xf32>
    %19 = vector.broadcast %18 : vector<1x128xf32> to vector<256x128xf32>
    %20 = arith.mulf %17, %19 : vector<256x128xf32>
    %21 = arith.addf %15, %20 : vector<256x128xf32>
    %c2_i32 = arith.constant 2 : i32
    %22 = tpu.dynamic_rotate %10 by %c2_i32 dim 0 : vector<264x128xf32>, i32 -> vector<264x128xf32>
    %23 = vector.extract_strided_slice %22 {offsets = [8, 0], sizes = [256, 128], strides = [1, 1]} : vector<264x128xf32> to vector<256x128xf32>
    %c1 = arith.constant 1 : index
    %c0_12 = arith.constant 0 : index
    %24 = vector.load %arg4[%c1, %c0_12] : memref<4x128xf32, #tpu.memory_space<vmem>>, vector<1x128xf32>
    %25 = vector.broadcast %24 : vector<1x128xf32> to vector<256x128xf32>
    %26 = arith.mulf %23, %25 : vector<256x128xf32>
    %27 = arith.addf %21, %26 : vector<256x128xf32>
    %c1_i32 = arith.constant 1 : i32
    %28 = tpu.dynamic_rotate %10 by %c1_i32 dim 0 : vector<264x128xf32>, i32 -> vector<264x128xf32>
    %29 = vector.extract_strided_slice %28 {offsets = [8, 0], sizes = [256, 128], strides = [1, 1]} : vector<264x128xf32> to vector<256x128xf32>
    %c2 = arith.constant 2 : index
    %c0_13 = arith.constant 0 : index
    %30 = vector.load %arg4[%c2, %c0_13] : memref<4x128xf32, #tpu.memory_space<vmem>>, vector<1x128xf32>
    %31 = vector.broadcast %30 : vector<1x128xf32> to vector<256x128xf32>
    %32 = arith.mulf %29, %31 : vector<256x128xf32>
    %33 = arith.addf %27, %32 : vector<256x128xf32>
    %c3 = arith.constant 3 : index
    %c0_14 = arith.constant 0 : index
    %34 = vector.load %arg4[%c3, %c0_14] : memref<4x128xf32, #tpu.memory_space<vmem>>, vector<1x128xf32>
    %35 = vector.broadcast %34 : vector<1x128xf32> to vector<256x128xf32>
    %36 = arith.mulf %7, %35 : vector<256x128xf32>
    %37 = arith.addf %33, %36 : vector<256x128xf32>
    %cst_15 = arith.constant 5.000000e-01 : f32
    %38 = vector.broadcast %cst_15 : f32 to vector<256x128xf32>
    %39 = arith.mulf %38, %37 : vector<256x128xf32>
    %40 = math.tanh %39 : vector<256x128xf32>
    %cst_16 = arith.constant 5.000000e-01 : f32
    %41 = vector.broadcast %cst_16 : f32 to vector<256x128xf32>
    %42 = arith.mulf %41, %40 : vector<256x128xf32>
    %cst_17 = arith.constant 5.000000e-01 : f32
    %43 = vector.broadcast %cst_17 : f32 to vector<256x128xf32>
    %44 = arith.addf %42, %43 : vector<256x128xf32>
    %45 = arith.mulf %37, %44 : vector<256x128xf32>
    %46 = arith.truncf %45 : vector<256x128xf32> to vector<256x128xbf16>
    %c0_18 = arith.constant 0 : index
    %c0_19 = arith.constant 0 : index
    %47 = vector.load %arg6[%c0_18, %c0_19] : memref<128x128xbf16, #tpu.memory_space<vmem>>, vector<128x128xbf16>
    %cst_20 = arith.constant dense<0.000000e+00> : vector<256x128xf32>
    %48 = tpu.matmul %46, %47, %cst_20 {dimension_numbers = #tpu.dot_dimension_numbers<[1], [0], [0], [1], [0, 0, 1, 1], [], []>} : vector<256x128xbf16>, vector<128x128xbf16>, vector<256x128xf32> -> vector<256x128xf32>
    %c0_21 = arith.constant 0 : index
    %c0_22 = arith.constant 0 : index
    %49 = vector.load %arg7[%c0_21, %c0_22] : memref<1x128xf32, #tpu.memory_space<vmem>>, vector<1x128xf32>
    %50 = vector.broadcast %49 : vector<1x128xf32> to vector<256x128xf32>
    %51 = arith.addf %48, %50 : vector<256x128xf32>
    %cst_23 = arith.constant 0.000000e+00 : f32
    %52 = vector.broadcast %cst_23 : f32 to vector<256x128xf32>
    %53 = arith.maximumf %51, %52 : vector<256x128xf32>
    %54 = math.absf %51 : vector<256x128xf32>
    %cst_24 = arith.constant 0.000000e+00 : f32
    %55 = vector.broadcast %cst_24 : f32 to vector<256x128xf32>
    %56 = arith.subf %55, %54 : vector<256x128xf32>
    %57 = math.exp %56 : vector<256x128xf32>
    %cst_25 = arith.constant 1.000000e+00 : f32
    %58 = vector.broadcast %cst_25 : f32 to vector<256x128xf32>
    %59 = arith.addf %58, %57 : vector<256x128xf32>
    %60 = math.log %59 : vector<256x128xf32>
    %61 = arith.addf %53, %60 : vector<256x128xf32>
    %62 = arith.truncf %61 : vector<256x128xf32> to vector<256x128xbf16>
    %c0_26 = arith.constant 0 : index
    %c0_27 = arith.constant 0 : index
    %63 = vector.load %arg2[%c0_26, %c0_27] : memref<128x128xbf16, #tpu.memory_space<vmem>>, vector<128x128xbf16>
    %cst_28 = arith.constant dense<0.000000e+00> : vector<256x128xf32>
    %64 = tpu.matmul %62, %63, %cst_28 {dimension_numbers = #tpu.dot_dimension_numbers<[1], [0], [0], [1], [0, 0, 1, 1], [], []>} : vector<256x128xbf16>, vector<128x128xbf16>, vector<256x128xf32> -> vector<256x128xf32>
    %c0_29 = arith.constant 0 : index
    %c0_30 = arith.constant 0 : index
    %65 = vector.load %arg8[%c0_29, %c0_30] : memref<128x512xbf16, #tpu.memory_space<vmem>>, vector<128x512xbf16>
    %cst_31 = arith.constant dense<0.000000e+00> : vector<256x512xf32>
    %66 = tpu.matmul %46, %65, %cst_31 {dimension_numbers = #tpu.dot_dimension_numbers<[1], [0], [0], [1], [0, 0, 1, 1], [], []>} : vector<256x128xbf16>, vector<128x512xbf16>, vector<256x512xf32> -> vector<256x512xf32>
    %67 = vector.extract_strided_slice %66 {offsets = [0, 0], sizes = [256, 256], strides = [1, 1]} : vector<256x512xf32> to vector<256x256xf32>
    %68 = vector.extract_strided_slice %66 {offsets = [0, 256], sizes = [256, 256], strides = [1, 1]} : vector<256x512xf32> to vector<256x256xf32>
    %69 = tpu.concatenate %64, %64 in 1 : vector<256x128xf32>, vector<256x128xf32> -> vector<256x256xf32>
    %c0_32 = arith.constant 0 : index
    %c0_33 = arith.constant 0 : index
    %70 = vector.load %arg9[%c0_32, %c0_33] : memref<1x256xf32, #tpu.memory_space<vmem>>, vector<1x256xf32>
    %71 = vector.broadcast %70 : vector<1x256xf32> to vector<256x256xf32>
    %72 = arith.mulf %69, %71 : vector<256x256xf32>
    %73 = math.exp %72 : vector<256x256xf32>
    %74 = arith.mulf %64, %45 : vector<256x128xf32>
    %75 = tpu.concatenate %74, %74 in 1 : vector<256x128xf32>, vector<256x128xf32> -> vector<256x256xf32>
    %76 = arith.mulf %75, %67 : vector<256x256xf32>
    %77 = tpu.iota {dimensions = array<i32: 0>} : vector<256x256xi32>
    %c1_i32_34 = arith.constant 1 : i32
    %78 = tpu.dynamic_rotate %73 by %c1_i32_34 dim 0 : vector<256x256xf32>, i32 -> vector<256x256xf32>
    %c1_i32_35 = arith.constant 1 : i32
    %79 = tpu.dynamic_rotate %76 by %c1_i32_35 dim 0 : vector<256x256xf32>, i32 -> vector<256x256xf32>
    %c1_i32_36 = arith.constant 1 : i32
    %80 = vector.broadcast %c1_i32_36 : i32 to vector<256x256xi32>
    %81 = arith.cmpi sge, %77, %80 : vector<256x256xi32>
    %cst_37 = arith.constant 1.000000e+00 : f32
    %82 = vector.broadcast %cst_37 : f32 to vector<256x256xf32>
    %83 = arith.select %81, %78, %82 : vector<256x256xi1>, vector<256x256xf32>
    %cst_38 = arith.constant 0.000000e+00 : f32
    %84 = vector.broadcast %cst_38 : f32 to vector<256x256xf32>
    %85 = arith.select %81, %79, %84 : vector<256x256xi1>, vector<256x256xf32>
    %86 = arith.mulf %73, %85 : vector<256x256xf32>
    %87 = arith.addf %86, %76 : vector<256x256xf32>
    %88 = arith.mulf %73, %83 : vector<256x256xf32>
    %c2_i32_39 = arith.constant 2 : i32
    %89 = tpu.dynamic_rotate %88 by %c2_i32_39 dim 0 : vector<256x256xf32>, i32 -> vector<256x256xf32>
    %c2_i32_40 = arith.constant 2 : i32
    %90 = tpu.dynamic_rotate %87 by %c2_i32_40 dim 0 : vector<256x256xf32>, i32 -> vector<256x256xf32>
    %c2_i32_41 = arith.constant 2 : i32
    %91 = vector.broadcast %c2_i32_41 : i32 to vector<256x256xi32>
    %92 = arith.cmpi sge, %77, %91 : vector<256x256xi32>
    %cst_42 = arith.constant 1.000000e+00 : f32
    %93 = vector.broadcast %cst_42 : f32 to vector<256x256xf32>
    %94 = arith.select %92, %89, %93 : vector<256x256xi1>, vector<256x256xf32>
    %cst_43 = arith.constant 0.000000e+00 : f32
    %95 = vector.broadcast %cst_43 : f32 to vector<256x256xf32>
    %96 = arith.select %92, %90, %95 : vector<256x256xi1>, vector<256x256xf32>
    %97 = arith.mulf %88, %96 : vector<256x256xf32>
    %98 = arith.addf %97, %87 : vector<256x256xf32>
    %99 = arith.mulf %88, %94 : vector<256x256xf32>
    %c4_i32 = arith.constant 4 : i32
    %100 = tpu.dynamic_rotate %99 by %c4_i32 dim 0 : vector<256x256xf32>, i32 -> vector<256x256xf32>
    %c4_i32_44 = arith.constant 4 : i32
    %101 = tpu.dynamic_rotate %98 by %c4_i32_44 dim 0 : vector<256x256xf32>, i32 -> vector<256x256xf32>
    %c4_i32_45 = arith.constant 4 : i32
    %102 = vector.broadcast %c4_i32_45 : i32 to vector<256x256xi32>
    %103 = arith.cmpi sge, %77, %102 : vector<256x256xi32>
    %cst_46 = arith.constant 1.000000e+00 : f32
    %104 = vector.broadcast %cst_46 : f32 to vector<256x256xf32>
    %105 = arith.select %103, %100, %104 : vector<256x256xi1>, vector<256x256xf32>
    %cst_47 = arith.constant 0.000000e+00 : f32
    %106 = vector.broadcast %cst_47 : f32 to vector<256x256xf32>
    %107 = arith.select %103, %101, %106 : vector<256x256xi1>, vector<256x256xf32>
    %108 = arith.mulf %99, %107 : vector<256x256xf32>
    %109 = arith.addf %108, %98 : vector<256x256xf32>
    %110 = arith.mulf %99, %105 : vector<256x256xf32>
    %c8_i32 = arith.constant 8 : i32
    %111 = tpu.dynamic_rotate %110 by %c8_i32 dim 0 : vector<256x256xf32>, i32 -> vector<256x256xf32>
    %c8_i32_48 = arith.constant 8 : i32
    %112 = tpu.dynamic_rotate %109 by %c8_i32_48 dim 0 : vector<256x256xf32>, i32 -> vector<256x256xf32>
    %c8_i32_49 = arith.constant 8 : i32
    %113 = vector.broadcast %c8_i32_49 : i32 to vector<256x256xi32>
    %114 = arith.cmpi sge, %77, %113 : vector<256x256xi32>
    %cst_50 = arith.constant 1.000000e+00 : f32
    %115 = vector.broadcast %cst_50 : f32 to vector<256x256xf32>
    %116 = arith.select %114, %111, %115 : vector<256x256xi1>, vector<256x256xf32>
    %cst_51 = arith.constant 0.000000e+00 : f32
    %117 = vector.broadcast %cst_51 : f32 to vector<256x256xf32>
    %118 = arith.select %114, %112, %117 : vector<256x256xi1>, vector<256x256xf32>
    %119 = arith.mulf %110, %118 : vector<256x256xf32>
    %120 = arith.addf %119, %109 : vector<256x256xf32>
    %121 = arith.mulf %110, %116 : vector<256x256xf32>
    %c16_i32 = arith.constant 16 : i32
    %122 = tpu.dynamic_rotate %121 by %c16_i32 dim 0 : vector<256x256xf32>, i32 -> vector<256x256xf32>
    %c16_i32_52 = arith.constant 16 : i32
    %123 = tpu.dynamic_rotate %120 by %c16_i32_52 dim 0 : vector<256x256xf32>, i32 -> vector<256x256xf32>
    %c16_i32_53 = arith.constant 16 : i32
    %124 = vector.broadcast %c16_i32_53 : i32 to vector<256x256xi32>
    %125 = arith.cmpi sge, %77, %124 : vector<256x256xi32>
    %cst_54 = arith.constant 1.000000e+00 : f32
    %126 = vector.broadcast %cst_54 : f32 to vector<256x256xf32>
    %127 = arith.select %125, %122, %126 : vector<256x256xi1>, vector<256x256xf32>
    %cst_55 = arith.constant 0.000000e+00 : f32
    %128 = vector.broadcast %cst_55 : f32 to vector<256x256xf32>
    %129 = arith.select %125, %123, %128 : vector<256x256xi1>, vector<256x256xf32>
    %130 = arith.mulf %121, %129 : vector<256x256xf32>
    %131 = arith.addf %130, %120 : vector<256x256xf32>
    %132 = arith.mulf %121, %127 : vector<256x256xf32>
    %c32_i32 = arith.constant 32 : i32
    %133 = tpu.dynamic_rotate %132 by %c32_i32 dim 0 : vector<256x256xf32>, i32 -> vector<256x256xf32>
    %c32_i32_56 = arith.constant 32 : i32
    %134 = tpu.dynamic_rotate %131 by %c32_i32_56 dim 0 : vector<256x256xf32>, i32 -> vector<256x256xf32>
    %c32_i32_57 = arith.constant 32 : i32
    %135 = vector.broadcast %c32_i32_57 : i32 to vector<256x256xi32>
    %136 = arith.cmpi sge, %77, %135 : vector<256x256xi32>
    %cst_58 = arith.constant 1.000000e+00 : f32
    %137 = vector.broadcast %cst_58 : f32 to vector<256x256xf32>
    %138 = arith.select %136, %133, %137 : vector<256x256xi1>, vector<256x256xf32>
    %cst_59 = arith.constant 0.000000e+00 : f32
    %139 = vector.broadcast %cst_59 : f32 to vector<256x256xf32>
    %140 = arith.select %136, %134, %139 : vector<256x256xi1>, vector<256x256xf32>
    %141 = arith.mulf %132, %140 : vector<256x256xf32>
    %142 = arith.addf %141, %131 : vector<256x256xf32>
    %143 = arith.mulf %132, %138 : vector<256x256xf32>
    %c64_i32 = arith.constant 64 : i32
    %144 = tpu.dynamic_rotate %143 by %c64_i32 dim 0 : vector<256x256xf32>, i32 -> vector<256x256xf32>
    %c64_i32_60 = arith.constant 64 : i32
    %145 = tpu.dynamic_rotate %142 by %c64_i32_60 dim 0 : vector<256x256xf32>, i32 -> vector<256x256xf32>
    %c64_i32_61 = arith.constant 64 : i32
    %146 = vector.broadcast %c64_i32_61 : i32 to vector<256x256xi32>
    %147 = arith.cmpi sge, %77, %146 : vector<256x256xi32>
    %cst_62 = arith.constant 1.000000e+00 : f32
    %148 = vector.broadcast %cst_62 : f32 to vector<256x256xf32>
    %149 = arith.select %147, %144, %148 : vector<256x256xi1>, vector<256x256xf32>
    %cst_63 = arith.constant 0.000000e+00 : f32
    %150 = vector.broadcast %cst_63 : f32 to vector<256x256xf32>
    %151 = arith.select %147, %145, %150 : vector<256x256xi1>, vector<256x256xf32>
    %152 = arith.mulf %143, %151 : vector<256x256xf32>
    %153 = arith.addf %152, %142 : vector<256x256xf32>
    %154 = arith.mulf %143, %149 : vector<256x256xf32>
    %c128_i32 = arith.constant 128 : i32
    %155 = tpu.dynamic_rotate %154 by %c128_i32 dim 0 : vector<256x256xf32>, i32 -> vector<256x256xf32>
    %c128_i32_64 = arith.constant 128 : i32
    %156 = tpu.dynamic_rotate %153 by %c128_i32_64 dim 0 : vector<256x256xf32>, i32 -> vector<256x256xf32>
    %c128_i32_65 = arith.constant 128 : i32
    %157 = vector.broadcast %c128_i32_65 : i32 to vector<256x256xi32>
    %158 = arith.cmpi sge, %77, %157 : vector<256x256xi32>
    %cst_66 = arith.constant 1.000000e+00 : f32
    %159 = vector.broadcast %cst_66 : f32 to vector<256x256xf32>
    %160 = arith.select %158, %155, %159 : vector<256x256xi1>, vector<256x256xf32>
    %cst_67 = arith.constant 0.000000e+00 : f32
    %161 = vector.broadcast %cst_67 : f32 to vector<256x256xf32>
    %162 = arith.select %158, %156, %161 : vector<256x256xi1>, vector<256x256xf32>
    %163 = arith.mulf %154, %162 : vector<256x256xf32>
    %164 = arith.addf %163, %153 : vector<256x256xf32>
    %165 = arith.mulf %154, %160 : vector<256x256xf32>
    %c0_68 = arith.constant 0 : index
    %c0_69 = arith.constant 0 : index
    %166 = vector.load %arg13[%c0_68, %c0_69] : memref<1x256xf32, #tpu.memory_space<vmem>>, vector<1x256xf32>
    %167 = vector.broadcast %166 : vector<1x256xf32> to vector<256x256xf32>
    %168 = arith.mulf %165, %167 : vector<256x256xf32>
    %169 = arith.addf %164, %168 : vector<256x256xf32>
    %170 = vector.extract_strided_slice %169 {offsets = [255, 0], sizes = [1, 256], strides = [1, 1]} : vector<256x256xf32> to vector<1x256xf32>
    %c0_70 = arith.constant 0 : index
    %c0_71 = arith.constant 0 : index
    %171 = vector.load %arg13[%c0_70, %c0_71] : memref<1x256xf32, #tpu.memory_space<vmem>>, vector<1x256xf32>
    tpu.vector_store %arg13[%c0_70, %c0_71], %170 {strides = array<i32>} : memref<1x256xf32, #tpu.memory_space<vmem>>, vector<1x256xf32>,
    %172 = arith.mulf %169, %68 : vector<256x256xf32>
    %173 = vector.extract_strided_slice %172 {offsets = [0, 0], sizes = [256, 128], strides = [1, 1]} : vector<256x256xf32> to vector<256x128xf32>
    %174 = vector.extract_strided_slice %172 {offsets = [0, 128], sizes = [256, 128], strides = [1, 1]} : vector<256x256xf32> to vector<256x128xf32>
    %175 = arith.addf %173, %174 : vector<256x128xf32>
    %c0_72 = arith.constant 0 : index
    %c0_73 = arith.constant 0 : index
    %176 = vector.load %arg10[%c0_72, %c0_73] : memref<1x128xf32, #tpu.memory_space<vmem>>, vector<1x128xf32>
    %177 = vector.broadcast %176 : vector<1x128xf32> to vector<256x128xf32>
    %178 = arith.mulf %45, %177 : vector<256x128xf32>
    %179 = arith.addf %175, %178 : vector<256x128xf32>
    %cst_74 = arith.constant 5.000000e-01 : f32
    %180 = vector.broadcast %cst_74 : f32 to vector<256x128xf32>
    %181 = arith.mulf %180, %8 : vector<256x128xf32>
    %182 = math.tanh %181 : vector<256x128xf32>
    %cst_75 = arith.constant 5.000000e-01 : f32
    %183 = vector.broadcast %cst_75 : f32 to vector<256x128xf32>
    %184 = arith.mulf %183, %182 : vector<256x128xf32>
    %cst_76 = arith.constant 5.000000e-01 : f32
    %185 = vector.broadcast %cst_76 : f32 to vector<256x128xf32>
    %186 = arith.addf %184, %185 : vector<256x128xf32>
    %187 = arith.mulf %8, %186 : vector<256x128xf32>
    %188 = arith.mulf %179, %187 : vector<256x128xf32>
    %189 = arith.truncf %188 : vector<256x128xf32> to vector<256x128xbf16>
    %c0_77 = arith.constant 0 : index
    %c0_78 = arith.constant 0 : index
    %190 = vector.load %arg11[%c0_77, %c0_78] : memref<128x128xbf16, #tpu.memory_space<vmem>>, vector<128x128xbf16>
    %cst_79 = arith.constant dense<0.000000e+00> : vector<256x128xf32>
    %191 = tpu.matmul %189, %190, %cst_79 {dimension_numbers = #tpu.dot_dimension_numbers<[1], [0], [0], [1], [0, 0, 1, 1], [], []>} : vector<256x128xbf16>, vector<128x128xbf16>, vector<256x128xf32> -> vector<256x128xf32>
    %192 = tpu.weird %191 : vector<256x128xf32> -> vector<256x128xi1>
    %cst_80 = arith.constant dense<true> : vector<256x128xi1>
    %193 = arith.xori %192, %cst_80 : vector<256x128xi1>
    %cst_81 = arith.constant 0.000000e+00 : f32
    %194 = vector.broadcast %cst_81 : f32 to vector<256x128xf32>
    %195 = arith.select %193, %191, %194 : vector<256x128xi1>, vector<256x128xf32>
    %c0_82 = arith.constant 0 : index
    %c0_83 = arith.constant 0 : index
    %196 = vector.load %arg12[%c0_82, %c0_83] : memref<256x128xf32, #tpu.memory_space<vmem>>, vector<256x128xf32>
    tpu.vector_store %arg12[%c0_82, %c0_83], %195 {strides = array<i32>} : memref<256x128xf32, #tpu.memory_space<vmem>>, vector<256x128xf32>,
    return
  }
  func.func @transform_0(%arg0: i32) -> (i32, i32) {
    %c0_i32 = arith.constant 0 : i32
    %c0_i32_0 = arith.constant 0 : i32
    return %arg0, %c0_i32 : i32, i32
  }
  func.func @transform_1(%arg0: i32) -> (i32, i32) {
    %c0_i32 = arith.constant 0 : i32
    %c0_i32_0 = arith.constant 0 : i32
    %c0_i32_1 = arith.constant 0 : i32
    return %c0_i32, %c0_i32_0 : i32, i32
  }
  func.func @transform_2(%arg0: i32) -> (i32, i32) {
    %c0_i32 = arith.constant 0 : i32
    %c0_i32_0 = arith.constant 0 : i32
    %c0_i32_1 = arith.constant 0 : i32
    return %c0_i32, %c0_i32_0 : i32, i32
  }
  func.func @transform_3(%arg0: i32) -> (i32, i32) {
    %c0_i32 = arith.constant 0 : i32
    %c0_i32_0 = arith.constant 0 : i32
    %c0_i32_1 = arith.constant 0 : i32
    return %c0_i32, %c0_i32_0 : i32, i32
  }
  func.func @transform_4(%arg0: i32) -> (i32, i32) {
    %c0_i32 = arith.constant 0 : i32
    %c0_i32_0 = arith.constant 0 : i32
    %c0_i32_1 = arith.constant 0 : i32
    return %c0_i32, %c0_i32_0 : i32, i32
  }
  func.func @transform_5(%arg0: i32) -> (i32, i32) {
    %c0_i32 = arith.constant 0 : i32
    %c0_i32_0 = arith.constant 0 : i32
    %c0_i32_1 = arith.constant 0 : i32
    return %c0_i32, %c0_i32_0 : i32, i32
  }
  func.func @transform_6(%arg0: i32) -> (i32, i32) {
    %c0_i32 = arith.constant 0 : i32
    %c0_i32_0 = arith.constant 0 : i32
    %c0_i32_1 = arith.constant 0 : i32
    return %c0_i32, %c0_i32_0 : i32, i32
  }
  func.func @transform_7(%arg0: i32) -> (i32, i32) {
    %c0_i32 = arith.constant 0 : i32
    %c0_i32_0 = arith.constant 0 : i32
    %c0_i32_1 = arith.constant 0 : i32
    return %c0_i32, %c0_i32_0 : i32, i32
  }
  func.func @transform_8(%arg0: i32) -> (i32, i32) {
    %c0_i32 = arith.constant 0 : i32
    %c0_i32_0 = arith.constant 0 : i32
    %c0_i32_1 = arith.constant 0 : i32
    return %c0_i32, %c0_i32_0 : i32, i32
  }
  func.func @transform_9(%arg0: i32) -> (i32, i32) {
    %c0_i32 = arith.constant 0 : i32
    %c0_i32_0 = arith.constant 0 : i32
    %c0_i32_1 = arith.constant 0 : i32
    return %c0_i32, %c0_i32_0 : i32, i32
  }
  func.func @transform_10(%arg0: i32) -> (i32, i32) {
    %c0_i32 = arith.constant 0 : i32
    %c0_i32_0 = arith.constant 0 : i32
    %c0_i32_1 = arith.constant 0 : i32
    return %c0_i32, %c0_i32_0 : i32, i32
  }
  func.func @transform_11(%arg0: i32) -> (i32, i32) {
    %c0_i32 = arith.constant 0 : i32
    %c0_i32_0 = arith.constant 0 : i32
    return %arg0, %c0_i32 : i32, i32
  }
}

</mosaic_0001>

<llo_original>
// kernel: tpu_custom_call.1
$region0: #{tpu_custom_call.1}
  #allocation0 [shape = 'u32[]', space=smem, size = 0x4, offset = 0x4, fixed_abs, tag = 'smem constant byte address 0x4 - core index']
  #allocation1 [shape = 'u32[144,128]{1,0:T(1,128)}', space=vmem, size = 0x12000, scoped, tag = 'internal scratch']
  #allocation2 [shape = 'f32[1,256]{1,0:T(1,128)}', space=vmem, size = 0x400, scoped, tag = 'scratch operand']
  #allocation3 [shape = 'f32[8,128]{1,0:T(8,128)}', space=vmem, size = 0x1000, scoped, tag = 'scratch operand']
  %s0 = inlined_call_operand.hbm [shape: f32[512,128], index: 0, kind: input, shape index: {}]
  %s1 = inlined_call_operand.hbm [shape: bf16[128,128], index: 1, kind: input, shape index: {}]
  %s2 = inlined_call_operand.hbm [shape: bf16[128,256], index: 2, kind: input, shape index: {}]
  %s3 = inlined_call_operand.vmem [shape: f32[4,128], index: 3, kind: input, shape index: {}]
  %s4 = inlined_call_operand.vmem [shape: f32[1,128], index: 4, kind: input, shape index: {}]
  %s5 = inlined_call_operand.hbm [shape: bf16[128,128], index: 5, kind: input, shape index: {}]
  %s6 = inlined_call_operand.vmem [shape: f32[1,128], index: 6, kind: input, shape index: {}]
  %s7 = inlined_call_operand.hbm [shape: bf16[128,512], index: 7, kind: input, shape index: {}]
  %s8 = inlined_call_operand.vmem [shape: f32[1,256], index: 8, kind: input, shape index: {}]
  %s9 = inlined_call_operand.vmem [shape: f32[1,128], index: 9, kind: input, shape index: {}]
  %s10 = inlined_call_operand.hbm [shape: bf16[128,128], index: 10, kind: input, shape index: {}]
  %s11 = inlined_call_operand.hbm [shape: f32[512,128], index: 11, kind: output, shape index: {}]
  %s12 = sld [smem:[#allocation0]]
  $region105: #{tpu_custom_call.1} parent=0
    _
  %s14 = ssub.s32 1, %s12
  %s15 = scalar_select 0, %s14, %s12
  $region1: #{tpu_custom_call.1} parent=0
    #allocation4 [shape = 'u8[262144]{0}', space=vmem, size = 0x40000, scoped, tag = 'input window, operand 0']
    #allocation5 [shape = 's32[2]{0}', space=sflag, size = 0x8, scoped, tag = 'scoped memory for tpu_custom_call.1']
    #allocation6 [shape = 's32[2]{0}', space=sflag, size = 0x8, scoped, tag = 'scoped memory for tpu_custom_call.1']
    #allocation7 [shape = 'u8[32768]{0}', space=vmem, size = 0x8000, scoped, tag = 'input window, operand 1, single buffered']
    #allocation8 [shape = 's32[1]{0}', space=sflag, size = 0x4, scoped, tag = 'scoped memory for tpu_custom_call.1']
    #allocation9 [shape = 'u8[65536]{0}', space=vmem, size = 0x10000, scoped, tag = 'input window, operand 2, single buffered']
    #allocation10 [shape = 'u8[32768]{0}', space=vmem, size = 0x8000, scoped, tag = 'input window, operand 5, single buffered']
    #allocation11 [shape = 's32[1]{0}', space=sflag, size = 0x4, scoped, tag = 'scoped memory for tpu_custom_call.1']
    #allocation12 [shape = 'u8[131072]{0}', space=vmem, size = 0x20000, scoped, tag = 'input window, operand 7, single buffered']
    #allocation13 [shape = 'u8[32768]{0}', space=vmem, size = 0x8000, scoped, tag = 'input window, operand 10, single buffered']
    #allocation14 [shape = 's32[1]{0}', space=sflag, size = 0x4, scoped, tag = 'scoped memory for tpu_custom_call.1']
    #allocation15 [shape = 'u8[262144]{0}', space=vmem, size = 0x40000, scoped, tag = 'output window, operand 0']
    %16 = vsyncpa [#allocation5], 0
    %s17 = scalar_lea.sflag [#allocation5], 1
    %18 = vsyncpa %s17, 0
    %19 = vsyncpa [#allocation8], 0
    %20 = vsyncpa [#allocation11], 0
    %21 = vsyncpa [#allocation14], 0
    %22 = vsyncpa [#allocation6], 0
    %s23 = scalar_lea.sflag [#allocation6], 1
    %24 = vsyncpa %s23, 0
    loop: start=0, step=1, limit=4
    $region2: #{tpu_custom_call.1} parent=1 // loop_pre_header
      _
    $region3: #{tpu_custom_call.1} parent=1 // loop_header
      %s26 = sphi 0, %s30
      %p27 = scmp.ge.s32.totalorder %s26, 4
      %s36 = sphi 0, %s38
      %s39 = sphi 0, %s36
      %s40 = sphi 0, %s39
      %s56 = sphi 0, %s40
      %s60 = sphi 0, %s60
      %s62 = sphi 0, %s60
      %s63 = sphi 0, %s62
      %s77 = sphi 0, %s63
      %s81 = sphi 0, %s81
      %s83 = sphi 0, %s81
      %s84 = sphi 0, %s83
      %s98 = sphi 0, %s84
      %s102 = sphi 0, %s102
      %s104 = sphi 0, %s102
      %s105 = sphi 0, %s104
      %s119 = sphi 0, %s105
      %s123 = sphi 0, %s123
      %s125 = sphi 0, %s123
      %s126 = sphi 0, %s125
      %s140 = sphi 0, %s126
      %s144 = sphi 0, %s144
      %s146 = sphi 0, %s144
      %s147 = sphi 0, %s146
      %s161 = sphi 0, %s147
      %s165 = sphi 0, %s165
      %s167 = sphi 0, %s165
      %s168 = sphi 0, %s167
      %s182 = sphi 0, %s168
      %s186 = sphi 0, %s186
      %s188 = sphi 0, %s186
      %s189 = sphi 0, %s188
      %s203 = sphi 0, %s189
      %s207 = sphi 0, %s207
      %s209 = sphi 0, %s207
      %s210 = sphi 0, %s209
      %s224 = sphi 0, %s210
      %s228 = sphi 0, %s228
      %s230 = sphi 0, %s228
      %s231 = sphi 0, %s230
      %s245 = sphi 0, %s231
      %s249 = sphi 0, %s249
      %s251 = sphi 0, %s249
      %s252 = sphi 0, %s251
      %s266 = sphi 0, %s252
      %s272 = sphi 0, %s274
      %s275 = sphi 0, %s272
      %s276 = sphi 0, %s275
      %s292 = sphi 0, %s276
    $region4: #{tpu_custom_call.1} parent=1 // loop_header_branch
      %29 = sbr.rel (%p27) target = $region8
    $region5: #{tpu_custom_call.1} parent=1 // loop_body
      %s31 = ssub.s32 %s26, 1
      %s32 = ssub.s32 %s26, 2
      %s33 = sadd.s32 %s26, 1
      %s34 = ssub.s32 %s26, %s33
      %p35 = scmp.eq.s32.totalorder %s34, 0
      %s37 = sadd.s32 %s36, 1
      %s38 = scalar_select %p35, %s36, %s37
      %p41 = pneg %p35
      %p42 = scmp.eq.s32.totalorder %s26, 1
      %p43 = por %p41, %p42
      %p44 = scmp.ne.s32.totalorder %s36, %s39
      %p45 = scmp.eq.s32.totalorder %s26, 0
      %p46 = por %p44, %p45
      %p47 = scmp.ne.s32.totalorder %s36, %s39
      %p48 = scmp.eq.s32.totalorder %s31, 1
      %p49 = por %p47, %p48
      %p50 = scmp.ne.s32.totalorder %s39, %s40
      %p51 = scmp.eq.s32.totalorder %s31, 0
      %p52 = por %p50, %p51
      %p53 = scmp.ne.s32.totalorder %s39, %s40
      %p54 = scmp.eq.s32.totalorder %s32, 1
      %p55 = por %p53, %p54
      %p57 = scmp.ne.s32.totalorder %s40, %s56
      %p58 = scmp.eq.s32.totalorder %s32, 0
      %p59 = por %p57, %p58
      %s61 = sadd.s32 %s60, 1
      %p64 = scmp.eq.s32.totalorder %s26, 1
      %p65 = scmp.ne.s32.totalorder %s60, %s62
      %p66 = scmp.eq.s32.totalorder %s26, 0
      %p67 = por %p65, %p66
      %p68 = scmp.ne.s32.totalorder %s60, %s62
      %p69 = scmp.eq.s32.totalorder %s31, 1
      %p70 = por %p68, %p69
      %p71 = scmp.ne.s32.totalorder %s62, %s63
      %p72 = scmp.eq.s32.totalorder %s31, 0
      %p73 = por %p71, %p72
      %p74 = scmp.ne.s32.totalorder %s62, %s63
      %p75 = scmp.eq.s32.totalorder %s32, 1
      %p76 = por %p74, %p75
      %p78 = scmp.ne.s32.totalorder %s63, %s77
      %p79 = scmp.eq.s32.totalorder %s32, 0
      %p80 = por %p78, %p79
      %s82 = sadd.s32 %s81, 1
      %p85 = scmp.eq.s32.totalorder %s26, 1
      %p86 = scmp.ne.s32.totalorder %s81, %s83
      %p87 = scmp.eq.s32.totalorder %s26, 0
      %p88 = por %p86, %p87
      %p89 = scmp.ne.s32.totalorder %s81, %s83
      %p90 = scmp.eq.s32.totalorder %s31, 1
      %p91 = por %p89, %p90
      %p92 = scmp.ne.s32.totalorder %s83, %s84
      %p93 = scmp.eq.s32.totalorder %s31, 0
      %p94 = por %p92, %p93
      %p95 = scmp.ne.s32.totalorder %s83, %s84
      %p96 = scmp.eq.s32.totalorder %s32, 1
      %p97 = por %p95, %p96
      %p99 = scmp.ne.s32.totalorder %s84, %s98
      %p100 = scmp.eq.s32.totalorder %s32, 0
      %p101 = por %p99, %p100
      %s103 = sadd.s32 %s102, 1
      %p106 = scmp.eq.s32.totalorder %s26, 1
      %p107 = scmp.ne.s32.totalorder %s102, %s104
      %p108 = scmp.eq.s32.totalorder %s26, 0
      %p109 = por %p107, %p108
      %p110 = scmp.ne.s32.totalorder %s102, %s104
      %p111 = scmp.eq.s32.totalorder %s31, 1
      %p112 = por %p110, %p111
      %p113 = scmp.ne.s32.totalorder %s104, %s105
      %p114 = scmp.eq.s32.totalorder %s31, 0
      %p115 = por %p113, %p114
      %p116 = scmp.ne.s32.totalorder %s104, %s105
      %p117 = scmp.eq.s32.totalorder %s32, 1
      %p118 = por %p116, %p117
      %p120 = scmp.ne.s32.totalorder %s105, %s119
      %p121 = scmp.eq.s32.totalorder %s32, 0
      %p122 = por %p120, %p121
      %s124 = sadd.s32 %s123, 1
      %p127 = scmp.eq.s32.totalorder %s26, 1
      %p128 = scmp.ne.s32.totalorder %s123, %s125
      %p129 = scmp.eq.s32.totalorder %s26, 0
      %p130 = por %p128, %p129
      %p131 = scmp.ne.s32.totalorder %s123, %s125
      %p132 = scmp.eq.s32.totalorder %s31, 1
      %p133 = por %p131, %p132
      %p134 = scmp.ne.s32.totalorder %s125, %s126
      %p135 = scmp.eq.s32.totalorder %s31, 0
      %p136 = por %p134, %p135
      %p137 = scmp.ne.s32.totalorder %s125, %s126
      %p138 = scmp.eq.s32.totalorder %s32, 1
      %p139 = por %p137, %p138
      %p141 = scmp.ne.s32.totalorder %s126, %s140
      %p142 = scmp.eq.s32.totalorder %s32, 0
      %p143 = por %p141, %p142
      %s145 = sadd.s32 %s144, 1
      %p148 = scmp.eq.s32.totalorder %s26, 1
      %p149 = scmp.ne.s32.totalorder %s144, %s146
      %p150 = scmp.eq.s32.totalorder %s26, 0
      %p151 = por %p149, %p150
      %p152 = scmp.ne.s32.totalorder %s144, %s146
      %p153 = scmp.eq.s32.totalorder %s31, 1
      %p154 = por %p152, %p153
      %p155 = scmp.ne.s32.totalorder %s146, %s147
      %p156 = scmp.eq.s32.totalorder %s31, 0
      %p157 = por %p155, %p156
      %p158 = scmp.ne.s32.totalorder %s146, %s147
      %p159 = scmp.eq.s32.totalorder %s32, 1
      %p160 = por %p158, %p159
      %p162 = scmp.ne.s32.totalorder %s147, %s161
      %p163 = scmp.eq.s32.totalorder %s32, 0
      %p164 = por %p162, %p163
      %s166 = sadd.s32 %s165, 1
      %p169 = scmp.eq.s32.totalorder %s26, 1
      %p170 = scmp.ne.s32.totalorder %s165, %s167
      %p171 = scmp.eq.s32.totalorder %s26, 0
      %p172 = por %p170, %p171
      %p173 = scmp.ne.s32.totalorder %s165, %s167
      %p174 = scmp.eq.s32.totalorder %s31, 1
      %p175 = por %p173, %p174
      %p176 = scmp.ne.s32.totalorder %s167, %s168
      %p177 = scmp.eq.s32.totalorder %s31, 0
      %p178 = por %p176, %p177
      %p179 = scmp.ne.s32.totalorder %s167, %s168
      %p180 = scmp.eq.s32.totalorder %s32, 1
      %p181 = por %p179, %p180
      %p183 = scmp.ne.s32.totalorder %s168, %s182
      %p184 = scmp.eq.s32.totalorder %s32, 0
      %p185 = por %p183, %p184
      %s187 = sadd.s32 %s186, 1
      %p190 = scmp.eq.s32.totalorder %s26, 1
      %p191 = scmp.ne.s32.totalorder %s186, %s188
      %p192 = scmp.eq.s32.totalorder %s26, 0
      %p193 = por %p191, %p192
      %p194 = scmp.ne.s32.totalorder %s186, %s188
      %p195 = scmp.eq.s32.totalorder %s31, 1
      %p196 = por %p194, %p195
      %p197 = scmp.ne.s32.totalorder %s188, %s189
      %p198 = scmp.eq.s32.totalorder %s31, 0
      %p199 = por %p197, %p198
      %p200 = scmp.ne.s32.totalorder %s188, %s189
      %p201 = scmp.eq.s32.totalorder %s32, 1
      %p202 = por %p200, %p201
      %p204 = scmp.ne.s32.totalorder %s189, %s203
      %p205 = scmp.eq.s32.totalorder %s32, 0
      %p206 = por %p204, %p205
      %s208 = sadd.s32 %s207, 1
      %p211 = scmp.eq.s32.totalorder %s26, 1
      %p212 = scmp.ne.s32.totalorder %s207, %s209
      %p213 = scmp.eq.s32.totalorder %s26, 0
      %p214 = por %p212, %p213
      %p215 = scmp.ne.s32.totalorder %s207, %s209
      %p216 = scmp.eq.s32.totalorder %s31, 1
      %p217 = por %p215, %p216
      %p218 = scmp.ne.s32.totalorder %s209, %s210
      %p219 = scmp.eq.s32.totalorder %s31, 0
      %p220 = por %p218, %p219
      %p221 = scmp.ne.s32.totalorder %s209, %s210
      %p222 = scmp.eq.s32.totalorder %s32, 1
      %p223 = por %p221, %p222
      %p225 = scmp.ne.s32.totalorder %s210, %s224
      %p226 = scmp.eq.s32.totalorder %s32, 0
      %p227 = por %p225, %p226
      %s229 = sadd.s32 %s228, 1
      %p232 = scmp.eq.s32.totalorder %s26, 1
      %p233 = scmp.ne.s32.totalorder %s228, %s230
      %p234 = scmp.eq.s32.totalorder %s26, 0
      %p235 = por %p233, %p234
      %p236 = scmp.ne.s32.totalorder %s228, %s230
      %p237 = scmp.eq.s32.totalorder %s31, 1
      %p238 = por %p236, %p237
      %p239 = scmp.ne.s32.totalorder %s230, %s231
      %p240 = scmp.eq.s32.totalorder %s31, 0
      %p241 = por %p239, %p240
      %p242 = scmp.ne.s32.totalorder %s230, %s231
      %p243 = scmp.eq.s32.totalorder %s32, 1
      %p244 = por %p242, %p243
      %p246 = scmp.ne.s32.totalorder %s231, %s245
      %p247 = scmp.eq.s32.totalorder %s32, 0
      %p248 = por %p246, %p247
      %s250 = sadd.s32 %s249, 1
      %p253 = scmp.eq.s32.totalorder %s26, 1
      %p254 = scmp.ne.s32.totalorder %s249, %s251
      %p255 = scmp.eq.s32.totalorder %s26, 0
      %p256 = por %p254, %p255
      %p257 = scmp.ne.s32.totalorder %s249, %s251
      %p258 = scmp.eq.s32.totalorder %s31, 1
      %p259 = por %p257, %p258
      %p260 = scmp.ne.s32.totalorder %s251, %s252
      %p261 = scmp.eq.s32.totalorder %s31, 0
      %p262 = por %p260, %p261
      %p263 = scmp.ne.s32.totalorder %s251, %s252
      %p264 = scmp.eq.s32.totalorder %s32, 1
      %p265 = por %p263, %p264
      %p267 = scmp.ne.s32.totalorder %s252, %s266
      %p268 = scmp.eq.s32.totalorder %s32, 0
      %p269 = por %p267, %p268
      %s270 = ssub.s32 %s26, %s33
      %p271 = scmp.eq.s32.totalorder %s270, 0
      %s273 = sadd.s32 %s272, 1
      %s274 = scalar_select %p271, %s272, %s273
      %p277 = pneg %p271
      %p278 = scmp.eq.s32.totalorder %s26, 1
      %p279 = por %p277, %p278
      %p280 = scmp.ne.s32.totalorder %s272, %s275
      %p281 = scmp.eq.s32.totalorder %s26, 0
      %p282 = por %p280, %p281
      %p283 = scmp.ne.s32.totalorder %s272, %s275
      %p284 = scmp.eq.s32.totalorder %s31, 1
      %p285 = por %p283, %p284
      %p286 = scmp.ne.s32.totalorder %s275, %s276
      %p287 = scmp.eq.s32.totalorder %s31, 0
      %p288 = por %p286, %p287
      %p289 = scmp.ne.s32.totalorder %s275, %s276
      %p290 = scmp.eq.s32.totalorder %s32, 1
      %p291 = por %p289, %p290
      %p293 = scmp.ne.s32.totalorder %s276, %s292
      %p294 = scmp.eq.s32.totalorder %s32, 0
      %p295 = por %p293, %p294
      %p296 = scmp.le.s32.totalorder 1, %s26
      %p297 = scmp.lt.s32.totalorder %s26, 3
      %p298 = pnand %p296, %p297
      %p299 = pneg %p298
      // Predicated region
      $region9: #{tpu_custom_call.1} parent=5 // pred_check
        _
      $region10: #{tpu_custom_call.1} parent=5 // pred_check_branch
        %301 = sbr.rel (%p298) target = $region12
      $region11: #{tpu_custom_call.1} parent=5 // pred_region
        %s302 = ssub.s32 %s26, 1
        // Predicated region
        $region13: #{tpu_custom_call.1} parent=11 // pred_check
          %p303 = pneg %p73
        $region14: #{tpu_custom_call.1} parent=11 // pred_check_branch
          %305 = sbr.rel (%p303) target = $region16
        $region15: #{tpu_custom_call.1} parent=11 // pred_region
          %s307 = ssub.s32 1024, 1024
          %308 = vsyncadd [#allocation8], %s307
          %s309 = sshll.u32 [#allocation7], 4
          %s310 = int_to_ptr.vmem [resolvable:$true] %s309
          %315 = dma.hbm_to_vmem [thread:$0]  %s1, 1024, %s310, [#allocation8], 64, 64, 4
        $region16: #{tpu_custom_call.1} parent=11 // pred_fallthru
          _
        // Predicated region
        $region17: #{tpu_custom_call.1} parent=11 // pred_check
          %p316 = pneg %p94
        $region18: #{tpu_custom_call.1} parent=11 // pred_check_branch
          %318 = sbr.rel (%p316) target = $region20
        $region19: #{tpu_custom_call.1} parent=11 // pred_region
          %s320 = ssub.s32 2048, 2048
          %321 = vsyncadd [#allocation8], %s320
          %s322 = sshll.u32 [#allocation9], 4
          %s323 = int_to_ptr.vmem [resolvable:$true] %s322
          %328 = dma.hbm_to_vmem [thread:$0]  %s2, 2048, %s323, [#allocation8], 128, 128, 8
        $region20: #{tpu_custom_call.1} parent=11 // pred_fallthru
          _
        // Predicated region
        $region21: #{tpu_custom_call.1} parent=11 // pred_check
          %p329 = pneg %p115
        $region22: #{tpu_custom_call.1} parent=11 // pred_check_branch
          %331 = sbr.rel (%p329) target = $region24
        $region23: #{tpu_custom_call.1} parent=11 // pred_region
          _
        $region24: #{tpu_custom_call.1} parent=11 // pred_fallthru
          _
        // Predicated region
        $region25: #{tpu_custom_call.1} parent=11 // pred_check
          %p332 = pneg %p136
        $region26: #{tpu_custom_call.1} parent=11 // pred_check_branch
          %334 = sbr.rel (%p332) target = $region28
        $region27: #{tpu_custom_call.1} parent=11 // pred_region
          _
        $region28: #{tpu_custom_call.1} parent=11 // pred_fallthru
          _
        // Predicated region
        $region29: #{tpu_custom_call.1} parent=11 // pred_check
          %p335 = pneg %p157
        $region30: #{tpu_custom_call.1} parent=11 // pred_check_branch
          %337 = sbr.rel (%p335) target = $region32
        $region31: #{tpu_custom_call.1} parent=11 // pred_region
          %s339 = ssub.s32 1024, 1024
          %340 = vsyncadd [#allocation11], %s339
          %s341 = sshll.u32 [#allocation10], 4
          %s342 = int_to_ptr.vmem [resolvable:$true] %s341
          %347 = dma.hbm_to_vmem [thread:$0]  %s5, 1024, %s342, [#allocation11], 64, 64, 4
        $region32: #{tpu_custom_call.1} parent=11 // pred_fallthru
          _
        // Predicated region
        $region33: #{tpu_custom_call.1} parent=11 // pred_check
          %p348 = pneg %p178
        $region34: #{tpu_custom_call.1} parent=11 // pred_check_branch
          %350 = sbr.rel (%p348) target = $region36
        $region35: #{tpu_custom_call.1} parent=11 // pred_region
          _
        $region36: #{tpu_custom_call.1} parent=11 // pred_fallthru
          _
        // Predicated region
        $region37: #{tpu_custom_call.1} parent=11 // pred_check
          %p351 = pneg %p199
        $region38: #{tpu_custom_call.1} parent=11 // pred_check_branch
          %353 = sbr.rel (%p351) target = $region40
        $region39: #{tpu_custom_call.1} parent=11 // pred_region
          %s355 = ssub.s32 4096, 4096
          %356 = vsyncadd [#allocation11], %s355
          %s357 = sshll.u32 [#allocation12], 4
          %s358 = int_to_ptr.vmem [resolvable:$true] %s357
          %363 = dma.hbm_to_vmem [thread:$0]  %s7, 4096, %s358, [#allocation11], 256, 256, 16
        $region40: #{tpu_custom_call.1} parent=11 // pred_fallthru
          _
        // Predicated region
        $region41: #{tpu_custom_call.1} parent=11 // pred_check
          %p364 = pneg %p220
        $region42: #{tpu_custom_call.1} parent=11 // pred_check_branch
          %366 = sbr.rel (%p364) target = $region44
        $region43: #{tpu_custom_call.1} parent=11 // pred_region
          _
        $region44: #{tpu_custom_call.1} parent=11 // pred_fallthru
          _
        // Predicated region
        $region45: #{tpu_custom_call.1} parent=11 // pred_check
          %p367 = pneg %p241
        $region46: #{tpu_custom_call.1} parent=11 // pred_check_branch
          %369 = sbr.rel (%p367) target = $region48
        $region47: #{tpu_custom_call.1} parent=11 // pred_region
          _
        $region48: #{tpu_custom_call.1} parent=11 // pred_fallthru
          _
        // Predicated region
        $region49: #{tpu_custom_call.1} parent=11 // pred_check
          %p370 = pneg %p262
        $region50: #{tpu_custom_call.1} parent=11 // pred_check_branch
          %372 = sbr.rel (%p370) target = $region52
        $region51: #{tpu_custom_call.1} parent=11 // pred_region
          %s374 = ssub.s32 1024, 1024
          %375 = vsyncadd [#allocation14], %s374
          %s376 = sshll.u32 [#allocation13], 4
          %s377 = int_to_ptr.vmem [resolvable:$true] %s376
          %382 = dma.hbm_to_vmem [thread:$0]  %s10, 1024, %s377, [#allocation14], 64, 64, 4
        $region52: #{tpu_custom_call.1} parent=11 // pred_fallthru
          _
      $region12: #{tpu_custom_call.1} parent=5 // pred_fallthru
        _
      %p383 = scmp.lt.s32.totalorder %s26, 2
      // Predicated region
      $region53: #{tpu_custom_call.1} parent=5 // pred_check
        %p384 = pneg %p383
      $region54: #{tpu_custom_call.1} parent=5 // pred_check_branch
        %386 = sbr.rel (%p384) target = $region56
      $region55: #{tpu_custom_call.1} parent=5 // pred_region
        // Predicated region
        $region57: #{tpu_custom_call.1} parent=55 // pred_check
          %p387 = pneg %p46
        $region58: #{tpu_custom_call.1} parent=55 // pred_check_branch
          %389 = sbr.rel (%p387) target = $region60
        $region59: #{tpu_custom_call.1} parent=55 // pred_region
          %s390 = sand.u32 %s36, 1
          %s391 = scalar_lea.sflag [#allocation5], %s390
          %s392 = sand.u32 %s36, 1
          %s393 = smul.addr %s392, 256
          %s394 = scalar_lea.vmem [#allocation4], %s393
          %s395 = smul.u32 32, %s26
          %s397 = ssub.s32 4096, 4096
          %398 = vsyncadd %s391, %s397
          %s399 = smul.addr %s395, 128
          %s400 = scalar_lea.hbm %s0, %s399
          %s401 = sshll.u32 %s394, 4
          %s402 = int_to_ptr.vmem [resolvable:$true] %s401
          %407 = dma.hbm_to_vmem [thread:$0]  %s400, 4096, %s402, %s391, 128, 128, 8
        $region60: #{tpu_custom_call.1} parent=55 // pred_fallthru
          _
      $region56: #{tpu_custom_call.1} parent=5 // pred_fallthru
        _
      %p408 = scmp.le.s32.totalorder 1, %s26
      %p409 = scmp.lt.s32.totalorder %s26, 3
      %p410 = pnand %p408, %p409
      %p411 = pneg %p410
      // Predicated region
      $region61: #{tpu_custom_call.1} parent=5 // pred_check
        _
      $region62: #{tpu_custom_call.1} parent=5 // pred_check_branch
        %413 = sbr.rel (%p410) target = $region64
      $region63: #{tpu_custom_call.1} parent=5 // pred_region
        %s414 = ssub.s32 %s26, 1
        %s415 = sand.u32 %s39, 1
        %s416 = scalar_lea.sflag [#allocation5], %s415
        %s417 = sand.u32 %s39, 1
        %s418 = smul.addr %s417, 256
        %s419 = scalar_lea.vmem [#allocation4], %s418
        // Predicated region
        $region65: #{tpu_custom_call.1} parent=63 // pred_check
          %p420 = pneg %p52
        $region66: #{tpu_custom_call.1} parent=63 // pred_check_branch
          %422 = sbr.rel (%p420) target = $region68
        $region67: #{tpu_custom_call.1} parent=63 // pred_region
          %423 = dma.done %s416, 4096
        $region68: #{tpu_custom_call.1} parent=63 // pred_fallthru
          _
        // Predicated region
        $region69: #{tpu_custom_call.1} parent=63 // pred_check
          %p424 = pneg %p73
        $region70: #{tpu_custom_call.1} parent=63 // pred_check_branch
          %426 = sbr.rel (%p424) target = $region72
        $region71: #{tpu_custom_call.1} parent=63 // pred_region
          %427 = dma.done [#allocation8], 1024
        $region72: #{tpu_custom_call.1} parent=63 // pred_fallthru
          _
        // Predicated region
        $region73: #{tpu_custom_call.1} parent=63 // pred_check
          %p428 = pneg %p94
        $region74: #{tpu_custom_call.1} parent=63 // pred_check_branch
          %430 = sbr.rel (%p428) target = $region76
        $region75: #{tpu_custom_call.1} parent=63 // pred_region
          %431 = dma.done [#allocation8], 2048
        $region76: #{tpu_custom_call.1} parent=63 // pred_fallthru
          _
        // Predicated region
        $region77: #{tpu_custom_call.1} parent=63 // pred_check
          %p432 = pneg %p157
        $region78: #{tpu_custom_call.1} parent=63 // pred_check_branch
          %434 = sbr.rel (%p432) target = $region80
        $region79: #{tpu_custom_call.1} parent=63 // pred_region
          %435 = dma.done [#allocation11], 1024
        $region80: #{tpu_custom_call.1} parent=63 // pred_fallthru
          _
        // Predicated region
        $region81: #{tpu_custom_call.1} parent=63 // pred_check
          %p436 = pneg %p199
        $region82: #{tpu_custom_call.1} parent=63 // pred_check_branch
          %438 = sbr.rel (%p436) target = $region84
        $region83: #{tpu_custom_call.1} parent=63 // pred_region
          %439 = dma.done [#allocation11], 4096
        $region84: #{tpu_custom_call.1} parent=63 // pred_fallthru
          _
        // Predicated region
        $region85: #{tpu_custom_call.1} parent=63 // pred_check
          %p440 = pneg %p262
        $region86: #{tpu_custom_call.1} parent=63 // pred_check_branch
          %442 = sbr.rel (%p440) target = $region88
        $region87: #{tpu_custom_call.1} parent=63 // pred_region
          %443 = dma.done [#allocation14], 1024
        $region88: #{tpu_custom_call.1} parent=63 // pred_fallthru
          _
        %s444 = sand.u32 %s39, 1
        %s445 = scalar_lea.sflag [#allocation5], %s444
        %s446 = sand.u32 %s39, 1
        %s447 = smul.addr %s446, 256
        %s448 = scalar_lea.vmem [#allocation4], %s447
        %p449 = pneg %p52
        %p450 = pneg %p49
        %p451 = pneg %p73
        %p452 = pneg %p70
        %p453 = pneg %p94
        %p454 = pneg %p91
        %p455 = pneg %p115
        %p456 = pneg %p112
        %p457 = pneg %p136
        %p458 = pneg %p133
        %p459 = pneg %p157
        %p460 = pneg %p154
        %p461 = pneg %p178
        %p462 = pneg %p175
        %p463 = pneg %p199
        %p464 = pneg %p196
        %p465 = pneg %p220
        %p466 = pneg %p217
        %p467 = pneg %p241
        %p468 = pneg %p238
        %p469 = pneg %p262
        %p470 = pneg %p259
        %p471 = pneg %p288
        %p472 = pneg %p285
        %s473 = sand.u32 %s275, 1
        %s474 = scalar_lea.sflag [#allocation6], %s473
        %s475 = sand.u32 %s275, 1
        %s476 = smul.addr %s475, 256
        %s477 = scalar_lea.vmem [#allocation15], %s476
        %s478 = smul.u32 32, %s31
        %s479 = smul.u32 32, %s31
        %p481 = scmp.eq.s32.totalorder %s31, 0
        // Predicated region
        $region89: #{tpu_custom_call.1} parent=63 // pred_check
          %p482 = pneg %p481
        $region90: #{tpu_custom_call.1} parent=63 // pred_check_branch
          %484 = sbr.rel (%p482) target = $region92
        $region91: #{tpu_custom_call.1} parent=63 // pred_region
          %v485 = vlaneseq
          %vm486 = vcmp.ge.s32.totalorder %v485, 0
          %vm487 = vcmp.lt.s32.totalorder %v485, 256
          %vm488 = vmand %vm486, %vm487
          %489 = vst.msk [vmem:[#allocation2] sm:$0x3] %vm488, 0.0
          %490 = vst [vmem:[#allocation3] sm:$0xff] 0.0
        $region92: #{tpu_custom_call.1} parent=63 // pred_fallthru
          _
        %v491 = vld [vmem:[%s419] sm:$0xff]
        %v492 = vld [vmem:[%s419 + $0x8] sm:$0xff]
        %v493 = vld [vmem:[%s419 + $0x10] sm:$0xff]
        %v494 = vld [vmem:[%s419 + $0x18] sm:$0xff]
        %v495 = vld [vmem:[%s419 + $0x20] sm:$0xff]
        %v496 = vld [vmem:[%s419 + $0x28] sm:$0xff]
        %v497 = vld [vmem:[%s419 + $0x30] sm:$0xff]
        %v498 = vld [vmem:[%s419 + $0x38] sm:$0xff]
        %v499 = vld [vmem:[%s419 + $0x40] sm:$0xff]
        %v500 = vld [vmem:[%s419 + $0x48] sm:$0xff]
        %v501 = vld [vmem:[%s419 + $0x50] sm:$0xff]
        %v502 = vld [vmem:[%s419 + $0x58] sm:$0xff]
        %v503 = vld [vmem:[%s419 + $0x60] sm:$0xff]
        %v504 = vld [vmem:[%s419 + $0x68] sm:$0xff]
        %v505 = vld [vmem:[%s419 + $0x70] sm:$0xff]
        %v506 = vld [vmem:[%s419 + $0x78] sm:$0xff]
        %v507 = vld [vmem:[%s419 + $0x80] sm:$0xff]
        %v508 = vld [vmem:[%s419 + $0x88] sm:$0xff]
        %v509 = vld [vmem:[%s419 + $0x90] sm:$0xff]
        %v510 = vld [vmem:[%s419 + $0x98] sm:$0xff]
        %v511 = vld [vmem:[%s419 + $0xa0] sm:$0xff]
        %v512 = vld [vmem:[%s419 + $0xa8] sm:$0xff]
        %v513 = vld [vmem:[%s419 + $0xb0] sm:$0xff]
        %v514 = vld [vmem:[%s419 + $0xb8] sm:$0xff]
        %v515 = vld [vmem:[%s419 + $0xc0] sm:$0xff]
        %v516 = vld [vmem:[%s419 + $0xc8] sm:$0xff]
        %v517 = vld [vmem:[%s419 + $0xd0] sm:$0xff]
        %v518 = vld [vmem:[%s419 + $0xd8] sm:$0xff]
        %v519 = vld [vmem:[%s419 + $0xe0] sm:$0xff]
        %v520 = vld [vmem:[%s419 + $0xe8] sm:$0xff]
        %v521 = vld [vmem:[%s419 + $0xf0] sm:$0xff]
        %v522 = vld [vmem:[%s419 + $0xf8] sm:$0xff]
        %v523 = vpack.c.bf16 %v492, %v491
        %v524 = vpack.c.bf16 %v494, %v493
        %v525 = vpack.c.bf16 %v496, %v495
        %v526 = vpack.c.bf16 %v498, %v497
        %v527 = vpack.c.bf16 %v500, %v499
        %v528 = vpack.c.bf16 %v502, %v501
        %v529 = vpack.c.bf16 %v504, %v503
        %v530 = vpack.c.bf16 %v506, %v505
        %v531 = vpack.c.bf16 %v508, %v507
        %v532 = vpack.c.bf16 %v510, %v509
        %v533 = vpack.c.bf16 %v512, %v511
        %v534 = vpack.c.bf16 %v514, %v513
        %v535 = vpack.c.bf16 %v516, %v515
        %v536 = vpack.c.bf16 %v518, %v517
        %v537 = vpack.c.bf16 %v520, %v519
        %v538 = vpack.c.bf16 %v522, %v521
        %v539 = vld [vmem:[#allocation9] sm:$0xff]
        %v540 = vld [vmem:[#allocation9 + $0x8] sm:$0xff]
        %v541 = vld [vmem:[#allocation9 + $0x10] sm:$0xff]
        %v542 = vld [vmem:[#allocation9 + $0x18] sm:$0xff]
        %v543 = vld [vmem:[#allocation9 + $0x20] sm:$0xff]
        %v544 = vld [vmem:[#allocation9 + $0x28] sm:$0xff]
        %v545 = vld [vmem:[#allocation9 + $0x30] sm:$0xff]
        %v546 = vld [vmem:[#allocation9 + $0x38] sm:$0xff]
        %v547 = vld [vmem:[#allocation9 + $0x40] sm:$0xff]
        %v548 = vld [vmem:[#allocation9 + $0x48] sm:$0xff]
        %v549 = vld [vmem:[#allocation9 + $0x50] sm:$0xff]
        %v550 = vld [vmem:[#allocation9 + $0x58] sm:$0xff]
        %v551 = vld [vmem:[#allocation9 + $0x60] sm:$0xff]
        %v552 = vld [vmem:[#allocation9 + $0x68] sm:$0xff]
        %v553 = vld [vmem:[#allocation9 + $0x70] sm:$0xff]
        %v554 = vld [vmem:[#allocation9 + $0x78] sm:$0xff]
        %v571 = vunpack.c.l.b16 %v539
        %v572 = vunpack.c.h.b16 %v539
        %v573 = vunpack.c.l.b16 %v540
        %v574 = vunpack.c.h.b16 %v540
        %v575 = vunpack.c.l.b16 %v541
        %v576 = vunpack.c.h.b16 %v541
        %v577 = vunpack.c.l.b16 %v542
        %v578 = vunpack.c.h.b16 %v542
        %v579 = vunpack.c.l.b16 %v543
        %v580 = vunpack.c.h.b16 %v543
        %v581 = vunpack.c.l.b16 %v544
        %v582 = vunpack.c.h.b16 %v544
        %v583 = vunpack.c.l.b16 %v545
        %v584 = vunpack.c.h.b16 %v545
        %v585 = vunpack.c.l.b16 %v546
        %v586 = vunpack.c.h.b16 %v546
        %v587 = vunpack.c.l.b16 %v547
        %v588 = vunpack.c.h.b16 %v547
        %v589 = vunpack.c.l.b16 %v548
        %v590 = vunpack.c.h.b16 %v548
        %v591 = vunpack.c.l.b16 %v549
        %v592 = vunpack.c.h.b16 %v549
        %v593 = vunpack.c.l.b16 %v550
        %v594 = vunpack.c.h.b16 %v550
        %v595 = vunpack.c.l.b16 %v551
        %v596 = vunpack.c.h.b16 %v551
        %v597 = vunpack.c.l.b16 %v552
        %v598 = vunpack.c.h.b16 %v552
        %v599 = vunpack.c.l.b16 %v553
        %v600 = vunpack.c.h.b16 %v553
        %v601 = vunpack.c.l.b16 %v554
        %v602 = vunpack.c.h.b16 %v554
        %v603 = vpack.c.b16 %v573, %v571
        %v604 = vpack.c.b16 %v574, %v572
        %v605 = vpack.c.b16 %v577, %v575
        %v606 = vpack.c.b16 %v578, %v576
        %v607 = vpack.c.b16 %v581, %v579
        %v608 = vpack.c.b16 %v582, %v580
        %v609 = vpack.c.b16 %v585, %v583
        %v610 = vpack.c.b16 %v586, %v584
        %v611 = vpack.c.b16 %v589, %v587
        %v612 = vpack.c.b16 %v590, %v588
        %v613 = vpack.c.b16 %v593, %v591
        %v614 = vpack.c.b16 %v594, %v592
        %v615 = vpack.c.b16 %v597, %v595
        %v616 = vpack.c.b16 %v598, %v596
        %v617 = vpack.c.b16 %v601, %v599
        %v618 = vpack.c.b16 %v602, %v600
        %635 = vmatprep.subr.bf16.mxu0 %v604
        %636 = vmatpush1.bf16.msra.mxu0 %v603
        %637 = vmatprep.subr.bf16.mxu0 %v606
        %638 = vmatpush1.bf16.msra.mxu0 %v605
        %639 = vmatprep.subr.bf16.mxu0 %v608
        %640 = vmatpush1.bf16.msra.mxu0 %v607
        %641 = vmatprep.subr.bf16.mxu0 %v610
        %642 = vmatpush1.bf16.msra.mxu0 %v609
        %643 = vmatprep.subr.bf16.mxu0 %v612
        %644 = vmatpush1.bf16.msra.mxu0 %v611
        %645 = vmatprep.subr.bf16.mxu0 %v614
        %646 = vmatpush1.bf16.msra.mxu0 %v613
        %647 = vmatprep.subr.bf16.mxu0 %v616
        %648 = vmatpush1.bf16.msra.mxu0 %v615
        %649 = vmatprep.subr.bf16.mxu0 %v618
        %650 = vmatpush1.bf16.msra.mxu0 %v617
        %651 = vmatprep.subr.bf16.mxu0 0
        %652 = vmatpush1.bf16.msra.mxu0 0
        %653 = vmatprep.subr.bf16.mxu0 0
        %654 = vmatpush1.bf16.msra.mxu0 0
        %655 = vmatprep.subr.bf16.mxu0 0
        %656 = vmatpush1.bf16.msra.mxu0 0
        %657 = vmatprep.subr.bf16.mxu0 0
        %658 = vmatpush1.bf16.msra.mxu0 0
        %659 = vmatprep.subr.bf16.mxu0 0
        %660 = vmatpush1.bf16.msra.mxu0 0
        %661 = vmatprep.subr.bf16.mxu0 0
        %662 = vmatpush1.bf16.msra.mxu0 0
        %663 = vmatprep.subr.bf16.mxu0 0
        %664 = vmatpush1.bf16.msra.mxu0 0
        %665 = vmatprep.subr.bf16.mxu0 0
        %666 = vmatpush1.bf16.msra.mxu0 0
        %667 = vmatprep.mubr.bf16.mxu0 0
        %668 = vmatmul.mubr.bf16.gmra.mrb[0].mxu0 %v523
        %v669 = vpop.f32.mrb[0].mxu0
        %v670 = vadd.f32 0.0, %v669
        %v671 = vpop.f32.mrb[0].mxu0
        %v672 = vadd.f32 0.0, %v671
        %v673 = vpop.f32.mrb[0].mxu0
        %v674 = vadd.f32 0.0, %v673
        %v675 = vpop.f32.mrb[0].mxu0
        %v676 = vadd.f32 0.0, %v675
        %677 = vmatprep.mubr.bf16.mxu0 0
        %678 = vmatmul.mubr.bf16.gmra.mrb[0].mxu0 %v524
        %v679 = vpop.f32.mrb[0].mxu0
        %v680 = vadd.f32 0.0, %v679
        %v681 = vpop.f32.mrb[0].mxu0
        %v682 = vadd.f32 0.0, %v681
        %v683 = vpop.f32.mrb[0].mxu0
        %v684 = vadd.f32 0.0, %v683
        %v685 = vpop.f32.mrb[0].mxu0
        %v686 = vadd.f32 0.0, %v685
        %687 = vmatprep.mubr.bf16.mxu0 0
        %688 = vmatmul.mubr.bf16.gmra.mrb[0].mxu0 %v525
        %v689 = vpop.f32.mrb[0].mxu0
        %v690 = vadd.f32 0.0, %v689
        %v691 = vpop.f32.mrb[0].mxu0
        %v692 = vadd.f32 0.0, %v691
        %v693 = vpop.f32.mrb[0].mxu0
        %v694 = vadd.f32 0.0, %v693
        %v695 = vpop.f32.mrb[0].mxu0
        %v696 = vadd.f32 0.0, %v695
        %697 = vmatprep.mubr.bf16.mxu0 0
        %698 = vmatmul.mubr.bf16.gmra.mrb[0].mxu0 %v526
        %v699 = vpop.f32.mrb[0].mxu0
        %v700 = vadd.f32 0.0, %v699
        %v701 = vpop.f32.mrb[0].mxu0
        %v702 = vadd.f32 0.0, %v701
        %v703 = vpop.f32.mrb[0].mxu0
        %v704 = vadd.f32 0.0, %v703
        %v705 = vpop.f32.mrb[0].mxu0
        %v706 = vadd.f32 0.0, %v705
        %707 = vmatprep.mubr.bf16.mxu0 0
        %708 = vmatmul.mubr.bf16.gmra.mrb[0].mxu0 %v527
        %v709 = vpop.f32.mrb[0].mxu0
        %v710 = vadd.f32 0.0, %v709
        %v711 = vpop.f32.mrb[0].mxu0
        %v712 = vadd.f32 0.0, %v711
        %v713 = vpop.f32.mrb[0].mxu0
        %v714 = vadd.f32 0.0, %v713
        %v715 = vpop.f32.mrb[0].mxu0
        %v716 = vadd.f32 0.0, %v715
        %717 = vmatprep.mubr.bf16.mxu0 0
        %718 = vmatmul.mubr.bf16.gmra.mrb[0].mxu0 %v528
        %v719 = vpop.f32.mrb[0].mxu0
        %v720 = vadd.f32 0.0, %v719
        %v721 = vpop.f32.mrb[0].mxu0
        %v722 = vadd.f32 0.0, %v721
        %v723 = vpop.f32.mrb[0].mxu0
        %v724 = vadd.f32 0.0, %v723
        %v725 = vpop.f32.mrb[0].mxu0
        %v726 = vadd.f32 0.0, %v725
        %727 = vmatprep.mubr.bf16.mxu0 0
        %728 = vmatmul.mubr.bf16.gmra.mrb[0].mxu0 %v529
        %v729 = vpop.f32.mrb[0].mxu0
        %v730 = vadd.f32 0.0, %v729
        %v731 = vpop.f32.mrb[0].mxu0
        %v732 = vadd.f32 0.0, %v731
        %v733 = vpop.f32.mrb[0].mxu0
        %v734 = vadd.f32 0.0, %v733
        %v735 = vpop.f32.mrb[0].mxu0
        %v736 = vadd.f32 0.0, %v735
        %737 = vmatprep.mubr.bf16.mxu0 0
        %738 = vmatmul.mubr.bf16.gmra.mrb[0].mxu0 %v530
        %v739 = vpop.f32.mrb[0].mxu0
        %v740 = vadd.f32 0.0, %v739
        %v741 = vpop.f32.mrb[0].mxu0
        %v742 = vadd.f32 0.0, %v741
        %v743 = vpop.f32.mrb[0].mxu0
        %v744 = vadd.f32 0.0, %v743
        %v745 = vpop.f32.mrb[0].mxu0
        %v746 = vadd.f32 0.0, %v745
        %747 = vmatprep.mubr.bf16.mxu0 0
        %748 = vmatmul.mubr.bf16.gmra.mrb[0].mxu0 %v531
        %v749 = vpop.f32.mrb[0].mxu0
        %v750 = vadd.f32 0.0, %v749
        %v751 = vpop.f32.mrb[0].mxu0
        %v752 = vadd.f32 0.0, %v751
        %v753 = vpop.f32.mrb[0].mxu0
        %v754 = vadd.f32 0.0, %v753
        %v755 = vpop.f32.mrb[0].mxu0
        %v756 = vadd.f32 0.0, %v755
        %757 = vmatprep.mubr.bf16.mxu0 0
        %758 = vmatmul.mubr.bf16.gmra.mrb[0].mxu0 %v532
        %v759 = vpop.f32.mrb[0].mxu0
        %v760 = vadd.f32 0.0, %v759
        %v761 = vpop.f32.mrb[0].mxu0
        %v762 = vadd.f32 0.0, %v761
        %v763 = vpop.f32.mrb[0].mxu0
        %v764 = vadd.f32 0.0, %v763
        %v765 = vpop.f32.mrb[0].mxu0
        %v766 = vadd.f32 0.0, %v765
        %767 = vmatprep.mubr.bf16.mxu0 0
        %768 = vmatmul.mubr.bf16.gmra.mrb[0].mxu0 %v533
        %v769 = vpop.f32.mrb[0].mxu0
        %v770 = vadd.f32 0.0, %v769
        %v771 = vpop.f32.mrb[0].mxu0
        %v772 = vadd.f32 0.0, %v771
        %v773 = vpop.f32.mrb[0].mxu0
        %v774 = vadd.f32 0.0, %v773
        %v775 = vpop.f32.mrb[0].mxu0
        %v776 = vadd.f32 0.0, %v775
        %777 = vmatprep.mubr.bf16.mxu0 0
        %778 = vmatmul.mubr.bf16.gmra.mrb[0].mxu0 %v534
        %v779 = vpop.f32.mrb[0].mxu0
        %v780 = vadd.f32 0.0, %v779
        %v781 = vpop.f32.mrb[0].mxu0
        %v782 = vadd.f32 0.0, %v781
        %v783 = vpop.f32.mrb[0].mxu0
        %v784 = vadd.f32 0.0, %v783
        %v785 = vpop.f32.mrb[0].mxu0
        %v786 = vadd.f32 0.0, %v785
        %787 = vmatprep.mubr.bf16.mxu0 0
        %788 = vmatmul.mubr.bf16.gmra.mrb[0].mxu0 %v535
        %v789 = vpop.f32.mrb[0].mxu0
        %v790 = vadd.f32 0.0, %v789
        %v791 = vpop.f32.mrb[0].mxu0
        %v792 = vadd.f32 0.0, %v791
        %v793 = vpop.f32.mrb[0].mxu0
        %v794 = vadd.f32 0.0, %v793
        %v795 = vpop.f32.mrb[0].mxu0
        %v796 = vadd.f32 0.0, %v795
        %797 = vmatprep.mubr.bf16.mxu0 0
        %798 = vmatmul.mubr.bf16.gmra.mrb[0].mxu0 %v536
        %v799 = vpop.f32.mrb[0].mxu0
        %v800 = vadd.f32 0.0, %v799
        %v801 = vpop.f32.mrb[0].mxu0
        %v802 = vadd.f32 0.0, %v801
        %v803 = vpop.f32.mrb[0].mxu0
        %v804 = vadd.f32 0.0, %v803
        %v805 = vpop.f32.mrb[0].mxu0
        %v806 = vadd.f32 0.0, %v805
        %807 = vmatprep.mubr.bf16.mxu0 0
        %808 = vmatmul.mubr.bf16.gmra.mrb[0].mxu0 %v537
        %v809 = vpop.f32.mrb[0].mxu0
        %v810 = vadd.f32 0.0, %v809
        %v811 = vpop.f32.mrb[0].mxu0
        %v812 = vadd.f32 0.0, %v811
        %v813 = vpop.f32.mrb[0].mxu0
        %v814 = vadd.f32 0.0, %v813
        %v815 = vpop.f32.mrb[0].mxu0
        %v816 = vadd.f32 0.0, %v815
        %817 = vmatprep.mubr.bf16.mxu0 0
        %818 = vmatmul.mubr.bf16.gmra.mrb[0].mxu0 %v538
        %v819 = vpop.f32.mrb[0].mxu0
        %v820 = vadd.f32 0.0, %v819
        %v821 = vpop.f32.mrb[0].mxu0
        %v822 = vadd.f32 0.0, %v821
        %v823 = vpop.f32.mrb[0].mxu0
        %v824 = vadd.f32 0.0, %v823
        %v825 = vpop.f32.mrb[0].mxu0
        %v826 = vadd.f32 0.0, %v825
        %827 = vdwg.mxu0
        %v828 = vld [vmem:[#allocation3] sm:$0xff]
        %829 = vst [vmem:[#allocation3] sm:$0xff] %v824
        %v830 = vld [vmem:[%s4] sm:$0x1]
        %v832 = vlaneseq
        %v833 = vshrl.u32 %v832, 7
        %v834 = vsub.s32 0, %v833
        %v835 = vrot.slane %v830, %v834
        %v837 = vrot.slane %v828, 5
        %v838 = vrot.slane %v670, 5
        %v839 = vrot.slane %v674, 5
        %v840 = vrot.slane %v680, 5
        %v841 = vrot.slane %v684, 5
        %v842 = vrot.slane %v690, 5
        %v843 = vrot.slane %v694, 5
        %v844 = vrot.slane %v700, 5
        %v845 = vrot.slane %v704, 5
        %v846 = vrot.slane %v710, 5
        %v847 = vrot.slane %v714, 5
        %v848 = vrot.slane %v720, 5
        %v849 = vrot.slane %v724, 5
        %v850 = vrot.slane %v730, 5
        %v851 = vrot.slane %v734, 5
        %v852 = vrot.slane %v740, 5
        %v853 = vrot.slane %v744, 5
        %v854 = vrot.slane %v750, 5
        %v855 = vrot.slane %v754, 5
        %v856 = vrot.slane %v760, 5
        %v857 = vrot.slane %v764, 5
        %v858 = vrot.slane %v770, 5
        %v859 = vrot.slane %v774, 5
        %v860 = vrot.slane %v780, 5
        %v861 = vrot.slane %v784, 5
        %v862 = vrot.slane %v790, 5
        %v863 = vrot.slane %v794, 5
        %v864 = vrot.slane %v800, 5
        %v865 = vrot.slane %v804, 5
        %v866 = vrot.slane %v810, 5
        %v867 = vrot.slane %v814, 5
        %v868 = vrot.slane %v820, 5
        %v869 = vrot.slane %v824, 5
        %v870 = vlaneseq
        %v871 = vshrl.u32 %v870, 7
        %vm872 = vcmp.lt.s32.totalorder %v871, 3
        %v873 = vsel %vm872, %v868, %v869
        %v874 = vsel %vm872, %v867, %v868
        %v875 = vsel %vm872, %v866, %v867
        %v876 = vsel %vm872, %v865, %v866
        %v877 = vsel %vm872, %v864, %v865
        %v878 = vsel %vm872, %v863, %v864
        %v879 = vsel %vm872, %v862, %v863
        %v880 = vsel %vm872, %v861, %v862
        %v881 = vsel %vm872, %v860, %v861
        %v882 = vsel %vm872, %v859, %v860
        %v883 = vsel %vm872, %v858, %v859
        %v884 = vsel %vm872, %v857, %v858
        %v885 = vsel %vm872, %v856, %v857
        %v886 = vsel %vm872, %v855, %v856
        %v887 = vsel %vm872, %v854, %v855
        %v888 = vsel %vm872, %v853, %v854
        %v889 = vsel %vm872, %v852, %v853
        %v890 = vsel %vm872, %v851, %v852
        %v891 = vsel %vm872, %v850, %v851
        %v892 = vsel %vm872, %v849, %v850
        %v893 = vsel %vm872, %v848, %v849
        %v894 = vsel %vm872, %v847, %v848
        %v895 = vsel %vm872, %v846, %v847
        %v896 = vsel %vm872, %v845, %v846
        %v897 = vsel %vm872, %v844, %v845
        %v898 = vsel %vm872, %v843, %v844
        %v899 = vsel %vm872, %v842, %v843
        %v900 = vsel %vm872, %v841, %v842
        %v901 = vsel %vm872, %v840, %v841
        %v902 = vsel %vm872, %v839, %v840
        %v903 = vsel %vm872, %v838, %v839
        %v904 = vsel %vm872, %v837, %v838
        %v905 = vld [vmem:[%s3] sm:$0x1]
        %v906 = vlaneseq
        %v907 = vshrl.u32 %v906, 7
        %v908 = vsub.s32 0, %v907
        %v909 = vrot.slane %v905, %v908
        %v910 = vmul.f32 %v904, %v909
        %v911 = vmul.f32 %v903, %v909
        %v912 = vmul.f32 %v902, %v909
        %v913 = vmul.f32 %v901, %v909
        %v914 = vmul.f32 %v900, %v909
        %v915 = vmul.f32 %v899, %v909
        %v916 = vmul.f32 %v898, %v909
        %v917 = vmul.f32 %v897, %v909
        %v918 = vmul.f32 %v896, %v909
        %v919 = vmul.f32 %v895, %v909
        %v920 = vmul.f32 %v894, %v909
        %v921 = vmul.f32 %v893, %v909
        %v922 = vmul.f32 %v892, %v909
        %v923 = vmul.f32 %v891, %v909
        %v924 = vmul.f32 %v890, %v909
        %v925 = vmul.f32 %v889, %v909
        %v926 = vmul.f32 %v888, %v909
        %v927 = vmul.f32 %v887, %v909
        %v928 = vmul.f32 %v886, %v909
        %v929 = vmul.f32 %v885, %v909
        %v930 = vmul.f32 %v884, %v909
        %v931 = vmul.f32 %v883, %v909
        %v932 = vmul.f32 %v882, %v909
        %v933 = vmul.f32 %v881, %v909
        %v934 = vmul.f32 %v880, %v909
        %v935 = vmul.f32 %v879, %v909
        %v936 = vmul.f32 %v878, %v909
        %v937 = vmul.f32 %v877, %v909
        %v938 = vmul.f32 %v876, %v909
        %v939 = vmul.f32 %v875, %v909
        %v940 = vmul.f32 %v874, %v909
        %v941 = vmul.f32 %v873, %v909
        %v942 = vadd.f32 %v835, %v910
        %v943 = vadd.f32 %v835, %v911
        %v944 = vadd.f32 %v835, %v912
        %v945 = vadd.f32 %v835, %v913
        %v946 = vadd.f32 %v835, %v914
        %v947 = vadd.f32 %v835, %v915
        %v948 = vadd.f32 %v835, %v916
        %v949 = vadd.f32 %v835, %v917
        %v950 = vadd.f32 %v835, %v918
        %v951 = vadd.f32 %v835, %v919
        %v952 = vadd.f32 %v835, %v920
        %v953 = vadd.f32 %v835, %v921
        %v954 = vadd.f32 %v835, %v922
        %v955 = vadd.f32 %v835, %v923
        %v956 = vadd.f32 %v835, %v924
        %v957 = vadd.f32 %v835, %v925
        %v958 = vadd.f32 %v835, %v926
        %v959 = vadd.f32 %v835, %v927
        %v960 = vadd.f32 %v835, %v928
        %v961 = vadd.f32 %v835, %v929
        %v962 = vadd.f32 %v835, %v930
        %v963 = vadd.f32 %v835, %v931
        %v964 = vadd.f32 %v835, %v932
        %v965 = vadd.f32 %v835, %v933
        %v966 = vadd.f32 %v835, %v934
        %v967 = vadd.f32 %v835, %v935
        %v968 = vadd.f32 %v835, %v936
        %v969 = vadd.f32 %v835, %v937
        %v970 = vadd.f32 %v835, %v938
        %v971 = vadd.f32 %v835, %v939
        %v972 = vadd.f32 %v835, %v940
        %v973 = vadd.f32 %v835, %v941
        %v974 = vrot.slane %v828, 6
        %v975 = vrot.slane %v670, 6
        %v976 = vrot.slane %v674, 6
        %v977 = vrot.slane %v680, 6
        %v978 = vrot.slane %v684, 6
        %v979 = vrot.slane %v690, 6
        %v980 = vrot.slane %v694, 6
        %v981 = vrot.slane %v700, 6
        %v982 = vrot.slane %v704, 6
        %v983 = vrot.slane %v710, 6
        %v984 = vrot.slane %v714, 6
        %v985 = vrot.slane %v720, 6
        %v986 = vrot.slane %v724, 6
        %v987 = vrot.slane %v730, 6
        %v988 = vrot.slane %v734, 6
        %v989 = vrot.slane %v740, 6
        %v990 = vrot.slane %v744, 6
        %v991 = vrot.slane %v750, 6
        %v992 = vrot.slane %v754, 6
        %v993 = vrot.slane %v760, 6
        %v994 = vrot.slane %v764, 6
        %v995 = vrot.slane %v770, 6
        %v996 = vrot.slane %v774, 6
        %v997 = vrot.slane %v780, 6
        %v998 = vrot.slane %v784, 6
        %v999 = vrot.slane %v790, 6
        %v1000 = vrot.slane %v794, 6
        %v1001 = vrot.slane %v800, 6
        %v1002 = vrot.slane %v804, 6
        %v1003 = vrot.slane %v810, 6
        %v1004 = vrot.slane %v814, 6
        %v1005 = vrot.slane %v820, 6
        %v1006 = vrot.slane %v824, 6
        %vm1007 = vcmp.lt.s32.totalorder %v871, 2
        %v1008 = vsel %vm1007, %v1005, %v1006
        %v1009 = vsel %vm1007, %v1004, %v1005
        %v1010 = vsel %vm1007, %v1003, %v1004
        %v1011 = vsel %vm1007, %v1002, %v1003
        %v1012 = vsel %vm1007, %v1001, %v1002
        %v1013 = vsel %vm1007, %v1000, %v1001
        %v1014 = vsel %vm1007, %v999, %v1000
        %v1015 = vsel %vm1007, %v998, %v999
        %v1016 = vsel %vm1007, %v997, %v998
        %v1017 = vsel %vm1007, %v996, %v997
        %v1018 = vsel %vm1007, %v995, %v996
        %v1019 = vsel %vm1007, %v994, %v995
        %v1020 = vsel %vm1007, %v993, %v994
        %v1021 = vsel %vm1007, %v992, %v993
        %v1022 = vsel %vm1007, %v991, %v992
        %v1023 = vsel %vm1007, %v990, %v991
        %v1024 = vsel %vm1007, %v989, %v990
        %v1025 = vsel %vm1007, %v988, %v989
        %v1026 = vsel %vm1007, %v987, %v988
        %v1027 = vsel %vm1007, %v986, %v987
        %v1028 = vsel %vm1007, %v985, %v986
        %v1029 = vsel %vm1007, %v984, %v985
        %v1030 = vsel %vm1007, %v983, %v984
        %v1031 = vsel %vm1007, %v982, %v983
        %v1032 = vsel %vm1007, %v981, %v982
        %v1033 = vsel %vm1007, %v980, %v981
        %v1034 = vsel %vm1007, %v979, %v980
        %v1035 = vsel %vm1007, %v978, %v979
        %v1036 = vsel %vm1007, %v977, %v978
        %v1037 = vsel %vm1007, %v976, %v977
        %v1038 = vsel %vm1007, %v975, %v976
        %v1039 = vsel %vm1007, %v974, %v975
        %v1040 = vld [vmem:[%s3 + $0x1] sm:$0x1]
        %v1041 = vlaneseq
        %v1042 = vshrl.u32 %v1041, 7
        %v1043 = vsub.s32 0, %v1042
        %v1044 = vrot.slane %v1040, %v1043
        %v1045 = vmul.f32 %v1039, %v1044
        %v1046 = vmul.f32 %v1038, %v1044
        %v1047 = vmul.f32 %v1037, %v1044
        %v1048 = vmul.f32 %v1036, %v1044
        %v1049 = vmul.f32 %v1035, %v1044
        %v1050 = vmul.f32 %v1034, %v1044
        %v1051 = vmul.f32 %v1033, %v1044
        %v1052 = vmul.f32 %v1032, %v1044
        %v1053 = vmul.f32 %v1031, %v1044
        %v1054 = vmul.f32 %v1030, %v1044
        %v1055 = vmul.f32 %v1029, %v1044
        %v1056 = vmul.f32 %v1028, %v1044
        %v1057 = vmul.f32 %v1027, %v1044
        %v1058 = vmul.f32 %v1026, %v1044
        %v1059 = vmul.f32 %v1025, %v1044
        %v1060 = vmul.f32 %v1024, %v1044
        %v1061 = vmul.f32 %v1023, %v1044
        %v1062 = vmul.f32 %v1022, %v1044
        %v1063 = vmul.f32 %v1021, %v1044
        %v1064 = vmul.f32 %v1020, %v1044
        %v1065 = vmul.f32 %v1019, %v1044
        %v1066 = vmul.f32 %v1018, %v1044
        %v1067 = vmul.f32 %v1017, %v1044
        %v1068 = vmul.f32 %v1016, %v1044
        %v1069 = vmul.f32 %v1015, %v1044
        %v1070 = vmul.f32 %v1014, %v1044
        %v1071 = vmul.f32 %v1013, %v1044
        %v1072 = vmul.f32 %v1012, %v1044
        %v1073 = vmul.f32 %v1011, %v1044
        %v1074 = vmul.f32 %v1010, %v1044
        %v1075 = vmul.f32 %v1009, %v1044
        %v1076 = vmul.f32 %v1008, %v1044
        %v1077 = vadd.f32 %v942, %v1045
        %v1078 = vadd.f32 %v943, %v1046
        %v1079 = vadd.f32 %v944, %v1047
        %v1080 = vadd.f32 %v945, %v1048
        %v1081 = vadd.f32 %v946, %v1049
        %v1082 = vadd.f32 %v947, %v1050
        %v1083 = vadd.f32 %v948, %v1051
        %v1084 = vadd.f32 %v949, %v1052
        %v1085 = vadd.f32 %v950, %v1053
        %v1086 = vadd.f32 %v951, %v1054
        %v1087 = vadd.f32 %v952, %v1055
        %v1088 = vadd.f32 %v953, %v1056
        %v1089 = vadd.f32 %v954, %v1057
        %v1090 = vadd.f32 %v955, %v1058
        %v1091 = vadd.f32 %v956, %v1059
        %v1092 = vadd.f32 %v957, %v1060
        %v1093 = vadd.f32 %v958, %v1061
        %v1094 = vadd.f32 %v959, %v1062
        %v1095 = vadd.f32 %v960, %v1063
        %v1096 = vadd.f32 %v961, %v1064
        %v1097 = vadd.f32 %v962, %v1065
        %v1098 = vadd.f32 %v963, %v1066
        %v1099 = vadd.f32 %v964, %v1067
        %v1100 = vadd.f32 %v965, %v1068
        %v1101 = vadd.f32 %v966, %v1069
        %v1102 = vadd.f32 %v967, %v1070
        %v1103 = vadd.f32 %v968, %v1071
        %v1104 = vadd.f32 %v969, %v1072
        %v1105 = vadd.f32 %v970, %v1073
        %v1106 = vadd.f32 %v971, %v1074
        %v1107 = vadd.f32 %v972, %v1075
        %v1108 = vadd.f32 %v973, %v1076
        %v1109 = vrot.slane %v828, 7
        %v1110 = vrot.slane %v670, 7
        %v1111 = vrot.slane %v674, 7
        %v1112 = vrot.slane %v680, 7
        %v1113 = vrot.slane %v684, 7
        %v1114 = vrot.slane %v690, 7
        %v1115 = vrot.slane %v694, 7
        %v1116 = vrot.slane %v700, 7
        %v1117 = vrot.slane %v704, 7
        %v1118 = vrot.slane %v710, 7
        %v1119 = vrot.slane %v714, 7
        %v1120 = vrot.slane %v720, 7
        %v1121 = vrot.slane %v724, 7
        %v1122 = vrot.slane %v730, 7
        %v1123 = vrot.slane %v734, 7
        %v1124 = vrot.slane %v740, 7
        %v1125 = vrot.slane %v744, 7
        %v1126 = vrot.slane %v750, 7
        %v1127 = vrot.slane %v754, 7
        %v1128 = vrot.slane %v760, 7
        %v1129 = vrot.slane %v764, 7
        %v1130 = vrot.slane %v770, 7
        %v1131 = vrot.slane %v774, 7
        %v1132 = vrot.slane %v780, 7
        %v1133 = vrot.slane %v784, 7
        %v1134 = vrot.slane %v790, 7
        %v1135 = vrot.slane %v794, 7
        %v1136 = vrot.slane %v800, 7
        %v1137 = vrot.slane %v804, 7
        %v1138 = vrot.slane %v810, 7
        %v1139 = vrot.slane %v814, 7
        %v1140 = vrot.slane %v820, 7
        %v1141 = vrot.slane %v824, 7
        %vm1142 = vcmp.lt.s32.totalorder %v871, 1
        %v1143 = vsel %vm1142, %v1140, %v1141
        %v1144 = vsel %vm1142, %v1139, %v1140
        %v1145 = vsel %vm1142, %v1138, %v1139
        %v1146 = vsel %vm1142, %v1137, %v1138
        %v1147 = vsel %vm1142, %v1136, %v1137
        %v1148 = vsel %vm1142, %v1135, %v1136
        %v1149 = vsel %vm1142, %v1134, %v1135
        %v1150 = vsel %vm1142, %v1133, %v1134
        %v1151 = vsel %vm1142, %v1132, %v1133
        %v1152 = vsel %vm1142, %v1131, %v1132
        %v1153 = vsel %vm1142, %v1130, %v1131
        %v1154 = vsel %vm1142, %v1129, %v1130
        %v1155 = vsel %vm1142, %v1128, %v1129
        %v1156 = vsel %vm1142, %v1127, %v1128
        %v1157 = vsel %vm1142, %v1126, %v1127
        %v1158 = vsel %vm1142, %v1125, %v1126
        %v1159 = vsel %vm1142, %v1124, %v1125
        %v1160 = vsel %vm1142, %v1123, %v1124
        %v1161 = vsel %vm1142, %v1122, %v1123
        %v1162 = vsel %vm1142, %v1121, %v1122
        %v1163 = vsel %vm1142, %v1120, %v1121
        %v1164 = vsel %vm1142, %v1119, %v1120
        %v1165 = vsel %vm1142, %v1118, %v1119
        %v1166 = vsel %vm1142, %v1117, %v1118
        %v1167 = vsel %vm1142, %v1116, %v1117
        %v1168 = vsel %vm1142, %v1115, %v1116
        %v1169 = vsel %vm1142, %v1114, %v1115
        %v1170 = vsel %vm1142, %v1113, %v1114
        %v1171 = vsel %vm1142, %v1112, %v1113
        %v1172 = vsel %vm1142, %v1111, %v1112
        %v1173 = vsel %vm1142, %v1110, %v1111
        %v1174 = vsel %vm1142, %v1109, %v1110
        %v1175 = vld [vmem:[%s3 + $0x2] sm:$0x1]
        %v1176 = vlaneseq
        %v1177 = vshrl.u32 %v1176, 7
        %v1178 = vsub.s32 0, %v1177
        %v1179 = vrot.slane %v1175, %v1178
        %v1180 = vmul.f32 %v1174, %v1179
        %v1181 = vmul.f32 %v1173, %v1179
        %v1182 = vmul.f32 %v1172, %v1179
        %v1183 = vmul.f32 %v1171, %v1179
        %v1184 = vmul.f32 %v1170, %v1179
        %v1185 = vmul.f32 %v1169, %v1179
        %v1186 = vmul.f32 %v1168, %v1179
        %v1187 = vmul.f32 %v1167, %v1179
        %v1188 = vmul.f32 %v1166, %v1179
        %v1189 = vmul.f32 %v1165, %v1179
        %v1190 = vmul.f32 %v1164, %v1179
        %v1191 = vmul.f32 %v1163, %v1179
        %v1192 = vmul.f32 %v1162, %v1179
        %v1193 = vmul.f32 %v1161, %v1179
        %v1194 = vmul.f32 %v1160, %v1179
        %v1195 = vmul.f32 %v1159, %v1179
        %v1196 = vmul.f32 %v1158, %v1179
        %v1197 = vmul.f32 %v1157, %v1179
        %v1198 = vmul.f32 %v1156, %v1179
        %v1199 = vmul.f32 %v1155, %v1179
        %v1200 = vmul.f32 %v1154, %v1179
        %v1201 = vmul.f32 %v1153, %v1179
        %v1202 = vmul.f32 %v1152, %v1179
        %v1203 = vmul.f32 %v1151, %v1179
        %v1204 = vmul.f32 %v1150, %v1179
        %v1205 = vmul.f32 %v1149, %v1179
        %v1206 = vmul.f32 %v1148, %v1179
        %v1207 = vmul.f32 %v1147, %v1179
        %v1208 = vmul.f32 %v1146, %v1179
        %v1209 = vmul.f32 %v1145, %v1179
        %v1210 = vmul.f32 %v1144, %v1179
        %v1211 = vmul.f32 %v1143, %v1179
        %v1212 = vadd.f32 %v1077, %v1180
        %v1213 = vadd.f32 %v1078, %v1181
        %v1214 = vadd.f32 %v1079, %v1182
        %v1215 = vadd.f32 %v1080, %v1183
        %v1216 = vadd.f32 %v1081, %v1184
        %v1217 = vadd.f32 %v1082, %v1185
        %v1218 = vadd.f32 %v1083, %v1186
        %v1219 = vadd.f32 %v1084, %v1187
        %v1220 = vadd.f32 %v1085, %v1188
        %v1221 = vadd.f32 %v1086, %v1189
        %v1222 = vadd.f32 %v1087, %v1190
        %v1223 = vadd.f32 %v1088, %v1191
        %v1224 = vadd.f32 %v1089, %v1192
        %v1225 = vadd.f32 %v1090, %v1193
        %v1226 = vadd.f32 %v1091, %v1194
        %v1227 = vadd.f32 %v1092, %v1195
        %v1228 = vadd.f32 %v1093, %v1196
        %v1229 = vadd.f32 %v1094, %v1197
        %v1230 = vadd.f32 %v1095, %v1198
        %v1231 = vadd.f32 %v1096, %v1199
        %v1232 = vadd.f32 %v1097, %v1200
        %v1233 = vadd.f32 %v1098, %v1201
        %v1234 = vadd.f32 %v1099, %v1202
        %v1235 = vadd.f32 %v1100, %v1203
        %v1236 = vadd.f32 %v1101, %v1204
        %v1237 = vadd.f32 %v1102, %v1205
        %v1238 = vadd.f32 %v1103, %v1206
        %v1239 = vadd.f32 %v1104, %v1207
        %v1240 = vadd.f32 %v1105, %v1208
        %v1241 = vadd.f32 %v1106, %v1209
        %v1242 = vadd.f32 %v1107, %v1210
        %v1243 = vadd.f32 %v1108, %v1211
        %v1244 = vld [vmem:[%s3 + $0x3] sm:$0x1]
        %v1245 = vlaneseq
        %v1246 = vshrl.u32 %v1245, 7
        %v1247 = vsub.s32 0, %v1246
        %v1248 = vrot.slane %v1244, %v1247
        %v1249 = vmul.f32 %v670, %v1248
        %v1250 = vmul.f32 %v674, %v1248
        %v1251 = vmul.f32 %v680, %v1248
        %v1252 = vmul.f32 %v684, %v1248
        %v1253 = vmul.f32 %v690, %v1248
        %v1254 = vmul.f32 %v694, %v1248
        %v1255 = vmul.f32 %v700, %v1248
        %v1256 = vmul.f32 %v704, %v1248
        %v1257 = vmul.f32 %v710, %v1248
        %v1258 = vmul.f32 %v714, %v1248
        %v1259 = vmul.f32 %v720, %v1248
        %v1260 = vmul.f32 %v724, %v1248
        %v1261 = vmul.f32 %v730, %v1248
        %v1262 = vmul.f32 %v734, %v1248
        %v1263 = vmul.f32 %v740, %v1248
        %v1264 = vmul.f32 %v744, %v1248
        %v1265 = vmul.f32 %v750, %v1248
        %v1266 = vmul.f32 %v754, %v1248
        %v1267 = vmul.f32 %v760, %v1248
        %v1268 = vmul.f32 %v764, %v1248
        %v1269 = vmul.f32 %v770, %v1248
        %v1270 = vmul.f32 %v774, %v1248
        %v1271 = vmul.f32 %v780, %v1248
        %v1272 = vmul.f32 %v784, %v1248
        %v1273 = vmul.f32 %v790, %v1248
        %v1274 = vmul.f32 %v794, %v1248
        %v1275 = vmul.f32 %v800, %v1248
        %v1276 = vmul.f32 %v804, %v1248
        %v1277 = vmul.f32 %v810, %v1248
        %v1278 = vmul.f32 %v814, %v1248
        %v1279 = vmul.f32 %v820, %v1248
        %v1280 = vmul.f32 %v824, %v1248
        %v1281 = vadd.f32 %v1212, %v1249
        %v1282 = vadd.f32 %v1213, %v1250
        %v1283 = vadd.f32 %v1214, %v1251
        %v1284 = vadd.f32 %v1215, %v1252
        %v1285 = vadd.f32 %v1216, %v1253
        %v1286 = vadd.f32 %v1217, %v1254
        %v1287 = vadd.f32 %v1218, %v1255
        %v1288 = vadd.f32 %v1219, %v1256
        %v1289 = vadd.f32 %v1220, %v1257
        %v1290 = vadd.f32 %v1221, %v1258
        %v1291 = vadd.f32 %v1222, %v1259
        %v1292 = vadd.f32 %v1223, %v1260
        %v1293 = vadd.f32 %v1224, %v1261
        %v1294 = vadd.f32 %v1225, %v1262
        %v1295 = vadd.f32 %v1226, %v1263
        %v1296 = vadd.f32 %v1227, %v1264
        %v1297 = vadd.f32 %v1228, %v1265
        %v1298 = vadd.f32 %v1229, %v1266
        %v1299 = vadd.f32 %v1230, %v1267
        %v1300 = vadd.f32 %v1231, %v1268
        %v1301 = vadd.f32 %v1232, %v1269
        %v1302 = vadd.f32 %v1233, %v1270
        %v1303 = vadd.f32 %v1234, %v1271
        %v1304 = vadd.f32 %v1235, %v1272
        %v1305 = vadd.f32 %v1236, %v1273
        %v1306 = vadd.f32 %v1237, %v1274
        %v1307 = vadd.f32 %v1238, %v1275
        %v1308 = vadd.f32 %v1239, %v1276
        %v1309 = vadd.f32 %v1240, %v1277
        %v1310 = vadd.f32 %v1241, %v1278
        %v1311 = vadd.f32 %v1242, %v1279
        %v1312 = vadd.f32 %v1243, %v1280
        %v1313 = vmul.f32 %v1281, 0.5
        %v1314 = vmul.f32 %v1282, 0.5
        %v1315 = vmul.f32 %v1283, 0.5
        %v1316 = vmul.f32 %v1284, 0.5
        %v1317 = vmul.f32 %v1285, 0.5
        %v1318 = vmul.f32 %v1286, 0.5
        %v1319 = vmul.f32 %v1287, 0.5
        %v1320 = vmul.f32 %v1288, 0.5
        %v1321 = vmul.f32 %v1289, 0.5
        %v1322 = vmul.f32 %v1290, 0.5
        %v1323 = vmul.f32 %v1291, 0.5
        %v1324 = vmul.f32 %v1292, 0.5
        %v1325 = vmul.f32 %v1293, 0.5
        %v1326 = vmul.f32 %v1294, 0.5
        %v1327 = vmul.f32 %v1295, 0.5
        %v1328 = vmul.f32 %v1296, 0.5
        %v1329 = vmul.f32 %v1297, 0.5
        %v1330 = vmul.f32 %v1298, 0.5
        %v1331 = vmul.f32 %v1299, 0.5
        %v1332 = vmul.f32 %v1300, 0.5
        %v1333 = vmul.f32 %v1301, 0.5
        %v1334 = vmul.f32 %v1302, 0.5
        %v1335 = vmul.f32 %v1303, 0.5
        %v1336 = vmul.f32 %v1304, 0.5
        %v1337 = vmul.f32 %v1305, 0.5
        %v1338 = vmul.f32 %v1306, 0.5
        %v1339 = vmul.f32 %v1307, 0.5
        %v1340 = vmul.f32 %v1308, 0.5
        %v1341 = vmul.f32 %v1309, 0.5
        %v1342 = vmul.f32 %v1310, 0.5
        %v1343 = vmul.f32 %v1311, 0.5
        %v1344 = vmul.f32 %v1312, 0.5
        %v1345 = vtanh.pop %v1313
        %v1346 = vtanh.pop %v1314
        %v1347 = vtanh.pop %v1315
        %v1348 = vtanh.pop %v1316
        %v1349 = vtanh.pop %v1317
        %v1350 = vtanh.pop %v1318
        %v1351 = vtanh.pop %v1319
        %v1352 = vtanh.pop %v1320
        %v1353 = vtanh.pop %v1321
        %v1354 = vtanh.pop %v1322
        %v1355 = vtanh.pop %v1323
        %v1356 = vtanh.pop %v1324
        %v1357 = vtanh.pop %v1325
        %v1358 = vtanh.pop %v1326
        %v1359 = vtanh.pop %v1327
        %v1360 = vtanh.pop %v1328
        %v1361 = vtanh.pop %v1329
        %v1362 = vtanh.pop %v1330
        %v1363 = vtanh.pop %v1331
        %v1364 = vtanh.pop %v1332
        %v1365 = vtanh.pop %v1333
        %v1366 = vtanh.pop %v1334
        %v1367 = vtanh.pop %v1335
        %v1368 = vtanh.pop %v1336
        %v1369 = vtanh.pop %v1337
        %v1370 = vtanh.pop %v1338
        %v1371 = vtanh.pop %v1339
        %v1372 = vtanh.pop %v1340
        %v1373 = vtanh.pop %v1341
        %v1374 = vtanh.pop %v1342
        %v1375 = vtanh.pop %v1343
        %v1376 = vtanh.pop %v1344
        %v1377 = vmul.f32 %v1345, 0.5
        %v1378 = vmul.f32 %v1346, 0.5
        %v1379 = vmul.f32 %v1347, 0.5
        %v1380 = vmul.f32 %v1348, 0.5
        %v1381 = vmul.f32 %v1349, 0.5
        %v1382 = vmul.f32 %v1350, 0.5
        %v1383 = vmul.f32 %v1351, 0.5
        %v1384 = vmul.f32 %v1352, 0.5
        %v1385 = vmul.f32 %v1353, 0.5
        %v1386 = vmul.f32 %v1354, 0.5
        %v1387 = vmul.f32 %v1355, 0.5
        %v1388 = vmul.f32 %v1356, 0.5
        %v1389 = vmul.f32 %v1357, 0.5
        %v1390 = vmul.f32 %v1358, 0.5
        %v1391 = vmul.f32 %v1359, 0.5
        %v1392 = vmul.f32 %v1360, 0.5
        %v1393 = vmul.f32 %v1361, 0.5
        %v1394 = vmul.f32 %v1362, 0.5
        %v1395 = vmul.f32 %v1363, 0.5
        %v1396 = vmul.f32 %v1364, 0.5
        %v1397 = vmul.f32 %v1365, 0.5
        %v1398 = vmul.f32 %v1366, 0.5
        %v1399 = vmul.f32 %v1367, 0.5
        %v1400 = vmul.f32 %v1368, 0.5
        %v1401 = vmul.f32 %v1369, 0.5
        %v1402 = vmul.f32 %v1370, 0.5
        %v1403 = vmul.f32 %v1371, 0.5
        %v1404 = vmul.f32 %v1372, 0.5
        %v1405 = vmul.f32 %v1373, 0.5
        %v1406 = vmul.f32 %v1374, 0.5
        %v1407 = vmul.f32 %v1375, 0.5
        %v1408 = vmul.f32 %v1376, 0.5
        %v1409 = vadd.f32 %v1377, 0.5
        %v1410 = vadd.f32 %v1378, 0.5
        %v1411 = vadd.f32 %v1379, 0.5
        %v1412 = vadd.f32 %v1380, 0.5
        %v1413 = vadd.f32 %v1381, 0.5
        %v1414 = vadd.f32 %v1382, 0.5
        %v1415 = vadd.f32 %v1383, 0.5
        %v1416 = vadd.f32 %v1384, 0.5
        %v1417 = vadd.f32 %v1385, 0.5
        %v1418 = vadd.f32 %v1386, 0.5
        %v1419 = vadd.f32 %v1387, 0.5
        %v1420 = vadd.f32 %v1388, 0.5
        %v1421 = vadd.f32 %v1389, 0.5
        %v1422 = vadd.f32 %v1390, 0.5
        %v1423 = vadd.f32 %v1391, 0.5
        %v1424 = vadd.f32 %v1392, 0.5
        %v1425 = vadd.f32 %v1393, 0.5
        %v1426 = vadd.f32 %v1394, 0.5
        %v1427 = vadd.f32 %v1395, 0.5
        %v1428 = vadd.f32 %v1396, 0.5
        %v1429 = vadd.f32 %v1397, 0.5
        %v1430 = vadd.f32 %v1398, 0.5
        %v1431 = vadd.f32 %v1399, 0.5
        %v1432 = vadd.f32 %v1400, 0.5
        %v1433 = vadd.f32 %v1401, 0.5
        %v1434 = vadd.f32 %v1402, 0.5
        %v1435 = vadd.f32 %v1403, 0.5
        %v1436 = vadd.f32 %v1404, 0.5
        %v1437 = vadd.f32 %v1405, 0.5
        %v1438 = vadd.f32 %v1406, 0.5
        %v1439 = vadd.f32 %v1407, 0.5
        %v1440 = vadd.f32 %v1408, 0.5
        %v1441 = vmul.f32 %v1281, %v1409
        %v1442 = vmul.f32 %v1282, %v1410
        %v1443 = vmul.f32 %v1283, %v1411
        %v1444 = vmul.f32 %v1284, %v1412
        %v1445 = vmul.f32 %v1285, %v1413
        %v1446 = vmul.f32 %v1286, %v1414
        %v1447 = vmul.f32 %v1287, %v1415
        %v1448 = vmul.f32 %v1288, %v1416
        %v1449 = vmul.f32 %v1289, %v1417
        %v1450 = vmul.f32 %v1290, %v1418
        %v1451 = vmul.f32 %v1291, %v1419
        %v1452 = vmul.f32 %v1292, %v1420
        %v1453 = vmul.f32 %v1293, %v1421
        %v1454 = vmul.f32 %v1294, %v1422
        %v1455 = vmul.f32 %v1295, %v1423
        %v1456 = vmul.f32 %v1296, %v1424
        %v1457 = vmul.f32 %v1297, %v1425
        %v1458 = vmul.f32 %v1298, %v1426
        %v1459 = vmul.f32 %v1299, %v1427
        %v1460 = vmul.f32 %v1300, %v1428
        %v1461 = vmul.f32 %v1301, %v1429
        %v1462 = vmul.f32 %v1302, %v1430
        %v1463 = vmul.f32 %v1303, %v1431
        %v1464 = vmul.f32 %v1304, %v1432
        %v1465 = vmul.f32 %v1305, %v1433
        %v1466 = vmul.f32 %v1306, %v1434
        %v1467 = vmul.f32 %v1307, %v1435
        %v1468 = vmul.f32 %v1308, %v1436
        %v1469 = vmul.f32 %v1309, %v1437
        %v1470 = vmul.f32 %v1310, %v1438
        %v1471 = vmul.f32 %v1311, %v1439
        %v1472 = vmul.f32 %v1312, %v1440
        %v1473 = vpack.c.bf16 %v1442, %v1441
        %v1474 = vpack.c.bf16 %v1444, %v1443
        %v1475 = vpack.c.bf16 %v1446, %v1445
        %v1476 = vpack.c.bf16 %v1448, %v1447
        %v1477 = vpack.c.bf16 %v1450, %v1449
        %v1478 = vpack.c.bf16 %v1452, %v1451
        %v1479 = vpack.c.bf16 %v1454, %v1453
        %v1480 = vpack.c.bf16 %v1456, %v1455
        %v1481 = vpack.c.bf16 %v1458, %v1457
        %v1482 = vpack.c.bf16 %v1460, %v1459
        %v1483 = vpack.c.bf16 %v1462, %v1461
        %v1484 = vpack.c.bf16 %v1464, %v1463
        %v1485 = vpack.c.bf16 %v1466, %v1465
        %v1486 = vpack.c.bf16 %v1468, %v1467
        %v1487 = vpack.c.bf16 %v1470, %v1469
        %v1488 = vpack.c.bf16 %v1472, %v1471
        %v1489 = vld [vmem:[#allocation10] sm:$0xf]
        %v1490 = vld [vmem:[#allocation10 + $0x4] sm:$0xf]
        %v1491 = vld [vmem:[#allocation10 + $0x8] sm:$0xf]
        %v1492 = vld [vmem:[#allocation10 + $0xc] sm:$0xf]
        %v1493 = vld [vmem:[#allocation10 + $0x10] sm:$0xf]
        %v1494 = vld [vmem:[#allocation10 + $0x14] sm:$0xf]
        %v1495 = vld [vmem:[#allocation10 + $0x18] sm:$0xf]
        %v1496 = vld [vmem:[#allocation10 + $0x1c] sm:$0xf]
        %v1497 = vld [vmem:[#allocation10 + $0x20] sm:$0xf]
        %v1498 = vld [vmem:[#allocation10 + $0x24] sm:$0xf]
        %v1499 = vld [vmem:[#allocation10 + $0x28] sm:$0xf]
        %v1500 = vld [vmem:[#allocation10 + $0x2c] sm:$0xf]
        %v1501 = vld [vmem:[#allocation10 + $0x30] sm:$0xf]
        %v1502 = vld [vmem:[#allocation10 + $0x34] sm:$0xf]
        %v1503 = vld [vmem:[#allocation10 + $0x38] sm:$0xf]
        %v1504 = vld [vmem:[#allocation10 + $0x3c] sm:$0xf]
        %v1505 = vld [vmem:[%s6] sm:$0x1]
        %v1507 = vlaneseq
        %v1508 = vshrl.u32 %v1507, 7
        %v1509 = vsub.s32 0, %v1508
        %v1510 = vrot.slane %v1505, %v1509
        %v1528 = vunpack.c.l.b16 %v1489
        %v1529 = vunpack.c.l.b16 %v1490
        %v1530 = vunpack.c.l.b16 %v1491
        %v1531 = vunpack.c.l.b16 %v1492
        %v1532 = vunpack.c.l.b16 %v1493
        %v1533 = vunpack.c.l.b16 %v1494
        %v1534 = vunpack.c.l.b16 %v1495
        %v1535 = vunpack.c.l.b16 %v1496
        %v1536 = vunpack.c.l.b16 %v1497
        %v1537 = vunpack.c.l.b16 %v1498
        %v1538 = vunpack.c.l.b16 %v1499
        %v1539 = vunpack.c.l.b16 %v1500
        %v1540 = vunpack.c.l.b16 %v1501
        %v1541 = vunpack.c.l.b16 %v1502
        %v1542 = vunpack.c.l.b16 %v1503
        %v1543 = vunpack.c.l.b16 %v1504
        %v1544 = vpack.c.b16 %v1529, %v1528
        %v1545 = vpack.c.b16 %v1531, %v1530
        %v1546 = vpack.c.b16 %v1533, %v1532
        %v1547 = vpack.c.b16 %v1535, %v1534
        %v1548 = vpack.c.b16 %v1537, %v1536
        %v1549 = vpack.c.b16 %v1539, %v1538
        %v1550 = vpack.c.b16 %v1541, %v1540
        %v1551 = vpack.c.b16 %v1543, %v1542
        %1560 = vmatprep.subr.bf16.mxu0 0
        %1561 = vmatpush1.bf16.msra.mxu0 %v1544
        %1562 = vmatprep.subr.bf16.mxu0 0
        %1563 = vmatpush1.bf16.msra.mxu0 %v1545
        %1564 = vmatprep.subr.bf16.mxu0 0
        %1565 = vmatpush1.bf16.msra.mxu0 %v1546
        %1566 = vmatprep.subr.bf16.mxu0 0
        %1567 = vmatpush1.bf16.msra.mxu0 %v1547
        %1568 = vmatprep.subr.bf16.mxu0 0
        %1569 = vmatpush1.bf16.msra.mxu0 %v1548
        %1570 = vmatprep.subr.bf16.mxu0 0
        %1571 = vmatpush1.bf16.msra.mxu0 %v1549
        %1572 = vmatprep.subr.bf16.mxu0 0
        %1573 = vmatpush1.bf16.msra.mxu0 %v1550
        %1574 = vmatprep.subr.bf16.mxu0 0
        %1575 = vmatpush1.bf16.msra.mxu0 %v1551
        %1576 = vmatprep.subr.bf16.mxu0 0
        %1577 = vmatpush1.bf16.msra.mxu0 0
        %1578 = vmatprep.subr.bf16.mxu0 0
        %1579 = vmatpush1.bf16.msra.mxu0 0
        %1580 = vmatprep.subr.bf16.mxu0 0
        %1581 = vmatpush1.bf16.msra.mxu0 0
        %1582 = vmatprep.subr.bf16.mxu0 0
        %1583 = vmatpush1.bf16.msra.mxu0 0
        %1584 = vmatprep.subr.bf16.mxu0 0
        %1585 = vmatpush1.bf16.msra.mxu0 0
        %1586 = vmatprep.subr.bf16.mxu0 0
        %1587 = vmatpush1.bf16.msra.mxu0 0
        %1588 = vmatprep.subr.bf16.mxu0 0
        %1589 = vmatpush1.bf16.msra.mxu0 0
        %1590 = vmatprep.subr.bf16.mxu0 0
        %1591 = vmatpush1.bf16.msra.mxu0 0
        %1592 = vmatprep.mubr.bf16.mxu0 0
        %1593 = vmatmul.mubr.bf16.gmra.mrb[0].mxu0 %v1473
        %v1594 = vpop.f32.mrb[0].mxu0
        %v1595 = vadd.f32 %v1510, %v1594
        %v1596 = vpop.f32.mrb[0].mxu0
        %v1597 = vpop.f32.mrb[0].mxu0
        %v1598 = vadd.f32 %v1510, %v1597
        %v1599 = vpop.f32.mrb[0].mxu0
        %1600 = vmatprep.mubr.bf16.mxu0 0
        %1601 = vmatmul.mubr.bf16.gmra.mrb[0].mxu0 %v1474
        %v1602 = vpop.f32.mrb[0].mxu0
        %v1603 = vadd.f32 %v1510, %v1602
        %v1604 = vpop.f32.mrb[0].mxu0
        %v1605 = vpop.f32.mrb[0].mxu0
        %v1606 = vadd.f32 %v1510, %v1605
        %v1607 = vpop.f32.mrb[0].mxu0
        %1608 = vmatprep.mubr.bf16.mxu0 0
        %1609 = vmatmul.mubr.bf16.gmra.mrb[0].mxu0 %v1475
        %v1610 = vpop.f32.mrb[0].mxu0
        %v1611 = vadd.f32 %v1510, %v1610
        %v1612 = vpop.f32.mrb[0].mxu0
        %v1613 = vpop.f32.mrb[0].mxu0
        %v1614 = vadd.f32 %v1510, %v1613
        %v1615 = vpop.f32.mrb[0].mxu0
        %1616 = vmatprep.mubr.bf16.mxu0 0
        %1617 = vmatmul.mubr.bf16.gmra.mrb[0].mxu0 %v1476
        %v1618 = vpop.f32.mrb[0].mxu0
        %v1619 = vadd.f32 %v1510, %v1618
        %v1620 = vpop.f32.mrb[0].mxu0
        %v1621 = vpop.f32.mrb[0].mxu0
        %v1622 = vadd.f32 %v1510, %v1621
        %v1623 = vpop.f32.mrb[0].mxu0
        %1624 = vmatprep.mubr.bf16.mxu0 0
        %1625 = vmatmul.mubr.bf16.gmra.mrb[0].mxu0 %v1477
        %v1626 = vpop.f32.mrb[0].mxu0
        %v1627 = vadd.f32 %v1510, %v1626
        %v1628 = vpop.f32.mrb[0].mxu0
        %v1629 = vpop.f32.mrb[0].mxu0
        %v1630 = vadd.f32 %v1510, %v1629
        %v1631 = vpop.f32.mrb[0].mxu0
        %1632 = vmatprep.mubr.bf16.mxu0 0
        %1633 = vmatmul.mubr.bf16.gmra.mrb[0].mxu0 %v1478
        %v1634 = vpop.f32.mrb[0].mxu0
        %v1635 = vadd.f32 %v1510, %v1634
        %v1636 = vpop.f32.mrb[0].mxu0
        %v1637 = vpop.f32.mrb[0].mxu0
        %v1638 = vadd.f32 %v1510, %v1637
        %v1639 = vpop.f32.mrb[0].mxu0
        %1640 = vmatprep.mubr.bf16.mxu0 0
        %1641 = vmatmul.mubr.bf16.gmra.mrb[0].mxu0 %v1479
        %v1642 = vpop.f32.mrb[0].mxu0
        %v1643 = vadd.f32 %v1510, %v1642
        %v1644 = vpop.f32.mrb[0].mxu0
        %v1645 = vpop.f32.mrb[0].mxu0
        %v1646 = vadd.f32 %v1510, %v1645
        %v1647 = vpop.f32.mrb[0].mxu0
        %1648 = vmatprep.mubr.bf16.mxu0 0
        %1649 = vmatmul.mubr.bf16.gmra.mrb[0].mxu0 %v1480
        %v1650 = vpop.f32.mrb[0].mxu0
        %v1651 = vadd.f32 %v1510, %v1650
        %v1652 = vpop.f32.mrb[0].mxu0
        %v1653 = vpop.f32.mrb[0].mxu0
        %v1654 = vadd.f32 %v1510, %v1653
        %v1655 = vpop.f32.mrb[0].mxu0
        %1656 = vmatprep.mubr.bf16.mxu0 0
        %1657 = vmatmul.mubr.bf16.gmra.mrb[0].mxu0 %v1481
        %v1658 = vpop.f32.mrb[0].mxu0
        %v1659 = vadd.f32 %v1510, %v1658
        %v1660 = vpop.f32.mrb[0].mxu0
        %v1661 = vpop.f32.mrb[0].mxu0
        %v1662 = vadd.f32 %v1510, %v1661
        %v1663 = vpop.f32.mrb[0].mxu0
        %1664 = vmatprep.mubr.bf16.mxu0 0
        %1665 = vmatmul.mubr.bf16.gmra.mrb[0].mxu0 %v1482
        %v1666 = vpop.f32.mrb[0].mxu0
        %v1667 = vadd.f32 %v1510, %v1666
        %v1668 = vpop.f32.mrb[0].mxu0
        %v1669 = vpop.f32.mrb[0].mxu0
        %v1670 = vadd.f32 %v1510, %v1669
        %v1671 = vpop.f32.mrb[0].mxu0
        %1672 = vmatprep.mubr.bf16.mxu0 0
        %1673 = vmatmul.mubr.bf16.gmra.mrb[0].mxu0 %v1483
        %v1674 = vpop.f32.mrb[0].mxu0
        %v1675 = vadd.f32 %v1510, %v1674
        %v1676 = vpop.f32.mrb[0].mxu0
        %v1677 = vpop.f32.mrb[0].mxu0
        %v1678 = vadd.f32 %v1510, %v1677
        %v1679 = vpop.f32.mrb[0].mxu0
        %1680 = vmatprep.mubr.bf16.mxu0 0
        %1681 = vmatmul.mubr.bf16.gmra.mrb[0].mxu0 %v1484
        %v1682 = vpop.f32.mrb[0].mxu0
        %v1683 = vadd.f32 %v1510, %v1682
        %v1684 = vpop.f32.mrb[0].mxu0
        %v1685 = vpop.f32.mrb[0].mxu0
        %v1686 = vadd.f32 %v1510, %v1685
        %v1687 = vpop.f32.mrb[0].mxu0
        %1688 = vmatprep.mubr.bf16.mxu0 0
        %1689 = vmatmul.mubr.bf16.gmra.mrb[0].mxu0 %v1485
        %v1690 = vpop.f32.mrb[0].mxu0
        %v1691 = vadd.f32 %v1510, %v1690
        %v1692 = vpop.f32.mrb[0].mxu0
        %v1693 = vpop.f32.mrb[0].mxu0
        %v1694 = vadd.f32 %v1510, %v1693
        %v1695 = vpop.f32.mrb[0].mxu0
        %1696 = vmatprep.mubr.bf16.mxu0 0
        %1697 = vmatmul.mubr.bf16.gmra.mrb[0].mxu0 %v1486
        %v1698 = vpop.f32.mrb[0].mxu0
        %v1699 = vadd.f32 %v1510, %v1698
        %v1700 = vpop.f32.mrb[0].mxu0
        %v1701 = vpop.f32.mrb[0].mxu0
        %v1702 = vadd.f32 %v1510, %v1701
        %v1703 = vpop.f32.mrb[0].mxu0
        %1704 = vmatprep.mubr.bf16.mxu0 0
        %1705 = vmatmul.mubr.bf16.gmra.mrb[0].mxu0 %v1487
        %v1706 = vpop.f32.mrb[0].mxu0
        %v1707 = vadd.f32 %v1510, %v1706
        %v1708 = vpop.f32.mrb[0].mxu0
        %v1709 = vpop.f32.mrb[0].mxu0
        %v1710 = vadd.f32 %v1510, %v1709
        %v1711 = vpop.f32.mrb[0].mxu0
        %1712 = vmatprep.mubr.bf16.mxu0 0
        %1713 = vmatmul.mubr.bf16.gmra.mrb[0].mxu0 %v1488
        %v1714 = vpop.f32.mrb[0].mxu0
        %v1715 = vadd.f32 %v1510, %v1714
        %v1716 = vpop.f32.mrb[0].mxu0
        %v1717 = vpop.f32.mrb[0].mxu0
        %v1718 = vadd.f32 %v1510, %v1717
        %v1719 = vpop.f32.mrb[0].mxu0
        %1720 = vdwg.mxu0
        %v1721 = vmax.f32 %v1595, 0.0
        %v1722 = vmax.f32 %v1598, 0.0
        %v1723 = vmax.f32 %v1603, 0.0
        %v1724 = vmax.f32 %v1606, 0.0
        %v1725 = vmax.f32 %v1611, 0.0
        %v1726 = vmax.f32 %v1614, 0.0
        %v1727 = vmax.f32 %v1619, 0.0
        %v1728 = vmax.f32 %v1622, 0.0
        %v1729 = vmax.f32 %v1627, 0.0
        %v1730 = vmax.f32 %v1630, 0.0
        %v1731 = vmax.f32 %v1635, 0.0
        %v1732 = vmax.f32 %v1638, 0.0
        %v1733 = vmax.f32 %v1643, 0.0
        %v1734 = vmax.f32 %v1646, 0.0
        %v1735 = vmax.f32 %v1651, 0.0
        %v1736 = vmax.f32 %v1654, 0.0
        %v1737 = vmax.f32 %v1659, 0.0
        %v1738 = vmax.f32 %v1662, 0.0
        %v1739 = vmax.f32 %v1667, 0.0
        %v1740 = vmax.f32 %v1670, 0.0
        %v1741 = vmax.f32 %v1675, 0.0
        %v1742 = vmax.f32 %v1678, 0.0
        %v1743 = vmax.f32 %v1683, 0.0
        %v1744 = vmax.f32 %v1686, 0.0
        %v1745 = vmax.f32 %v1691, 0.0
        %v1746 = vmax.f32 %v1694, 0.0
        %v1747 = vmax.f32 %v1699, 0.0
        %v1748 = vmax.f32 %v1702, 0.0
        %v1749 = vmax.f32 %v1707, 0.0
        %v1750 = vmax.f32 %v1710, 0.0
        %v1751 = vmax.f32 %v1715, 0.0
        %v1752 = vmax.f32 %v1718, 0.0
        %v1753 = vand.u32 2147483647, %v1595
        %v1754 = vand.u32 2147483647, %v1598
        %v1755 = vand.u32 2147483647, %v1603
        %v1756 = vand.u32 2147483647, %v1606
        %v1757 = vand.u32 2147483647, %v1611
        %v1758 = vand.u32 2147483647, %v1614
        %v1759 = vand.u32 2147483647, %v1619
        %v1760 = vand.u32 2147483647, %v1622
        %v1761 = vand.u32 2147483647, %v1627
        %v1762 = vand.u32 2147483647, %v1630
        %v1763 = vand.u32 2147483647, %v1635
        %v1764 = vand.u32 2147483647, %v1638
        %v1765 = vand.u32 2147483647, %v1643
        %v1766 = vand.u32 2147483647, %v1646
        %v1767 = vand.u32 2147483647, %v1651
        %v1768 = vand.u32 2147483647, %v1654
        %v1769 = vand.u32 2147483647, %v1659
        %v1770 = vand.u32 2147483647, %v1662
        %v1771 = vand.u32 2147483647, %v1667
        %v1772 = vand.u32 2147483647, %v1670
        %v1773 = vand.u32 2147483647, %v1675
        %v1774 = vand.u32 2147483647, %v1678
        %v1775 = vand.u32 2147483647, %v1683
        %v1776 = vand.u32 2147483647, %v1686
        %v1777 = vand.u32 2147483647, %v1691
        %v1778 = vand.u32 2147483647, %v1694
        %v1779 = vand.u32 2147483647, %v1699
        %v1780 = vand.u32 2147483647, %v1702
        %v1781 = vand.u32 2147483647, %v1707
        %v1782 = vand.u32 2147483647, %v1710
        %v1783 = vand.u32 2147483647, %v1715
        %v1784 = vand.u32 2147483647, %v1718
        %v1785 = vsub.f32 0.0, %v1753
        %v1786 = vsub.f32 0.0, %v1754
        %v1787 = vsub.f32 0.0, %v1755
        %v1788 = vsub.f32 0.0, %v1756
        %v1789 = vsub.f32 0.0, %v1757
        %v1790 = vsub.f32 0.0, %v1758
        %v1791 = vsub.f32 0.0, %v1759
        %v1792 = vsub.f32 0.0, %v1760
        %v1793 = vsub.f32 0.0, %v1761
        %v1794 = vsub.f32 0.0, %v1762
        %v1795 = vsub.f32 0.0, %v1763
        %v1796 = vsub.f32 0.0, %v1764
        %v1797 = vsub.f32 0.0, %v1765
        %v1798 = vsub.f32 0.0, %v1766
        %v1799 = vsub.f32 0.0, %v1767
        %v1800 = vsub.f32 0.0, %v1768
        %v1801 = vsub.f32 0.0, %v1769
        %v1802 = vsub.f32 0.0, %v1770
        %v1803 = vsub.f32 0.0, %v1771
        %v1804 = vsub.f32 0.0, %v1772
        %v1805 = vsub.f32 0.0, %v1773
        %v1806 = vsub.f32 0.0, %v1774
        %v1807 = vsub.f32 0.0, %v1775
        %v1808 = vsub.f32 0.0, %v1776
        %v1809 = vsub.f32 0.0, %v1777
        %v1810 = vsub.f32 0.0, %v1778
        %v1811 = vsub.f32 0.0, %v1779
        %v1812 = vsub.f32 0.0, %v1780
        %v1813 = vsub.f32 0.0, %v1781
        %v1814 = vsub.f32 0.0, %v1782
        %v1815 = vsub.f32 0.0, %v1783
        %v1816 = vsub.f32 0.0, %v1784
        %v1817 = vmul.f32 %v1785, 1.442695
        %v1818 = vpow.pop %v1817
        %v1819 = vmul.f32 %v1786, 1.442695
        %v1820 = vpow.pop %v1819
        %v1821 = vmul.f32 %v1787, 1.442695
        %v1822 = vpow.pop %v1821
        %v1823 = vmul.f32 %v1788, 1.442695
        %v1824 = vpow.pop %v1823
        %v1825 = vmul.f32 %v1789, 1.442695
        %v1826 = vpow.pop %v1825
        %v1827 = vmul.f32 %v1790, 1.442695
        %v1828 = vpow.pop %v1827
        %v1829 = vmul.f32 %v1791, 1.442695
        %v1830 = vpow.pop %v1829
        %v1831 = vmul.f32 %v1792, 1.442695
        %v1832 = vpow.pop %v1831
        %v1833 = vmul.f32 %v1793, 1.442695
        %v1834 = vpow.pop %v1833
        %v1835 = vmul.f32 %v1794, 1.442695
        %v1836 = vpow.pop %v1835
        %v1837 = vmul.f32 %v1795, 1.442695
        %v1838 = vpow.pop %v1837
        %v1839 = vmul.f32 %v1796, 1.442695
        %v1840 = vpow.pop %v1839
        %v1841 = vmul.f32 %v1797, 1.442695
        %v1842 = vpow.pop %v1841
        %v1843 = vmul.f32 %v1798, 1.442695
        %v1844 = vpow.pop %v1843
        %v1845 = vmul.f32 %v1799, 1.442695
        %v1846 = vpow.pop %v1845
        %v1847 = vmul.f32 %v1800, 1.442695
        %v1848 = vpow.pop %v1847
        %v1849 = vmul.f32 %v1801, 1.442695
        %v1850 = vpow.pop %v1849
        %v1851 = vmul.f32 %v1802, 1.442695
        %v1852 = vpow.pop %v1851
        %v1853 = vmul.f32 %v1803, 1.442695
        %v1854 = vpow.pop %v1853
        %v1855 = vmul.f32 %v1804, 1.442695
        %v1856 = vpow.pop %v1855
        %v1857 = vmul.f32 %v1805, 1.442695
        %v1858 = vpow.pop %v1857
        %v1859 = vmul.f32 %v1806, 1.442695
        %v1860 = vpow.pop %v1859
        %v1861 = vmul.f32 %v1807, 1.442695
        %v1862 = vpow.pop %v1861
        %v1863 = vmul.f32 %v1808, 1.442695
        %v1864 = vpow.pop %v1863
        %v1865 = vmul.f32 %v1809, 1.442695
        %v1866 = vpow.pop %v1865
        %v1867 = vmul.f32 %v1810, 1.442695
        %v1868 = vpow.pop %v1867
        %v1869 = vmul.f32 %v1811, 1.442695
        %v1870 = vpow.pop %v1869
        %v1871 = vmul.f32 %v1812, 1.442695
        %v1872 = vpow.pop %v1871
        %v1873 = vmul.f32 %v1813, 1.442695
        %v1874 = vpow.pop %v1873
        %v1875 = vmul.f32 %v1814, 1.442695
        %v1876 = vpow.pop %v1875
        %v1877 = vmul.f32 %v1815, 1.442695
        %v1878 = vpow.pop %v1877
        %v1879 = vmul.f32 %v1816, 1.442695
        %v1880 = vpow.pop %v1879
        %v1881 = vadd.f32 %v1818, 1.0
        %v1882 = vadd.f32 %v1820, 1.0
        %v1883 = vadd.f32 %v1822, 1.0
        %v1884 = vadd.f32 %v1824, 1.0
        %v1885 = vadd.f32 %v1826, 1.0
        %v1886 = vadd.f32 %v1828, 1.0
        %v1887 = vadd.f32 %v1830, 1.0
        %v1888 = vadd.f32 %v1832, 1.0
        %v1889 = vadd.f32 %v1834, 1.0
        %v1890 = vadd.f32 %v1836, 1.0
        %v1891 = vadd.f32 %v1838, 1.0
        %v1892 = vadd.f32 %v1840, 1.0
        %v1893 = vadd.f32 %v1842, 1.0
        %v1894 = vadd.f32 %v1844, 1.0
        %v1895 = vadd.f32 %v1846, 1.0
        %v1896 = vadd.f32 %v1848, 1.0
        %v1897 = vadd.f32 %v1850, 1.0
        %v1898 = vadd.f32 %v1852, 1.0
        %v1899 = vadd.f32 %v1854, 1.0
        %v1900 = vadd.f32 %v1856, 1.0
        %v1901 = vadd.f32 %v1858, 1.0
        %v1902 = vadd.f32 %v1860, 1.0
        %v1903 = vadd.f32 %v1862, 1.0
        %v1904 = vadd.f32 %v1864, 1.0
        %v1905 = vadd.f32 %v1866, 1.0
        %v1906 = vadd.f32 %v1868, 1.0
        %v1907 = vadd.f32 %v1870, 1.0
        %v1908 = vadd.f32 %v1872, 1.0
        %v1909 = vadd.f32 %v1874, 1.0
        %v1910 = vadd.f32 %v1876, 1.0
        %v1911 = vadd.f32 %v1878, 1.0
        %v1912 = vadd.f32 %v1880, 1.0
        %v1913 = vlog2.pop %v1881
        %v1914 = vmul.f32 %v1913, 0.6931472
        %v1915 = vlog2.pop %v1882
        %v1916 = vmul.f32 %v1915, 0.6931472
        %v1917 = vlog2.pop %v1883
        %v1918 = vmul.f32 %v1917, 0.6931472
        %v1919 = vlog2.pop %v1884
        %v1920 = vmul.f32 %v1919, 0.6931472
        %v1921 = vlog2.pop %v1885
        %v1922 = vmul.f32 %v1921, 0.6931472
        %v1923 = vlog2.pop %v1886
        %v1924 = vmul.f32 %v1923, 0.6931472
        %v1925 = vlog2.pop %v1887
        %v1926 = vmul.f32 %v1925, 0.6931472
        %v1927 = vlog2.pop %v1888
        %v1928 = vmul.f32 %v1927, 0.6931472
        %v1929 = vlog2.pop %v1889
        %v1930 = vmul.f32 %v1929, 0.6931472
        %v1931 = vlog2.pop %v1890
        %v1932 = vmul.f32 %v1931, 0.6931472
        %v1933 = vlog2.pop %v1891
        %v1934 = vmul.f32 %v1933, 0.6931472
        %v1935 = vlog2.pop %v1892
        %v1936 = vmul.f32 %v1935, 0.6931472
        %v1937 = vlog2.pop %v1893
        %v1938 = vmul.f32 %v1937, 0.6931472
        %v1939 = vlog2.pop %v1894
        %v1940 = vmul.f32 %v1939, 0.6931472
        %v1941 = vlog2.pop %v1895
        %v1942 = vmul.f32 %v1941, 0.6931472
        %v1943 = vlog2.pop %v1896
        %v1944 = vmul.f32 %v1943, 0.6931472
        %v1945 = vlog2.pop %v1897
        %v1946 = vmul.f32 %v1945, 0.6931472
        %v1947 = vlog2.pop %v1898
        %v1948 = vmul.f32 %v1947, 0.6931472
        %v1949 = vlog2.pop %v1899
        %v1950 = vmul.f32 %v1949, 0.6931472
        %v1951 = vlog2.pop %v1900
        %v1952 = vmul.f32 %v1951, 0.6931472
        %v1953 = vlog2.pop %v1901
        %v1954 = vmul.f32 %v1953, 0.6931472
        %v1955 = vlog2.pop %v1902
        %v1956 = vmul.f32 %v1955, 0.6931472
        %v1957 = vlog2.pop %v1903
        %v1958 = vmul.f32 %v1957, 0.6931472
        %v1959 = vlog2.pop %v1904
        %v1960 = vmul.f32 %v1959, 0.6931472
        %v1961 = vlog2.pop %v1905
        %v1962 = vmul.f32 %v1961, 0.6931472
        %v1963 = vlog2.pop %v1906
        %v1964 = vmul.f32 %v1963, 0.6931472
        %v1965 = vlog2.pop %v1907
        %v1966 = vmul.f32 %v1965, 0.6931472
        %v1967 = vlog2.pop %v1908
        %v1968 = vmul.f32 %v1967, 0.6931472
        %v1969 = vlog2.pop %v1909
        %v1970 = vmul.f32 %v1969, 0.6931472
        %v1971 = vlog2.pop %v1910
        %v1972 = vmul.f32 %v1971, 0.6931472
        %v1973 = vlog2.pop %v1911
        %v1974 = vmul.f32 %v1973, 0.6931472
        %v1975 = vlog2.pop %v1912
        %v1976 = vmul.f32 %v1975, 0.6931472
        %v1977 = vadd.f32 %v1721, %v1914
        %v1978 = vadd.f32 %v1722, %v1916
        %v1979 = vadd.f32 %v1723, %v1918
        %v1980 = vadd.f32 %v1724, %v1920
        %v1981 = vadd.f32 %v1725, %v1922
        %v1982 = vadd.f32 %v1726, %v1924
        %v1983 = vadd.f32 %v1727, %v1926
        %v1984 = vadd.f32 %v1728, %v1928
        %v1985 = vadd.f32 %v1729, %v1930
        %v1986 = vadd.f32 %v1730, %v1932
        %v1987 = vadd.f32 %v1731, %v1934
        %v1988 = vadd.f32 %v1732, %v1936
        %v1989 = vadd.f32 %v1733, %v1938
        %v1990 = vadd.f32 %v1734, %v1940
        %v1991 = vadd.f32 %v1735, %v1942
        %v1992 = vadd.f32 %v1736, %v1944
        %v1993 = vadd.f32 %v1737, %v1946
        %v1994 = vadd.f32 %v1738, %v1948
        %v1995 = vadd.f32 %v1739, %v1950
        %v1996 = vadd.f32 %v1740, %v1952
        %v1997 = vadd.f32 %v1741, %v1954
        %v1998 = vadd.f32 %v1742, %v1956
        %v1999 = vadd.f32 %v1743, %v1958
        %v2000 = vadd.f32 %v1744, %v1960
        %v2001 = vadd.f32 %v1745, %v1962
        %v2002 = vadd.f32 %v1746, %v1964
        %v2003 = vadd.f32 %v1747, %v1966
        %v2004 = vadd.f32 %v1748, %v1968
        %v2005 = vadd.f32 %v1749, %v1970
        %v2006 = vadd.f32 %v1750, %v1972
        %v2007 = vadd.f32 %v1751, %v1974
        %v2008 = vadd.f32 %v1752, %v1976
        %v2009 = vpack.c.bf16 %v1978, %v1977
        %v2010 = vpack.c.bf16 %v1980, %v1979
        %v2011 = vpack.c.bf16 %v1982, %v1981
        %v2012 = vpack.c.bf16 %v1984, %v1983
        %v2013 = vpack.c.bf16 %v1986, %v1985
        %v2014 = vpack.c.bf16 %v1988, %v1987
        %v2015 = vpack.c.bf16 %v1990, %v1989
        %v2016 = vpack.c.bf16 %v1992, %v1991
        %v2017 = vpack.c.bf16 %v1994, %v1993
        %v2018 = vpack.c.bf16 %v1996, %v1995
        %v2019 = vpack.c.bf16 %v1998, %v1997
        %v2020 = vpack.c.bf16 %v2000, %v1999
        %v2021 = vpack.c.bf16 %v2002, %v2001
        %v2022 = vpack.c.bf16 %v2004, %v2003
        %v2023 = vpack.c.bf16 %v2006, %v2005
        %v2024 = vpack.c.bf16 %v2008, %v2007
        %v2025 = vld [vmem:[#allocation7] sm:$0xf]
        %v2026 = vld [vmem:[#allocation7 + $0x4] sm:$0xf]
        %v2027 = vld [vmem:[#allocation7 + $0x8] sm:$0xf]
        %v2028 = vld [vmem:[#allocation7 + $0xc] sm:$0xf]
        %v2029 = vld [vmem:[#allocation7 + $0x10] sm:$0xf]
        %v2030 = vld [vmem:[#allocation7 + $0x14] sm:$0xf]
        %v2031 = vld [vmem:[#allocation7 + $0x18] sm:$0xf]
        %v2032 = vld [vmem:[#allocation7 + $0x1c] sm:$0xf]
        %v2033 = vld [vmem:[#allocation7 + $0x20] sm:$0xf]
        %v2034 = vld [vmem:[#allocation7 + $0x24] sm:$0xf]
        %v2035 = vld [vmem:[#allocation7 + $0x28] sm:$0xf]
        %v2036 = vld [vmem:[#allocation7 + $0x2c] sm:$0xf]
        %v2037 = vld [vmem:[#allocation7 + $0x30] sm:$0xf]
        %v2038 = vld [vmem:[#allocation7 + $0x34] sm:$0xf]
        %v2039 = vld [vmem:[#allocation7 + $0x38] sm:$0xf]
        %v2040 = vld [vmem:[#allocation7 + $0x3c] sm:$0xf]
        %v2057 = vunpack.c.l.b16 %v2025
        %v2058 = vunpack.c.l.b16 %v2026
        %v2059 = vunpack.c.l.b16 %v2027
        %v2060 = vunpack.c.l.b16 %v2028
        %v2061 = vunpack.c.l.b16 %v2029
        %v2062 = vunpack.c.l.b16 %v2030
        %v2063 = vunpack.c.l.b16 %v2031
        %v2064 = vunpack.c.l.b16 %v2032
        %v2065 = vunpack.c.l.b16 %v2033
        %v2066 = vunpack.c.l.b16 %v2034
        %v2067 = vunpack.c.l.b16 %v2035
        %v2068 = vunpack.c.l.b16 %v2036
        %v2069 = vunpack.c.l.b16 %v2037
        %v2070 = vunpack.c.l.b16 %v2038
        %v2071 = vunpack.c.l.b16 %v2039
        %v2072 = vunpack.c.l.b16 %v2040
        %v2073 = vpack.c.b16 %v2058, %v2057
        %v2074 = vpack.c.b16 %v2060, %v2059
        %v2075 = vpack.c.b16 %v2062, %v2061
        %v2076 = vpack.c.b16 %v2064, %v2063
        %v2077 = vpack.c.b16 %v2066, %v2065
        %v2078 = vpack.c.b16 %v2068, %v2067
        %v2079 = vpack.c.b16 %v2070, %v2069
        %v2080 = vpack.c.b16 %v2072, %v2071
        %2089 = vmatprep.subr.bf16.mxu0 0
        %2090 = vmatpush1.bf16.msra.mxu0 %v2073
        %2091 = vmatprep.subr.bf16.mxu0 0
        %2092 = vmatpush1.bf16.msra.mxu0 %v2074
        %2093 = vmatprep.subr.bf16.mxu0 0
        %2094 = vmatpush1.bf16.msra.mxu0 %v2075
        %2095 = vmatprep.subr.bf16.mxu0 0
        %2096 = vmatpush1.bf16.msra.mxu0 %v2076
        %2097 = vmatprep.subr.bf16.mxu0 0
        %2098 = vmatpush1.bf16.msra.mxu0 %v2077
        %2099 = vmatprep.subr.bf16.mxu0 0
        %2100 = vmatpush1.bf16.msra.mxu0 %v2078
        %2101 = vmatprep.subr.bf16.mxu0 0
        %2102 = vmatpush1.bf16.msra.mxu0 %v2079
        %2103 = vmatprep.subr.bf16.mxu0 0
        %2104 = vmatpush1.bf16.msra.mxu0 %v2080
        %2105 = vmatprep.subr.bf16.mxu0 0
        %2106 = vmatpush1.bf16.msra.mxu0 0
        %2107 = vmatprep.subr.bf16.mxu0 0
        %2108 = vmatpush1.bf16.msra.mxu0 0
        %2109 = vmatprep.subr.bf16.mxu0 0
        %2110 = vmatpush1.bf16.msra.mxu0 0
        %2111 = vmatprep.subr.bf16.mxu0 0
        %2112 = vmatpush1.bf16.msra.mxu0 0
        %2113 = vmatprep.subr.bf16.mxu0 0
        %2114 = vmatpush1.bf16.msra.mxu0 0
        %2115 = vmatprep.subr.bf16.mxu0 0
        %2116 = vmatpush1.bf16.msra.mxu0 0
        %2117 = vmatprep.subr.bf16.mxu0 0
        %2118 = vmatpush1.bf16.msra.mxu0 0
        %2119 = vmatprep.subr.bf16.mxu0 0
        %2120 = vmatpush1.bf16.msra.mxu0 0
        %2121 = vmatprep.mubr.bf16.mxu0 0
        %2122 = vmatmul.mubr.bf16.gmra.mrb[0].mxu0 %v2009
        %v2123 = vpop.f32.mrb[0].mxu0
        %v2124 = vadd.f32 0.0, %v2123
        %v2125 = vpop.f32.mrb[0].mxu0
        %v2126 = vpop.f32.mrb[0].mxu0
        %v2127 = vadd.f32 0.0, %v2126
        %v2128 = vpop.f32.mrb[0].mxu0
        %2129 = vmatprep.mubr.bf16.mxu0 0
        %2130 = vmatmul.mubr.bf16.gmra.mrb[0].mxu0 %v2010
        %v2131 = vpop.f32.mrb[0].mxu0
        %v2132 = vadd.f32 0.0, %v2131
        %v2133 = vpop.f32.mrb[0].mxu0
        %v2134 = vpop.f32.mrb[0].mxu0
        %v2135 = vadd.f32 0.0, %v2134
        %v2136 = vpop.f32.mrb[0].mxu0
        %2137 = vmatprep.mubr.bf16.mxu0 0
        %2138 = vmatmul.mubr.bf16.gmra.mrb[0].mxu0 %v2011
        %v2139 = vpop.f32.mrb[0].mxu0
        %v2140 = vadd.f32 0.0, %v2139
        %v2141 = vpop.f32.mrb[0].mxu0
        %v2142 = vpop.f32.mrb[0].mxu0
        %v2143 = vadd.f32 0.0, %v2142
        %v2144 = vpop.f32.mrb[0].mxu0
        %2145 = vmatprep.mubr.bf16.mxu0 0
        %2146 = vmatmul.mubr.bf16.gmra.mrb[0].mxu0 %v2012
        %v2147 = vpop.f32.mrb[0].mxu0
        %v2148 = vadd.f32 0.0, %v2147
        %v2149 = vpop.f32.mrb[0].mxu0
        %v2150 = vpop.f32.mrb[0].mxu0
        %v2151 = vadd.f32 0.0, %v2150
        %v2152 = vpop.f32.mrb[0].mxu0
        %2153 = vmatprep.mubr.bf16.mxu0 0
        %2154 = vmatmul.mubr.bf16.gmra.mrb[0].mxu0 %v2013
        %v2155 = vpop.f32.mrb[0].mxu0
        %v2156 = vadd.f32 0.0, %v2155
        %v2157 = vpop.f32.mrb[0].mxu0
        %v2158 = vpop.f32.mrb[0].mxu0
        %v2159 = vadd.f32 0.0, %v2158
        %v2160 = vpop.f32.mrb[0].mxu0
        %2161 = vmatprep.mubr.bf16.mxu0 0
        %2162 = vmatmul.mubr.bf16.gmra.mrb[0].mxu0 %v2014
        %v2163 = vpop.f32.mrb[0].mxu0
        %v2164 = vadd.f32 0.0, %v2163
        %v2165 = vpop.f32.mrb[0].mxu0
        %v2166 = vpop.f32.mrb[0].mxu0
        %v2167 = vadd.f32 0.0, %v2166
        %v2168 = vpop.f32.mrb[0].mxu0
        %2169 = vmatprep.mubr.bf16.mxu0 0
        %2170 = vmatmul.mubr.bf16.gmra.mrb[0].mxu0 %v2015
        %v2171 = vpop.f32.mrb[0].mxu0
        %v2172 = vadd.f32 0.0, %v2171
        %v2173 = vpop.f32.mrb[0].mxu0
        %v2174 = vpop.f32.mrb[0].mxu0
        %v2175 = vadd.f32 0.0, %v2174
        %v2176 = vpop.f32.mrb[0].mxu0
        %2177 = vmatprep.mubr.bf16.mxu0 0
        %2178 = vmatmul.mubr.bf16.gmra.mrb[0].mxu0 %v2016
        %v2179 = vpop.f32.mrb[0].mxu0
        %v2180 = vadd.f32 0.0, %v2179
        %v2181 = vpop.f32.mrb[0].mxu0
        %v2182 = vpop.f32.mrb[0].mxu0
        %v2183 = vadd.f32 0.0, %v2182
        %v2184 = vpop.f32.mrb[0].mxu0
        %2185 = vmatprep.mubr.bf16.mxu0 0
        %2186 = vmatmul.mubr.bf16.gmra.mrb[0].mxu0 %v2017
        %v2187 = vpop.f32.mrb[0].mxu0
        %v2188 = vadd.f32 0.0, %v2187
        %v2189 = vpop.f32.mrb[0].mxu0
        %v2190 = vpop.f32.mrb[0].mxu0
        %v2191 = vadd.f32 0.0, %v2190
        %v2192 = vpop.f32.mrb[0].mxu0
        %2193 = vmatprep.mubr.bf16.mxu0 0
        %2194 = vmatmul.mubr.bf16.gmra.mrb[0].mxu0 %v2018
        %v2195 = vpop.f32.mrb[0].mxu0
        %v2196 = vadd.f32 0.0, %v2195
        %v2197 = vpop.f32.mrb[0].mxu0
        %v2198 = vpop.f32.mrb[0].mxu0
        %v2199 = vadd.f32 0.0, %v2198
        %v2200 = vpop.f32.mrb[0].mxu0
        %2201 = vmatprep.mubr.bf16.mxu0 0
        %2202 = vmatmul.mubr.bf16.gmra.mrb[0].mxu0 %v2019
        %v2203 = vpop.f32.mrb[0].mxu0
        %v2204 = vadd.f32 0.0, %v2203
        %v2205 = vpop.f32.mrb[0].mxu0
        %v2206 = vpop.f32.mrb[0].mxu0
        %v2207 = vadd.f32 0.0, %v2206
        %v2208 = vpop.f32.mrb[0].mxu0
        %2209 = vmatprep.mubr.bf16.mxu0 0
        %2210 = vmatmul.mubr.bf16.gmra.mrb[0].mxu0 %v2020
        %v2211 = vpop.f32.mrb[0].mxu0
        %v2212 = vadd.f32 0.0, %v2211
        %v2213 = vpop.f32.mrb[0].mxu0
        %v2214 = vpop.f32.mrb[0].mxu0
        %v2215 = vadd.f32 0.0, %v2214
        %v2216 = vpop.f32.mrb[0].mxu0
        %2217 = vmatprep.mubr.bf16.mxu0 0
        %2218 = vmatmul.mubr.bf16.gmra.mrb[0].mxu0 %v2021
        %v2219 = vpop.f32.mrb[0].mxu0
        %v2220 = vadd.f32 0.0, %v2219
        %v2221 = vpop.f32.mrb[0].mxu0
        %v2222 = vpop.f32.mrb[0].mxu0
        %v2223 = vadd.f32 0.0, %v2222
        %v2224 = vpop.f32.mrb[0].mxu0
        %2225 = vmatprep.mubr.bf16.mxu0 0
        %2226 = vmatmul.mubr.bf16.gmra.mrb[0].mxu0 %v2022
        %v2227 = vpop.f32.mrb[0].mxu0
        %v2228 = vadd.f32 0.0, %v2227
        %v2229 = vpop.f32.mrb[0].mxu0
        %v2230 = vpop.f32.mrb[0].mxu0
        %v2231 = vadd.f32 0.0, %v2230
        %v2232 = vpop.f32.mrb[0].mxu0
        %2233 = vmatprep.mubr.bf16.mxu0 0
        %2234 = vmatmul.mubr.bf16.gmra.mrb[0].mxu0 %v2023
        %v2235 = vpop.f32.mrb[0].mxu0
        %v2236 = vadd.f32 0.0, %v2235
        %v2237 = vpop.f32.mrb[0].mxu0
        %v2238 = vpop.f32.mrb[0].mxu0
        %v2239 = vadd.f32 0.0, %v2238
        %v2240 = vpop.f32.mrb[0].mxu0
        %2241 = vmatprep.mubr.bf16.mxu0 0
        %2242 = vmatmul.mubr.bf16.gmra.mrb[0].mxu0 %v2024
        %v2243 = vpop.f32.mrb[0].mxu0
        %v2244 = vadd.f32 0.0, %v2243
        %v2245 = vpop.f32.mrb[0].mxu0
        %v2246 = vpop.f32.mrb[0].mxu0
        %v2247 = vadd.f32 0.0, %v2246
        %v2248 = vpop.f32.mrb[0].mxu0
        %2249 = vdwg.mxu0
        %v2250 = vld [vmem:[#allocation12] sm:$0xff]
        %v2251 = vld [vmem:[#allocation12 + $0x8] sm:$0xff]
        %v2252 = vld [vmem:[#allocation12 + $0x10] sm:$0xff]
        %v2253 = vld [vmem:[#allocation12 + $0x18] sm:$0xff]
        %v2254 = vld [vmem:[#allocation12 + $0x20] sm:$0xff]
        %v2255 = vld [vmem:[#allocation12 + $0x28] sm:$0xff]
        %v2256 = vld [vmem:[#allocation12 + $0x30] sm:$0xff]
        %v2257 = vld [vmem:[#allocation12 + $0x38] sm:$0xff]
        %v2258 = vld [vmem:[#allocation12 + $0x40] sm:$0xff]
        %v2259 = vld [vmem:[#allocation12 + $0x48] sm:$0xff]
        %v2260 = vld [vmem:[#allocation12 + $0x50] sm:$0xff]
        %v2261 = vld [vmem:[#allocation12 + $0x58] sm:$0xff]
        %v2262 = vld [vmem:[#allocation12 + $0x60] sm:$0xff]
        %v2263 = vld [vmem:[#allocation12 + $0x68] sm:$0xff]
        %v2264 = vld [vmem:[#allocation12 + $0x70] sm:$0xff]
        %v2265 = vld [vmem:[#allocation12 + $0x78] sm:$0xff]
        %v2266 = vld [vmem:[#allocation12 + $0x80] sm:$0xff]
        %v2267 = vld [vmem:[#allocation12 + $0x88] sm:$0xff]
        %v2268 = vld [vmem:[#allocation12 + $0x90] sm:$0xff]
        %v2269 = vld [vmem:[#allocation12 + $0x98] sm:$0xff]
        %v2270 = vld [vmem:[#allocation12 + $0xa0] sm:$0xff]
        %v2271 = vld [vmem:[#allocation12 + $0xa8] sm:$0xff]
        %v2272 = vld [vmem:[#allocation12 + $0xb0] sm:$0xff]
        %v2273 = vld [vmem:[#allocation12 + $0xb8] sm:$0xff]
        %v2274 = vld [vmem:[#allocation12 + $0xc0] sm:$0xff]
        %v2275 = vld [vmem:[#allocation12 + $0xc8] sm:$0xff]
        %v2276 = vld [vmem:[#allocation12 + $0xd0] sm:$0xff]
        %v2277 = vld [vmem:[#allocation12 + $0xd8] sm:$0xff]
        %v2278 = vld [vmem:[#allocation12 + $0xe0] sm:$0xff]
        %v2279 = vld [vmem:[#allocation12 + $0xe8] sm:$0xff]
        %v2280 = vld [vmem:[#allocation12 + $0xf0] sm:$0xff]
        %v2281 = vld [vmem:[#allocation12 + $0xf8] sm:$0xff]
        %v2314 = vunpack.c.l.b16 %v2250
        %v2315 = vunpack.c.h.b16 %v2250
        %v2316 = vunpack.c.l.b16 %v2251
        %v2317 = vunpack.c.h.b16 %v2251
        %v2318 = vunpack.c.l.b16 %v2252
        %v2319 = vunpack.c.h.b16 %v2252
        %v2320 = vunpack.c.l.b16 %v2253
        %v2321 = vunpack.c.h.b16 %v2253
        %v2322 = vunpack.c.l.b16 %v2254
        %v2323 = vunpack.c.h.b16 %v2254
        %v2324 = vunpack.c.l.b16 %v2255
        %v2325 = vunpack.c.h.b16 %v2255
        %v2326 = vunpack.c.l.b16 %v2256
        %v2327 = vunpack.c.h.b16 %v2256
        %v2328 = vunpack.c.l.b16 %v2257
        %v2329 = vunpack.c.h.b16 %v2257
        %v2330 = vunpack.c.l.b16 %v2258
        %v2331 = vunpack.c.h.b16 %v2258
        %v2332 = vunpack.c.l.b16 %v2259
        %v2333 = vunpack.c.h.b16 %v2259
        %v2334 = vunpack.c.l.b16 %v2260
        %v2335 = vunpack.c.h.b16 %v2260
        %v2336 = vunpack.c.l.b16 %v2261
        %v2337 = vunpack.c.h.b16 %v2261
        %v2338 = vunpack.c.l.b16 %v2262
        %v2339 = vunpack.c.h.b16 %v2262
        %v2340 = vunpack.c.l.b16 %v2263
        %v2341 = vunpack.c.h.b16 %v2263
        %v2342 = vunpack.c.l.b16 %v2264
        %v2343 = vunpack.c.h.b16 %v2264
        %v2344 = vunpack.c.l.b16 %v2265
        %v2345 = vunpack.c.h.b16 %v2265
        %v2346 = vunpack.c.l.b16 %v2266
        %v2347 = vunpack.c.h.b16 %v2266
        %v2348 = vunpack.c.l.b16 %v2267
        %v2349 = vunpack.c.h.b16 %v2267
        %v2350 = vunpack.c.l.b16 %v2268
        %v2351 = vunpack.c.h.b16 %v2268
        %v2352 = vunpack.c.l.b16 %v2269
        %v2353 = vunpack.c.h.b16 %v2269
        %v2354 = vunpack.c.l.b16 %v2270
        %v2355 = vunpack.c.h.b16 %v2270
        %v2356 = vunpack.c.l.b16 %v2271
        %v2357 = vunpack.c.h.b16 %v2271
        %v2358 = vunpack.c.l.b16 %v2272
        %v2359 = vunpack.c.h.b16 %v2272
        %v2360 = vunpack.c.l.b16 %v2273
        %v2361 = vunpack.c.h.b16 %v2273
        %v2362 = vunpack.c.l.b16 %v2274
        %v2363 = vunpack.c.h.b16 %v2274
        %v2364 = vunpack.c.l.b16 %v2275
        %v2365 = vunpack.c.h.b16 %v2275
        %v2366 = vunpack.c.l.b16 %v2276
        %v2367 = vunpack.c.h.b16 %v2276
        %v2368 = vunpack.c.l.b16 %v2277
        %v2369 = vunpack.c.h.b16 %v2277
        %v2370 = vunpack.c.l.b16 %v2278
        %v2371 = vunpack.c.h.b16 %v2278
        %v2372 = vunpack.c.l.b16 %v2279
        %v2373 = vunpack.c.h.b16 %v2279
        %v2374 = vunpack.c.l.b16 %v2280
        %v2375 = vunpack.c.h.b16 %v2280
        %v2376 = vunpack.c.l.b16 %v2281
        %v2377 = vunpack.c.h.b16 %v2281
        %v2378 = vpack.c.b16 %v2318, %v2314
        %v2379 = vpack.c.b16 %v2319, %v2315
        %v2380 = vpack.c.b16 %v2320, %v2316
        %v2381 = vpack.c.b16 %v2321, %v2317
        %v2382 = vpack.c.b16 %v2326, %v2322
        %v2383 = vpack.c.b16 %v2327, %v2323
        %v2384 = vpack.c.b16 %v2328, %v2324
        %v2385 = vpack.c.b16 %v2329, %v2325
        %v2386 = vpack.c.b16 %v2334, %v2330
        %v2387 = vpack.c.b16 %v2335, %v2331
        %v2388 = vpack.c.b16 %v2336, %v2332
        %v2389 = vpack.c.b16 %v2337, %v2333
        %v2390 = vpack.c.b16 %v2342, %v2338
        %v2391 = vpack.c.b16 %v2343, %v2339
        %v2392 = vpack.c.b16 %v2344, %v2340
        %v2393 = vpack.c.b16 %v2345, %v2341
        %v2394 = vpack.c.b16 %v2350, %v2346
        %v2395 = vpack.c.b16 %v2351, %v2347
        %v2396 = vpack.c.b16 %v2352, %v2348
        %v2397 = vpack.c.b16 %v2353, %v2349
        %v2398 = vpack.c.b16 %v2358, %v2354
        %v2399 = vpack.c.b16 %v2359, %v2355
        %v2400 = vpack.c.b16 %v2360, %v2356
        %v2401 = vpack.c.b16 %v2361, %v2357
        %v2402 = vpack.c.b16 %v2366, %v2362
        %v2403 = vpack.c.b16 %v2367, %v2363
        %v2404 = vpack.c.b16 %v2368, %v2364
        %v2405 = vpack.c.b16 %v2369, %v2365
        %v2406 = vpack.c.b16 %v2374, %v2370
        %v2407 = vpack.c.b16 %v2375, %v2371
        %v2408 = vpack.c.b16 %v2376, %v2372
        %v2409 = vpack.c.b16 %v2377, %v2373
        %2442 = vmatprep.subr.bf16.mxu0 %v2379
        %2443 = vmatpush1.bf16.msra.mxu0 %v2378
        %2444 = vmatprep.subr.bf16.mxu0 %v2383
        %2445 = vmatpush1.bf16.msra.mxu0 %v2382
        %2446 = vmatprep.subr.bf16.mxu0 %v2387
        %2447 = vmatpush1.bf16.msra.mxu0 %v2386
        %2448 = vmatprep.subr.bf16.mxu0 %v2391
        %2449 = vmatpush1.bf16.msra.mxu0 %v2390
        %2450 = vmatprep.subr.bf16.mxu0 %v2395
        %2451 = vmatpush1.bf16.msra.mxu0 %v2394
        %2452 = vmatprep.subr.bf16.mxu0 %v2399
        %2453 = vmatpush1.bf16.msra.mxu0 %v2398
        %2454 = vmatprep.subr.bf16.mxu0 %v2403
        %2455 = vmatpush1.bf16.msra.mxu0 %v2402
        %2456 = vmatprep.subr.bf16.mxu0 %v2407
        %2457 = vmatpush1.bf16.msra.mxu0 %v2406
        %2458 = vmatprep.subr.bf16.mxu0 0
        %2459 = vmatpush1.bf16.msra.mxu0 0
        %2460 = vmatprep.subr.bf16.mxu0 0
        %2461 = vmatpush1.bf16.msra.mxu0 0
        %2462 = vmatprep.subr.bf16.mxu0 0
        %2463 = vmatpush1.bf16.msra.mxu0 0
        %2464 = vmatprep.subr.bf16.mxu0 0
        %2465 = vmatpush1.bf16.msra.mxu0 0
        %2466 = vmatprep.subr.bf16.mxu0 0
        %2467 = vmatpush1.bf16.msra.mxu0 0
        %2468 = vmatprep.subr.bf16.mxu0 0
        %2469 = vmatpush1.bf16.msra.mxu0 0
        %2470 = vmatprep.subr.bf16.mxu0 0
        %2471 = vmatpush1.bf16.msra.mxu0 0
        %2472 = vmatprep.subr.bf16.mxu0 0
        %2473 = vmatpush1.bf16.msra.mxu0 0
        %2474 = vmatprep.mubr.bf16.mxu0 0
        %2475 = vmatmul.mubr.bf16.gmra.mrb[0].mxu0 %v1473
        %v2476 = vpop.f32.mrb[0].mxu0
        %v2477 = vadd.f32 0.0, %v2476
        %v2478 = vpop.f32.mrb[0].mxu0
        %v2479 = vadd.f32 0.0, %v2478
        %v2480 = vpop.f32.mrb[0].mxu0
        %v2481 = vadd.f32 0.0, %v2480
        %v2482 = vpop.f32.mrb[0].mxu0
        %v2483 = vadd.f32 0.0, %v2482
        %2484 = vmatprep.mubr.bf16.mxu0 0
        %2485 = vmatmul.mubr.bf16.gmra.mrb[0].mxu0 %v1474
        %v2486 = vpop.f32.mrb[0].mxu0
        %v2487 = vadd.f32 0.0, %v2486
        %v2488 = vpop.f32.mrb[0].mxu0
        %v2489 = vadd.f32 0.0, %v2488
        %v2490 = vpop.f32.mrb[0].mxu0
        %v2491 = vadd.f32 0.0, %v2490
        %v2492 = vpop.f32.mrb[0].mxu0
        %v2493 = vadd.f32 0.0, %v2492
        %2494 = vmatprep.mubr.bf16.mxu0 0
        %2495 = vmatmul.mubr.bf16.gmra.mrb[0].mxu0 %v1475
        %v2496 = vpop.f32.mrb[0].mxu0
        %v2497 = vadd.f32 0.0, %v2496
        %v2498 = vpop.f32.mrb[0].mxu0
        %v2499 = vadd.f32 0.0, %v2498
        %v2500 = vpop.f32.mrb[0].mxu0
        %v2501 = vadd.f32 0.0, %v2500
        %v2502 = vpop.f32.mrb[0].mxu0
        %v2503 = vadd.f32 0.0, %v2502
        %2504 = vmatprep.mubr.bf16.mxu0 0
        %2505 = vmatmul.mubr.bf16.gmra.mrb[0].mxu0 %v1476
        %v2506 = vpop.f32.mrb[0].mxu0
        %v2507 = vadd.f32 0.0, %v2506
        %v2508 = vpop.f32.mrb[0].mxu0
        %v2509 = vadd.f32 0.0, %v2508
        %v2510 = vpop.f32.mrb[0].mxu0
        %v2511 = vadd.f32 0.0, %v2510
        %v2512 = vpop.f32.mrb[0].mxu0
        %v2513 = vadd.f32 0.0, %v2512
        %2514 = vmatprep.mubr.bf16.mxu0 0
        %2515 = vmatmul.mubr.bf16.gmra.mrb[0].mxu0 %v1477
        %v2516 = vpop.f32.mrb[0].mxu0
        %v2517 = vadd.f32 0.0, %v2516
        %v2518 = vpop.f32.mrb[0].mxu0
        %v2519 = vadd.f32 0.0, %v2518
        %v2520 = vpop.f32.mrb[0].mxu0
        %v2521 = vadd.f32 0.0, %v2520
        %v2522 = vpop.f32.mrb[0].mxu0
        %v2523 = vadd.f32 0.0, %v2522
        %2524 = vmatprep.mubr.bf16.mxu0 0
        %2525 = vmatmul.mubr.bf16.gmra.mrb[0].mxu0 %v1478
        %v2526 = vpop.f32.mrb[0].mxu0
        %v2527 = vadd.f32 0.0, %v2526
        %v2528 = vpop.f32.mrb[0].mxu0
        %v2529 = vadd.f32 0.0, %v2528
        %v2530 = vpop.f32.mrb[0].mxu0
        %v2531 = vadd.f32 0.0, %v2530
        %v2532 = vpop.f32.mrb[0].mxu0
        %v2533 = vadd.f32 0.0, %v2532
        %2534 = vmatprep.mubr.bf16.mxu0 0
        %2535 = vmatmul.mubr.bf16.gmra.mrb[0].mxu0 %v1479
        %v2536 = vpop.f32.mrb[0].mxu0
        %v2537 = vadd.f32 0.0, %v2536
        %v2538 = vpop.f32.mrb[0].mxu0
        %v2539 = vadd.f32 0.0, %v2538
        %v2540 = vpop.f32.mrb[0].mxu0
        %v2541 = vadd.f32 0.0, %v2540
        %v2542 = vpop.f32.mrb[0].mxu0
        %v2543 = vadd.f32 0.0, %v2542
        %2544 = vmatprep.mubr.bf16.mxu0 0
        %2545 = vmatmul.mubr.bf16.gmra.mrb[0].mxu0 %v1480
        %v2546 = vpop.f32.mrb[0].mxu0
        %v2547 = vadd.f32 0.0, %v2546
        %v2548 = vpop.f32.mrb[0].mxu0
        %v2549 = vadd.f32 0.0, %v2548
        %v2550 = vpop.f32.mrb[0].mxu0
        %v2551 = vadd.f32 0.0, %v2550
        %v2552 = vpop.f32.mrb[0].mxu0
        %v2553 = vadd.f32 0.0, %v2552
        %2554 = vmatprep.mubr.bf16.mxu0 0
        %2555 = vmatmul.mubr.bf16.gmra.mrb[0].mxu0 %v1481
        %v2556 = vpop.f32.mrb[0].mxu0
        %v2557 = vadd.f32 0.0, %v2556
        %v2558 = vpop.f32.mrb[0].mxu0
        %v2559 = vadd.f32 0.0, %v2558
        %v2560 = vpop.f32.mrb[0].mxu0
        %v2561 = vadd.f32 0.0, %v2560
        %v2562 = vpop.f32.mrb[0].mxu0
        %v2563 = vadd.f32 0.0, %v2562
        %2564 = vmatprep.mubr.bf16.mxu0 0
        %2565 = vmatmul.mubr.bf16.gmra.mrb[0].mxu0 %v1482
        %v2566 = vpop.f32.mrb[0].mxu0
        %v2567 = vadd.f32 0.0, %v2566
        %v2568 = vpop.f32.mrb[0].mxu0
        %v2569 = vadd.f32 0.0, %v2568
        %v2570 = vpop.f32.mrb[0].mxu0
        %v2571 = vadd.f32 0.0, %v2570
        %v2572 = vpop.f32.mrb[0].mxu0
        %v2573 = vadd.f32 0.0, %v2572
        %2574 = vmatprep.mubr.bf16.mxu0 0
        %2575 = vmatmul.mubr.bf16.gmra.mrb[0].mxu0 %v1483
        %v2576 = vpop.f32.mrb[0].mxu0
        %v2577 = vadd.f32 0.0, %v2576
        %v2578 = vpop.f32.mrb[0].mxu0
        %v2579 = vadd.f32 0.0, %v2578
        %v2580 = vpop.f32.mrb[0].mxu0
        %v2581 = vadd.f32 0.0, %v2580
        %v2582 = vpop.f32.mrb[0].mxu0
        %v2583 = vadd.f32 0.0, %v2582
        %2584 = vmatprep.mubr.bf16.mxu0 0
        %2585 = vmatmul.mubr.bf16.gmra.mrb[0].mxu0 %v1484
        %v2586 = vpop.f32.mrb[0].mxu0
        %v2587 = vadd.f32 0.0, %v2586
        %v2588 = vpop.f32.mrb[0].mxu0
        %v2589 = vadd.f32 0.0, %v2588
        %v2590 = vpop.f32.mrb[0].mxu0
        %v2591 = vadd.f32 0.0, %v2590
        %v2592 = vpop.f32.mrb[0].mxu0
        %v2593 = vadd.f32 0.0, %v2592
        %2594 = vmatprep.mubr.bf16.mxu0 0
        %2595 = vmatmul.mubr.bf16.gmra.mrb[0].mxu0 %v1485
        %v2596 = vpop.f32.mrb[0].mxu0
        %v2597 = vadd.f32 0.0, %v2596
        %v2598 = vpop.f32.mrb[0].mxu0
        %v2599 = vadd.f32 0.0, %v2598
        %v2600 = vpop.f32.mrb[0].mxu0
        %v2601 = vadd.f32 0.0, %v2600
        %v2602 = vpop.f32.mrb[0].mxu0
        %v2603 = vadd.f32 0.0, %v2602
        %2604 = vmatprep.mubr.bf16.mxu0 0
        %2605 = vmatmul.mubr.bf16.gmra.mrb[0].mxu0 %v1486
        %v2606 = vpop.f32.mrb[0].mxu0
        %v2607 = vadd.f32 0.0, %v2606
        %v2608 = vpop.f32.mrb[0].mxu0
        %v2609 = vadd.f32 0.0, %v2608
        %v2610 = vpop.f32.mrb[0].mxu0
        %v2611 = vadd.f32 0.0, %v2610
        %v2612 = vpop.f32.mrb[0].mxu0
        %v2613 = vadd.f32 0.0, %v2612
        %2614 = vmatprep.mubr.bf16.mxu0 0
        %2615 = vmatmul.mubr.bf16.gmra.mrb[0].mxu0 %v1487
        %v2616 = vpop.f32.mrb[0].mxu0
        %v2617 = vadd.f32 0.0, %v2616
        %v2618 = vpop.f32.mrb[0].mxu0
        %v2619 = vadd.f32 0.0, %v2618
        %v2620 = vpop.f32.mrb[0].mxu0
        %v2621 = vadd.f32 0.0, %v2620
        %v2622 = vpop.f32.mrb[0].mxu0
        %v2623 = vadd.f32 0.0, %v2622
        %2624 = vmatprep.mubr.bf16.mxu0 0
        %2625 = vmatmul.mubr.bf16.gmra.mrb[0].mxu0 %v1488
        %v2626 = vpop.f32.mrb[0].mxu0
        %v2627 = vadd.f32 0.0, %v2626
        %v2628 = vpop.f32.mrb[0].mxu0
        %v2629 = vadd.f32 0.0, %v2628
        %v2630 = vpop.f32.mrb[0].mxu0
        %v2631 = vadd.f32 0.0, %v2630
        %v2632 = vpop.f32.mrb[0].mxu0
        %v2633 = vadd.f32 0.0, %v2632
        %2634 = vdwg.mxu0
        %2635 = vmatprep.subr.bf16.mxu0 %v2381
        %2636 = vmatpush1.bf16.msra.mxu0 %v2380
        %2637 = vmatprep.subr.bf16.mxu0 %v2385
        %2638 = vmatpush1.bf16.msra.mxu0 %v2384
        %2639 = vmatprep.subr.bf16.mxu0 %v2389
        %2640 = vmatpush1.bf16.msra.mxu0 %v2388
        %2641 = vmatprep.subr.bf16.mxu0 %v2393
        %2642 = vmatpush1.bf16.msra.mxu0 %v2392
        %2643 = vmatprep.subr.bf16.mxu0 %v2397
        %2644 = vmatpush1.bf16.msra.mxu0 %v2396
        %2645 = vmatprep.subr.bf16.mxu0 %v2401
        %2646 = vmatpush1.bf16.msra.mxu0 %v2400
        %2647 = vmatprep.subr.bf16.mxu0 %v2405
        %2648 = vmatpush1.bf16.msra.mxu0 %v2404
        %2649 = vmatprep.subr.bf16.mxu0 %v2409
        %2650 = vmatpush1.bf16.msra.mxu0 %v2408
        %2651 = vmatprep.subr.bf16.mxu0 0
        %2652 = vmatpush1.bf16.msra.mxu0 0
        %2653 = vmatprep.subr.bf16.mxu0 0
        %2654 = vmatpush1.bf16.msra.mxu0 0
        %2655 = vmatprep.subr.bf16.mxu0 0
        %2656 = vmatpush1.bf16.msra.mxu0 0
        %2657 = vmatprep.subr.bf16.mxu0 0
        %2658 = vmatpush1.bf16.msra.mxu0 0
        %2659 = vmatprep.subr.bf16.mxu0 0
        %2660 = vmatpush1.bf16.msra.mxu0 0
        %2661 = vmatprep.subr.bf16.mxu0 0
        %2662 = vmatpush1.bf16.msra.mxu0 0
        %2663 = vmatprep.subr.bf16.mxu0 0
        %2664 = vmatpush1.bf16.msra.mxu0 0
        %2665 = vmatprep.subr.bf16.mxu0 0
        %2666 = vmatpush1.bf16.msra.mxu0 0
        %2667 = vmatprep.mubr.bf16.mxu0 0
        %2668 = vmatmul.mubr.bf16.gmra.mrb[0].mxu0 %v1473
        %v2669 = vpop.f32.mrb[0].mxu0
        %v2670 = vadd.f32 0.0, %v2669
        %v2671 = vpop.f32.mrb[0].mxu0
        %v2672 = vadd.f32 0.0, %v2671
        %v2673 = vpop.f32.mrb[0].mxu0
        %v2674 = vadd.f32 0.0, %v2673
        %v2675 = vpop.f32.mrb[0].mxu0
        %v2676 = vadd.f32 0.0, %v2675
        %2677 = vmatprep.mubr.bf16.mxu0 0
        %2678 = vmatmul.mubr.bf16.gmra.mrb[0].mxu0 %v1474
        %v2679 = vpop.f32.mrb[0].mxu0
        %v2680 = vadd.f32 0.0, %v2679
        %v2681 = vpop.f32.mrb[0].mxu0
        %v2682 = vadd.f32 0.0, %v2681
        %v2683 = vpop.f32.mrb[0].mxu0
        %v2684 = vadd.f32 0.0, %v2683
        %v2685 = vpop.f32.mrb[0].mxu0
        %v2686 = vadd.f32 0.0, %v2685
        %2687 = vmatprep.mubr.bf16.mxu0 0
        %2688 = vmatmul.mubr.bf16.gmra.mrb[0].mxu0 %v1475
        %v2689 = vpop.f32.mrb[0].mxu0
        %v2690 = vadd.f32 0.0, %v2689
        %v2691 = vpop.f32.mrb[0].mxu0
        %v2692 = vadd.f32 0.0, %v2691
        %v2693 = vpop.f32.mrb[0].mxu0
        %v2694 = vadd.f32 0.0, %v2693
        %v2695 = vpop.f32.mrb[0].mxu0
        %v2696 = vadd.f32 0.0, %v2695
        %2697 = vmatprep.mubr.bf16.mxu0 0
        %2698 = vmatmul.mubr.bf16.gmra.mrb[0].mxu0 %v1476
        %v2699 = vpop.f32.mrb[0].mxu0
        %v2700 = vadd.f32 0.0, %v2699
        %v2701 = vpop.f32.mrb[0].mxu0
        %v2702 = vadd.f32 0.0, %v2701
        %v2703 = vpop.f32.mrb[0].mxu0
        %v2704 = vadd.f32 0.0, %v2703
        %v2705 = vpop.f32.mrb[0].mxu0
        %v2706 = vadd.f32 0.0, %v2705
        %2707 = vmatprep.mubr.bf16.mxu0 0
        %2708 = vmatmul.mubr.bf16.gmra.mrb[0].mxu0 %v1477
        %v2709 = vpop.f32.mrb[0].mxu0
        %v2710 = vadd.f32 0.0, %v2709
        %v2711 = vpop.f32.mrb[0].mxu0
        %v2712 = vadd.f32 0.0, %v2711
        %v2713 = vpop.f32.mrb[0].mxu0
        %v2714 = vadd.f32 0.0, %v2713
        %v2715 = vpop.f32.mrb[0].mxu0
        %v2716 = vadd.f32 0.0, %v2715
        %2717 = vmatprep.mubr.bf16.mxu0 0
        %2718 = vmatmul.mubr.bf16.gmra.mrb[0].mxu0 %v1478
        %v2719 = vpop.f32.mrb[0].mxu0
        %v2720 = vadd.f32 0.0, %v2719
        %v2721 = vpop.f32.mrb[0].mxu0
        %v2722 = vadd.f32 0.0, %v2721
        %v2723 = vpop.f32.mrb[0].mxu0
        %v2724 = vadd.f32 0.0, %v2723
        %v2725 = vpop.f32.mrb[0].mxu0
        %v2726 = vadd.f32 0.0, %v2725
        %2727 = vmatprep.mubr.bf16.mxu0 0
        %2728 = vmatmul.mubr.bf16.gmra.mrb[0].mxu0 %v1479
        %v2729 = vpop.f32.mrb[0].mxu0
        %v2730 = vadd.f32 0.0, %v2729
        %v2731 = vpop.f32.mrb[0].mxu0
        %v2732 = vadd.f32 0.0, %v2731
        %v2733 = vpop.f32.mrb[0].mxu0
        %v2734 = vadd.f32 0.0, %v2733
        %v2735 = vpop.f32.mrb[0].mxu0
        %v2736 = vadd.f32 0.0, %v2735
        %2737 = vmatprep.mubr.bf16.mxu0 0
        %2738 = vmatmul.mubr.bf16.gmra.mrb[0].mxu0 %v1480
        %v2739 = vpop.f32.mrb[0].mxu0
        %v2740 = vadd.f32 0.0, %v2739
        %v2741 = vpop.f32.mrb[0].mxu0
        %v2742 = vadd.f32 0.0, %v2741
        %v2743 = vpop.f32.mrb[0].mxu0
        %v2744 = vadd.f32 0.0, %v2743
        %v2745 = vpop.f32.mrb[0].mxu0
        %v2746 = vadd.f32 0.0, %v2745
        %2747 = vmatprep.mubr.bf16.mxu0 0
        %2748 = vmatmul.mubr.bf16.gmra.mrb[0].mxu0 %v1481
        %v2749 = vpop.f32.mrb[0].mxu0
        %v2750 = vadd.f32 0.0, %v2749
        %v2751 = vpop.f32.mrb[0].mxu0
        %v2752 = vadd.f32 0.0, %v2751
        %v2753 = vpop.f32.mrb[0].mxu0
        %v2754 = vadd.f32 0.0, %v2753
        %v2755 = vpop.f32.mrb[0].mxu0
        %v2756 = vadd.f32 0.0, %v2755
        %2757 = vmatprep.mubr.bf16.mxu0 0
        %2758 = vmatmul.mubr.bf16.gmra.mrb[0].mxu0 %v1482
        %v2759 = vpop.f32.mrb[0].mxu0
        %v2760 = vadd.f32 0.0, %v2759
        %v2761 = vpop.f32.mrb[0].mxu0
        %v2762 = vadd.f32 0.0, %v2761
        %v2763 = vpop.f32.mrb[0].mxu0
        %v2764 = vadd.f32 0.0, %v2763
        %v2765 = vpop.f32.mrb[0].mxu0
        %v2766 = vadd.f32 0.0, %v2765
        %2767 = vmatprep.mubr.bf16.mxu0 0
        %2768 = vmatmul.mubr.bf16.gmra.mrb[0].mxu0 %v1483
        %v2769 = vpop.f32.mrb[0].mxu0
        %v2770 = vadd.f32 0.0, %v2769
        %v2771 = vpop.f32.mrb[0].mxu0
        %v2772 = vadd.f32 0.0, %v2771
        %v2773 = vpop.f32.mrb[0].mxu0
        %v2774 = vadd.f32 0.0, %v2773
        %v2775 = vpop.f32.mrb[0].mxu0
        %v2776 = vadd.f32 0.0, %v2775
        %2777 = vmatprep.mubr.bf16.mxu0 0
        %2778 = vmatmul.mubr.bf16.gmra.mrb[0].mxu0 %v1484
        %v2779 = vpop.f32.mrb[0].mxu0
        %v2780 = vadd.f32 0.0, %v2779
        %v2781 = vpop.f32.mrb[0].mxu0
        %v2782 = vadd.f32 0.0, %v2781
        %v2783 = vpop.f32.mrb[0].mxu0
        %v2784 = vadd.f32 0.0, %v2783
        %v2785 = vpop.f32.mrb[0].mxu0
        %v2786 = vadd.f32 0.0, %v2785
        %2787 = vmatprep.mubr.bf16.mxu0 0
        %2788 = vmatmul.mubr.bf16.gmra.mrb[0].mxu0 %v1485
        %v2789 = vpop.f32.mrb[0].mxu0
        %v2790 = vadd.f32 0.0, %v2789
        %v2791 = vpop.f32.mrb[0].mxu0
        %v2792 = vadd.f32 0.0, %v2791
        %v2793 = vpop.f32.mrb[0].mxu0
        %v2794 = vadd.f32 0.0, %v2793
        %v2795 = vpop.f32.mrb[0].mxu0
        %v2796 = vadd.f32 0.0, %v2795
        %2797 = vmatprep.mubr.bf16.mxu0 0
        %2798 = vmatmul.mubr.bf16.gmra.mrb[0].mxu0 %v1486
        %v2799 = vpop.f32.mrb[0].mxu0
        %v2800 = vadd.f32 0.0, %v2799
        %v2801 = vpop.f32.mrb[0].mxu0
        %v2802 = vadd.f32 0.0, %v2801
        %v2803 = vpop.f32.mrb[0].mxu0
        %v2804 = vadd.f32 0.0, %v2803
        %v2805 = vpop.f32.mrb[0].mxu0
        %v2806 = vadd.f32 0.0, %v2805
        %2807 = vmatprep.mubr.bf16.mxu0 0
        %2808 = vmatmul.mubr.bf16.gmra.mrb[0].mxu0 %v1487
        %v2809 = vpop.f32.mrb[0].mxu0
        %v2810 = vadd.f32 0.0, %v2809
        %v2811 = vpop.f32.mrb[0].mxu0
        %v2812 = vadd.f32 0.0, %v2811
        %v2813 = vpop.f32.mrb[0].mxu0
        %v2814 = vadd.f32 0.0, %v2813
        %v2815 = vpop.f32.mrb[0].mxu0
        %v2816 = vadd.f32 0.0, %v2815
        %2817 = vmatprep.mubr.bf16.mxu0 0
        %2818 = vmatmul.mubr.bf16.gmra.mrb[0].mxu0 %v1488
        %v2819 = vpop.f32.mrb[0].mxu0
        %v2820 = vadd.f32 0.0, %v2819
        %v2821 = vpop.f32.mrb[0].mxu0
        %v2822 = vadd.f32 0.0, %v2821
        %v2823 = vpop.f32.mrb[0].mxu0
        %v2824 = vadd.f32 0.0, %v2823
        %v2825 = vpop.f32.mrb[0].mxu0
        %v2826 = vadd.f32 0.0, %v2825
        %2827 = vdwg.mxu0
        %v2828 = vld [vmem:[%s8] sm:$0x3]
        %v2830 = vlaneseq
        %v2831 = vshrl.u32 %v2830, 7
        %v2832 = vsub.s32 0, %v2831
        %v2833 = vrot.slane %v2828, %v2832
        %v2834 = vlaneseq
        %v2835 = vshrl.u32 %v2834, 7
        %v2836 = vsub.s32 1, %v2835
        %v2837 = vrot.slane %v2828, %v2836
        %v2840 = vmul.f32 %v2124, %v2833
        %v2841 = vmul.f32 %v2124, %v2837
        %v2842 = vmul.f32 %v2127, %v2833
        %v2843 = vmul.f32 %v2127, %v2837
        %v2844 = vmul.f32 %v2132, %v2833
        %v2845 = vmul.f32 %v2132, %v2837
        %v2846 = vmul.f32 %v2135, %v2833
        %v2847 = vmul.f32 %v2135, %v2837
        %v2848 = vmul.f32 %v2140, %v2833
        %v2849 = vmul.f32 %v2140, %v2837
        %v2850 = vmul.f32 %v2143, %v2833
        %v2851 = vmul.f32 %v2143, %v2837
        %v2852 = vmul.f32 %v2148, %v2833
        %v2853 = vmul.f32 %v2148, %v2837
        %v2854 = vmul.f32 %v2151, %v2833
        %v2855 = vmul.f32 %v2151, %v2837
        %v2856 = vmul.f32 %v2156, %v2833
        %v2857 = vmul.f32 %v2156, %v2837
        %v2858 = vmul.f32 %v2159, %v2833
        %v2859 = vmul.f32 %v2159, %v2837
        %v2860 = vmul.f32 %v2164, %v2833
        %v2861 = vmul.f32 %v2164, %v2837
        %v2862 = vmul.f32 %v2167, %v2833
        %v2863 = vmul.f32 %v2167, %v2837
        %v2864 = vmul.f32 %v2172, %v2833
        %v2865 = vmul.f32 %v2172, %v2837
        %v2866 = vmul.f32 %v2175, %v2833
        %v2867 = vmul.f32 %v2175, %v2837
        %v2868 = vmul.f32 %v2180, %v2833
        %v2869 = vmul.f32 %v2180, %v2837
        %v2870 = vmul.f32 %v2183, %v2833
        %v2871 = vmul.f32 %v2183, %v2837
        %v2872 = vmul.f32 %v2188, %v2833
        %v2873 = vmul.f32 %v2188, %v2837
        %v2874 = vmul.f32 %v2191, %v2833
        %v2875 = vmul.f32 %v2191, %v2837
        %v2876 = vmul.f32 %v2196, %v2833
        %v2877 = vmul.f32 %v2196, %v2837
        %v2878 = vmul.f32 %v2199, %v2833
        %v2879 = vmul.f32 %v2199, %v2837
        %v2880 = vmul.f32 %v2204, %v2833
        %v2881 = vmul.f32 %v2204, %v2837
        %v2882 = vmul.f32 %v2207, %v2833
        %v2883 = vmul.f32 %v2207, %v2837
        %v2884 = vmul.f32 %v2212, %v2833
        %v2885 = vmul.f32 %v2212, %v2837
        %v2886 = vmul.f32 %v2215, %v2833
        %v2887 = vmul.f32 %v2215, %v2837
        %v2888 = vmul.f32 %v2220, %v2833
        %v2889 = vmul.f32 %v2220, %v2837
        %v2890 = vmul.f32 %v2223, %v2833
        %v2891 = vmul.f32 %v2223, %v2837
        %v2892 = vmul.f32 %v2228, %v2833
        %v2893 = vmul.f32 %v2228, %v2837
        %v2894 = vmul.f32 %v2231, %v2833
        %v2895 = vmul.f32 %v2231, %v2837
        %v2896 = vmul.f32 %v2236, %v2833
        %v2897 = vmul.f32 %v2236, %v2837
        %v2898 = vmul.f32 %v2239, %v2833
        %v2899 = vmul.f32 %v2239, %v2837
        %v2900 = vmul.f32 %v2244, %v2833
        %v2901 = vmul.f32 %v2244, %v2837
        %v2902 = vmul.f32 %v2247, %v2833
        %v2903 = vmul.f32 %v2247, %v2837
        %v2904 = vmul.f32 %v2840, 1.442695
        %v2905 = vpow.pop %v2904
        %v2906 = vmul.f32 %v2841, 1.442695
        %v2907 = vpow.pop %v2906
        %v2908 = vmul.f32 %v2842, 1.442695
        %v2909 = vpow.pop %v2908
        %v2910 = vmul.f32 %v2843, 1.442695
        %v2911 = vpow.pop %v2910
        %v2912 = vmul.f32 %v2844, 1.442695
        %v2913 = vpow.pop %v2912
        %v2914 = vmul.f32 %v2845, 1.442695
        %v2915 = vpow.pop %v2914
        %v2916 = vmul.f32 %v2846, 1.442695
        %v2917 = vpow.pop %v2916
        %v2918 = vmul.f32 %v2847, 1.442695
        %v2919 = vpow.pop %v2918
        %v2920 = vmul.f32 %v2848, 1.442695
        %v2921 = vpow.pop %v2920
        %v2922 = vmul.f32 %v2849, 1.442695
        %v2923 = vpow.pop %v2922
        %v2924 = vmul.f32 %v2850, 1.442695
        %v2925 = vpow.pop %v2924
        %v2926 = vmul.f32 %v2851, 1.442695
        %v2927 = vpow.pop %v2926
        %v2928 = vmul.f32 %v2852, 1.442695
        %v2929 = vpow.pop %v2928
        %v2930 = vmul.f32 %v2853, 1.442695
        %v2931 = vpow.pop %v2930
        %v2932 = vmul.f32 %v2854, 1.442695
        %v2933 = vpow.pop %v2932
        %v2934 = vmul.f32 %v2855, 1.442695
        %v2935 = vpow.pop %v2934
        %v2936 = vmul.f32 %v2856, 1.442695
        %v2937 = vpow.pop %v2936
        %v2938 = vmul.f32 %v2857, 1.442695
        %v2939 = vpow.pop %v2938
        %v2940 = vmul.f32 %v2858, 1.442695
        %v2941 = vpow.pop %v2940
        %v2942 = vmul.f32 %v2859, 1.442695
        %v2943 = vpow.pop %v2942
        %v2944 = vmul.f32 %v2860, 1.442695
        %v2945 = vpow.pop %v2944
        %v2946 = vmul.f32 %v2861, 1.442695
        %v2947 = vpow.pop %v2946
        %v2948 = vmul.f32 %v2862, 1.442695
        %v2949 = vpow.pop %v2948
        %v2950 = vmul.f32 %v2863, 1.442695
        %v2951 = vpow.pop %v2950
        %v2952 = vmul.f32 %v2864, 1.442695
        %v2953 = vpow.pop %v2952
        %v2954 = vmul.f32 %v2865, 1.442695
        %v2955 = vpow.pop %v2954
        %v2956 = vmul.f32 %v2866, 1.442695
        %v2957 = vpow.pop %v2956
        %v2958 = vmul.f32 %v2867, 1.442695
        %v2959 = vpow.pop %v2958
        %v2960 = vmul.f32 %v2868, 1.442695
        %v2961 = vpow.pop %v2960
        %v2962 = vmul.f32 %v2869, 1.442695
        %v2963 = vpow.pop %v2962
        %v2964 = vmul.f32 %v2870, 1.442695
        %v2965 = vpow.pop %v2964
        %v2966 = vmul.f32 %v2871, 1.442695
        %v2967 = vpow.pop %v2966
        %v2968 = vmul.f32 %v2872, 1.442695
        %v2969 = vpow.pop %v2968
        %v2970 = vmul.f32 %v2873, 1.442695
        %v2971 = vpow.pop %v2970
        %v2972 = vmul.f32 %v2874, 1.442695
        %v2973 = vpow.pop %v2972
        %v2974 = vmul.f32 %v2875, 1.442695
        %v2975 = vpow.pop %v2974
        %v2976 = vmul.f32 %v2876, 1.442695
        %v2977 = vpow.pop %v2976
        %v2978 = vmul.f32 %v2877, 1.442695
        %v2979 = vpow.pop %v2978
        %v2980 = vmul.f32 %v2878, 1.442695
        %v2981 = vpow.pop %v2980
        %v2982 = vmul.f32 %v2879, 1.442695
        %v2983 = vpow.pop %v2982
        %v2984 = vmul.f32 %v2880, 1.442695
        %v2985 = vpow.pop %v2984
        %v2986 = vmul.f32 %v2881, 1.442695
        %v2987 = vpow.pop %v2986
        %v2988 = vmul.f32 %v2882, 1.442695
        %v2989 = vpow.pop %v2988
        %v2990 = vmul.f32 %v2883, 1.442695
        %v2991 = vpow.pop %v2990
        %v2992 = vmul.f32 %v2884, 1.442695
        %v2993 = vpow.pop %v2992
        %v2994 = vmul.f32 %v2885, 1.442695
        %v2995 = vpow.pop %v2994
        %v2996 = vmul.f32 %v2886, 1.442695
        %v2997 = vpow.pop %v2996
        %v2998 = vmul.f32 %v2887, 1.442695
        %v2999 = vpow.pop %v2998
        %v3000 = vmul.f32 %v2888, 1.442695
        %v3001 = vpow.pop %v3000
        %v3002 = vmul.f32 %v2889, 1.442695
        %v3003 = vpow.pop %v3002
        %v3004 = vmul.f32 %v2890, 1.442695
        %v3005 = vpow.pop %v3004
        %v3006 = vmul.f32 %v2891, 1.442695
        %v3007 = vpow.pop %v3006
        %v3008 = vmul.f32 %v2892, 1.442695
        %v3009 = vpow.pop %v3008
        %v3010 = vmul.f32 %v2893, 1.442695
        %v3011 = vpow.pop %v3010
        %v3012 = vmul.f32 %v2894, 1.442695
        %v3013 = vpow.pop %v3012
        %v3014 = vmul.f32 %v2895, 1.442695
        %v3015 = vpow.pop %v3014
        %v3016 = vmul.f32 %v2896, 1.442695
        %v3017 = vpow.pop %v3016
        %v3018 = vmul.f32 %v2897, 1.442695
        %v3019 = vpow.pop %v3018
        %v3020 = vmul.f32 %v2898, 1.442695
        %v3021 = vpow.pop %v3020
        %v3022 = vmul.f32 %v2899, 1.442695
        %v3023 = vpow.pop %v3022
        %v3024 = vmul.f32 %v2900, 1.442695
        %v3025 = vpow.pop %v3024
        %v3026 = vmul.f32 %v2901, 1.442695
        %v3027 = vpow.pop %v3026
        %v3028 = vmul.f32 %v2902, 1.442695
        %v3029 = vpow.pop %v3028
        %v3030 = vmul.f32 %v2903, 1.442695
        %v3031 = vpow.pop %v3030
        %v3032 = vmul.f32 %v2124, %v1441
        %v3033 = vmul.f32 %v2127, %v1442
        %v3034 = vmul.f32 %v2132, %v1443
        %v3035 = vmul.f32 %v2135, %v1444
        %v3036 = vmul.f32 %v2140, %v1445
        %v3037 = vmul.f32 %v2143, %v1446
        %v3038 = vmul.f32 %v2148, %v1447
        %v3039 = vmul.f32 %v2151, %v1448
        %v3040 = vmul.f32 %v2156, %v1449
        %v3041 = vmul.f32 %v2159, %v1450
        %v3042 = vmul.f32 %v2164, %v1451
        %v3043 = vmul.f32 %v2167, %v1452
        %v3044 = vmul.f32 %v2172, %v1453
        %v3045 = vmul.f32 %v2175, %v1454
        %v3046 = vmul.f32 %v2180, %v1455
        %v3047 = vmul.f32 %v2183, %v1456
        %v3048 = vmul.f32 %v2188, %v1457
        %v3049 = vmul.f32 %v2191, %v1458
        %v3050 = vmul.f32 %v2196, %v1459
        %v3051 = vmul.f32 %v2199, %v1460
        %v3052 = vmul.f32 %v2204, %v1461
        %v3053 = vmul.f32 %v2207, %v1462
        %v3054 = vmul.f32 %v2212, %v1463
        %v3055 = vmul.f32 %v2215, %v1464
        %v3056 = vmul.f32 %v2220, %v1465
        %v3057 = vmul.f32 %v2223, %v1466
        %v3058 = vmul.f32 %v2228, %v1467
        %v3059 = vmul.f32 %v2231, %v1468
        %v3060 = vmul.f32 %v2236, %v1469
        %v3061 = vmul.f32 %v2239, %v1470
        %v3062 = vmul.f32 %v2244, %v1471
        %v3063 = vmul.f32 %v2247, %v1472
        %v3064 = vmul.f32 %v3032, %v2477
        %v3065 = vmul.f32 %v3032, %v2479
        %v3066 = vmul.f32 %v3033, %v2481
        %v3067 = vmul.f32 %v3033, %v2483
        %v3068 = vmul.f32 %v3034, %v2487
        %v3069 = vmul.f32 %v3034, %v2489
        %v3070 = vmul.f32 %v3035, %v2491
        %v3071 = vmul.f32 %v3035, %v2493
        %v3072 = vmul.f32 %v3036, %v2497
        %v3073 = vmul.f32 %v3036, %v2499
        %v3074 = vmul.f32 %v3037, %v2501
        %v3075 = vmul.f32 %v3037, %v2503
        %v3076 = vmul.f32 %v3038, %v2507
        %v3077 = vmul.f32 %v3038, %v2509
        %v3078 = vmul.f32 %v3039, %v2511
        %v3079 = vmul.f32 %v3039, %v2513
        %v3080 = vmul.f32 %v3040, %v2517
        %v3081 = vmul.f32 %v3040, %v2519
        %v3082 = vmul.f32 %v3041, %v2521
        %v3083 = vmul.f32 %v3041, %v2523
        %v3084 = vmul.f32 %v3042, %v2527
        %v3085 = vmul.f32 %v3042, %v2529
        %v3086 = vmul.f32 %v3043, %v2531
        %v3087 = vmul.f32 %v3043, %v2533
        %v3088 = vmul.f32 %v3044, %v2537
        %v3089 = vmul.f32 %v3044, %v2539
        %v3090 = vmul.f32 %v3045, %v2541
        %v3091 = vmul.f32 %v3045, %v2543
        %v3092 = vmul.f32 %v3046, %v2547
        %v3093 = vmul.f32 %v3046, %v2549
        %v3094 = vmul.f32 %v3047, %v2551
        %v3095 = vmul.f32 %v3047, %v2553
        %v3096 = vmul.f32 %v3048, %v2557
        %v3097 = vmul.f32 %v3048, %v2559
        %v3098 = vmul.f32 %v3049, %v2561
        %v3099 = vmul.f32 %v3049, %v2563
        %v3100 = vmul.f32 %v3050, %v2567
        %v3101 = vmul.f32 %v3050, %v2569
        %v3102 = vmul.f32 %v3051, %v2571
        %v3103 = vmul.f32 %v3051, %v2573
        %v3104 = vmul.f32 %v3052, %v2577
        %v3105 = vmul.f32 %v3052, %v2579
        %v3106 = vmul.f32 %v3053, %v2581
        %v3107 = vmul.f32 %v3053, %v2583
        %v3108 = vmul.f32 %v3054, %v2587
        %v3109 = vmul.f32 %v3054, %v2589
        %v3110 = vmul.f32 %v3055, %v2591
        %v3111 = vmul.f32 %v3055, %v2593
        %v3112 = vmul.f32 %v3056, %v2597
        %v3113 = vmul.f32 %v3056, %v2599
        %v3114 = vmul.f32 %v3057, %v2601
        %v3115 = vmul.f32 %v3057, %v2603
        %v3116 = vmul.f32 %v3058, %v2607
        %v3117 = vmul.f32 %v3058, %v2609
        %v3118 = vmul.f32 %v3059, %v2611
        %v3119 = vmul.f32 %v3059, %v2613
        %v3120 = vmul.f32 %v3060, %v2617
        %v3121 = vmul.f32 %v3060, %v2619
        %v3122 = vmul.f32 %v3061, %v2621
        %v3123 = vmul.f32 %v3061, %v2623
        %v3124 = vmul.f32 %v3062, %v2627
        %v3125 = vmul.f32 %v3062, %v2629
        %v3126 = vmul.f32 %v3063, %v2631
        %v3127 = vmul.f32 %v3063, %v2633
        %v3128 = vadd.s32 %v871, 8
        %v3129 = vadd.s32 %v871, 16
        %v3130 = vadd.s32 %v871, 24
        %v3131 = vadd.s32 %v871, 32
        %v3132 = vadd.s32 %v871, 40
        %v3133 = vadd.s32 %v871, 48
        %v3134 = vadd.s32 %v871, 56
        %v3135 = vadd.s32 %v871, 64
        %v3136 = vadd.s32 %v871, 72
        %v3137 = vadd.s32 %v871, 80
        %v3138 = vadd.s32 %v871, 88
        %v3139 = vadd.s32 %v871, 96
        %v3140 = vadd.s32 %v871, 104
        %v3141 = vadd.s32 %v871, 112
        %v3142 = vadd.s32 %v871, 120
        %v3143 = vadd.s32 %v871, 128
        %v3144 = vadd.s32 %v871, 136
        %v3145 = vadd.s32 %v871, 144
        %v3146 = vadd.s32 %v871, 152
        %v3147 = vadd.s32 %v871, 160
        %v3148 = vadd.s32 %v871, 168
        %v3149 = vadd.s32 %v871, 176
        %v3150 = vadd.s32 %v871, 184
        %v3151 = vadd.s32 %v871, 192
        %v3152 = vadd.s32 %v871, 200
        %v3153 = vadd.s32 %v871, 208
        %v3154 = vadd.s32 %v871, 216
        %v3155 = vadd.s32 %v871, 224
        %v3156 = vadd.s32 %v871, 232
        %v3157 = vadd.s32 %v871, 240
        %v3158 = vadd.s32 %v871, 248
        %v3159 = vrot.slane %v2905, 7
        %v3160 = vrot.slane %v2907, 7
        %v3161 = vrot.slane %v2909, 7
        %v3162 = vrot.slane %v2911, 7
        %v3163 = vrot.slane %v2913, 7
        %v3164 = vrot.slane %v2915, 7
        %v3165 = vrot.slane %v2917, 7
        %v3166 = vrot.slane %v2919, 7
        %v3167 = vrot.slane %v2921, 7
        %v3168 = vrot.slane %v2923, 7
        %v3169 = vrot.slane %v2925, 7
        %v3170 = vrot.slane %v2927, 7
        %v3171 = vrot.slane %v2929, 7
        %v3172 = vrot.slane %v2931, 7
        %v3173 = vrot.slane %v2933, 7
        %v3174 = vrot.slane %v2935, 7
        %v3175 = vrot.slane %v2937, 7
        %v3176 = vrot.slane %v2939, 7
        %v3177 = vrot.slane %v2941, 7
        %v3178 = vrot.slane %v2943, 7
        %v3179 = vrot.slane %v2945, 7
        %v3180 = vrot.slane %v2947, 7
        %v3181 = vrot.slane %v2949, 7
        %v3182 = vrot.slane %v2951, 7
        %v3183 = vrot.slane %v2953, 7
        %v3184 = vrot.slane %v2955, 7
        %v3185 = vrot.slane %v2957, 7
        %v3186 = vrot.slane %v2959, 7
        %v3187 = vrot.slane %v2961, 7
        %v3188 = vrot.slane %v2963, 7
        %v3189 = vrot.slane %v2965, 7
        %v3190 = vrot.slane %v2967, 7
        %v3191 = vrot.slane %v2969, 7
        %v3192 = vrot.slane %v2971, 7
        %v3193 = vrot.slane %v2973, 7
        %v3194 = vrot.slane %v2975, 7
        %v3195 = vrot.slane %v2977, 7
        %v3196 = vrot.slane %v2979, 7
        %v3197 = vrot.slane %v2981, 7
        %v3198 = vrot.slane %v2983, 7
        %v3199 = vrot.slane %v2985, 7
        %v3200 = vrot.slane %v2987, 7
        %v3201 = vrot.slane %v2989, 7
        %v3202 = vrot.slane %v2991, 7
        %v3203 = vrot.slane %v2993, 7
        %v3204 = vrot.slane %v2995, 7
        %v3205 = vrot.slane %v2997, 7
        %v3206 = vrot.slane %v2999, 7
        %v3207 = vrot.slane %v3001, 7
        %v3208 = vrot.slane %v3003, 7
        %v3209 = vrot.slane %v3005, 7
        %v3210 = vrot.slane %v3007, 7
        %v3211 = vrot.slane %v3009, 7
        %v3212 = vrot.slane %v3011, 7
        %v3213 = vrot.slane %v3013, 7
        %v3214 = vrot.slane %v3015, 7
        %v3215 = vrot.slane %v3017, 7
        %v3216 = vrot.slane %v3019, 7
        %v3217 = vrot.slane %v3021, 7
        %v3218 = vrot.slane %v3023, 7
        %v3219 = vrot.slane %v3025, 7
        %v3220 = vrot.slane %v3027, 7
        %v3221 = vrot.slane %v3029, 7
        %v3222 = vrot.slane %v3031, 7
        %v3223 = vsel %vm1142, %v3219, %v3221
        %v3224 = vsel %vm1142, %v3220, %v3222
        %v3225 = vsel %vm1142, %v3217, %v3219
        %v3226 = vsel %vm1142, %v3218, %v3220
        %v3227 = vsel %vm1142, %v3215, %v3217
        %v3228 = vsel %vm1142, %v3216, %v3218
        %v3229 = vsel %vm1142, %v3213, %v3215
        %v3230 = vsel %vm1142, %v3214, %v3216
        %v3231 = vsel %vm1142, %v3211, %v3213
        %v3232 = vsel %vm1142, %v3212, %v3214
        %v3233 = vsel %vm1142, %v3209, %v3211
        %v3234 = vsel %vm1142, %v3210, %v3212
        %v3235 = vsel %vm1142, %v3207, %v3209
        %v3236 = vsel %vm1142, %v3208, %v3210
        %v3237 = vsel %vm1142, %v3205, %v3207
        %v3238 = vsel %vm1142, %v3206, %v3208
        %v3239 = vsel %vm1142, %v3203, %v3205
        %v3240 = vsel %vm1142, %v3204, %v3206
        %v3241 = vsel %vm1142, %v3201, %v3203
        %v3242 = vsel %vm1142, %v3202, %v3204
        %v3243 = vsel %vm1142, %v3199, %v3201
        %v3244 = vsel %vm1142, %v3200, %v3202
        %v3245 = vsel %vm1142, %v3197, %v3199
        %v3246 = vsel %vm1142, %v3198, %v3200
        %v3247 = vsel %vm1142, %v3195, %v3197
        %v3248 = vsel %vm1142, %v3196, %v3198
        %v3249 = vsel %vm1142, %v3193, %v3195
        %v3250 = vsel %vm1142, %v3194, %v3196
        %v3251 = vsel %vm1142, %v3191, %v3193
        %v3252 = vsel %vm1142, %v3192, %v3194
        %v3253 = vsel %vm1142, %v3189, %v3191
        %v3254 = vsel %vm1142, %v3190, %v3192
        %v3255 = vsel %vm1142, %v3187, %v3189
        %v3256 = vsel %vm1142, %v3188, %v3190
        %v3257 = vsel %vm1142, %v3185, %v3187
        %v3258 = vsel %vm1142, %v3186, %v3188
        %v3259 = vsel %vm1142, %v3183, %v3185
        %v3260 = vsel %vm1142, %v3184, %v3186
        %v3261 = vsel %vm1142, %v3181, %v3183
        %v3262 = vsel %vm1142, %v3182, %v3184
        %v3263 = vsel %vm1142, %v3179, %v3181
        %v3264 = vsel %vm1142, %v3180, %v3182
        %v3265 = vsel %vm1142, %v3177, %v3179
        %v3266 = vsel %vm1142, %v3178, %v3180
        %v3267 = vsel %vm1142, %v3175, %v3177
        %v3268 = vsel %vm1142, %v3176, %v3178
        %v3269 = vsel %vm1142, %v3173, %v3175
        %v3270 = vsel %vm1142, %v3174, %v3176
        %v3271 = vsel %vm1142, %v3171, %v3173
        %v3272 = vsel %vm1142, %v3172, %v3174
        %v3273 = vsel %vm1142, %v3169, %v3171
        %v3274 = vsel %vm1142, %v3170, %v3172
        %v3275 = vsel %vm1142, %v3167, %v3169
        %v3276 = vsel %vm1142, %v3168, %v3170
        %v3277 = vsel %vm1142, %v3165, %v3167
        %v3278 = vsel %vm1142, %v3166, %v3168
        %v3279 = vsel %vm1142, %v3163, %v3165
        %v3280 = vsel %vm1142, %v3164, %v3166
        %v3281 = vsel %vm1142, %v3161, %v3163
        %v3282 = vsel %vm1142, %v3162, %v3164
        %v3283 = vsel %vm1142, %v3159, %v3161
        %v3284 = vsel %vm1142, %v3160, %v3162
        %v3285 = vsel %vm1142, %v3221, %v3159
        %v3286 = vsel %vm1142, %v3222, %v3160
        %v3287 = vrot.slane %v3064, 7
        %v3288 = vrot.slane %v3065, 7
        %v3289 = vrot.slane %v3066, 7
        %v3290 = vrot.slane %v3067, 7
        %v3291 = vrot.slane %v3068, 7
        %v3292 = vrot.slane %v3069, 7
        %v3293 = vrot.slane %v3070, 7
        %v3294 = vrot.slane %v3071, 7
        %v3295 = vrot.slane %v3072, 7
        %v3296 = vrot.slane %v3073, 7
        %v3297 = vrot.slane %v3074, 7
        %v3298 = vrot.slane %v3075, 7
        %v3299 = vrot.slane %v3076, 7
        %v3300 = vrot.slane %v3077, 7
        %v3301 = vrot.slane %v3078, 7
        %v3302 = vrot.slane %v3079, 7
        %v3303 = vrot.slane %v3080, 7
        %v3304 = vrot.slane %v3081, 7
        %v3305 = vrot.slane %v3082, 7
        %v3306 = vrot.slane %v3083, 7
        %v3307 = vrot.slane %v3084, 7
        %v3308 = vrot.slane %v3085, 7
        %v3309 = vrot.slane %v3086, 7
        %v3310 = vrot.slane %v3087, 7
        %v3311 = vrot.slane %v3088, 7
        %v3312 = vrot.slane %v3089, 7
        %v3313 = vrot.slane %v3090, 7
        %v3314 = vrot.slane %v3091, 7
        %v3315 = vrot.slane %v3092, 7
        %v3316 = vrot.slane %v3093, 7
        %v3317 = vrot.slane %v3094, 7
        %v3318 = vrot.slane %v3095, 7
        %v3319 = vrot.slane %v3096, 7
        %v3320 = vrot.slane %v3097, 7
        %v3321 = vrot.slane %v3098, 7
        %v3322 = vrot.slane %v3099, 7
        %v3323 = vrot.slane %v3100, 7
        %v3324 = vrot.slane %v3101, 7
        %v3325 = vrot.slane %v3102, 7
        %v3326 = vrot.slane %v3103, 7
        %v3327 = vrot.slane %v3104, 7
        %v3328 = vrot.slane %v3105, 7
        %v3329 = vrot.slane %v3106, 7
        %v3330 = vrot.slane %v3107, 7
        %v3331 = vrot.slane %v3108, 7
        %v3332 = vrot.slane %v3109, 7
        %v3333 = vrot.slane %v3110, 7
        %v3334 = vrot.slane %v3111, 7
        %v3335 = vrot.slane %v3112, 7
        %v3336 = vrot.slane %v3113, 7
        %v3337 = vrot.slane %v3114, 7
        %v3338 = vrot.slane %v3115, 7
        %v3339 = vrot.slane %v3116, 7
        %v3340 = vrot.slane %v3117, 7
        %v3341 = vrot.slane %v3118, 7
        %v3342 = vrot.slane %v3119, 7
        %v3343 = vrot.slane %v3120, 7
        %v3344 = vrot.slane %v3121, 7
        %v3345 = vrot.slane %v3122, 7
        %v3346 = vrot.slane %v3123, 7
        %v3347 = vrot.slane %v3124, 7
        %v3348 = vrot.slane %v3125, 7
        %v3349 = vrot.slane %v3126, 7
        %v3350 = vrot.slane %v3127, 7
        %v3351 = vsel %vm1142, %v3347, %v3349
        %v3352 = vsel %vm1142, %v3348, %v3350
        %v3353 = vsel %vm1142, %v3345, %v3347
        %v3354 = vsel %vm1142, %v3346, %v3348
        %v3355 = vsel %vm1142, %v3343, %v3345
        %v3356 = vsel %vm1142, %v3344, %v3346
        %v3357 = vsel %vm1142, %v3341, %v3343
        %v3358 = vsel %vm1142, %v3342, %v3344
        %v3359 = vsel %vm1142, %v3339, %v3341
        %v3360 = vsel %vm1142, %v3340, %v3342
        %v3361 = vsel %vm1142, %v3337, %v3339
        %v3362 = vsel %vm1142, %v3338, %v3340
        %v3363 = vsel %vm1142, %v3335, %v3337
        %v3364 = vsel %vm1142, %v3336, %v3338
        %v3365 = vsel %vm1142, %v3333, %v3335
        %v3366 = vsel %vm1142, %v3334, %v3336
        %v3367 = vsel %vm1142, %v3331, %v3333
        %v3368 = vsel %vm1142, %v3332, %v3334
        %v3369 = vsel %vm1142, %v3329, %v3331
        %v3370 = vsel %vm1142, %v3330, %v3332
        %v3371 = vsel %vm1142, %v3327, %v3329
        %v3372 = vsel %vm1142, %v3328, %v3330
        %v3373 = vsel %vm1142, %v3325, %v3327
        %v3374 = vsel %vm1142, %v3326, %v3328
        %v3375 = vsel %vm1142, %v3323, %v3325
        %v3376 = vsel %vm1142, %v3324, %v3326
        %v3377 = vsel %vm1142, %v3321, %v3323
        %v3378 = vsel %vm1142, %v3322, %v3324
        %v3379 = vsel %vm1142, %v3319, %v3321
        %v3380 = vsel %vm1142, %v3320, %v3322
        %v3381 = vsel %vm1142, %v3317, %v3319
        %v3382 = vsel %vm1142, %v3318, %v3320
        %v3383 = vsel %vm1142, %v3315, %v3317
        %v3384 = vsel %vm1142, %v3316, %v3318
        %v3385 = vsel %vm1142, %v3313, %v3315
        %v3386 = vsel %vm1142, %v3314, %v3316
        %v3387 = vsel %vm1142, %v3311, %v3313
        %v3388 = vsel %vm1142, %v3312, %v3314
        %v3389 = vsel %vm1142, %v3309, %v3311
        %v3390 = vsel %vm1142, %v3310, %v3312
        %v3391 = vsel %vm1142, %v3307, %v3309
        %v3392 = vsel %vm1142, %v3308, %v3310
        %v3393 = vsel %vm1142, %v3305, %v3307
        %v3394 = vsel %vm1142, %v3306, %v3308
        %v3395 = vsel %vm1142, %v3303, %v3305
        %v3396 = vsel %vm1142, %v3304, %v3306
        %v3397 = vsel %vm1142, %v3301, %v3303
        %v3398 = vsel %vm1142, %v3302, %v3304
        %v3399 = vsel %vm1142, %v3299, %v3301
        %v3400 = vsel %vm1142, %v3300, %v3302
        %v3401 = vsel %vm1142, %v3297, %v3299
        %v3402 = vsel %vm1142, %v3298, %v3300
        %v3403 = vsel %vm1142, %v3295, %v3297
        %v3404 = vsel %vm1142, %v3296, %v3298
        %v3405 = vsel %vm1142, %v3293, %v3295
        %v3406 = vsel %vm1142, %v3294, %v3296
        %v3407 = vsel %vm1142, %v3291, %v3293
        %v3408 = vsel %vm1142, %v3292, %v3294
        %v3409 = vsel %vm1142, %v3289, %v3291
        %v3410 = vsel %vm1142, %v3290, %v3292
        %v3411 = vsel %vm1142, %v3287, %v3289
        %v3412 = vsel %vm1142, %v3288, %v3290
        %v3413 = vsel %vm1142, %v3349, %v3287
        %v3414 = vsel %vm1142, %v3350, %v3288
        %vm3415 = vcmp.ge.s32.totalorder %v871, 1
        %vm3416 = vcmp.ge.s32.totalorder %v3128, 1
        %vm3417 = vcmp.ge.s32.totalorder %v3129, 1
        %vm3418 = vcmp.ge.s32.totalorder %v3130, 1
        %vm3419 = vcmp.ge.s32.totalorder %v3131, 1
        %vm3420 = vcmp.ge.s32.totalorder %v3132, 1
        %vm3421 = vcmp.ge.s32.totalorder %v3133, 1
        %vm3422 = vcmp.ge.s32.totalorder %v3134, 1
        %vm3423 = vcmp.ge.s32.totalorder %v3135, 1
        %vm3424 = vcmp.ge.s32.totalorder %v3136, 1
        %vm3425 = vcmp.ge.s32.totalorder %v3137, 1
        %vm3426 = vcmp.ge.s32.totalorder %v3138, 1
        %vm3427 = vcmp.ge.s32.totalorder %v3139, 1
        %vm3428 = vcmp.ge.s32.totalorder %v3140, 1
        %vm3429 = vcmp.ge.s32.totalorder %v3141, 1
        %vm3430 = vcmp.ge.s32.totalorder %v3142, 1
        %vm3431 = vcmp.ge.s32.totalorder %v3143, 1
        %vm3432 = vcmp.ge.s32.totalorder %v3144, 1
        %vm3433 = vcmp.ge.s32.totalorder %v3145, 1
        %vm3434 = vcmp.ge.s32.totalorder %v3146, 1
        %vm3435 = vcmp.ge.s32.totalorder %v3147, 1
        %vm3436 = vcmp.ge.s32.totalorder %v3148, 1
        %vm3437 = vcmp.ge.s32.totalorder %v3149, 1
        %vm3438 = vcmp.ge.s32.totalorder %v3150, 1
        %vm3439 = vcmp.ge.s32.totalorder %v3151, 1
        %vm3440 = vcmp.ge.s32.totalorder %v3152, 1
        %vm3441 = vcmp.ge.s32.totalorder %v3153, 1
        %vm3442 = vcmp.ge.s32.totalorder %v3154, 1
        %vm3443 = vcmp.ge.s32.totalorder %v3155, 1
        %vm3444 = vcmp.ge.s32.totalorder %v3156, 1
        %vm3445 = vcmp.ge.s32.totalorder %v3157, 1
        %vm3446 = vcmp.ge.s32.totalorder %v3158, 1
        %v3447 = vsel %vm3415, %v3285, 1.0
        %v3448 = vsel %vm3415, %v3286, 1.0
        %v3449 = vsel %vm3416, %v3283, 1.0
        %v3450 = vsel %vm3416, %v3284, 1.0
        %v3451 = vsel %vm3417, %v3281, 1.0
        %v3452 = vsel %vm3417, %v3282, 1.0
        %v3453 = vsel %vm3418, %v3279, 1.0
        %v3454 = vsel %vm3418, %v3280, 1.0
        %v3455 = vsel %vm3419, %v3277, 1.0
        %v3456 = vsel %vm3419, %v3278, 1.0
        %v3457 = vsel %vm3420, %v3275, 1.0
        %v3458 = vsel %vm3420, %v3276, 1.0
        %v3459 = vsel %vm3421, %v3273, 1.0
        %v3460 = vsel %vm3421, %v3274, 1.0
        %v3461 = vsel %vm3422, %v3271, 1.0
        %v3462 = vsel %vm3422, %v3272, 1.0
        %v3463 = vsel %vm3423, %v3269, 1.0
        %v3464 = vsel %vm3423, %v3270, 1.0
        %v3465 = vsel %vm3424, %v3267, 1.0
        %v3466 = vsel %vm3424, %v3268, 1.0
        %v3467 = vsel %vm3425, %v3265, 1.0
        %v3468 = vsel %vm3425, %v3266, 1.0
        %v3469 = vsel %vm3426, %v3263, 1.0
        %v3470 = vsel %vm3426, %v3264, 1.0
        %v3471 = vsel %vm3427, %v3261, 1.0
        %v3472 = vsel %vm3427, %v3262, 1.0
        %v3473 = vsel %vm3428, %v3259, 1.0
        %v3474 = vsel %vm3428, %v3260, 1.0
        %v3475 = vsel %vm3429, %v3257, 1.0
        %v3476 = vsel %vm3429, %v3258, 1.0
        %v3477 = vsel %vm3430, %v3255, 1.0
        %v3478 = vsel %vm3430, %v3256, 1.0
        %v3479 = vsel %vm3431, %v3253, 1.0
        %v3480 = vsel %vm3431, %v3254, 1.0
        %v3481 = vsel %vm3432, %v3251, 1.0
        %v3482 = vsel %vm3432, %v3252, 1.0
        %v3483 = vsel %vm3433, %v3249, 1.0
        %v3484 = vsel %vm3433, %v3250, 1.0
        %v3485 = vsel %vm3434, %v3247, 1.0
        %v3486 = vsel %vm3434, %v3248, 1.0
        %v3487 = vsel %vm3435, %v3245, 1.0
        %v3488 = vsel %vm3435, %v3246, 1.0
        %v3489 = vsel %vm3436, %v3243, 1.0
        %v3490 = vsel %vm3436, %v3244, 1.0
        %v3491 = vsel %vm3437, %v3241, 1.0
        %v3492 = vsel %vm3437, %v3242, 1.0
        %v3493 = vsel %vm3438, %v3239, 1.0
        %v3494 = vsel %vm3438, %v3240, 1.0
        %v3495 = vsel %vm3439, %v3237, 1.0
        %v3496 = vsel %vm3439, %v3238, 1.0
        %v3497 = vsel %vm3440, %v3235, 1.0
        %v3498 = vsel %vm3440, %v3236, 1.0
        %v3499 = vsel %vm3441, %v3233, 1.0
        %v3500 = vsel %vm3441, %v3234, 1.0
        %v3501 = vsel %vm3442, %v3231, 1.0
        %v3502 = vsel %vm3442, %v3232, 1.0
        %v3503 = vsel %vm3443, %v3229, 1.0
        %v3504 = vsel %vm3443, %v3230, 1.0
        %v3505 = vsel %vm3444, %v3227, 1.0
        %v3506 = vsel %vm3444, %v3228, 1.0
        %v3507 = vsel %vm3445, %v3225, 1.0
        %v3508 = vsel %vm3445, %v3226, 1.0
        %v3509 = vsel %vm3446, %v3223, 1.0
        %v3510 = vsel %vm3446, %v3224, 1.0
        %v3511 = vsel %vm3415, %v3413, 0.0
        %v3512 = vsel %vm3415, %v3414, 0.0
        %v3513 = vsel %vm3416, %v3411, 0.0
        %v3514 = vsel %vm3416, %v3412, 0.0
        %v3515 = vsel %vm3417, %v3409, 0.0
        %v3516 = vsel %vm3417, %v3410, 0.0
        %v3517 = vsel %vm3418, %v3407, 0.0
        %v3518 = vsel %vm3418, %v3408, 0.0
        %v3519 = vsel %vm3419, %v3405, 0.0
        %v3520 = vsel %vm3419, %v3406, 0.0
        %v3521 = vsel %vm3420, %v3403, 0.0
        %v3522 = vsel %vm3420, %v3404, 0.0
        %v3523 = vsel %vm3421, %v3401, 0.0
        %v3524 = vsel %vm3421, %v3402, 0.0
        %v3525 = vsel %vm3422, %v3399, 0.0
        %v3526 = vsel %vm3422, %v3400, 0.0
        %v3527 = vsel %vm3423, %v3397, 0.0
        %v3528 = vsel %vm3423, %v3398, 0.0
        %v3529 = vsel %vm3424, %v3395, 0.0
        %v3530 = vsel %vm3424, %v3396, 0.0
        %v3531 = vsel %vm3425, %v3393, 0.0
        %v3532 = vsel %vm3425, %v3394, 0.0
        %v3533 = vsel %vm3426, %v3391, 0.0
        %v3534 = vsel %vm3426, %v3392, 0.0
        %v3535 = vsel %vm3427, %v3389, 0.0
        %v3536 = vsel %vm3427, %v3390, 0.0
        %v3537 = vsel %vm3428, %v3387, 0.0
        %v3538 = vsel %vm3428, %v3388, 0.0
        %v3539 = vsel %vm3429, %v3385, 0.0
        %v3540 = vsel %vm3429, %v3386, 0.0
        %v3541 = vsel %vm3430, %v3383, 0.0
        %v3542 = vsel %vm3430, %v3384, 0.0
        %v3543 = vsel %vm3431, %v3381, 0.0
        %v3544 = vsel %vm3431, %v3382, 0.0
        %v3545 = vsel %vm3432, %v3379, 0.0
        %v3546 = vsel %vm3432, %v3380, 0.0
        %v3547 = vsel %vm3433, %v3377, 0.0
        %v3548 = vsel %vm3433, %v3378, 0.0
        %v3549 = vsel %vm3434, %v3375, 0.0
        %v3550 = vsel %vm3434, %v3376, 0.0
        %v3551 = vsel %vm3435, %v3373, 0.0
        %v3552 = vsel %vm3435, %v3374, 0.0
        %v3553 = vsel %vm3436, %v3371, 0.0
        %v3554 = vsel %vm3436, %v3372, 0.0
        %v3555 = vsel %vm3437, %v3369, 0.0
        %v3556 = vsel %vm3437, %v3370, 0.0
        %v3557 = vsel %vm3438, %v3367, 0.0
        %v3558 = vsel %vm3438, %v3368, 0.0
        %v3559 = vsel %vm3439, %v3365, 0.0
        %v3560 = vsel %vm3439, %v3366, 0.0
        %v3561 = vsel %vm3440, %v3363, 0.0
        %v3562 = vsel %vm3440, %v3364, 0.0
        %v3563 = vsel %vm3441, %v3361, 0.0
        %v3564 = vsel %vm3441, %v3362, 0.0
        %v3565 = vsel %vm3442, %v3359, 0.0
        %v3566 = vsel %vm3442, %v3360, 0.0
        %v3567 = vsel %vm3443, %v3357, 0.0
        %v3568 = vsel %vm3443, %v3358, 0.0
        %v3569 = vsel %vm3444, %v3355, 0.0
        %v3570 = vsel %vm3444, %v3356, 0.0
        %v3571 = vsel %vm3445, %v3353, 0.0
        %v3572 = vsel %vm3445, %v3354, 0.0
        %v3573 = vsel %vm3446, %v3351, 0.0
        %v3574 = vsel %vm3446, %v3352, 0.0
        %v3575 = vmul.f32 %v2905, %v3511
        %v3576 = vmul.f32 %v2907, %v3512
        %v3577 = vmul.f32 %v2909, %v3513
        %v3578 = vmul.f32 %v2911, %v3514
        %v3579 = vmul.f32 %v2913, %v3515
        %v3580 = vmul.f32 %v2915, %v3516
        %v3581 = vmul.f32 %v2917, %v3517
        %v3582 = vmul.f32 %v2919, %v3518
        %v3583 = vmul.f32 %v2921, %v3519
        %v3584 = vmul.f32 %v2923, %v3520
        %v3585 = vmul.f32 %v2925, %v3521
        %v3586 = vmul.f32 %v2927, %v3522
        %v3587 = vmul.f32 %v2929, %v3523
        %v3588 = vmul.f32 %v2931, %v3524
        %v3589 = vmul.f32 %v2933, %v3525
        %v3590 = vmul.f32 %v2935, %v3526
        %v3591 = vmul.f32 %v2937, %v3527
        %v3592 = vmul.f32 %v2939, %v3528
        %v3593 = vmul.f32 %v2941, %v3529
        %v3594 = vmul.f32 %v2943, %v3530
        %v3595 = vmul.f32 %v2945, %v3531
        %v3596 = vmul.f32 %v2947, %v3532
        %v3597 = vmul.f32 %v2949, %v3533
        %v3598 = vmul.f32 %v2951, %v3534
        %v3599 = vmul.f32 %v2953, %v3535
        %v3600 = vmul.f32 %v2955, %v3536
        %v3601 = vmul.f32 %v2957, %v3537
        %v3602 = vmul.f32 %v2959, %v3538
        %v3603 = vmul.f32 %v2961, %v3539
        %v3604 = vmul.f32 %v2963, %v3540
        %v3605 = vmul.f32 %v2965, %v3541
        %v3606 = vmul.f32 %v2967, %v3542
        %v3607 = vmul.f32 %v2969, %v3543
        %v3608 = vmul.f32 %v2971, %v3544
        %v3609 = vmul.f32 %v2973, %v3545
        %v3610 = vmul.f32 %v2975, %v3546
        %v3611 = vmul.f32 %v2977, %v3547
        %v3612 = vmul.f32 %v2979, %v3548
        %v3613 = vmul.f32 %v2981, %v3549
        %v3614 = vmul.f32 %v2983, %v3550
        %v3615 = vmul.f32 %v2985, %v3551
        %v3616 = vmul.f32 %v2987, %v3552
        %v3617 = vmul.f32 %v2989, %v3553
        %v3618 = vmul.f32 %v2991, %v3554
        %v3619 = vmul.f32 %v2993, %v3555
        %v3620 = vmul.f32 %v2995, %v3556
        %v3621 = vmul.f32 %v2997, %v3557
        %v3622 = vmul.f32 %v2999, %v3558
        %v3623 = vmul.f32 %v3001, %v3559
        %v3624 = vmul.f32 %v3003, %v3560
        %v3625 = vmul.f32 %v3005, %v3561
        %v3626 = vmul.f32 %v3007, %v3562
        %v3627 = vmul.f32 %v3009, %v3563
        %v3628 = vmul.f32 %v3011, %v3564
        %v3629 = vmul.f32 %v3013, %v3565
        %v3630 = vmul.f32 %v3015, %v3566
        %v3631 = vmul.f32 %v3017, %v3567
        %v3632 = vmul.f32 %v3019, %v3568
        %v3633 = vmul.f32 %v3021, %v3569
        %v3634 = vmul.f32 %v3023, %v3570
        %v3635 = vmul.f32 %v3025, %v3571
        %v3636 = vmul.f32 %v3027, %v3572
        %v3637 = vmul.f32 %v3029, %v3573
        %v3638 = vmul.f32 %v3031, %v3574
        %v3639 = vadd.f32 %v3575, %v3064
        %v3640 = vadd.f32 %v3576, %v3065
        %v3641 = vadd.f32 %v3577, %v3066
        %v3642 = vadd.f32 %v3578, %v3067
        %v3643 = vadd.f32 %v3579, %v3068
        %v3644 = vadd.f32 %v3580, %v3069
        %v3645 = vadd.f32 %v3581, %v3070
        %v3646 = vadd.f32 %v3582, %v3071
        %v3647 = vadd.f32 %v3583, %v3072
        %v3648 = vadd.f32 %v3584, %v3073
        %v3649 = vadd.f32 %v3585, %v3074
        %v3650 = vadd.f32 %v3586, %v3075
        %v3651 = vadd.f32 %v3587, %v3076
        %v3652 = vadd.f32 %v3588, %v3077
        %v3653 = vadd.f32 %v3589, %v3078
        %v3654 = vadd.f32 %v3590, %v3079
        %v3655 = vadd.f32 %v3591, %v3080
        %v3656 = vadd.f32 %v3592, %v3081
        %v3657 = vadd.f32 %v3593, %v3082
        %v3658 = vadd.f32 %v3594, %v3083
        %v3659 = vadd.f32 %v3595, %v3084
        %v3660 = vadd.f32 %v3596, %v3085
        %v3661 = vadd.f32 %v3597, %v3086
        %v3662 = vadd.f32 %v3598, %v3087
        %v3663 = vadd.f32 %v3599, %v3088
        %v3664 = vadd.f32 %v3600, %v3089
        %v3665 = vadd.f32 %v3601, %v3090
        %v3666 = vadd.f32 %v3602, %v3091
        %v3667 = vadd.f32 %v3603, %v3092
        %v3668 = vadd.f32 %v3604, %v3093
        %v3669 = vadd.f32 %v3605, %v3094
        %v3670 = vadd.f32 %v3606, %v3095
        %v3671 = vadd.f32 %v3607, %v3096
        %v3672 = vadd.f32 %v3608, %v3097
        %v3673 = vadd.f32 %v3609, %v3098
        %v3674 = vadd.f32 %v3610, %v3099
        %v3675 = vadd.f32 %v3611, %v3100
        %v3676 = vadd.f32 %v3612, %v3101
        %v3677 = vadd.f32 %v3613, %v3102
        %v3678 = vadd.f32 %v3614, %v3103
        %v3679 = vadd.f32 %v3615, %v3104
        %v3680 = vadd.f32 %v3616, %v3105
        %v3681 = vadd.f32 %v3617, %v3106
        %v3682 = vadd.f32 %v3618, %v3107
        %v3683 = vadd.f32 %v3619, %v3108
        %v3684 = vadd.f32 %v3620, %v3109
        %v3685 = vadd.f32 %v3621, %v3110
        %v3686 = vadd.f32 %v3622, %v3111
        %v3687 = vadd.f32 %v3623, %v3112
        %v3688 = vadd.f32 %v3624, %v3113
        %v3689 = vadd.f32 %v3625, %v3114
        %v3690 = vadd.f32 %v3626, %v3115
        %v3691 = vadd.f32 %v3627, %v3116
        %v3692 = vadd.f32 %v3628, %v3117
        %v3693 = vadd.f32 %v3629, %v3118
        %v3694 = vadd.f32 %v3630, %v3119
        %v3695 = vadd.f32 %v3631, %v3120
        %v3696 = vadd.f32 %v3632, %v3121
        %v3697 = vadd.f32 %v3633, %v3122
        %v3698 = vadd.f32 %v3634, %v3123
        %v3699 = vadd.f32 %v3635, %v3124
        %v3700 = vadd.f32 %v3636, %v3125
        %v3701 = vadd.f32 %v3637, %v3126
        %v3702 = vadd.f32 %v3638, %v3127
        %v3703 = vmul.f32 %v2905, %v3447
        %v3704 = vmul.f32 %v2907, %v3448
        %v3705 = vmul.f32 %v2909, %v3449
        %v3706 = vmul.f32 %v2911, %v3450
        %v3707 = vmul.f32 %v2913, %v3451
        %v3708 = vmul.f32 %v2915, %v3452
        %v3709 = vmul.f32 %v2917, %v3453
        %v3710 = vmul.f32 %v2919, %v3454
        %v3711 = vmul.f32 %v2921, %v3455
        %v3712 = vmul.f32 %v2923, %v3456
        %v3713 = vmul.f32 %v2925, %v3457
        %v3714 = vmul.f32 %v2927, %v3458
        %v3715 = vmul.f32 %v2929, %v3459
        %v3716 = vmul.f32 %v2931, %v3460
        %v3717 = vmul.f32 %v2933, %v3461
        %v3718 = vmul.f32 %v2935, %v3462
        %v3719 = vmul.f32 %v2937, %v3463
        %v3720 = vmul.f32 %v2939, %v3464
        %v3721 = vmul.f32 %v2941, %v3465
        %v3722 = vmul.f32 %v2943, %v3466
        %v3723 = vmul.f32 %v2945, %v3467
        %v3724 = vmul.f32 %v2947, %v3468
        %v3725 = vmul.f32 %v2949, %v3469
        %v3726 = vmul.f32 %v2951, %v3470
        %v3727 = vmul.f32 %v2953, %v3471
        %v3728 = vmul.f32 %v2955, %v3472
        %v3729 = vmul.f32 %v2957, %v3473
        %v3730 = vmul.f32 %v2959, %v3474
        %v3731 = vmul.f32 %v2961, %v3475
        %v3732 = vmul.f32 %v2963, %v3476
        %v3733 = vmul.f32 %v2965, %v3477
        %v3734 = vmul.f32 %v2967, %v3478
        %v3735 = vmul.f32 %v2969, %v3479
        %v3736 = vmul.f32 %v2971, %v3480
        %v3737 = vmul.f32 %v2973, %v3481
        %v3738 = vmul.f32 %v2975, %v3482
        %v3739 = vmul.f32 %v2977, %v3483
        %v3740 = vmul.f32 %v2979, %v3484
        %v3741 = vmul.f32 %v2981, %v3485
        %v3742 = vmul.f32 %v2983, %v3486
        %v3743 = vmul.f32 %v2985, %v3487
        %v3744 = vmul.f32 %v2987, %v3488
        %v3745 = vmul.f32 %v2989, %v3489
        %v3746 = vmul.f32 %v2991, %v3490
        %v3747 = vmul.f32 %v2993, %v3491
        %v3748 = vmul.f32 %v2995, %v3492
        %v3749 = vmul.f32 %v2997, %v3493
        %v3750 = vmul.f32 %v2999, %v3494
        %v3751 = vmul.f32 %v3001, %v3495
        %v3752 = vmul.f32 %v3003, %v3496
        %v3753 = vmul.f32 %v3005, %v3497
        %v3754 = vmul.f32 %v3007, %v3498
        %v3755 = vmul.f32 %v3009, %v3499
        %v3756 = vmul.f32 %v3011, %v3500
        %v3757 = vmul.f32 %v3013, %v3501
        %v3758 = vmul.f32 %v3015, %v3502
        %v3759 = vmul.f32 %v3017, %v3503
        %v3760 = vmul.f32 %v3019, %v3504
        %v3761 = vmul.f32 %v3021, %v3505
        %v3762 = vmul.f32 %v3023, %v3506
        %v3763 = vmul.f32 %v3025, %v3507
        %v3764 = vmul.f32 %v3027, %v3508
        %v3765 = vmul.f32 %v3029, %v3509
        %v3766 = vmul.f32 %v3031, %v3510
        %v3767 = vrot.slane %v3703, 6
        %v3768 = vrot.slane %v3704, 6
        %v3769 = vrot.slane %v3705, 6
        %v3770 = vrot.slane %v3706, 6
        %v3771 = vrot.slane %v3707, 6
        %v3772 = vrot.slane %v3708, 6
        %v3773 = vrot.slane %v3709, 6
        %v3774 = vrot.slane %v3710, 6
        %v3775 = vrot.slane %v3711, 6
        %v3776 = vrot.slane %v3712, 6
        %v3777 = vrot.slane %v3713, 6
        %v3778 = vrot.slane %v3714, 6
        %v3779 = vrot.slane %v3715, 6
        %v3780 = vrot.slane %v3716, 6
        %v3781 = vrot.slane %v3717, 6
        %v3782 = vrot.slane %v3718, 6
        %v3783 = vrot.slane %v3719, 6
        %v3784 = vrot.slane %v3720, 6
        %v3785 = vrot.slane %v3721, 6
        %v3786 = vrot.slane %v3722, 6
        %v3787 = vrot.slane %v3723, 6
        %v3788 = vrot.slane %v3724, 6
        %v3789 = vrot.slane %v3725, 6
        %v3790 = vrot.slane %v3726, 6
        %v3791 = vrot.slane %v3727, 6
        %v3792 = vrot.slane %v3728, 6
        %v3793 = vrot.slane %v3729, 6
        %v3794 = vrot.slane %v3730, 6
        %v3795 = vrot.slane %v3731, 6
        %v3796 = vrot.slane %v3732, 6
        %v3797 = vrot.slane %v3733, 6
        %v3798 = vrot.slane %v3734, 6
        %v3799 = vrot.slane %v3735, 6
        %v3800 = vrot.slane %v3736, 6
        %v3801 = vrot.slane %v3737, 6
        %v3802 = vrot.slane %v3738, 6
        %v3803 = vrot.slane %v3739, 6
        %v3804 = vrot.slane %v3740, 6
        %v3805 = vrot.slane %v3741, 6
        %v3806 = vrot.slane %v3742, 6
        %v3807 = vrot.slane %v3743, 6
        %v3808 = vrot.slane %v3744, 6
        %v3809 = vrot.slane %v3745, 6
        %v3810 = vrot.slane %v3746, 6
        %v3811 = vrot.slane %v3747, 6
        %v3812 = vrot.slane %v3748, 6
        %v3813 = vrot.slane %v3749, 6
        %v3814 = vrot.slane %v3750, 6
        %v3815 = vrot.slane %v3751, 6
        %v3816 = vrot.slane %v3752, 6
        %v3817 = vrot.slane %v3753, 6
        %v3818 = vrot.slane %v3754, 6
        %v3819 = vrot.slane %v3755, 6
        %v3820 = vrot.slane %v3756, 6
        %v3821 = vrot.slane %v3757, 6
        %v3822 = vrot.slane %v3758, 6
        %v3823 = vrot.slane %v3759, 6
        %v3824 = vrot.slane %v3760, 6
        %v3825 = vrot.slane %v3761, 6
        %v3826 = vrot.slane %v3762, 6
        %v3827 = vrot.slane %v3763, 6
        %v3828 = vrot.slane %v3764, 6
        %v3829 = vrot.slane %v3765, 6
        %v3830 = vrot.slane %v3766, 6
        %v3831 = vsel %vm1007, %v3827, %v3829
        %v3832 = vsel %vm1007, %v3828, %v3830
        %v3833 = vsel %vm1007, %v3825, %v3827
        %v3834 = vsel %vm1007, %v3826, %v3828
        %v3835 = vsel %vm1007, %v3823, %v3825
        %v3836 = vsel %vm1007, %v3824, %v3826
        %v3837 = vsel %vm1007, %v3821, %v3823
        %v3838 = vsel %vm1007, %v3822, %v3824
        %v3839 = vsel %vm1007, %v3819, %v3821
        %v3840 = vsel %vm1007, %v3820, %v3822
        %v3841 = vsel %vm1007, %v3817, %v3819
        %v3842 = vsel %vm1007, %v3818, %v3820
        %v3843 = vsel %vm1007, %v3815, %v3817
        %v3844 = vsel %vm1007, %v3816, %v3818
        %v3845 = vsel %vm1007, %v3813, %v3815
        %v3846 = vsel %vm1007, %v3814, %v3816
        %v3847 = vsel %vm1007, %v3811, %v3813
        %v3848 = vsel %vm1007, %v3812, %v3814
        %v3849 = vsel %vm1007, %v3809, %v3811
        %v3850 = vsel %vm1007, %v3810, %v3812
        %v3851 = vsel %vm1007, %v3807, %v3809
        %v3852 = vsel %vm1007, %v3808, %v3810
        %v3853 = vsel %vm1007, %v3805, %v3807
        %v3854 = vsel %vm1007, %v3806, %v3808
        %v3855 = vsel %vm1007, %v3803, %v3805
        %v3856 = vsel %vm1007, %v3804, %v3806
        %v3857 = vsel %vm1007, %v3801, %v3803
        %v3858 = vsel %vm1007, %v3802, %v3804
        %v3859 = vsel %vm1007, %v3799, %v3801
        %v3860 = vsel %vm1007, %v3800, %v3802
        %v3861 = vsel %vm1007, %v3797, %v3799
        %v3862 = vsel %vm1007, %v3798, %v3800
        %v3863 = vsel %vm1007, %v3795, %v3797
        %v3864 = vsel %vm1007, %v3796, %v3798
        %v3865 = vsel %vm1007, %v3793, %v3795
        %v3866 = vsel %vm1007, %v3794, %v3796
        %v3867 = vsel %vm1007, %v3791, %v3793
        %v3868 = vsel %vm1007, %v3792, %v3794
        %v3869 = vsel %vm1007, %v3789, %v3791
        %v3870 = vsel %vm1007, %v3790, %v3792
        %v3871 = vsel %vm1007, %v3787, %v3789
        %v3872 = vsel %vm1007, %v3788, %v3790
        %v3873 = vsel %vm1007, %v3785, %v3787
        %v3874 = vsel %vm1007, %v3786, %v3788
        %v3875 = vsel %vm1007, %v3783, %v3785
        %v3876 = vsel %vm1007, %v3784, %v3786
        %v3877 = vsel %vm1007, %v3781, %v3783
        %v3878 = vsel %vm1007, %v3782, %v3784
        %v3879 = vsel %vm1007, %v3779, %v3781
        %v3880 = vsel %vm1007, %v3780, %v3782
        %v3881 = vsel %vm1007, %v3777, %v3779
        %v3882 = vsel %vm1007, %v3778, %v3780
        %v3883 = vsel %vm1007, %v3775, %v3777
        %v3884 = vsel %vm1007, %v3776, %v3778
        %v3885 = vsel %vm1007, %v3773, %v3775
        %v3886 = vsel %vm1007, %v3774, %v3776
        %v3887 = vsel %vm1007, %v3771, %v3773
        %v3888 = vsel %vm1007, %v3772, %v3774
        %v3889 = vsel %vm1007, %v3769, %v3771
        %v3890 = vsel %vm1007, %v3770, %v3772
        %v3891 = vsel %vm1007, %v3767, %v3769
        %v3892 = vsel %vm1007, %v3768, %v3770
        %v3893 = vsel %vm1007, %v3829, %v3767
        %v3894 = vsel %vm1007, %v3830, %v3768
        %v3895 = vrot.slane %v3639, 6
        %v3896 = vrot.slane %v3640, 6
        %v3897 = vrot.slane %v3641, 6
        %v3898 = vrot.slane %v3642, 6
        %v3899 = vrot.slane %v3643, 6
        %v3900 = vrot.slane %v3644, 6
        %v3901 = vrot.slane %v3645, 6
        %v3902 = vrot.slane %v3646, 6
        %v3903 = vrot.slane %v3647, 6
        %v3904 = vrot.slane %v3648, 6
        %v3905 = vrot.slane %v3649, 6
        %v3906 = vrot.slane %v3650, 6
        %v3907 = vrot.slane %v3651, 6
        %v3908 = vrot.slane %v3652, 6
        %v3909 = vrot.slane %v3653, 6
        %v3910 = vrot.slane %v3654, 6
        %v3911 = vrot.slane %v3655, 6
        %v3912 = vrot.slane %v3656, 6
        %v3913 = vrot.slane %v3657, 6
        %v3914 = vrot.slane %v3658, 6
        %v3915 = vrot.slane %v3659, 6
        %v3916 = vrot.slane %v3660, 6
        %v3917 = vrot.slane %v3661, 6
        %v3918 = vrot.slane %v3662, 6
        %v3919 = vrot.slane %v3663, 6
        %v3920 = vrot.slane %v3664, 6
        %v3921 = vrot.slane %v3665, 6
        %v3922 = vrot.slane %v3666, 6
        %v3923 = vrot.slane %v3667, 6
        %v3924 = vrot.slane %v3668, 6
        %v3925 = vrot.slane %v3669, 6
        %v3926 = vrot.slane %v3670, 6
        %v3927 = vrot.slane %v3671, 6
        %v3928 = vrot.slane %v3672, 6
        %v3929 = vrot.slane %v3673, 6
        %v3930 = vrot.slane %v3674, 6
        %v3931 = vrot.slane %v3675, 6
        %v3932 = vrot.slane %v3676, 6
        %v3933 = vrot.slane %v3677, 6
        %v3934 = vrot.slane %v3678, 6
        %v3935 = vrot.slane %v3679, 6
        %v3936 = vrot.slane %v3680, 6
        %v3937 = vrot.slane %v3681, 6
        %v3938 = vrot.slane %v3682, 6
        %v3939 = vrot.slane %v3683, 6
        %v3940 = vrot.slane %v3684, 6
        %v3941 = vrot.slane %v3685, 6
        %v3942 = vrot.slane %v3686, 6
        %v3943 = vrot.slane %v3687, 6
        %v3944 = vrot.slane %v3688, 6
        %v3945 = vrot.slane %v3689, 6
        %v3946 = vrot.slane %v3690, 6
        %v3947 = vrot.slane %v3691, 6
        %v3948 = vrot.slane %v3692, 6
        %v3949 = vrot.slane %v3693, 6
        %v3950 = vrot.slane %v3694, 6
        %v3951 = vrot.slane %v3695, 6
        %v3952 = vrot.slane %v3696, 6
        %v3953 = vrot.slane %v3697, 6
        %v3954 = vrot.slane %v3698, 6
        %v3955 = vrot.slane %v3699, 6
        %v3956 = vrot.slane %v3700, 6
        %v3957 = vrot.slane %v3701, 6
        %v3958 = vrot.slane %v3702, 6
        %v3959 = vsel %vm1007, %v3955, %v3957
        %v3960 = vsel %vm1007, %v3956, %v3958
        %v3961 = vsel %vm1007, %v3953, %v3955
        %v3962 = vsel %vm1007, %v3954, %v3956
        %v3963 = vsel %vm1007, %v3951, %v3953
        %v3964 = vsel %vm1007, %v3952, %v3954
        %v3965 = vsel %vm1007, %v3949, %v3951
        %v3966 = vsel %vm1007, %v3950, %v3952
        %v3967 = vsel %vm1007, %v3947, %v3949
        %v3968 = vsel %vm1007, %v3948, %v3950
        %v3969 = vsel %vm1007, %v3945, %v3947
        %v3970 = vsel %vm1007, %v3946, %v3948
        %v3971 = vsel %vm1007, %v3943, %v3945
        %v3972 = vsel %vm1007, %v3944, %v3946
        %v3973 = vsel %vm1007, %v3941, %v3943
        %v3974 = vsel %vm1007, %v3942, %v3944
        %v3975 = vsel %vm1007, %v3939, %v3941
        %v3976 = vsel %vm1007, %v3940, %v3942
        %v3977 = vsel %vm1007, %v3937, %v3939
        %v3978 = vsel %vm1007, %v3938, %v3940
        %v3979 = vsel %vm1007, %v3935, %v3937
        %v3980 = vsel %vm1007, %v3936, %v3938
        %v3981 = vsel %vm1007, %v3933, %v3935
        %v3982 = vsel %vm1007, %v3934, %v3936
        %v3983 = vsel %vm1007, %v3931, %v3933
        %v3984 = vsel %vm1007, %v3932, %v3934
        %v3985 = vsel %vm1007, %v3929, %v3931
        %v3986 = vsel %vm1007, %v3930, %v3932
        %v3987 = vsel %vm1007, %v3927, %v3929
        %v3988 = vsel %vm1007, %v3928, %v3930
        %v3989 = vsel %vm1007, %v3925, %v3927
        %v3990 = vsel %vm1007, %v3926, %v3928
        %v3991 = vsel %vm1007, %v3923, %v3925
        %v3992 = vsel %vm1007, %v3924, %v3926
        %v3993 = vsel %vm1007, %v3921, %v3923
        %v3994 = vsel %vm1007, %v3922, %v3924
        %v3995 = vsel %vm1007, %v3919, %v3921
        %v3996 = vsel %vm1007, %v3920, %v3922
        %v3997 = vsel %vm1007, %v3917, %v3919
        %v3998 = vsel %vm1007, %v3918, %v3920
        %v3999 = vsel %vm1007, %v3915, %v3917
        %v4000 = vsel %vm1007, %v3916, %v3918
        %v4001 = vsel %vm1007, %v3913, %v3915
        %v4002 = vsel %vm1007, %v3914, %v3916
        %v4003 = vsel %vm1007, %v3911, %v3913
        %v4004 = vsel %vm1007, %v3912, %v3914
        %v4005 = vsel %vm1007, %v3909, %v3911
        %v4006 = vsel %vm1007, %v3910, %v3912
        %v4007 = vsel %vm1007, %v3907, %v3909
        %v4008 = vsel %vm1007, %v3908, %v3910
        %v4009 = vsel %vm1007, %v3905, %v3907
        %v4010 = vsel %vm1007, %v3906, %v3908
        %v4011 = vsel %vm1007, %v3903, %v3905
        %v4012 = vsel %vm1007, %v3904, %v3906
        %v4013 = vsel %vm1007, %v3901, %v3903
        %v4014 = vsel %vm1007, %v3902, %v3904
        %v4015 = vsel %vm1007, %v3899, %v3901
        %v4016 = vsel %vm1007, %v3900, %v3902
        %v4017 = vsel %vm1007, %v3897, %v3899
        %v4018 = vsel %vm1007, %v3898, %v3900
        %v4019 = vsel %vm1007, %v3895, %v3897
        %v4020 = vsel %vm1007, %v3896, %v3898
        %v4021 = vsel %vm1007, %v3957, %v3895
        %v4022 = vsel %vm1007, %v3958, %v3896
        %vm4023 = vcmp.ge.s32.totalorder %v871, 2
        %vm4024 = vcmp.ge.s32.totalorder %v3128, 2
        %vm4025 = vcmp.ge.s32.totalorder %v3129, 2
        %vm4026 = vcmp.ge.s32.totalorder %v3130, 2
        %vm4027 = vcmp.ge.s32.totalorder %v3131, 2
        %vm4028 = vcmp.ge.s32.totalorder %v3132, 2
        %vm4029 = vcmp.ge.s32.totalorder %v3133, 2
        %vm4030 = vcmp.ge.s32.totalorder %v3134, 2
        %vm4031 = vcmp.ge.s32.totalorder %v3135, 2
        %vm4032 = vcmp.ge.s32.totalorder %v3136, 2
        %vm4033 = vcmp.ge.s32.totalorder %v3137, 2
        %vm4034 = vcmp.ge.s32.totalorder %v3138, 2
        %vm4035 = vcmp.ge.s32.totalorder %v3139, 2
        %vm4036 = vcmp.ge.s32.totalorder %v3140, 2
        %vm4037 = vcmp.ge.s32.totalorder %v3141, 2
        %vm4038 = vcmp.ge.s32.totalorder %v3142, 2
        %vm4039 = vcmp.ge.s32.totalorder %v3143, 2
        %vm4040 = vcmp.ge.s32.totalorder %v3144, 2
        %vm4041 = vcmp.ge.s32.totalorder %v3145, 2
        %vm4042 = vcmp.ge.s32.totalorder %v3146, 2
        %vm4043 = vcmp.ge.s32.totalorder %v3147, 2
        %vm4044 = vcmp.ge.s32.totalorder %v3148, 2
        %vm4045 = vcmp.ge.s32.totalorder %v3149, 2
        %vm4046 = vcmp.ge.s32.totalorder %v3150, 2
        %vm4047 = vcmp.ge.s32.totalorder %v3151, 2
        %vm4048 = vcmp.ge.s32.totalorder %v3152, 2
        %vm4049 = vcmp.ge.s32.totalorder %v3153, 2
        %vm4050 = vcmp.ge.s32.totalorder %v3154, 2
        %vm4051 = vcmp.ge.s32.totalorder %v3155, 2
        %vm4052 = vcmp.ge.s32.totalorder %v3156, 2
        %vm4053 = vcmp.ge.s32.totalorder %v3157, 2
        %vm4054 = vcmp.ge.s32.totalorder %v3158, 2
        %v4055 = vsel %vm4023, %v3893, 1.0
        %v4056 = vsel %vm4023, %v3894, 1.0
        %v4057 = vsel %vm4024, %v3891, 1.0
        %v4058 = vsel %vm4024, %v3892, 1.0
        %v4059 = vsel %vm4025, %v3889, 1.0
        %v4060 = vsel %vm4025, %v3890, 1.0
        %v4061 = vsel %vm4026, %v3887, 1.0
        %v4062 = vsel %vm4026, %v3888, 1.0
        %v4063 = vsel %vm4027, %v3885, 1.0
        %v4064 = vsel %vm4027, %v3886, 1.0
        %v4065 = vsel %vm4028, %v3883, 1.0
        %v4066 = vsel %vm4028, %v3884, 1.0
        %v4067 = vsel %vm4029, %v3881, 1.0
        %v4068 = vsel %vm4029, %v3882, 1.0
        %v4069 = vsel %vm4030, %v3879, 1.0
        %v4070 = vsel %vm4030, %v3880, 1.0
        %v4071 = vsel %vm4031, %v3877, 1.0
        %v4072 = vsel %vm4031, %v3878, 1.0
        %v4073 = vsel %vm4032, %v3875, 1.0
        %v4074 = vsel %vm4032, %v3876, 1.0
        %v4075 = vsel %vm4033, %v3873, 1.0
        %v4076 = vsel %vm4033, %v3874, 1.0
        %v4077 = vsel %vm4034, %v3871, 1.0
        %v4078 = vsel %vm4034, %v3872, 1.0
        %v4079 = vsel %vm4035, %v3869, 1.0
        %v4080 = vsel %vm4035, %v3870, 1.0
        %v4081 = vsel %vm4036, %v3867, 1.0
        %v4082 = vsel %vm4036, %v3868, 1.0
        %v4083 = vsel %vm4037, %v3865, 1.0
        %v4084 = vsel %vm4037, %v3866, 1.0
        %v4085 = vsel %vm4038, %v3863, 1.0
        %v4086 = vsel %vm4038, %v3864, 1.0
        %v4087 = vsel %vm4039, %v3861, 1.0
        %v4088 = vsel %vm4039, %v3862, 1.0
        %v4089 = vsel %vm4040, %v3859, 1.0
        %v4090 = vsel %vm4040, %v3860, 1.0
        %v4091 = vsel %vm4041, %v3857, 1.0
        %v4092 = vsel %vm4041, %v3858, 1.0
        %v4093 = vsel %vm4042, %v3855, 1.0
        %v4094 = vsel %vm4042, %v3856, 1.0
        %v4095 = vsel %vm4043, %v3853, 1.0
        %v4096 = vsel %vm4043, %v3854, 1.0
        %v4097 = vsel %vm4044, %v3851, 1.0
        %v4098 = vsel %vm4044, %v3852, 1.0
        %v4099 = vsel %vm4045, %v3849, 1.0
        %v4100 = vsel %vm4045, %v3850, 1.0
        %v4101 = vsel %vm4046, %v3847, 1.0
        %v4102 = vsel %vm4046, %v3848, 1.0
        %v4103 = vsel %vm4047, %v3845, 1.0
        %v4104 = vsel %vm4047, %v3846, 1.0
        %v4105 = vsel %vm4048, %v3843, 1.0
        %v4106 = vsel %vm4048, %v3844, 1.0
        %v4107 = vsel %vm4049, %v3841, 1.0
        %v4108 = vsel %vm4049, %v3842, 1.0
        %v4109 = vsel %vm4050, %v3839, 1.0
        %v4110 = vsel %vm4050, %v3840, 1.0
        %v4111 = vsel %vm4051, %v3837, 1.0
        %v4112 = vsel %vm4051, %v3838, 1.0
        %v4113 = vsel %vm4052, %v3835, 1.0
        %v4114 = vsel %vm4052, %v3836, 1.0
        %v4115 = vsel %vm4053, %v3833, 1.0
        %v4116 = vsel %vm4053, %v3834, 1.0
        %v4117 = vsel %vm4054, %v3831, 1.0
        %v4118 = vsel %vm4054, %v3832, 1.0
        %v4119 = vsel %vm4023, %v4021, 0.0
        %v4120 = vsel %vm4023, %v4022, 0.0
        %v4121 = vsel %vm4024, %v4019, 0.0
        %v4122 = vsel %vm4024, %v4020, 0.0
        %v4123 = vsel %vm4025, %v4017, 0.0
        %v4124 = vsel %vm4025, %v4018, 0.0
        %v4125 = vsel %vm4026, %v4015, 0.0
        %v4126 = vsel %vm4026, %v4016, 0.0
        %v4127 = vsel %vm4027, %v4013, 0.0
        %v4128 = vsel %vm4027, %v4014, 0.0
        %v4129 = vsel %vm4028, %v4011, 0.0
        %v4130 = vsel %vm4028, %v4012, 0.0
        %v4131 = vsel %vm4029, %v4009, 0.0
        %v4132 = vsel %vm4029, %v4010, 0.0
        %v4133 = vsel %vm4030, %v4007, 0.0
        %v4134 = vsel %vm4030, %v4008, 0.0
        %v4135 = vsel %vm4031, %v4005, 0.0
        %v4136 = vsel %vm4031, %v4006, 0.0
        %v4137 = vsel %vm4032, %v4003, 0.0
        %v4138 = vsel %vm4032, %v4004, 0.0
        %v4139 = vsel %vm4033, %v4001, 0.0
        %v4140 = vsel %vm4033, %v4002, 0.0
        %v4141 = vsel %vm4034, %v3999, 0.0
        %v4142 = vsel %vm4034, %v4000, 0.0
        %v4143 = vsel %vm4035, %v3997, 0.0
        %v4144 = vsel %vm4035, %v3998, 0.0
        %v4145 = vsel %vm4036, %v3995, 0.0
        %v4146 = vsel %vm4036, %v3996, 0.0
        %v4147 = vsel %vm4037, %v3993, 0.0
        %v4148 = vsel %vm4037, %v3994, 0.0
        %v4149 = vsel %vm4038, %v3991, 0.0
        %v4150 = vsel %vm4038, %v3992, 0.0
        %v4151 = vsel %vm4039, %v3989, 0.0
        %v4152 = vsel %vm4039, %v3990, 0.0
        %v4153 = vsel %vm4040, %v3987, 0.0
        %v4154 = vsel %vm4040, %v3988, 0.0
        %v4155 = vsel %vm4041, %v3985, 0.0
        %v4156 = vsel %vm4041, %v3986, 0.0
        %v4157 = vsel %vm4042, %v3983, 0.0
        %v4158 = vsel %vm4042, %v3984, 0.0
        %v4159 = vsel %vm4043, %v3981, 0.0
        %v4160 = vsel %vm4043, %v3982, 0.0
        %v4161 = vsel %vm4044, %v3979, 0.0
        %v4162 = vsel %vm4044, %v3980, 0.0
        %v4163 = vsel %vm4045, %v3977, 0.0
        %v4164 = vsel %vm4045, %v3978, 0.0
        %v4165 = vsel %vm4046, %v3975, 0.0
        %v4166 = vsel %vm4046, %v3976, 0.0
        %v4167 = vsel %vm4047, %v3973, 0.0
        %v4168 = vsel %vm4047, %v3974, 0.0
        %v4169 = vsel %vm4048, %v3971, 0.0
        %v4170 = vsel %vm4048, %v3972, 0.0
        %v4171 = vsel %vm4049, %v3969, 0.0
        %v4172 = vsel %vm4049, %v3970, 0.0
        %v4173 = vsel %vm4050, %v3967, 0.0
        %v4174 = vsel %vm4050, %v3968, 0.0
        %v4175 = vsel %vm4051, %v3965, 0.0
        %v4176 = vsel %vm4051, %v3966, 0.0
        %v4177 = vsel %vm4052, %v3963, 0.0
        %v4178 = vsel %vm4052, %v3964, 0.0
        %v4179 = vsel %vm4053, %v3961, 0.0
        %v4180 = vsel %vm4053, %v3962, 0.0
        %v4181 = vsel %vm4054, %v3959, 0.0
        %v4182 = vsel %vm4054, %v3960, 0.0
        %v4183 = vmul.f32 %v3703, %v4119
        %v4184 = vmul.f32 %v3704, %v4120
        %v4185 = vmul.f32 %v3705, %v4121
        %v4186 = vmul.f32 %v3706, %v4122
        %v4187 = vmul.f32 %v3707, %v4123
        %v4188 = vmul.f32 %v3708, %v4124
        %v4189 = vmul.f32 %v3709, %v4125
        %v4190 = vmul.f32 %v3710, %v4126
        %v4191 = vmul.f32 %v3711, %v4127
        %v4192 = vmul.f32 %v3712, %v4128
        %v4193 = vmul.f32 %v3713, %v4129
        %v4194 = vmul.f32 %v3714, %v4130
        %v4195 = vmul.f32 %v3715, %v4131
        %v4196 = vmul.f32 %v3716, %v4132
        %v4197 = vmul.f32 %v3717, %v4133
        %v4198 = vmul.f32 %v3718, %v4134
        %v4199 = vmul.f32 %v3719, %v4135
        %v4200 = vmul.f32 %v3720, %v4136
        %v4201 = vmul.f32 %v3721, %v4137
        %v4202 = vmul.f32 %v3722, %v4138
        %v4203 = vmul.f32 %v3723, %v4139
        %v4204 = vmul.f32 %v3724, %v4140
        %v4205 = vmul.f32 %v3725, %v4141
        %v4206 = vmul.f32 %v3726, %v4142
        %v4207 = vmul.f32 %v3727, %v4143
        %v4208 = vmul.f32 %v3728, %v4144
        %v4209 = vmul.f32 %v3729, %v4145
        %v4210 = vmul.f32 %v3730, %v4146
        %v4211 = vmul.f32 %v3731, %v4147
        %v4212 = vmul.f32 %v3732, %v4148
        %v4213 = vmul.f32 %v3733, %v4149
        %v4214 = vmul.f32 %v3734, %v4150
        %v4215 = vmul.f32 %v3735, %v4151
        %v4216 = vmul.f32 %v3736, %v4152
        %v4217 = vmul.f32 %v3737, %v4153
        %v4218 = vmul.f32 %v3738, %v4154
        %v4219 = vmul.f32 %v3739, %v4155
        %v4220 = vmul.f32 %v3740, %v4156
        %v4221 = vmul.f32 %v3741, %v4157
        %v4222 = vmul.f32 %v3742, %v4158
        %v4223 = vmul.f32 %v3743, %v4159
        %v4224 = vmul.f32 %v3744, %v4160
        %v4225 = vmul.f32 %v3745, %v4161
        %v4226 = vmul.f32 %v3746, %v4162
        %v4227 = vmul.f32 %v3747, %v4163
        %v4228 = vmul.f32 %v3748, %v4164
        %v4229 = vmul.f32 %v3749, %v4165
        %v4230 = vmul.f32 %v3750, %v4166
        %v4231 = vmul.f32 %v3751, %v4167
        %v4232 = vmul.f32 %v3752, %v4168
        %v4233 = vmul.f32 %v3753, %v4169
        %v4234 = vmul.f32 %v3754, %v4170
        %v4235 = vmul.f32 %v3755, %v4171
        %v4236 = vmul.f32 %v3756, %v4172
        %v4237 = vmul.f32 %v3757, %v4173
        %v4238 = vmul.f32 %v3758, %v4174
        %v4239 = vmul.f32 %v3759, %v4175
        %v4240 = vmul.f32 %v3760, %v4176
        %v4241 = vmul.f32 %v3761, %v4177
        %v4242 = vmul.f32 %v3762, %v4178
        %v4243 = vmul.f32 %v3763, %v4179
        %v4244 = vmul.f32 %v3764, %v4180
        %v4245 = vmul.f32 %v3765, %v4181
        %v4246 = vmul.f32 %v3766, %v4182
        %v4247 = vadd.f32 %v4183, %v3639
        %v4248 = vadd.f32 %v4184, %v3640
        %v4249 = vadd.f32 %v4185, %v3641
        %v4250 = vadd.f32 %v4186, %v3642
        %v4251 = vadd.f32 %v4187, %v3643
        %v4252 = vadd.f32 %v4188, %v3644
        %v4253 = vadd.f32 %v4189, %v3645
        %v4254 = vadd.f32 %v4190, %v3646
        %v4255 = vadd.f32 %v4191, %v3647
        %v4256 = vadd.f32 %v4192, %v3648
        %v4257 = vadd.f32 %v4193, %v3649
        %v4258 = vadd.f32 %v4194, %v3650
        %v4259 = vadd.f32 %v4195, %v3651
        %v4260 = vadd.f32 %v4196, %v3652
        %v4261 = vadd.f32 %v4197, %v3653
        %v4262 = vadd.f32 %v4198, %v3654
        %v4263 = vadd.f32 %v4199, %v3655
        %v4264 = vadd.f32 %v4200, %v3656
        %v4265 = vadd.f32 %v4201, %v3657
        %v4266 = vadd.f32 %v4202, %v3658
        %v4267 = vadd.f32 %v4203, %v3659
        %v4268 = vadd.f32 %v4204, %v3660
        %v4269 = vadd.f32 %v4205, %v3661
        %v4270 = vadd.f32 %v4206, %v3662
        %v4271 = vadd.f32 %v4207, %v3663
        %v4272 = vadd.f32 %v4208, %v3664
        %v4273 = vadd.f32 %v4209, %v3665
        %v4274 = vadd.f32 %v4210, %v3666
        %v4275 = vadd.f32 %v4211, %v3667
        %v4276 = vadd.f32 %v4212, %v3668
        %v4277 = vadd.f32 %v4213, %v3669
        %v4278 = vadd.f32 %v4214, %v3670
        %v4279 = vadd.f32 %v4215, %v3671
        %v4280 = vadd.f32 %v4216, %v3672
        %v4281 = vadd.f32 %v4217, %v3673
        %v4282 = vadd.f32 %v4218, %v3674
        %v4283 = vadd.f32 %v4219, %v3675
        %v4284 = vadd.f32 %v4220, %v3676
        %v4285 = vadd.f32 %v4221, %v3677
        %v4286 = vadd.f32 %v4222, %v3678
        %v4287 = vadd.f32 %v4223, %v3679
        %v4288 = vadd.f32 %v4224, %v3680
        %v4289 = vadd.f32 %v4225, %v3681
        %v4290 = vadd.f32 %v4226, %v3682
        %v4291 = vadd.f32 %v4227, %v3683
        %v4292 = vadd.f32 %v4228, %v3684
        %v4293 = vadd.f32 %v4229, %v3685
        %v4294 = vadd.f32 %v4230, %v3686
        %v4295 = vadd.f32 %v4231, %v3687
        %v4296 = vadd.f32 %v4232, %v3688
        %v4297 = vadd.f32 %v4233, %v3689
        %v4298 = vadd.f32 %v4234, %v3690
        %v4299 = vadd.f32 %v4235, %v3691
        %v4300 = vadd.f32 %v4236, %v3692
        %v4301 = vadd.f32 %v4237, %v3693
        %v4302 = vadd.f32 %v4238, %v3694
        %v4303 = vadd.f32 %v4239, %v3695
        %v4304 = vadd.f32 %v4240, %v3696
        %v4305 = vadd.f32 %v4241, %v3697
        %v4306 = vadd.f32 %v4242, %v3698
        %v4307 = vadd.f32 %v4243, %v3699
        %v4308 = vadd.f32 %v4244, %v3700
        %v4309 = vadd.f32 %v4245, %v3701
        %v4310 = vadd.f32 %v4246, %v3702
        %v4311 = vmul.f32 %v3703, %v4055
        %v4312 = vmul.f32 %v3704, %v4056
        %v4313 = vmul.f32 %v3705, %v4057
        %v4314 = vmul.f32 %v3706, %v4058
        %v4315 = vmul.f32 %v3707, %v4059
        %v4316 = vmul.f32 %v3708, %v4060
        %v4317 = vmul.f32 %v3709, %v4061
        %v4318 = vmul.f32 %v3710, %v4062
        %v4319 = vmul.f32 %v3711, %v4063
        %v4320 = vmul.f32 %v3712, %v4064
        %v4321 = vmul.f32 %v3713, %v4065
        %v4322 = vmul.f32 %v3714, %v4066
        %v4323 = vmul.f32 %v3715, %v4067
        %v4324 = vmul.f32 %v3716, %v4068
        %v4325 = vmul.f32 %v3717, %v4069
        %v4326 = vmul.f32 %v3718, %v4070
        %v4327 = vmul.f32 %v3719, %v4071
        %v4328 = vmul.f32 %v3720, %v4072
        %v4329 = vmul.f32 %v3721, %v4073
        %v4330 = vmul.f32 %v3722, %v4074
        %v4331 = vmul.f32 %v3723, %v4075
        %v4332 = vmul.f32 %v3724, %v4076
        %v4333 = vmul.f32 %v3725, %v4077
        %v4334 = vmul.f32 %v3726, %v4078
        %v4335 = vmul.f32 %v3727, %v4079
        %v4336 = vmul.f32 %v3728, %v4080
        %v4337 = vmul.f32 %v3729, %v4081
        %v4338 = vmul.f32 %v3730, %v4082
        %v4339 = vmul.f32 %v3731, %v4083
        %v4340 = vmul.f32 %v3732, %v4084
        %v4341 = vmul.f32 %v3733, %v4085
        %v4342 = vmul.f32 %v3734, %v4086
        %v4343 = vmul.f32 %v3735, %v4087
        %v4344 = vmul.f32 %v3736, %v4088
        %v4345 = vmul.f32 %v3737, %v4089
        %v4346 = vmul.f32 %v3738, %v4090
        %v4347 = vmul.f32 %v3739, %v4091
        %v4348 = vmul.f32 %v3740, %v4092
        %v4349 = vmul.f32 %v3741, %v4093
        %v4350 = vmul.f32 %v3742, %v4094
        %v4351 = vmul.f32 %v3743, %v4095
        %v4352 = vmul.f32 %v3744, %v4096
        %v4353 = vmul.f32 %v3745, %v4097
        %v4354 = vmul.f32 %v3746, %v4098
        %v4355 = vmul.f32 %v3747, %v4099
        %v4356 = vmul.f32 %v3748, %v4100
        %v4357 = vmul.f32 %v3749, %v4101
        %v4358 = vmul.f32 %v3750, %v4102
        %v4359 = vmul.f32 %v3751, %v4103
        %v4360 = vmul.f32 %v3752, %v4104
        %v4361 = vmul.f32 %v3753, %v4105
        %v4362 = vmul.f32 %v3754, %v4106
        %v4363 = vmul.f32 %v3755, %v4107
        %v4364 = vmul.f32 %v3756, %v4108
        %v4365 = vmul.f32 %v3757, %v4109
        %v4366 = vmul.f32 %v3758, %v4110
        %v4367 = vmul.f32 %v3759, %v4111
        %v4368 = vmul.f32 %v3760, %v4112
        %v4369 = vmul.f32 %v3761, %v4113
        %v4370 = vmul.f32 %v3762, %v4114
        %v4371 = vmul.f32 %v3763, %v4115
        %v4372 = vmul.f32 %v3764, %v4116
        %v4373 = vmul.f32 %v3765, %v4117
        %v4374 = vmul.f32 %v3766, %v4118
        %v4375 = vrot.slane %v4311, 4
        %v4376 = vrot.slane %v4312, 4
        %v4377 = vrot.slane %v4313, 4
        %v4378 = vrot.slane %v4314, 4
        %v4379 = vrot.slane %v4315, 4
        %v4380 = vrot.slane %v4316, 4
        %v4381 = vrot.slane %v4317, 4
        %v4382 = vrot.slane %v4318, 4
        %v4383 = vrot.slane %v4319, 4
        %v4384 = vrot.slane %v4320, 4
        %v4385 = vrot.slane %v4321, 4
        %v4386 = vrot.slane %v4322, 4
        %v4387 = vrot.slane %v4323, 4
        %v4388 = vrot.slane %v4324, 4
        %v4389 = vrot.slane %v4325, 4
        %v4390 = vrot.slane %v4326, 4
        %v4391 = vrot.slane %v4327, 4
        %v4392 = vrot.slane %v4328, 4
        %v4393 = vrot.slane %v4329, 4
        %v4394 = vrot.slane %v4330, 4
        %v4395 = vrot.slane %v4331, 4
        %v4396 = vrot.slane %v4332, 4
        %v4397 = vrot.slane %v4333, 4
        %v4398 = vrot.slane %v4334, 4
        %v4399 = vrot.slane %v4335, 4
        %v4400 = vrot.slane %v4336, 4
        %v4401 = vrot.slane %v4337, 4
        %v4402 = vrot.slane %v4338, 4
        %v4403 = vrot.slane %v4339, 4
        %v4404 = vrot.slane %v4340, 4
        %v4405 = vrot.slane %v4341, 4
        %v4406 = vrot.slane %v4342, 4
        %v4407 = vrot.slane %v4343, 4
        %v4408 = vrot.slane %v4344, 4
        %v4409 = vrot.slane %v4345, 4
        %v4410 = vrot.slane %v4346, 4
        %v4411 = vrot.slane %v4347, 4
        %v4412 = vrot.slane %v4348, 4
        %v4413 = vrot.slane %v4349, 4
        %v4414 = vrot.slane %v4350, 4
        %v4415 = vrot.slane %v4351, 4
        %v4416 = vrot.slane %v4352, 4
        %v4417 = vrot.slane %v4353, 4
        %v4418 = vrot.slane %v4354, 4
        %v4419 = vrot.slane %v4355, 4
        %v4420 = vrot.slane %v4356, 4
        %v4421 = vrot.slane %v4357, 4
        %v4422 = vrot.slane %v4358, 4
        %v4423 = vrot.slane %v4359, 4
        %v4424 = vrot.slane %v4360, 4
        %v4425 = vrot.slane %v4361, 4
        %v4426 = vrot.slane %v4362, 4
        %v4427 = vrot.slane %v4363, 4
        %v4428 = vrot.slane %v4364, 4
        %v4429 = vrot.slane %v4365, 4
        %v4430 = vrot.slane %v4366, 4
        %v4431 = vrot.slane %v4367, 4
        %v4432 = vrot.slane %v4368, 4
        %v4433 = vrot.slane %v4369, 4
        %v4434 = vrot.slane %v4370, 4
        %v4435 = vrot.slane %v4371, 4
        %v4436 = vrot.slane %v4372, 4
        %v4437 = vrot.slane %v4373, 4
        %v4438 = vrot.slane %v4374, 4
        %vm4439 = vcmp.lt.s32.totalorder %v871, 4
        %v4440 = vsel %vm4439, %v4435, %v4437
        %v4441 = vsel %vm4439, %v4436, %v4438
        %v4442 = vsel %vm4439, %v4433, %v4435
        %v4443 = vsel %vm4439, %v4434, %v4436
        %v4444 = vsel %vm4439, %v4431, %v4433
        %v4445 = vsel %vm4439, %v4432, %v4434
        %v4446 = vsel %vm4439, %v4429, %v4431
        %v4447 = vsel %vm4439, %v4430, %v4432
        %v4448 = vsel %vm4439, %v4427, %v4429
        %v4449 = vsel %vm4439, %v4428, %v4430
        %v4450 = vsel %vm4439, %v4425, %v4427
        %v4451 = vsel %vm4439, %v4426, %v4428
        %v4452 = vsel %vm4439, %v4423, %v4425
        %v4453 = vsel %vm4439, %v4424, %v4426
        %v4454 = vsel %vm4439, %v4421, %v4423
        %v4455 = vsel %vm4439, %v4422, %v4424
        %v4456 = vsel %vm4439, %v4419, %v4421
        %v4457 = vsel %vm4439, %v4420, %v4422
        %v4458 = vsel %vm4439, %v4417, %v4419
        %v4459 = vsel %vm4439, %v4418, %v4420
        %v4460 = vsel %vm4439, %v4415, %v4417
        %v4461 = vsel %vm4439, %v4416, %v4418
        %v4462 = vsel %vm4439, %v4413, %v4415
        %v4463 = vsel %vm4439, %v4414, %v4416
        %v4464 = vsel %vm4439, %v4411, %v4413
        %v4465 = vsel %vm4439, %v4412, %v4414
        %v4466 = vsel %vm4439, %v4409, %v4411
        %v4467 = vsel %vm4439, %v4410, %v4412
        %v4468 = vsel %vm4439, %v4407, %v4409
        %v4469 = vsel %vm4439, %v4408, %v4410
        %v4470 = vsel %vm4439, %v4405, %v4407
        %v4471 = vsel %vm4439, %v4406, %v4408
        %v4472 = vsel %vm4439, %v4403, %v4405
        %v4473 = vsel %vm4439, %v4404, %v4406
        %v4474 = vsel %vm4439, %v4401, %v4403
        %v4475 = vsel %vm4439, %v4402, %v4404
        %v4476 = vsel %vm4439, %v4399, %v4401
        %v4477 = vsel %vm4439, %v4400, %v4402
        %v4478 = vsel %vm4439, %v4397, %v4399
        %v4479 = vsel %vm4439, %v4398, %v4400
        %v4480 = vsel %vm4439, %v4395, %v4397
        %v4481 = vsel %vm4439, %v4396, %v4398
        %v4482 = vsel %vm4439, %v4393, %v4395
        %v4483 = vsel %vm4439, %v4394, %v4396
        %v4484 = vsel %vm4439, %v4391, %v4393
        %v4485 = vsel %vm4439, %v4392, %v4394
        %v4486 = vsel %vm4439, %v4389, %v4391
        %v4487 = vsel %vm4439, %v4390, %v4392
        %v4488 = vsel %vm4439, %v4387, %v4389
        %v4489 = vsel %vm4439, %v4388, %v4390
        %v4490 = vsel %vm4439, %v4385, %v4387
        %v4491 = vsel %vm4439, %v4386, %v4388
        %v4492 = vsel %vm4439, %v4383, %v4385
        %v4493 = vsel %vm4439, %v4384, %v4386
        %v4494 = vsel %vm4439, %v4381, %v4383
        %v4495 = vsel %vm4439, %v4382, %v4384
        %v4496 = vsel %vm4439, %v4379, %v4381
        %v4497 = vsel %vm4439, %v4380, %v4382
        %v4498 = vsel %vm4439, %v4377, %v4379
        %v4499 = vsel %vm4439, %v4378, %v4380
        %v4500 = vsel %vm4439, %v4375, %v4377
        %v4501 = vsel %vm4439, %v4376, %v4378
        %v4502 = vsel %vm4439, %v4437, %v4375
        %v4503 = vsel %vm4439, %v4438, %v4376
        %v4504 = vrot.slane %v4247, 4
        %v4505 = vrot.slane %v4248, 4
        %v4506 = vrot.slane %v4249, 4
        %v4507 = vrot.slane %v4250, 4
        %v4508 = vrot.slane %v4251, 4
        %v4509 = vrot.slane %v4252, 4
        %v4510 = vrot.slane %v4253, 4
        %v4511 = vrot.slane %v4254, 4
        %v4512 = vrot.slane %v4255, 4
        %v4513 = vrot.slane %v4256, 4
        %v4514 = vrot.slane %v4257, 4
        %v4515 = vrot.slane %v4258, 4
        %v4516 = vrot.slane %v4259, 4
        %v4517 = vrot.slane %v4260, 4
        %v4518 = vrot.slane %v4261, 4
        %v4519 = vrot.slane %v4262, 4
        %v4520 = vrot.slane %v4263, 4
        %v4521 = vrot.slane %v4264, 4
        %v4522 = vrot.slane %v4265, 4
        %v4523 = vrot.slane %v4266, 4
        %v4524 = vrot.slane %v4267, 4
        %v4525 = vrot.slane %v4268, 4
        %v4526 = vrot.slane %v4269, 4
        %v4527 = vrot.slane %v4270, 4
        %v4528 = vrot.slane %v4271, 4
        %v4529 = vrot.slane %v4272, 4
        %v4530 = vrot.slane %v4273, 4
        %v4531 = vrot.slane %v4274, 4
        %v4532 = vrot.slane %v4275, 4
        %v4533 = vrot.slane %v4276, 4
        %v4534 = vrot.slane %v4277, 4
        %v4535 = vrot.slane %v4278, 4
        %v4536 = vrot.slane %v4279, 4
        %v4537 = vrot.slane %v4280, 4
        %v4538 = vrot.slane %v4281, 4
        %v4539 = vrot.slane %v4282, 4
        %v4540 = vrot.slane %v4283, 4
        %v4541 = vrot.slane %v4284, 4
        %v4542 = vrot.slane %v4285, 4
        %v4543 = vrot.slane %v4286, 4
        %v4544 = vrot.slane %v4287, 4
        %v4545 = vrot.slane %v4288, 4
        %v4546 = vrot.slane %v4289, 4
        %v4547 = vrot.slane %v4290, 4
        %v4548 = vrot.slane %v4291, 4
        %v4549 = vrot.slane %v4292, 4
        %v4550 = vrot.slane %v4293, 4
        %v4551 = vrot.slane %v4294, 4
        %v4552 = vrot.slane %v4295, 4
        %v4553 = vrot.slane %v4296, 4
        %v4554 = vrot.slane %v4297, 4
        %v4555 = vrot.slane %v4298, 4
        %v4556 = vrot.slane %v4299, 4
        %v4557 = vrot.slane %v4300, 4
        %v4558 = vrot.slane %v4301, 4
        %v4559 = vrot.slane %v4302, 4
        %v4560 = vrot.slane %v4303, 4
        %v4561 = vrot.slane %v4304, 4
        %v4562 = vrot.slane %v4305, 4
        %v4563 = vrot.slane %v4306, 4
        %v4564 = vrot.slane %v4307, 4
        %v4565 = vrot.slane %v4308, 4
        %v4566 = vrot.slane %v4309, 4
        %v4567 = vrot.slane %v4310, 4
        %v4568 = vsel %vm4439, %v4564, %v4566
        %v4569 = vsel %vm4439, %v4565, %v4567
        %v4570 = vsel %vm4439, %v4562, %v4564
        %v4571 = vsel %vm4439, %v4563, %v4565
        %v4572 = vsel %vm4439, %v4560, %v4562
        %v4573 = vsel %vm4439, %v4561, %v4563
        %v4574 = vsel %vm4439, %v4558, %v4560
        %v4575 = vsel %vm4439, %v4559, %v4561
        %v4576 = vsel %vm4439, %v4556, %v4558
        %v4577 = vsel %vm4439, %v4557, %v4559
        %v4578 = vsel %vm4439, %v4554, %v4556
        %v4579 = vsel %vm4439, %v4555, %v4557
        %v4580 = vsel %vm4439, %v4552, %v4554
        %v4581 = vsel %vm4439, %v4553, %v4555
        %v4582 = vsel %vm4439, %v4550, %v4552
        %v4583 = vsel %vm4439, %v4551, %v4553
        %v4584 = vsel %vm4439, %v4548, %v4550
        %v4585 = vsel %vm4439, %v4549, %v4551
        %v4586 = vsel %vm4439, %v4546, %v4548
        %v4587 = vsel %vm4439, %v4547, %v4549
        %v4588 = vsel %vm4439, %v4544, %v4546
        %v4589 = vsel %vm4439, %v4545, %v4547
        %v4590 = vsel %vm4439, %v4542, %v4544
        %v4591 = vsel %vm4439, %v4543, %v4545
        %v4592 = vsel %vm4439, %v4540, %v4542
        %v4593 = vsel %vm4439, %v4541, %v4543
        %v4594 = vsel %vm4439, %v4538, %v4540
        %v4595 = vsel %vm4439, %v4539, %v4541
        %v4596 = vsel %vm4439, %v4536, %v4538
        %v4597 = vsel %vm4439, %v4537, %v4539
        %v4598 = vsel %vm4439, %v4534, %v4536
        %v4599 = vsel %vm4439, %v4535, %v4537
        %v4600 = vsel %vm4439, %v4532, %v4534
        %v4601 = vsel %vm4439, %v4533, %v4535
        %v4602 = vsel %vm4439, %v4530, %v4532
        %v4603 = vsel %vm4439, %v4531, %v4533
        %v4604 = vsel %vm4439, %v4528, %v4530
        %v4605 = vsel %vm4439, %v4529, %v4531
        %v4606 = vsel %vm4439, %v4526, %v4528
        %v4607 = vsel %vm4439, %v4527, %v4529
        %v4608 = vsel %vm4439, %v4524, %v4526
        %v4609 = vsel %vm4439, %v4525, %v4527
        %v4610 = vsel %vm4439, %v4522, %v4524
        %v4611 = vsel %vm4439, %v4523, %v4525
        %v4612 = vsel %vm4439, %v4520, %v4522
        %v4613 = vsel %vm4439, %v4521, %v4523
        %v4614 = vsel %vm4439, %v4518, %v4520
        %v4615 = vsel %vm4439, %v4519, %v4521
        %v4616 = vsel %vm4439, %v4516, %v4518
        %v4617 = vsel %vm4439, %v4517, %v4519
        %v4618 = vsel %vm4439, %v4514, %v4516
        %v4619 = vsel %vm4439, %v4515, %v4517
        %v4620 = vsel %vm4439, %v4512, %v4514
        %v4621 = vsel %vm4439, %v4513, %v4515
        %v4622 = vsel %vm4439, %v4510, %v4512
        %v4623 = vsel %vm4439, %v4511, %v4513
        %v4624 = vsel %vm4439, %v4508, %v4510
        %v4625 = vsel %vm4439, %v4509, %v4511
        %v4626 = vsel %vm4439, %v4506, %v4508
        %v4627 = vsel %vm4439, %v4507, %v4509
        %v4628 = vsel %vm4439, %v4504, %v4506
        %v4629 = vsel %vm4439, %v4505, %v4507
        %v4630 = vsel %vm4439, %v4566, %v4504
        %v4631 = vsel %vm4439, %v4567, %v4505
        %vm4632 = vcmp.ge.s32.totalorder %v871, 4
        %vm4633 = vcmp.ge.s32.totalorder %v3128, 4
        %vm4634 = vcmp.ge.s32.totalorder %v3129, 4
        %vm4635 = vcmp.ge.s32.totalorder %v3130, 4
        %vm4636 = vcmp.ge.s32.totalorder %v3131, 4
        %vm4637 = vcmp.ge.s32.totalorder %v3132, 4
        %vm4638 = vcmp.ge.s32.totalorder %v3133, 4
        %vm4639 = vcmp.ge.s32.totalorder %v3134, 4
        %vm4640 = vcmp.ge.s32.totalorder %v3135, 4
        %vm4641 = vcmp.ge.s32.totalorder %v3136, 4
        %vm4642 = vcmp.ge.s32.totalorder %v3137, 4
        %vm4643 = vcmp.ge.s32.totalorder %v3138, 4
        %vm4644 = vcmp.ge.s32.totalorder %v3139, 4
        %vm4645 = vcmp.ge.s32.totalorder %v3140, 4
        %vm4646 = vcmp.ge.s32.totalorder %v3141, 4
        %vm4647 = vcmp.ge.s32.totalorder %v3142, 4
        %vm4648 = vcmp.ge.s32.totalorder %v3143, 4
        %vm4649 = vcmp.ge.s32.totalorder %v3144, 4
        %vm4650 = vcmp.ge.s32.totalorder %v3145, 4
        %vm4651 = vcmp.ge.s32.totalorder %v3146, 4
        %vm4652 = vcmp.ge.s32.totalorder %v3147, 4
        %vm4653 = vcmp.ge.s32.totalorder %v3148, 4
        %vm4654 = vcmp.ge.s32.totalorder %v3149, 4
        %vm4655 = vcmp.ge.s32.totalorder %v3150, 4
        %vm4656 = vcmp.ge.s32.totalorder %v3151, 4
        %vm4657 = vcmp.ge.s32.totalorder %v3152, 4
        %vm4658 = vcmp.ge.s32.totalorder %v3153, 4
        %vm4659 = vcmp.ge.s32.totalorder %v3154, 4
        %vm4660 = vcmp.ge.s32.totalorder %v3155, 4
        %vm4661 = vcmp.ge.s32.totalorder %v3156, 4
        %vm4662 = vcmp.ge.s32.totalorder %v3157, 4
        %vm4663 = vcmp.ge.s32.totalorder %v3158, 4
        %v4664 = vsel %vm4632, %v4502, 1.0
        %v4665 = vsel %vm4632, %v4503, 1.0
        %v4666 = vsel %vm4633, %v4500, 1.0
        %v4667 = vsel %vm4633, %v4501, 1.0
        %v4668 = vsel %vm4634, %v4498, 1.0
        %v4669 = vsel %vm4634, %v4499, 1.0
        %v4670 = vsel %vm4635, %v4496, 1.0
        %v4671 = vsel %vm4635, %v4497, 1.0
        %v4672 = vsel %vm4636, %v4494, 1.0
        %v4673 = vsel %vm4636, %v4495, 1.0
        %v4674 = vsel %vm4637, %v4492, 1.0
        %v4675 = vsel %vm4637, %v4493, 1.0
        %v4676 = vsel %vm4638, %v4490, 1.0
        %v4677 = vsel %vm4638, %v4491, 1.0
        %v4678 = vsel %vm4639, %v4488, 1.0
        %v4679 = vsel %vm4639, %v4489, 1.0
        %v4680 = vsel %vm4640, %v4486, 1.0
        %v4681 = vsel %vm4640, %v4487, 1.0
        %v4682 = vsel %vm4641, %v4484, 1.0
        %v4683 = vsel %vm4641, %v4485, 1.0
        %v4684 = vsel %vm4642, %v4482, 1.0
        %v4685 = vsel %vm4642, %v4483, 1.0
        %v4686 = vsel %vm4643, %v4480, 1.0
        %v4687 = vsel %vm4643, %v4481, 1.0
        %v4688 = vsel %vm4644, %v4478, 1.0
        %v4689 = vsel %vm4644, %v4479, 1.0
        %v4690 = vsel %vm4645, %v4476, 1.0
        %v4691 = vsel %vm4645, %v4477, 1.0
        %v4692 = vsel %vm4646, %v4474, 1.0
        %v4693 = vsel %vm4646, %v4475, 1.0
        %v4694 = vsel %vm4647, %v4472, 1.0
        %v4695 = vsel %vm4647, %v4473, 1.0
        %v4696 = vsel %vm4648, %v4470, 1.0
        %v4697 = vsel %vm4648, %v4471, 1.0
        %v4698 = vsel %vm4649, %v4468, 1.0
        %v4699 = vsel %vm4649, %v4469, 1.0
        %v4700 = vsel %vm4650, %v4466, 1.0
        %v4701 = vsel %vm4650, %v4467, 1.0
        %v4702 = vsel %vm4651, %v4464, 1.0
        %v4703 = vsel %vm4651, %v4465, 1.0
        %v4704 = vsel %vm4652, %v4462, 1.0
        %v4705 = vsel %vm4652, %v4463, 1.0
        %v4706 = vsel %vm4653, %v4460, 1.0
        %v4707 = vsel %vm4653, %v4461, 1.0
        %v4708 = vsel %vm4654, %v4458, 1.0
        %v4709 = vsel %vm4654, %v4459, 1.0
        %v4710 = vsel %vm4655, %v4456, 1.0
        %v4711 = vsel %vm4655, %v4457, 1.0
        %v4712 = vsel %vm4656, %v4454, 1.0
        %v4713 = vsel %vm4656, %v4455, 1.0
        %v4714 = vsel %vm4657, %v4452, 1.0
        %v4715 = vsel %vm4657, %v4453, 1.0
        %v4716 = vsel %vm4658, %v4450, 1.0
        %v4717 = vsel %vm4658, %v4451, 1.0
        %v4718 = vsel %vm4659, %v4448, 1.0
        %v4719 = vsel %vm4659, %v4449, 1.0
        %v4720 = vsel %vm4660, %v4446, 1.0
        %v4721 = vsel %vm4660, %v4447, 1.0
        %v4722 = vsel %vm4661, %v4444, 1.0
        %v4723 = vsel %vm4661, %v4445, 1.0
        %v4724 = vsel %vm4662, %v4442, 1.0
        %v4725 = vsel %vm4662, %v4443, 1.0
        %v4726 = vsel %vm4663, %v4440, 1.0
        %v4727 = vsel %vm4663, %v4441, 1.0
        %v4728 = vsel %vm4632, %v4630, 0.0
        %v4729 = vsel %vm4632, %v4631, 0.0
        %v4730 = vsel %vm4633, %v4628, 0.0
        %v4731 = vsel %vm4633, %v4629, 0.0
        %v4732 = vsel %vm4634, %v4626, 0.0
        %v4733 = vsel %vm4634, %v4627, 0.0
        %v4734 = vsel %vm4635, %v4624, 0.0
        %v4735 = vsel %vm4635, %v4625, 0.0
        %v4736 = vsel %vm4636, %v4622, 0.0
        %v4737 = vsel %vm4636, %v4623, 0.0
        %v4738 = vsel %vm4637, %v4620, 0.0
        %v4739 = vsel %vm4637, %v4621, 0.0
        %v4740 = vsel %vm4638, %v4618, 0.0
        %v4741 = vsel %vm4638, %v4619, 0.0
        %v4742 = vsel %vm4639, %v4616, 0.0
        %v4743 = vsel %vm4639, %v4617, 0.0
        %v4744 = vsel %vm4640, %v4614, 0.0
        %v4745 = vsel %vm4640, %v4615, 0.0
        %v4746 = vsel %vm4641, %v4612, 0.0
        %v4747 = vsel %vm4641, %v4613, 0.0
        %v4748 = vsel %vm4642, %v4610, 0.0
        %v4749 = vsel %vm4642, %v4611, 0.0
        %v4750 = vsel %vm4643, %v4608, 0.0
        %v4751 = vsel %vm4643, %v4609, 0.0
        %v4752 = vsel %vm4644, %v4606, 0.0
        %v4753 = vsel %vm4644, %v4607, 0.0
        %v4754 = vsel %vm4645, %v4604, 0.0
        %v4755 = vsel %vm4645, %v4605, 0.0
        %v4756 = vsel %vm4646, %v4602, 0.0
        %v4757 = vsel %vm4646, %v4603, 0.0
        %v4758 = vsel %vm4647, %v4600, 0.0
        %v4759 = vsel %vm4647, %v4601, 0.0
        %v4760 = vsel %vm4648, %v4598, 0.0
        %v4761 = vsel %vm4648, %v4599, 0.0
        %v4762 = vsel %vm4649, %v4596, 0.0
        %v4763 = vsel %vm4649, %v4597, 0.0
        %v4764 = vsel %vm4650, %v4594, 0.0
        %v4765 = vsel %vm4650, %v4595, 0.0
        %v4766 = vsel %vm4651, %v4592, 0.0
        %v4767 = vsel %vm4651, %v4593, 0.0
        %v4768 = vsel %vm4652, %v4590, 0.0
        %v4769 = vsel %vm4652, %v4591, 0.0
        %v4770 = vsel %vm4653, %v4588, 0.0
        %v4771 = vsel %vm4653, %v4589, 0.0
        %v4772 = vsel %vm4654, %v4586, 0.0
        %v4773 = vsel %vm4654, %v4587, 0.0
        %v4774 = vsel %vm4655, %v4584, 0.0
        %v4775 = vsel %vm4655, %v4585, 0.0
        %v4776 = vsel %vm4656, %v4582, 0.0
        %v4777 = vsel %vm4656, %v4583, 0.0
        %v4778 = vsel %vm4657, %v4580, 0.0
        %v4779 = vsel %vm4657, %v4581, 0.0
        %v4780 = vsel %vm4658, %v4578, 0.0
        %v4781 = vsel %vm4658, %v4579, 0.0
        %v4782 = vsel %vm4659, %v4576, 0.0
        %v4783 = vsel %vm4659, %v4577, 0.0
        %v4784 = vsel %vm4660, %v4574, 0.0
        %v4785 = vsel %vm4660, %v4575, 0.0
        %v4786 = vsel %vm4661, %v4572, 0.0
        %v4787 = vsel %vm4661, %v4573, 0.0
        %v4788 = vsel %vm4662, %v4570, 0.0
        %v4789 = vsel %vm4662, %v4571, 0.0
        %v4790 = vsel %vm4663, %v4568, 0.0
        %v4791 = vsel %vm4663, %v4569, 0.0
        %v4792 = vmul.f32 %v4311, %v4728
        %v4793 = vmul.f32 %v4312, %v4729
        %v4794 = vmul.f32 %v4313, %v4730
        %v4795 = vmul.f32 %v4314, %v4731
        %v4796 = vmul.f32 %v4315, %v4732
        %v4797 = vmul.f32 %v4316, %v4733
        %v4798 = vmul.f32 %v4317, %v4734
        %v4799 = vmul.f32 %v4318, %v4735
        %v4800 = vmul.f32 %v4319, %v4736
        %v4801 = vmul.f32 %v4320, %v4737
        %v4802 = vmul.f32 %v4321, %v4738
        %v4803 = vmul.f32 %v4322, %v4739
        %v4804 = vmul.f32 %v4323, %v4740
        %v4805 = vmul.f32 %v4324, %v4741
        %v4806 = vmul.f32 %v4325, %v4742
        %v4807 = vmul.f32 %v4326, %v4743
        %v4808 = vmul.f32 %v4327, %v4744
        %v4809 = vmul.f32 %v4328, %v4745
        %v4810 = vmul.f32 %v4329, %v4746
        %v4811 = vmul.f32 %v4330, %v4747
        %v4812 = vmul.f32 %v4331, %v4748
        %v4813 = vmul.f32 %v4332, %v4749
        %v4814 = vmul.f32 %v4333, %v4750
        %v4815 = vmul.f32 %v4334, %v4751
        %v4816 = vmul.f32 %v4335, %v4752
        %v4817 = vmul.f32 %v4336, %v4753
        %v4818 = vmul.f32 %v4337, %v4754
        %v4819 = vmul.f32 %v4338, %v4755
        %v4820 = vmul.f32 %v4339, %v4756
        %v4821 = vmul.f32 %v4340, %v4757
        %v4822 = vmul.f32 %v4341, %v4758
        %v4823 = vmul.f32 %v4342, %v4759
        %v4824 = vmul.f32 %v4343, %v4760
        %v4825 = vmul.f32 %v4344, %v4761
        %v4826 = vmul.f32 %v4345, %v4762
        %v4827 = vmul.f32 %v4346, %v4763
        %v4828 = vmul.f32 %v4347, %v4764
        %v4829 = vmul.f32 %v4348, %v4765
        %v4830 = vmul.f32 %v4349, %v4766
        %v4831 = vmul.f32 %v4350, %v4767
        %v4832 = vmul.f32 %v4351, %v4768
        %v4833 = vmul.f32 %v4352, %v4769
        %v4834 = vmul.f32 %v4353, %v4770
        %v4835 = vmul.f32 %v4354, %v4771
        %v4836 = vmul.f32 %v4355, %v4772
        %v4837 = vmul.f32 %v4356, %v4773
        %v4838 = vmul.f32 %v4357, %v4774
        %v4839 = vmul.f32 %v4358, %v4775
        %v4840 = vmul.f32 %v4359, %v4776
        %v4841 = vmul.f32 %v4360, %v4777
        %v4842 = vmul.f32 %v4361, %v4778
        %v4843 = vmul.f32 %v4362, %v4779
        %v4844 = vmul.f32 %v4363, %v4780
        %v4845 = vmul.f32 %v4364, %v4781
        %v4846 = vmul.f32 %v4365, %v4782
        %v4847 = vmul.f32 %v4366, %v4783
        %v4848 = vmul.f32 %v4367, %v4784
        %v4849 = vmul.f32 %v4368, %v4785
        %v4850 = vmul.f32 %v4369, %v4786
        %v4851 = vmul.f32 %v4370, %v4787
        %v4852 = vmul.f32 %v4371, %v4788
        %v4853 = vmul.f32 %v4372, %v4789
        %v4854 = vmul.f32 %v4373, %v4790
        %v4855 = vmul.f32 %v4374, %v4791
        %v4856 = vadd.f32 %v4792, %v4247
        %v4857 = vadd.f32 %v4793, %v4248
        %v4858 = vadd.f32 %v4794, %v4249
        %v4859 = vadd.f32 %v4795, %v4250
        %v4860 = vadd.f32 %v4796, %v4251
        %v4861 = vadd.f32 %v4797, %v4252
        %v4862 = vadd.f32 %v4798, %v4253
        %v4863 = vadd.f32 %v4799, %v4254
        %v4864 = vadd.f32 %v4800, %v4255
        %v4865 = vadd.f32 %v4801, %v4256
        %v4866 = vadd.f32 %v4802, %v4257
        %v4867 = vadd.f32 %v4803, %v4258
        %v4868 = vadd.f32 %v4804, %v4259
        %v4869 = vadd.f32 %v4805, %v4260
        %v4870 = vadd.f32 %v4806, %v4261
        %v4871 = vadd.f32 %v4807, %v4262
        %v4872 = vadd.f32 %v4808, %v4263
        %v4873 = vadd.f32 %v4809, %v4264
        %v4874 = vadd.f32 %v4810, %v4265
        %v4875 = vadd.f32 %v4811, %v4266
        %v4876 = vadd.f32 %v4812, %v4267
        %v4877 = vadd.f32 %v4813, %v4268
        %v4878 = vadd.f32 %v4814, %v4269
        %v4879 = vadd.f32 %v4815, %v4270
        %v4880 = vadd.f32 %v4816, %v4271
        %v4881 = vadd.f32 %v4817, %v4272
        %v4882 = vadd.f32 %v4818, %v4273
        %v4883 = vadd.f32 %v4819, %v4274
        %v4884 = vadd.f32 %v4820, %v4275
        %v4885 = vadd.f32 %v4821, %v4276
        %v4886 = vadd.f32 %v4822, %v4277
        %v4887 = vadd.f32 %v4823, %v4278
        %v4888 = vadd.f32 %v4824, %v4279
        %v4889 = vadd.f32 %v4825, %v4280
        %v4890 = vadd.f32 %v4826, %v4281
        %v4891 = vadd.f32 %v4827, %v4282
        %v4892 = vadd.f32 %v4828, %v4283
        %v4893 = vadd.f32 %v4829, %v4284
        %v4894 = vadd.f32 %v4830, %v4285
        %v4895 = vadd.f32 %v4831, %v4286
        %v4896 = vadd.f32 %v4832, %v4287
        %v4897 = vadd.f32 %v4833, %v4288
        %v4898 = vadd.f32 %v4834, %v4289
        %v4899 = vadd.f32 %v4835, %v4290
        %v4900 = vadd.f32 %v4836, %v4291
        %v4901 = vadd.f32 %v4837, %v4292
        %v4902 = vadd.f32 %v4838, %v4293
        %v4903 = vadd.f32 %v4839, %v4294
        %v4904 = vadd.f32 %v4840, %v4295
        %v4905 = vadd.f32 %v4841, %v4296
        %v4906 = vadd.f32 %v4842, %v4297
        %v4907 = vadd.f32 %v4843, %v4298
        %v4908 = vadd.f32 %v4844, %v4299
        %v4909 = vadd.f32 %v4845, %v4300
        %v4910 = vadd.f32 %v4846, %v4301
        %v4911 = vadd.f32 %v4847, %v4302
        %v4912 = vadd.f32 %v4848, %v4303
        %v4913 = vadd.f32 %v4849, %v4304
        %v4914 = vadd.f32 %v4850, %v4305
        %v4915 = vadd.f32 %v4851, %v4306
        %v4916 = vadd.f32 %v4852, %v4307
        %v4917 = vadd.f32 %v4853, %v4308
        %v4918 = vadd.f32 %v4854, %v4309
        %v4919 = vadd.f32 %v4855, %v4310
        %v4920 = vmul.f32 %v4311, %v4664
        %v4921 = vmul.f32 %v4312, %v4665
        %v4922 = vmul.f32 %v4313, %v4666
        %v4923 = vmul.f32 %v4314, %v4667
        %v4924 = vmul.f32 %v4315, %v4668
        %v4925 = vmul.f32 %v4316, %v4669
        %v4926 = vmul.f32 %v4317, %v4670
        %v4927 = vmul.f32 %v4318, %v4671
        %v4928 = vmul.f32 %v4319, %v4672
        %v4929 = vmul.f32 %v4320, %v4673
        %v4930 = vmul.f32 %v4321, %v4674
        %v4931 = vmul.f32 %v4322, %v4675
        %v4932 = vmul.f32 %v4323, %v4676
        %v4933 = vmul.f32 %v4324, %v4677
        %v4934 = vmul.f32 %v4325, %v4678
        %v4935 = vmul.f32 %v4326, %v4679
        %v4936 = vmul.f32 %v4327, %v4680
        %v4937 = vmul.f32 %v4328, %v4681
        %v4938 = vmul.f32 %v4329, %v4682
        %v4939 = vmul.f32 %v4330, %v4683
        %v4940 = vmul.f32 %v4331, %v4684
        %v4941 = vmul.f32 %v4332, %v4685
        %v4942 = vmul.f32 %v4333, %v4686
        %v4943 = vmul.f32 %v4334, %v4687
        %v4944 = vmul.f32 %v4335, %v4688
        %v4945 = vmul.f32 %v4336, %v4689
        %v4946 = vmul.f32 %v4337, %v4690
        %v4947 = vmul.f32 %v4338, %v4691
        %v4948 = vmul.f32 %v4339, %v4692
        %v4949 = vmul.f32 %v4340, %v4693
        %v4950 = vmul.f32 %v4341, %v4694
        %v4951 = vmul.f32 %v4342, %v4695
        %v4952 = vmul.f32 %v4343, %v4696
        %v4953 = vmul.f32 %v4344, %v4697
        %v4954 = vmul.f32 %v4345, %v4698
        %v4955 = vmul.f32 %v4346, %v4699
        %v4956 = vmul.f32 %v4347, %v4700
        %v4957 = vmul.f32 %v4348, %v4701
        %v4958 = vmul.f32 %v4349, %v4702
        %v4959 = vmul.f32 %v4350, %v4703
        %v4960 = vmul.f32 %v4351, %v4704
        %v4961 = vmul.f32 %v4352, %v4705
        %v4962 = vmul.f32 %v4353, %v4706
        %v4963 = vmul.f32 %v4354, %v4707
        %v4964 = vmul.f32 %v4355, %v4708
        %v4965 = vmul.f32 %v4356, %v4709
        %v4966 = vmul.f32 %v4357, %v4710
        %v4967 = vmul.f32 %v4358, %v4711
        %v4968 = vmul.f32 %v4359, %v4712
        %v4969 = vmul.f32 %v4360, %v4713
        %v4970 = vmul.f32 %v4361, %v4714
        %v4971 = vmul.f32 %v4362, %v4715
        %v4972 = vmul.f32 %v4363, %v4716
        %v4973 = vmul.f32 %v4364, %v4717
        %v4974 = vmul.f32 %v4365, %v4718
        %v4975 = vmul.f32 %v4366, %v4719
        %v4976 = vmul.f32 %v4367, %v4720
        %v4977 = vmul.f32 %v4368, %v4721
        %v4978 = vmul.f32 %v4369, %v4722
        %v4979 = vmul.f32 %v4370, %v4723
        %v4980 = vmul.f32 %v4371, %v4724
        %v4981 = vmul.f32 %v4372, %v4725
        %v4982 = vmul.f32 %v4373, %v4726
        %v4983 = vmul.f32 %v4374, %v4727
        %vm4984 = vcmp.ge.s32.totalorder %v871, 8
        %vm4985 = vcmp.ge.s32.totalorder %v3128, 8
        %vm4986 = vcmp.ge.s32.totalorder %v3129, 8
        %vm4987 = vcmp.ge.s32.totalorder %v3130, 8
        %vm4988 = vcmp.ge.s32.totalorder %v3131, 8
        %vm4989 = vcmp.ge.s32.totalorder %v3132, 8
        %vm4990 = vcmp.ge.s32.totalorder %v3133, 8
        %vm4991 = vcmp.ge.s32.totalorder %v3134, 8
        %vm4992 = vcmp.ge.s32.totalorder %v3135, 8
        %vm4993 = vcmp.ge.s32.totalorder %v3136, 8
        %vm4994 = vcmp.ge.s32.totalorder %v3137, 8
        %vm4995 = vcmp.ge.s32.totalorder %v3138, 8
        %vm4996 = vcmp.ge.s32.totalorder %v3139, 8
        %vm4997 = vcmp.ge.s32.totalorder %v3140, 8
        %vm4998 = vcmp.ge.s32.totalorder %v3141, 8
        %vm4999 = vcmp.ge.s32.totalorder %v3142, 8
        %vm5000 = vcmp.ge.s32.totalorder %v3143, 8
        %vm5001 = vcmp.ge.s32.totalorder %v3144, 8
        %vm5002 = vcmp.ge.s32.totalorder %v3145, 8
        %vm5003 = vcmp.ge.s32.totalorder %v3146, 8
        %vm5004 = vcmp.ge.s32.totalorder %v3147, 8
        %vm5005 = vcmp.ge.s32.totalorder %v3148, 8
        %vm5006 = vcmp.ge.s32.totalorder %v3149, 8
        %vm5007 = vcmp.ge.s32.totalorder %v3150, 8
        %vm5008 = vcmp.ge.s32.totalorder %v3151, 8
        %vm5009 = vcmp.ge.s32.totalorder %v3152, 8
        %vm5010 = vcmp.ge.s32.totalorder %v3153, 8
        %vm5011 = vcmp.ge.s32.totalorder %v3154, 8
        %vm5012 = vcmp.ge.s32.totalorder %v3155, 8
        %vm5013 = vcmp.ge.s32.totalorder %v3156, 8
        %vm5014 = vcmp.ge.s32.totalorder %v3157, 8
        %vm5015 = vcmp.ge.s32.totalorder %v3158, 8
        %v5016 = vsel %vm4984, %v4982, 1.0
        %v5017 = vsel %vm4984, %v4983, 1.0
        %v5018 = vsel %vm4985, %v4920, 1.0
        %v5019 = vsel %vm4985, %v4921, 1.0
        %v5020 = vsel %vm4986, %v4922, 1.0
        %v5021 = vsel %vm4986, %v4923, 1.0
        %v5022 = vsel %vm4987, %v4924, 1.0
        %v5023 = vsel %vm4987, %v4925, 1.0
        %v5024 = vsel %vm4988, %v4926, 1.0
        %v5025 = vsel %vm4988, %v4927, 1.0
        %v5026 = vsel %vm4989, %v4928, 1.0
        %v5027 = vsel %vm4989, %v4929, 1.0
        %v5028 = vsel %vm4990, %v4930, 1.0
        %v5029 = vsel %vm4990, %v4931, 1.0
        %v5030 = vsel %vm4991, %v4932, 1.0
        %v5031 = vsel %vm4991, %v4933, 1.0
        %v5032 = vsel %vm4992, %v4934, 1.0
        %v5033 = vsel %vm4992, %v4935, 1.0
        %v5034 = vsel %vm4993, %v4936, 1.0
        %v5035 = vsel %vm4993, %v4937, 1.0
        %v5036 = vsel %vm4994, %v4938, 1.0
        %v5037 = vsel %vm4994, %v4939, 1.0
        %v5038 = vsel %vm4995, %v4940, 1.0
        %v5039 = vsel %vm4995, %v4941, 1.0
        %v5040 = vsel %vm4996, %v4942, 1.0
        %v5041 = vsel %vm4996, %v4943, 1.0
        %v5042 = vsel %vm4997, %v4944, 1.0
        %v5043 = vsel %vm4997, %v4945, 1.0
        %v5044 = vsel %vm4998, %v4946, 1.0
        %v5045 = vsel %vm4998, %v4947, 1.0
        %v5046 = vsel %vm4999, %v4948, 1.0
        %v5047 = vsel %vm4999, %v4949, 1.0
        %v5048 = vsel %vm5000, %v4950, 1.0
        %v5049 = vsel %vm5000, %v4951, 1.0
        %v5050 = vsel %vm5001, %v4952, 1.0
        %v5051 = vsel %vm5001, %v4953, 1.0
        %v5052 = vsel %vm5002, %v4954, 1.0
        %v5053 = vsel %vm5002, %v4955, 1.0
        %v5054 = vsel %vm5003, %v4956, 1.0
        %v5055 = vsel %vm5003, %v4957, 1.0
        %v5056 = vsel %vm5004, %v4958, 1.0
        %v5057 = vsel %vm5004, %v4959, 1.0
        %v5058 = vsel %vm5005, %v4960, 1.0
        %v5059 = vsel %vm5005, %v4961, 1.0
        %v5060 = vsel %vm5006, %v4962, 1.0
        %v5061 = vsel %vm5006, %v4963, 1.0
        %v5062 = vsel %vm5007, %v4964, 1.0
        %v5063 = vsel %vm5007, %v4965, 1.0
        %v5064 = vsel %vm5008, %v4966, 1.0
        %v5065 = vsel %vm5008, %v4967, 1.0
        %v5066 = vsel %vm5009, %v4968, 1.0
        %v5067 = vsel %vm5009, %v4969, 1.0
        %v5068 = vsel %vm5010, %v4970, 1.0
        %v5069 = vsel %vm5010, %v4971, 1.0
        %v5070 = vsel %vm5011, %v4972, 1.0
        %v5071 = vsel %vm5011, %v4973, 1.0
        %v5072 = vsel %vm5012, %v4974, 1.0
        %v5073 = vsel %vm5012, %v4975, 1.0
        %v5074 = vsel %vm5013, %v4976, 1.0
        %v5075 = vsel %vm5013, %v4977, 1.0
        %v5076 = vsel %vm5014, %v4978, 1.0
        %v5077 = vsel %vm5014, %v4979, 1.0
        %v5078 = vsel %vm5015, %v4980, 1.0
        %v5079 = vsel %vm5015, %v4981, 1.0
        %v5080 = vsel %vm4984, %v4918, 0.0
        %v5081 = vsel %vm4984, %v4919, 0.0
        %v5082 = vsel %vm4985, %v4856, 0.0
        %v5083 = vsel %vm4985, %v4857, 0.0
        %v5084 = vsel %vm4986, %v4858, 0.0
        %v5085 = vsel %vm4986, %v4859, 0.0
        %v5086 = vsel %vm4987, %v4860, 0.0
        %v5087 = vsel %vm4987, %v4861, 0.0
        %v5088 = vsel %vm4988, %v4862, 0.0
        %v5089 = vsel %vm4988, %v4863, 0.0
        %v5090 = vsel %vm4989, %v4864, 0.0
        %v5091 = vsel %vm4989, %v4865, 0.0
        %v5092 = vsel %vm4990, %v4866, 0.0
        %v5093 = vsel %vm4990, %v4867, 0.0
        %v5094 = vsel %vm4991, %v4868, 0.0
        %v5095 = vsel %vm4991, %v4869, 0.0
        %v5096 = vsel %vm4992, %v4870, 0.0
        %v5097 = vsel %vm4992, %v4871, 0.0
        %v5098 = vsel %vm4993, %v4872, 0.0
        %v5099 = vsel %vm4993, %v4873, 0.0
        %v5100 = vsel %vm4994, %v4874, 0.0
        %v5101 = vsel %vm4994, %v4875, 0.0
        %v5102 = vsel %vm4995, %v4876, 0.0
        %v5103 = vsel %vm4995, %v4877, 0.0
        %v5104 = vsel %vm4996, %v4878, 0.0
        %v5105 = vsel %vm4996, %v4879, 0.0
        %v5106 = vsel %vm4997, %v4880, 0.0
        %v5107 = vsel %vm4997, %v4881, 0.0
        %v5108 = vsel %vm4998, %v4882, 0.0
        %v5109 = vsel %vm4998, %v4883, 0.0
        %v5110 = vsel %vm4999, %v4884, 0.0
        %v5111 = vsel %vm4999, %v4885, 0.0
        %v5112 = vsel %vm5000, %v4886, 0.0
        %v5113 = vsel %vm5000, %v4887, 0.0
        %v5114 = vsel %vm5001, %v4888, 0.0
        %v5115 = vsel %vm5001, %v4889, 0.0
        %v5116 = vsel %vm5002, %v4890, 0.0
        %v5117 = vsel %vm5002, %v4891, 0.0
        %v5118 = vsel %vm5003, %v4892, 0.0
        %v5119 = vsel %vm5003, %v4893, 0.0
        %v5120 = vsel %vm5004, %v4894, 0.0
        %v5121 = vsel %vm5004, %v4895, 0.0
        %v5122 = vsel %vm5005, %v4896, 0.0
        %v5123 = vsel %vm5005, %v4897, 0.0
        %v5124 = vsel %vm5006, %v4898, 0.0
        %v5125 = vsel %vm5006, %v4899, 0.0
        %v5126 = vsel %vm5007, %v4900, 0.0
        %v5127 = vsel %vm5007, %v4901, 0.0
        %v5128 = vsel %vm5008, %v4902, 0.0
        %v5129 = vsel %vm5008, %v4903, 0.0
        %v5130 = vsel %vm5009, %v4904, 0.0
        %v5131 = vsel %vm5009, %v4905, 0.0
        %v5132 = vsel %vm5010, %v4906, 0.0
        %v5133 = vsel %vm5010, %v4907, 0.0
        %v5134 = vsel %vm5011, %v4908, 0.0
        %v5135 = vsel %vm5011, %v4909, 0.0
        %v5136 = vsel %vm5012, %v4910, 0.0
        %v5137 = vsel %vm5012, %v4911, 0.0
        %v5138 = vsel %vm5013, %v4912, 0.0
        %v5139 = vsel %vm5013, %v4913, 0.0
        %v5140 = vsel %vm5014, %v4914, 0.0
        %v5141 = vsel %vm5014, %v4915, 0.0
        %v5142 = vsel %vm5015, %v4916, 0.0
        %v5143 = vsel %vm5015, %v4917, 0.0
        %v5144 = vmul.f32 %v4920, %v5080
        %v5145 = vmul.f32 %v4921, %v5081
        %v5146 = vmul.f32 %v4922, %v5082
        %v5147 = vmul.f32 %v4923, %v5083
        %v5148 = vmul.f32 %v4924, %v5084
        %v5149 = vmul.f32 %v4925, %v5085
        %v5150 = vmul.f32 %v4926, %v5086
        %v5151 = vmul.f32 %v4927, %v5087
        %v5152 = vmul.f32 %v4928, %v5088
        %v5153 = vmul.f32 %v4929, %v5089
        %v5154 = vmul.f32 %v4930, %v5090
        %v5155 = vmul.f32 %v4931, %v5091
        %v5156 = vmul.f32 %v4932, %v5092
        %v5157 = vmul.f32 %v4933, %v5093
        %v5158 = vmul.f32 %v4934, %v5094
        %v5159 = vmul.f32 %v4935, %v5095
        %v5160 = vmul.f32 %v4936, %v5096
        %v5161 = vmul.f32 %v4937, %v5097
        %v5162 = vmul.f32 %v4938, %v5098
        %v5163 = vmul.f32 %v4939, %v5099
        %v5164 = vmul.f32 %v4940, %v5100
        %v5165 = vmul.f32 %v4941, %v5101
        %v5166 = vmul.f32 %v4942, %v5102
        %v5167 = vmul.f32 %v4943, %v5103
        %v5168 = vmul.f32 %v4944, %v5104
        %v5169 = vmul.f32 %v4945, %v5105
        %v5170 = vmul.f32 %v4946, %v5106
        %v5171 = vmul.f32 %v4947, %v5107
        %v5172 = vmul.f32 %v4948, %v5108
        %v5173 = vmul.f32 %v4949, %v5109
        %v5174 = vmul.f32 %v4950, %v5110
        %v5175 = vmul.f32 %v4951, %v5111
        %v5176 = vmul.f32 %v4952, %v5112
        %v5177 = vmul.f32 %v4953, %v5113
        %v5178 = vmul.f32 %v4954, %v5114
        %v5179 = vmul.f32 %v4955, %v5115
        %v5180 = vmul.f32 %v4956, %v5116
        %v5181 = vmul.f32 %v4957, %v5117
        %v5182 = vmul.f32 %v4958, %v5118
        %v5183 = vmul.f32 %v4959, %v5119
        %v5184 = vmul.f32 %v4960, %v5120
        %v5185 = vmul.f32 %v4961, %v5121
        %v5186 = vmul.f32 %v4962, %v5122
        %v5187 = vmul.f32 %v4963, %v5123
        %v5188 = vmul.f32 %v4964, %v5124
        %v5189 = vmul.f32 %v4965, %v5125
        %v5190 = vmul.f32 %v4966, %v5126
        %v5191 = vmul.f32 %v4967, %v5127
        %v5192 = vmul.f32 %v4968, %v5128
        %v5193 = vmul.f32 %v4969, %v5129
        %v5194 = vmul.f32 %v4970, %v5130
        %v5195 = vmul.f32 %v4971, %v5131
        %v5196 = vmul.f32 %v4972, %v5132
        %v5197 = vmul.f32 %v4973, %v5133
        %v5198 = vmul.f32 %v4974, %v5134
        %v5199 = vmul.f32 %v4975, %v5135
        %v5200 = vmul.f32 %v4976, %v5136
        %v5201 = vmul.f32 %v4977, %v5137
        %v5202 = vmul.f32 %v4978, %v5138
        %v5203 = vmul.f32 %v4979, %v5139
        %v5204 = vmul.f32 %v4980, %v5140
        %v5205 = vmul.f32 %v4981, %v5141
        %v5206 = vmul.f32 %v4982, %v5142
        %v5207 = vmul.f32 %v4983, %v5143
        %v5208 = vadd.f32 %v5144, %v4856
        %v5209 = vadd.f32 %v5145, %v4857
        %v5210 = vadd.f32 %v5146, %v4858
        %v5211 = vadd.f32 %v5147, %v4859
        %v5212 = vadd.f32 %v5148, %v4860
        %v5213 = vadd.f32 %v5149, %v4861
        %v5214 = vadd.f32 %v5150, %v4862
        %v5215 = vadd.f32 %v5151, %v4863
        %v5216 = vadd.f32 %v5152, %v4864
        %v5217 = vadd.f32 %v5153, %v4865
        %v5218 = vadd.f32 %v5154, %v4866
        %v5219 = vadd.f32 %v5155, %v4867
        %v5220 = vadd.f32 %v5156, %v4868
        %v5221 = vadd.f32 %v5157, %v4869
        %v5222 = vadd.f32 %v5158, %v4870
        %v5223 = vadd.f32 %v5159, %v4871
        %v5224 = vadd.f32 %v5160, %v4872
        %v5225 = vadd.f32 %v5161, %v4873
        %v5226 = vadd.f32 %v5162, %v4874
        %v5227 = vadd.f32 %v5163, %v4875
        %v5228 = vadd.f32 %v5164, %v4876
        %v5229 = vadd.f32 %v5165, %v4877
        %v5230 = vadd.f32 %v5166, %v4878
        %v5231 = vadd.f32 %v5167, %v4879
        %v5232 = vadd.f32 %v5168, %v4880
        %v5233 = vadd.f32 %v5169, %v4881
        %v5234 = vadd.f32 %v5170, %v4882
        %v5235 = vadd.f32 %v5171, %v4883
        %v5236 = vadd.f32 %v5172, %v4884
        %v5237 = vadd.f32 %v5173, %v4885
        %v5238 = vadd.f32 %v5174, %v4886
        %v5239 = vadd.f32 %v5175, %v4887
        %v5240 = vadd.f32 %v5176, %v4888
        %v5241 = vadd.f32 %v5177, %v4889
        %v5242 = vadd.f32 %v5178, %v4890
        %v5243 = vadd.f32 %v5179, %v4891
        %v5244 = vadd.f32 %v5180, %v4892
        %v5245 = vadd.f32 %v5181, %v4893
        %v5246 = vadd.f32 %v5182, %v4894
        %v5247 = vadd.f32 %v5183, %v4895
        %v5248 = vadd.f32 %v5184, %v4896
        %v5249 = vadd.f32 %v5185, %v4897
        %v5250 = vadd.f32 %v5186, %v4898
        %v5251 = vadd.f32 %v5187, %v4899
        %v5252 = vadd.f32 %v5188, %v4900
        %v5253 = vadd.f32 %v5189, %v4901
        %v5254 = vadd.f32 %v5190, %v4902
        %v5255 = vadd.f32 %v5191, %v4903
        %v5256 = vadd.f32 %v5192, %v4904
        %v5257 = vadd.f32 %v5193, %v4905
        %v5258 = vadd.f32 %v5194, %v4906
        %v5259 = vadd.f32 %v5195, %v4907
        %v5260 = vadd.f32 %v5196, %v4908
        %v5261 = vadd.f32 %v5197, %v4909
        %v5262 = vadd.f32 %v5198, %v4910
        %v5263 = vadd.f32 %v5199, %v4911
        %v5264 = vadd.f32 %v5200, %v4912
        %v5265 = vadd.f32 %v5201, %v4913
        %v5266 = vadd.f32 %v5202, %v4914
        %v5267 = vadd.f32 %v5203, %v4915
        %v5268 = vadd.f32 %v5204, %v4916
        %v5269 = vadd.f32 %v5205, %v4917
        %v5270 = vadd.f32 %v5206, %v4918
        %v5271 = vadd.f32 %v5207, %v4919
        %v5272 = vmul.f32 %v4920, %v5016
        %v5273 = vmul.f32 %v4921, %v5017
        %v5274 = vmul.f32 %v4922, %v5018
        %v5275 = vmul.f32 %v4923, %v5019
        %v5276 = vmul.f32 %v4924, %v5020
        %v5277 = vmul.f32 %v4925, %v5021
        %v5278 = vmul.f32 %v4926, %v5022
        %v5279 = vmul.f32 %v4927, %v5023
        %v5280 = vmul.f32 %v4928, %v5024
        %v5281 = vmul.f32 %v4929, %v5025
        %v5282 = vmul.f32 %v4930, %v5026
        %v5283 = vmul.f32 %v4931, %v5027
        %v5284 = vmul.f32 %v4932, %v5028
        %v5285 = vmul.f32 %v4933, %v5029
        %v5286 = vmul.f32 %v4934, %v5030
        %v5287 = vmul.f32 %v4935, %v5031
        %v5288 = vmul.f32 %v4936, %v5032
        %v5289 = vmul.f32 %v4937, %v5033
        %v5290 = vmul.f32 %v4938, %v5034
        %v5291 = vmul.f32 %v4939, %v5035
        %v5292 = vmul.f32 %v4940, %v5036
        %v5293 = vmul.f32 %v4941, %v5037
        %v5294 = vmul.f32 %v4942, %v5038
        %v5295 = vmul.f32 %v4943, %v5039
        %v5296 = vmul.f32 %v4944, %v5040
        %v5297 = vmul.f32 %v4945, %v5041
        %v5298 = vmul.f32 %v4946, %v5042
        %v5299 = vmul.f32 %v4947, %v5043
        %v5300 = vmul.f32 %v4948, %v5044
        %v5301 = vmul.f32 %v4949, %v5045
        %v5302 = vmul.f32 %v4950, %v5046
        %v5303 = vmul.f32 %v4951, %v5047
        %v5304 = vmul.f32 %v4952, %v5048
        %v5305 = vmul.f32 %v4953, %v5049
        %v5306 = vmul.f32 %v4954, %v5050
        %v5307 = vmul.f32 %v4955, %v5051
        %v5308 = vmul.f32 %v4956, %v5052
        %v5309 = vmul.f32 %v4957, %v5053
        %v5310 = vmul.f32 %v4958, %v5054
        %v5311 = vmul.f32 %v4959, %v5055
        %v5312 = vmul.f32 %v4960, %v5056
        %v5313 = vmul.f32 %v4961, %v5057
        %v5314 = vmul.f32 %v4962, %v5058
        %v5315 = vmul.f32 %v4963, %v5059
        %v5316 = vmul.f32 %v4964, %v5060
        %v5317 = vmul.f32 %v4965, %v5061
        %v5318 = vmul.f32 %v4966, %v5062
        %v5319 = vmul.f32 %v4967, %v5063
        %v5320 = vmul.f32 %v4968, %v5064
        %v5321 = vmul.f32 %v4969, %v5065
        %v5322 = vmul.f32 %v4970, %v5066
        %v5323 = vmul.f32 %v4971, %v5067
        %v5324 = vmul.f32 %v4972, %v5068
        %v5325 = vmul.f32 %v4973, %v5069
        %v5326 = vmul.f32 %v4974, %v5070
        %v5327 = vmul.f32 %v4975, %v5071
        %v5328 = vmul.f32 %v4976, %v5072
        %v5329 = vmul.f32 %v4977, %v5073
        %v5330 = vmul.f32 %v4978, %v5074
        %v5331 = vmul.f32 %v4979, %v5075
        %v5332 = vmul.f32 %v4980, %v5076
        %v5333 = vmul.f32 %v4981, %v5077
        %v5334 = vmul.f32 %v4982, %v5078
        %v5335 = vmul.f32 %v4983, %v5079
        %vm5336 = vcmp.ge.s32.totalorder %v871, 16
        %vm5337 = vcmp.ge.s32.totalorder %v3128, 16
        %vm5338 = vcmp.ge.s32.totalorder %v3129, 16
        %vm5339 = vcmp.ge.s32.totalorder %v3130, 16
        %vm5340 = vcmp.ge.s32.totalorder %v3131, 16
        %vm5341 = vcmp.ge.s32.totalorder %v3132, 16
        %vm5342 = vcmp.ge.s32.totalorder %v3133, 16
        %vm5343 = vcmp.ge.s32.totalorder %v3134, 16
        %vm5344 = vcmp.ge.s32.totalorder %v3135, 16
        %vm5345 = vcmp.ge.s32.totalorder %v3136, 16
        %vm5346 = vcmp.ge.s32.totalorder %v3137, 16
        %vm5347 = vcmp.ge.s32.totalorder %v3138, 16
        %vm5348 = vcmp.ge.s32.totalorder %v3139, 16
        %vm5349 = vcmp.ge.s32.totalorder %v3140, 16
        %vm5350 = vcmp.ge.s32.totalorder %v3141, 16
        %vm5351 = vcmp.ge.s32.totalorder %v3142, 16
        %vm5352 = vcmp.ge.s32.totalorder %v3143, 16
        %vm5353 = vcmp.ge.s32.totalorder %v3144, 16
        %vm5354 = vcmp.ge.s32.totalorder %v3145, 16
        %vm5355 = vcmp.ge.s32.totalorder %v3146, 16
        %vm5356 = vcmp.ge.s32.totalorder %v3147, 16
        %vm5357 = vcmp.ge.s32.totalorder %v3148, 16
        %vm5358 = vcmp.ge.s32.totalorder %v3149, 16
        %vm5359 = vcmp.ge.s32.totalorder %v3150, 16
        %vm5360 = vcmp.ge.s32.totalorder %v3151, 16
        %vm5361 = vcmp.ge.s32.totalorder %v3152, 16
        %vm5362 = vcmp.ge.s32.totalorder %v3153, 16
        %vm5363 = vcmp.ge.s32.totalorder %v3154, 16
        %vm5364 = vcmp.ge.s32.totalorder %v3155, 16
        %vm5365 = vcmp.ge.s32.totalorder %v3156, 16
        %vm5366 = vcmp.ge.s32.totalorder %v3157, 16
        %vm5367 = vcmp.ge.s32.totalorder %v3158, 16
        %v5368 = vsel %vm5336, %v5332, 1.0
        %v5369 = vsel %vm5336, %v5333, 1.0
        %v5370 = vsel %vm5337, %v5334, 1.0
        %v5371 = vsel %vm5337, %v5335, 1.0
        %v5372 = vsel %vm5338, %v5272, 1.0
        %v5373 = vsel %vm5338, %v5273, 1.0
        %v5374 = vsel %vm5339, %v5274, 1.0
        %v5375 = vsel %vm5339, %v5275, 1.0
        %v5376 = vsel %vm5340, %v5276, 1.0
        %v5377 = vsel %vm5340, %v5277, 1.0
        %v5378 = vsel %vm5341, %v5278, 1.0
        %v5379 = vsel %vm5341, %v5279, 1.0
        %v5380 = vsel %vm5342, %v5280, 1.0
        %v5381 = vsel %vm5342, %v5281, 1.0
        %v5382 = vsel %vm5343, %v5282, 1.0
        %v5383 = vsel %vm5343, %v5283, 1.0
        %v5384 = vsel %vm5344, %v5284, 1.0
        %v5385 = vsel %vm5344, %v5285, 1.0
        %v5386 = vsel %vm5345, %v5286, 1.0
        %v5387 = vsel %vm5345, %v5287, 1.0
        %v5388 = vsel %vm5346, %v5288, 1.0
        %v5389 = vsel %vm5346, %v5289, 1.0
        %v5390 = vsel %vm5347, %v5290, 1.0
        %v5391 = vsel %vm5347, %v5291, 1.0
        %v5392 = vsel %vm5348, %v5292, 1.0
        %v5393 = vsel %vm5348, %v5293, 1.0
        %v5394 = vsel %vm5349, %v5294, 1.0
        %v5395 = vsel %vm5349, %v5295, 1.0
        %v5396 = vsel %vm5350, %v5296, 1.0
        %v5397 = vsel %vm5350, %v5297, 1.0
        %v5398 = vsel %vm5351, %v5298, 1.0
        %v5399 = vsel %vm5351, %v5299, 1.0
        %v5400 = vsel %vm5352, %v5300, 1.0
        %v5401 = vsel %vm5352, %v5301, 1.0
        %v5402 = vsel %vm5353, %v5302, 1.0
        %v5403 = vsel %vm5353, %v5303, 1.0
        %v5404 = vsel %vm5354, %v5304, 1.0
        %v5405 = vsel %vm5354, %v5305, 1.0
        %v5406 = vsel %vm5355, %v5306, 1.0
        %v5407 = vsel %vm5355, %v5307, 1.0
        %v5408 = vsel %vm5356, %v5308, 1.0
        %v5409 = vsel %vm5356, %v5309, 1.0
        %v5410 = vsel %vm5357, %v5310, 1.0
        %v5411 = vsel %vm5357, %v5311, 1.0
        %v5412 = vsel %vm5358, %v5312, 1.0
        %v5413 = vsel %vm5358, %v5313, 1.0
        %v5414 = vsel %vm5359, %v5314, 1.0
        %v5415 = vsel %vm5359, %v5315, 1.0
        %v5416 = vsel %vm5360, %v5316, 1.0
        %v5417 = vsel %vm5360, %v5317, 1.0
        %v5418 = vsel %vm5361, %v5318, 1.0
        %v5419 = vsel %vm5361, %v5319, 1.0
        %v5420 = vsel %vm5362, %v5320, 1.0
        %v5421 = vsel %vm5362, %v5321, 1.0
        %v5422 = vsel %vm5363, %v5322, 1.0
        %v5423 = vsel %vm5363, %v5323, 1.0
        %v5424 = vsel %vm5364, %v5324, 1.0
        %v5425 = vsel %vm5364, %v5325, 1.0
        %v5426 = vsel %vm5365, %v5326, 1.0
        %v5427 = vsel %vm5365, %v5327, 1.0
        %v5428 = vsel %vm5366, %v5328, 1.0
        %v5429 = vsel %vm5366, %v5329, 1.0
        %v5430 = vsel %vm5367, %v5330, 1.0
        %v5431 = vsel %vm5367, %v5331, 1.0
        %v5432 = vsel %vm5336, %v5268, 0.0
        %v5433 = vsel %vm5336, %v5269, 0.0
        %v5434 = vsel %vm5337, %v5270, 0.0
        %v5435 = vsel %vm5337, %v5271, 0.0
        %v5436 = vsel %vm5338, %v5208, 0.0
        %v5437 = vsel %vm5338, %v5209, 0.0
        %v5438 = vsel %vm5339, %v5210, 0.0
        %v5439 = vsel %vm5339, %v5211, 0.0
        %v5440 = vsel %vm5340, %v5212, 0.0
        %v5441 = vsel %vm5340, %v5213, 0.0
        %v5442 = vsel %vm5341, %v5214, 0.0
        %v5443 = vsel %vm5341, %v5215, 0.0
        %v5444 = vsel %vm5342, %v5216, 0.0
        %v5445 = vsel %vm5342, %v5217, 0.0
        %v5446 = vsel %vm5343, %v5218, 0.0
        %v5447 = vsel %vm5343, %v5219, 0.0
        %v5448 = vsel %vm5344, %v5220, 0.0
        %v5449 = vsel %vm5344, %v5221, 0.0
        %v5450 = vsel %vm5345, %v5222, 0.0
        %v5451 = vsel %vm5345, %v5223, 0.0
        %v5452 = vsel %vm5346, %v5224, 0.0
        %v5453 = vsel %vm5346, %v5225, 0.0
        %v5454 = vsel %vm5347, %v5226, 0.0
        %v5455 = vsel %vm5347, %v5227, 0.0
        %v5456 = vsel %vm5348, %v5228, 0.0
        %v5457 = vsel %vm5348, %v5229, 0.0
        %v5458 = vsel %vm5349, %v5230, 0.0
        %v5459 = vsel %vm5349, %v5231, 0.0
        %v5460 = vsel %vm5350, %v5232, 0.0
        %v5461 = vsel %vm5350, %v5233, 0.0
        %v5462 = vsel %vm5351, %v5234, 0.0
        %v5463 = vsel %vm5351, %v5235, 0.0
        %v5464 = vsel %vm5352, %v5236, 0.0
        %v5465 = vsel %vm5352, %v5237, 0.0
        %v5466 = vsel %vm5353, %v5238, 0.0
        %v5467 = vsel %vm5353, %v5239, 0.0
        %v5468 = vsel %vm5354, %v5240, 0.0
        %v5469 = vsel %vm5354, %v5241, 0.0
        %v5470 = vsel %vm5355, %v5242, 0.0
        %v5471 = vsel %vm5355, %v5243, 0.0
        %v5472 = vsel %vm5356, %v5244, 0.0
        %v5473 = vsel %vm5356, %v5245, 0.0
        %v5474 = vsel %vm5357, %v5246, 0.0
        %v5475 = vsel %vm5357, %v5247, 0.0
        %v5476 = vsel %vm5358, %v5248, 0.0
        %v5477 = vsel %vm5358, %v5249, 0.0
        %v5478 = vsel %vm5359, %v5250, 0.0
        %v5479 = vsel %vm5359, %v5251, 0.0
        %v5480 = vsel %vm5360, %v5252, 0.0
        %v5481 = vsel %vm5360, %v5253, 0.0
        %v5482 = vsel %vm5361, %v5254, 0.0
        %v5483 = vsel %vm5361, %v5255, 0.0
        %v5484 = vsel %vm5362, %v5256, 0.0
        %v5485 = vsel %vm5362, %v5257, 0.0
        %v5486 = vsel %vm5363, %v5258, 0.0
        %v5487 = vsel %vm5363, %v5259, 0.0
        %v5488 = vsel %vm5364, %v5260, 0.0
        %v5489 = vsel %vm5364, %v5261, 0.0
        %v5490 = vsel %vm5365, %v5262, 0.0
        %v5491 = vsel %vm5365, %v5263, 0.0
        %v5492 = vsel %vm5366, %v5264, 0.0
        %v5493 = vsel %vm5366, %v5265, 0.0
        %v5494 = vsel %vm5367, %v5266, 0.0
        %v5495 = vsel %vm5367, %v5267, 0.0
        %v5496 = vmul.f32 %v5272, %v5432
        %v5497 = vmul.f32 %v5273, %v5433
        %v5498 = vmul.f32 %v5274, %v5434
        %v5499 = vmul.f32 %v5275, %v5435
        %v5500 = vmul.f32 %v5276, %v5436
        %v5501 = vmul.f32 %v5277, %v5437
        %v5502 = vmul.f32 %v5278, %v5438
        %v5503 = vmul.f32 %v5279, %v5439
        %v5504 = vmul.f32 %v5280, %v5440
        %v5505 = vmul.f32 %v5281, %v5441
        %v5506 = vmul.f32 %v5282, %v5442
        %v5507 = vmul.f32 %v5283, %v5443
        %v5508 = vmul.f32 %v5284, %v5444
        %v5509 = vmul.f32 %v5285, %v5445
        %v5510 = vmul.f32 %v5286, %v5446
        %v5511 = vmul.f32 %v5287, %v5447
        %v5512 = vmul.f32 %v5288, %v5448
        %v5513 = vmul.f32 %v5289, %v5449
        %v5514 = vmul.f32 %v5290, %v5450
        %v5515 = vmul.f32 %v5291, %v5451
        %v5516 = vmul.f32 %v5292, %v5452
        %v5517 = vmul.f32 %v5293, %v5453
        %v5518 = vmul.f32 %v5294, %v5454
        %v5519 = vmul.f32 %v5295, %v5455
        %v5520 = vmul.f32 %v5296, %v5456
        %v5521 = vmul.f32 %v5297, %v5457
        %v5522 = vmul.f32 %v5298, %v5458
        %v5523 = vmul.f32 %v5299, %v5459
        %v5524 = vmul.f32 %v5300, %v5460
        %v5525 = vmul.f32 %v5301, %v5461
        %v5526 = vmul.f32 %v5302, %v5462
        %v5527 = vmul.f32 %v5303, %v5463
        %v5528 = vmul.f32 %v5304, %v5464
        %v5529 = vmul.f32 %v5305, %v5465
        %v5530 = vmul.f32 %v5306, %v5466
        %v5531 = vmul.f32 %v5307, %v5467
        %v5532 = vmul.f32 %v5308, %v5468
        %v5533 = vmul.f32 %v5309, %v5469
        %v5534 = vmul.f32 %v5310, %v5470
        %v5535 = vmul.f32 %v5311, %v5471
        %v5536 = vmul.f32 %v5312, %v5472
        %v5537 = vmul.f32 %v5313, %v5473
        %v5538 = vmul.f32 %v5314, %v5474
        %v5539 = vmul.f32 %v5315, %v5475
        %v5540 = vmul.f32 %v5316, %v5476
        %v5541 = vmul.f32 %v5317, %v5477
        %v5542 = vmul.f32 %v5318, %v5478
        %v5543 = vmul.f32 %v5319, %v5479
        %v5544 = vmul.f32 %v5320, %v5480
        %v5545 = vmul.f32 %v5321, %v5481
        %v5546 = vmul.f32 %v5322, %v5482
        %v5547 = vmul.f32 %v5323, %v5483
        %v5548 = vmul.f32 %v5324, %v5484
        %v5549 = vmul.f32 %v5325, %v5485
        %v5550 = vmul.f32 %v5326, %v5486
        %v5551 = vmul.f32 %v5327, %v5487
        %v5552 = vmul.f32 %v5328, %v5488
        %v5553 = vmul.f32 %v5329, %v5489
        %v5554 = vmul.f32 %v5330, %v5490
        %v5555 = vmul.f32 %v5331, %v5491
        %v5556 = vmul.f32 %v5332, %v5492
        %v5557 = vmul.f32 %v5333, %v5493
        %v5558 = vmul.f32 %v5334, %v5494
        %v5559 = vmul.f32 %v5335, %v5495
        %v5560 = vadd.f32 %v5496, %v5208
        %v5561 = vadd.f32 %v5497, %v5209
        %v5562 = vadd.f32 %v5498, %v5210
        %v5563 = vadd.f32 %v5499, %v5211
        %v5564 = vadd.f32 %v5500, %v5212
        %v5565 = vadd.f32 %v5501, %v5213
        %v5566 = vadd.f32 %v5502, %v5214
        %v5567 = vadd.f32 %v5503, %v5215
        %v5568 = vadd.f32 %v5504, %v5216
        %v5569 = vadd.f32 %v5505, %v5217
        %v5570 = vadd.f32 %v5506, %v5218
        %v5571 = vadd.f32 %v5507, %v5219
        %v5572 = vadd.f32 %v5508, %v5220
        %v5573 = vadd.f32 %v5509, %v5221
        %v5574 = vadd.f32 %v5510, %v5222
        %v5575 = vadd.f32 %v5511, %v5223
        %v5576 = vadd.f32 %v5512, %v5224
        %v5577 = vadd.f32 %v5513, %v5225
        %v5578 = vadd.f32 %v5514, %v5226
        %v5579 = vadd.f32 %v5515, %v5227
        %v5580 = vadd.f32 %v5516, %v5228
        %v5581 = vadd.f32 %v5517, %v5229
        %v5582 = vadd.f32 %v5518, %v5230
        %v5583 = vadd.f32 %v5519, %v5231
        %v5584 = vadd.f32 %v5520, %v5232
        %v5585 = vadd.f32 %v5521, %v5233
        %v5586 = vadd.f32 %v5522, %v5234
        %v5587 = vadd.f32 %v5523, %v5235
        %v5588 = vadd.f32 %v5524, %v5236
        %v5589 = vadd.f32 %v5525, %v5237
        %v5590 = vadd.f32 %v5526, %v5238
        %v5591 = vadd.f32 %v5527, %v5239
        %v5592 = vadd.f32 %v5528, %v5240
        %v5593 = vadd.f32 %v5529, %v5241
        %v5594 = vadd.f32 %v5530, %v5242
        %v5595 = vadd.f32 %v5531, %v5243
        %v5596 = vadd.f32 %v5532, %v5244
        %v5597 = vadd.f32 %v5533, %v5245
        %v5598 = vadd.f32 %v5534, %v5246
        %v5599 = vadd.f32 %v5535, %v5247
        %v5600 = vadd.f32 %v5536, %v5248
        %v5601 = vadd.f32 %v5537, %v5249
        %v5602 = vadd.f32 %v5538, %v5250
        %v5603 = vadd.f32 %v5539, %v5251
        %v5604 = vadd.f32 %v5540, %v5252
        %v5605 = vadd.f32 %v5541, %v5253
        %v5606 = vadd.f32 %v5542, %v5254
        %v5607 = vadd.f32 %v5543, %v5255
        %v5608 = vadd.f32 %v5544, %v5256
        %v5609 = vadd.f32 %v5545, %v5257
        %v5610 = vadd.f32 %v5546, %v5258
        %v5611 = vadd.f32 %v5547, %v5259
        %v5612 = vadd.f32 %v5548, %v5260
        %v5613 = vadd.f32 %v5549, %v5261
        %v5614 = vadd.f32 %v5550, %v5262
        %v5615 = vadd.f32 %v5551, %v5263
        %v5616 = vadd.f32 %v5552, %v5264
        %v5617 = vadd.f32 %v5553, %v5265
        %v5618 = vadd.f32 %v5554, %v5266
        %v5619 = vadd.f32 %v5555, %v5267
        %v5620 = vadd.f32 %v5556, %v5268
        %v5621 = vadd.f32 %v5557, %v5269
        %v5622 = vadd.f32 %v5558, %v5270
        %v5623 = vadd.f32 %v5559, %v5271
        %v5624 = vmul.f32 %v5272, %v5368
        %v5625 = vmul.f32 %v5273, %v5369
        %v5626 = vmul.f32 %v5274, %v5370
        %v5627 = vmul.f32 %v5275, %v5371
        %v5628 = vmul.f32 %v5276, %v5372
        %v5629 = vmul.f32 %v5277, %v5373
        %v5630 = vmul.f32 %v5278, %v5374
        %v5631 = vmul.f32 %v5279, %v5375
        %v5632 = vmul.f32 %v5280, %v5376
        %v5633 = vmul.f32 %v5281, %v5377
        %v5634 = vmul.f32 %v5282, %v5378
        %v5635 = vmul.f32 %v5283, %v5379
        %v5636 = vmul.f32 %v5284, %v5380
        %v5637 = vmul.f32 %v5285, %v5381
        %v5638 = vmul.f32 %v5286, %v5382
        %v5639 = vmul.f32 %v5287, %v5383
        %v5640 = vmul.f32 %v5288, %v5384
        %v5641 = vmul.f32 %v5289, %v5385
        %v5642 = vmul.f32 %v5290, %v5386
        %v5643 = vmul.f32 %v5291, %v5387
        %v5644 = vmul.f32 %v5292, %v5388
        %v5645 = vmul.f32 %v5293, %v5389
        %v5646 = vmul.f32 %v5294, %v5390
        %v5647 = vmul.f32 %v5295, %v5391
        %v5648 = vmul.f32 %v5296, %v5392
        %v5649 = vmul.f32 %v5297, %v5393
        %v5650 = vmul.f32 %v5298, %v5394
        %v5651 = vmul.f32 %v5299, %v5395
        %v5652 = vmul.f32 %v5300, %v5396
        %v5653 = vmul.f32 %v5301, %v5397
        %v5654 = vmul.f32 %v5302, %v5398
        %v5655 = vmul.f32 %v5303, %v5399
        %v5656 = vmul.f32 %v5304, %v5400
        %v5657 = vmul.f32 %v5305, %v5401
        %v5658 = vmul.f32 %v5306, %v5402
        %v5659 = vmul.f32 %v5307, %v5403
        %v5660 = vmul.f32 %v5308, %v5404
        %v5661 = vmul.f32 %v5309, %v5405
        %v5662 = vmul.f32 %v5310, %v5406
        %v5663 = vmul.f32 %v5311, %v5407
        %v5664 = vmul.f32 %v5312, %v5408
        %v5665 = vmul.f32 %v5313, %v5409
        %v5666 = vmul.f32 %v5314, %v5410
        %v5667 = vmul.f32 %v5315, %v5411
        %v5668 = vmul.f32 %v5316, %v5412
        %v5669 = vmul.f32 %v5317, %v5413
        %v5670 = vmul.f32 %v5318, %v5414
        %v5671 = vmul.f32 %v5319, %v5415
        %v5672 = vmul.f32 %v5320, %v5416
        %v5673 = vmul.f32 %v5321, %v5417
        %v5674 = vmul.f32 %v5322, %v5418
        %v5675 = vmul.f32 %v5323, %v5419
        %v5676 = vmul.f32 %v5324, %v5420
        %v5677 = vmul.f32 %v5325, %v5421
        %v5678 = vmul.f32 %v5326, %v5422
        %v5679 = vmul.f32 %v5327, %v5423
        %v5680 = vmul.f32 %v5328, %v5424
        %v5681 = vmul.f32 %v5329, %v5425
        %v5682 = vmul.f32 %v5330, %v5426
        %v5683 = vmul.f32 %v5331, %v5427
        %v5684 = vmul.f32 %v5332, %v5428
        %v5685 = vmul.f32 %v5333, %v5429
        %v5686 = vmul.f32 %v5334, %v5430
        %v5687 = vmul.f32 %v5335, %v5431
        %vm5688 = vcmp.ge.s32.totalorder %v871, 32
        %vm5689 = vcmp.ge.s32.totalorder %v3128, 32
        %vm5690 = vcmp.ge.s32.totalorder %v3129, 32
        %vm5691 = vcmp.ge.s32.totalorder %v3130, 32
        %vm5692 = vcmp.ge.s32.totalorder %v3131, 32
        %vm5693 = vcmp.ge.s32.totalorder %v3132, 32
        %vm5694 = vcmp.ge.s32.totalorder %v3133, 32
        %vm5695 = vcmp.ge.s32.totalorder %v3134, 32
        %vm5696 = vcmp.ge.s32.totalorder %v3135, 32
        %vm5697 = vcmp.ge.s32.totalorder %v3136, 32
        %vm5698 = vcmp.ge.s32.totalorder %v3137, 32
        %vm5699 = vcmp.ge.s32.totalorder %v3138, 32
        %vm5700 = vcmp.ge.s32.totalorder %v3139, 32
        %vm5701 = vcmp.ge.s32.totalorder %v3140, 32
        %vm5702 = vcmp.ge.s32.totalorder %v3141, 32
        %vm5703 = vcmp.ge.s32.totalorder %v3142, 32
        %vm5704 = vcmp.ge.s32.totalorder %v3143, 32
        %vm5705 = vcmp.ge.s32.totalorder %v3144, 32
        %vm5706 = vcmp.ge.s32.totalorder %v3145, 32
        %vm5707 = vcmp.ge.s32.totalorder %v3146, 32
        %vm5708 = vcmp.ge.s32.totalorder %v3147, 32
        %vm5709 = vcmp.ge.s32.totalorder %v3148, 32
        %vm5710 = vcmp.ge.s32.totalorder %v3149, 32
        %vm5711 = vcmp.ge.s32.totalorder %v3150, 32
        %vm5712 = vcmp.ge.s32.totalorder %v3151, 32
        %vm5713 = vcmp.ge.s32.totalorder %v3152, 32
        %vm5714 = vcmp.ge.s32.totalorder %v3153, 32
        %vm5715 = vcmp.ge.s32.totalorder %v3154, 32
        %vm5716 = vcmp.ge.s32.totalorder %v3155, 32
        %vm5717 = vcmp.ge.s32.totalorder %v3156, 32
        %vm5718 = vcmp.ge.s32.totalorder %v3157, 32
        %vm5719 = vcmp.ge.s32.totalorder %v3158, 32
        %v5720 = vsel %vm5688, %v5680, 1.0
        %v5721 = vsel %vm5688, %v5681, 1.0
        %v5722 = vsel %vm5689, %v5682, 1.0
        %v5723 = vsel %vm5689, %v5683, 1.0
        %v5724 = vsel %vm5690, %v5684, 1.0
        %v5725 = vsel %vm5690, %v5685, 1.0
        %v5726 = vsel %vm5691, %v5686, 1.0
        %v5727 = vsel %vm5691, %v5687, 1.0
        %v5728 = vsel %vm5692, %v5624, 1.0
        %v5729 = vsel %vm5692, %v5625, 1.0
        %v5730 = vsel %vm5693, %v5626, 1.0
        %v5731 = vsel %vm5693, %v5627, 1.0
        %v5732 = vsel %vm5694, %v5628, 1.0
        %v5733 = vsel %vm5694, %v5629, 1.0
        %v5734 = vsel %vm5695, %v5630, 1.0
        %v5735 = vsel %vm5695, %v5631, 1.0
        %v5736 = vsel %vm5696, %v5632, 1.0
        %v5737 = vsel %vm5696, %v5633, 1.0
        %v5738 = vsel %vm5697, %v5634, 1.0
        %v5739 = vsel %vm5697, %v5635, 1.0
        %v5740 = vsel %vm5698, %v5636, 1.0
        %v5741 = vsel %vm5698, %v5637, 1.0
        %v5742 = vsel %vm5699, %v5638, 1.0
        %v5743 = vsel %vm5699, %v5639, 1.0
        %v5744 = vsel %vm5700, %v5640, 1.0
        %v5745 = vsel %vm5700, %v5641, 1.0
        %v5746 = vsel %vm5701, %v5642, 1.0
        %v5747 = vsel %vm5701, %v5643, 1.0
        %v5748 = vsel %vm5702, %v5644, 1.0
        %v5749 = vsel %vm5702, %v5645, 1.0
        %v5750 = vsel %vm5703, %v5646, 1.0
        %v5751 = vsel %vm5703, %v5647, 1.0
        %v5752 = vsel %vm5704, %v5648, 1.0
        %v5753 = vsel %vm5704, %v5649, 1.0
        %v5754 = vsel %vm5705, %v5650, 1.0
        %v5755 = vsel %vm5705, %v5651, 1.0
        %v5756 = vsel %vm5706, %v5652, 1.0
        %v5757 = vsel %vm5706, %v5653, 1.0
        %v5758 = vsel %vm5707, %v5654, 1.0
        %v5759 = vsel %vm5707, %v5655, 1.0
        %v5760 = vsel %vm5708, %v5656, 1.0
        %v5761 = vsel %vm5708, %v5657, 1.0
        %v5762 = vsel %vm5709, %v5658, 1.0
        %v5763 = vsel %vm5709, %v5659, 1.0
        %v5764 = vsel %vm5710, %v5660, 1.0
        %v5765 = vsel %vm5710, %v5661, 1.0
        %v5766 = vsel %vm5711, %v5662, 1.0
        %v5767 = vsel %vm5711, %v5663, 1.0
        %v5768 = vsel %vm5712, %v5664, 1.0
        %v5769 = vsel %vm5712, %v5665, 1.0
        %v5770 = vsel %vm5713, %v5666, 1.0
        %v5771 = vsel %vm5713, %v5667, 1.0
        %v5772 = vsel %vm5714, %v5668, 1.0
        %v5773 = vsel %vm5714, %v5669, 1.0
        %v5774 = vsel %vm5715, %v5670, 1.0
        %v5775 = vsel %vm5715, %v5671, 1.0
        %v5776 = vsel %vm5716, %v5672, 1.0
        %v5777 = vsel %vm5716, %v5673, 1.0
        %v5778 = vsel %vm5717, %v5674, 1.0
        %v5779 = vsel %vm5717, %v5675, 1.0
        %v5780 = vsel %vm5718, %v5676, 1.0
        %v5781 = vsel %vm5718, %v5677, 1.0
        %v5782 = vsel %vm5719, %v5678, 1.0
        %v5783 = vsel %vm5719, %v5679, 1.0
        %v5784 = vsel %vm5688, %v5616, 0.0
        %v5785 = vsel %vm5688, %v5617, 0.0
        %v5786 = vsel %vm5689, %v5618, 0.0
        %v5787 = vsel %vm5689, %v5619, 0.0
        %v5788 = vsel %vm5690, %v5620, 0.0
        %v5789 = vsel %vm5690, %v5621, 0.0
        %v5790 = vsel %vm5691, %v5622, 0.0
        %v5791 = vsel %vm5691, %v5623, 0.0
        %v5792 = vsel %vm5692, %v5560, 0.0
        %v5793 = vsel %vm5692, %v5561, 0.0
        %v5794 = vsel %vm5693, %v5562, 0.0
        %v5795 = vsel %vm5693, %v5563, 0.0
        %v5796 = vsel %vm5694, %v5564, 0.0
        %v5797 = vsel %vm5694, %v5565, 0.0
        %v5798 = vsel %vm5695, %v5566, 0.0
        %v5799 = vsel %vm5695, %v5567, 0.0
        %v5800 = vsel %vm5696, %v5568, 0.0
        %v5801 = vsel %vm5696, %v5569, 0.0
        %v5802 = vsel %vm5697, %v5570, 0.0
        %v5803 = vsel %vm5697, %v5571, 0.0
        %v5804 = vsel %vm5698, %v5572, 0.0
        %v5805 = vsel %vm5698, %v5573, 0.0
        %v5806 = vsel %vm5699, %v5574, 0.0
        %v5807 = vsel %vm5699, %v5575, 0.0
        %v5808 = vsel %vm5700, %v5576, 0.0
        %v5809 = vsel %vm5700, %v5577, 0.0
        %v5810 = vsel %vm5701, %v5578, 0.0
        %v5811 = vsel %vm5701, %v5579, 0.0
        %v5812 = vsel %vm5702, %v5580, 0.0
        %v5813 = vsel %vm5702, %v5581, 0.0
        %v5814 = vsel %vm5703, %v5582, 0.0
        %v5815 = vsel %vm5703, %v5583, 0.0
        %v5816 = vsel %vm5704, %v5584, 0.0
        %v5817 = vsel %vm5704, %v5585, 0.0
        %v5818 = vsel %vm5705, %v5586, 0.0
        %v5819 = vsel %vm5705, %v5587, 0.0
        %v5820 = vsel %vm5706, %v5588, 0.0
        %v5821 = vsel %vm5706, %v5589, 0.0
        %v5822 = vsel %vm5707, %v5590, 0.0
        %v5823 = vsel %vm5707, %v5591, 0.0
        %v5824 = vsel %vm5708, %v5592, 0.0
        %v5825 = vsel %vm5708, %v5593, 0.0
        %v5826 = vsel %vm5709, %v5594, 0.0
        %v5827 = vsel %vm5709, %v5595, 0.0
        %v5828 = vsel %vm5710, %v5596, 0.0
        %v5829 = vsel %vm5710, %v5597, 0.0
        %v5830 = vsel %vm5711, %v5598, 0.0
        %v5831 = vsel %vm5711, %v5599, 0.0
        %v5832 = vsel %vm5712, %v5600, 0.0
        %v5833 = vsel %vm5712, %v5601, 0.0
        %v5834 = vsel %vm5713, %v5602, 0.0
        %v5835 = vsel %vm5713, %v5603, 0.0
        %v5836 = vsel %vm5714, %v5604, 0.0
        %v5837 = vsel %vm5714, %v5605, 0.0
        %v5838 = vsel %vm5715, %v5606, 0.0
        %v5839 = vsel %vm5715, %v5607, 0.0
        %v5840 = vsel %vm5716, %v5608, 0.0
        %v5841 = vsel %vm5716, %v5609, 0.0
        %v5842 = vsel %vm5717, %v5610, 0.0
        %v5843 = vsel %vm5717, %v5611, 0.0
        %v5844 = vsel %vm5718, %v5612, 0.0
        %v5845 = vsel %vm5718, %v5613, 0.0
        %v5846 = vsel %vm5719, %v5614, 0.0
        %v5847 = vsel %vm5719, %v5615, 0.0
        %v5848 = vmul.f32 %v5624, %v5784
        %v5849 = vmul.f32 %v5625, %v5785
        %v5850 = vmul.f32 %v5626, %v5786
        %v5851 = vmul.f32 %v5627, %v5787
        %v5852 = vmul.f32 %v5628, %v5788
        %v5853 = vmul.f32 %v5629, %v5789
        %v5854 = vmul.f32 %v5630, %v5790
        %v5855 = vmul.f32 %v5631, %v5791
        %v5856 = vmul.f32 %v5632, %v5792
        %v5857 = vmul.f32 %v5633, %v5793
        %v5858 = vmul.f32 %v5634, %v5794
        %v5859 = vmul.f32 %v5635, %v5795
        %v5860 = vmul.f32 %v5636, %v5796
        %v5861 = vmul.f32 %v5637, %v5797
        %v5862 = vmul.f32 %v5638, %v5798
        %v5863 = vmul.f32 %v5639, %v5799
        %v5864 = vmul.f32 %v5640, %v5800
        %v5865 = vmul.f32 %v5641, %v5801
        %v5866 = vmul.f32 %v5642, %v5802
        %v5867 = vmul.f32 %v5643, %v5803
        %v5868 = vmul.f32 %v5644, %v5804
        %v5869 = vmul.f32 %v5645, %v5805
        %v5870 = vmul.f32 %v5646, %v5806
        %v5871 = vmul.f32 %v5647, %v5807
        %v5872 = vmul.f32 %v5648, %v5808
        %v5873 = vmul.f32 %v5649, %v5809
        %v5874 = vmul.f32 %v5650, %v5810
        %v5875 = vmul.f32 %v5651, %v5811
        %v5876 = vmul.f32 %v5652, %v5812
        %v5877 = vmul.f32 %v5653, %v5813
        %v5878 = vmul.f32 %v5654, %v5814
        %v5879 = vmul.f32 %v5655, %v5815
        %v5880 = vmul.f32 %v5656, %v5816
        %v5881 = vmul.f32 %v5657, %v5817
        %v5882 = vmul.f32 %v5658, %v5818
        %v5883 = vmul.f32 %v5659, %v5819
        %v5884 = vmul.f32 %v5660, %v5820
        %v5885 = vmul.f32 %v5661, %v5821
        %v5886 = vmul.f32 %v5662, %v5822
        %v5887 = vmul.f32 %v5663, %v5823
        %v5888 = vmul.f32 %v5664, %v5824
        %v5889 = vmul.f32 %v5665, %v5825
        %v5890 = vmul.f32 %v5666, %v5826
        %v5891 = vmul.f32 %v5667, %v5827
        %v5892 = vmul.f32 %v5668, %v5828
        %v5893 = vmul.f32 %v5669, %v5829
        %v5894 = vmul.f32 %v5670, %v5830
        %v5895 = vmul.f32 %v5671, %v5831
        %v5896 = vmul.f32 %v5672, %v5832
        %v5897 = vmul.f32 %v5673, %v5833
        %v5898 = vmul.f32 %v5674, %v5834
        %v5899 = vmul.f32 %v5675, %v5835
        %v5900 = vmul.f32 %v5676, %v5836
        %v5901 = vmul.f32 %v5677, %v5837
        %v5902 = vmul.f32 %v5678, %v5838
        %v5903 = vmul.f32 %v5679, %v5839
        %v5904 = vmul.f32 %v5680, %v5840
        %v5905 = vmul.f32 %v5681, %v5841
        %v5906 = vmul.f32 %v5682, %v5842
        %v5907 = vmul.f32 %v5683, %v5843
        %v5908 = vmul.f32 %v5684, %v5844
        %v5909 = vmul.f32 %v5685, %v5845
        %v5910 = vmul.f32 %v5686, %v5846
        %v5911 = vmul.f32 %v5687, %v5847
        %v5912 = vadd.f32 %v5848, %v5560
        %v5913 = vadd.f32 %v5849, %v5561
        %v5914 = vadd.f32 %v5850, %v5562
        %v5915 = vadd.f32 %v5851, %v5563
        %v5916 = vadd.f32 %v5852, %v5564
        %v5917 = vadd.f32 %v5853, %v5565
        %v5918 = vadd.f32 %v5854, %v5566
        %v5919 = vadd.f32 %v5855, %v5567
        %v5920 = vadd.f32 %v5856, %v5568
        %v5921 = vadd.f32 %v5857, %v5569
        %v5922 = vadd.f32 %v5858, %v5570
        %v5923 = vadd.f32 %v5859, %v5571
        %v5924 = vadd.f32 %v5860, %v5572
        %v5925 = vadd.f32 %v5861, %v5573
        %v5926 = vadd.f32 %v5862, %v5574
        %v5927 = vadd.f32 %v5863, %v5575
        %v5928 = vadd.f32 %v5864, %v5576
        %v5929 = vadd.f32 %v5865, %v5577
        %v5930 = vadd.f32 %v5866, %v5578
        %v5931 = vadd.f32 %v5867, %v5579
        %v5932 = vadd.f32 %v5868, %v5580
        %v5933 = vadd.f32 %v5869, %v5581
        %v5934 = vadd.f32 %v5870, %v5582
        %v5935 = vadd.f32 %v5871, %v5583
        %v5936 = vadd.f32 %v5872, %v5584
        %v5937 = vadd.f32 %v5873, %v5585
        %v5938 = vadd.f32 %v5874, %v5586
        %v5939 = vadd.f32 %v5875, %v5587
        %v5940 = vadd.f32 %v5876, %v5588
        %v5941 = vadd.f32 %v5877, %v5589
        %v5942 = vadd.f32 %v5878, %v5590
        %v5943 = vadd.f32 %v5879, %v5591
        %v5944 = vadd.f32 %v5880, %v5592
        %v5945 = vadd.f32 %v5881, %v5593
        %v5946 = vadd.f32 %v5882, %v5594
        %v5947 = vadd.f32 %v5883, %v5595
        %v5948 = vadd.f32 %v5884, %v5596
        %v5949 = vadd.f32 %v5885, %v5597
        %v5950 = vadd.f32 %v5886, %v5598
        %v5951 = vadd.f32 %v5887, %v5599
        %v5952 = vadd.f32 %v5888, %v5600
        %v5953 = vadd.f32 %v5889, %v5601
        %v5954 = vadd.f32 %v5890, %v5602
        %v5955 = vadd.f32 %v5891, %v5603
        %v5956 = vadd.f32 %v5892, %v5604
        %v5957 = vadd.f32 %v5893, %v5605
        %v5958 = vadd.f32 %v5894, %v5606
        %v5959 = vadd.f32 %v5895, %v5607
        %v5960 = vadd.f32 %v5896, %v5608
        %v5961 = vadd.f32 %v5897, %v5609
        %v5962 = vadd.f32 %v5898, %v5610
        %v5963 = vadd.f32 %v5899, %v5611
        %v5964 = vadd.f32 %v5900, %v5612
        %v5965 = vadd.f32 %v5901, %v5613
        %v5966 = vadd.f32 %v5902, %v5614
        %v5967 = vadd.f32 %v5903, %v5615
        %v5968 = vadd.f32 %v5904, %v5616
        %v5969 = vadd.f32 %v5905, %v5617
        %v5970 = vadd.f32 %v5906, %v5618
        %v5971 = vadd.f32 %v5907, %v5619
        %v5972 = vadd.f32 %v5908, %v5620
        %v5973 = vadd.f32 %v5909, %v5621
        %v5974 = vadd.f32 %v5910, %v5622
        %v5975 = vadd.f32 %v5911, %v5623
        %v5976 = vmul.f32 %v5624, %v5720
        %v5977 = vmul.f32 %v5625, %v5721
        %v5978 = vmul.f32 %v5626, %v5722
        %v5979 = vmul.f32 %v5627, %v5723
        %v5980 = vmul.f32 %v5628, %v5724
        %v5981 = vmul.f32 %v5629, %v5725
        %v5982 = vmul.f32 %v5630, %v5726
        %v5983 = vmul.f32 %v5631, %v5727
        %v5984 = vmul.f32 %v5632, %v5728
        %v5985 = vmul.f32 %v5633, %v5729
        %v5986 = vmul.f32 %v5634, %v5730
        %v5987 = vmul.f32 %v5635, %v5731
        %v5988 = vmul.f32 %v5636, %v5732
        %v5989 = vmul.f32 %v5637, %v5733
        %v5990 = vmul.f32 %v5638, %v5734
        %v5991 = vmul.f32 %v5639, %v5735
        %v5992 = vmul.f32 %v5640, %v5736
        %v5993 = vmul.f32 %v5641, %v5737
        %v5994 = vmul.f32 %v5642, %v5738
        %v5995 = vmul.f32 %v5643, %v5739
        %v5996 = vmul.f32 %v5644, %v5740
        %v5997 = vmul.f32 %v5645, %v5741
        %v5998 = vmul.f32 %v5646, %v5742
        %v5999 = vmul.f32 %v5647, %v5743
        %v6000 = vmul.f32 %v5648, %v5744
        %v6001 = vmul.f32 %v5649, %v5745
        %v6002 = vmul.f32 %v5650, %v5746
        %v6003 = vmul.f32 %v5651, %v5747
        %v6004 = vmul.f32 %v5652, %v5748
        %v6005 = vmul.f32 %v5653, %v5749
        %v6006 = vmul.f32 %v5654, %v5750
        %v6007 = vmul.f32 %v5655, %v5751
        %v6008 = vmul.f32 %v5656, %v5752
        %v6009 = vmul.f32 %v5657, %v5753
        %v6010 = vmul.f32 %v5658, %v5754
        %v6011 = vmul.f32 %v5659, %v5755
        %v6012 = vmul.f32 %v5660, %v5756
        %v6013 = vmul.f32 %v5661, %v5757
        %v6014 = vmul.f32 %v5662, %v5758
        %v6015 = vmul.f32 %v5663, %v5759
        %v6016 = vmul.f32 %v5664, %v5760
        %v6017 = vmul.f32 %v5665, %v5761
        %v6018 = vmul.f32 %v5666, %v5762
        %v6019 = vmul.f32 %v5667, %v5763
        %v6020 = vmul.f32 %v5668, %v5764
        %v6021 = vmul.f32 %v5669, %v5765
        %v6022 = vmul.f32 %v5670, %v5766
        %v6023 = vmul.f32 %v5671, %v5767
        %v6024 = vmul.f32 %v5672, %v5768
        %v6025 = vmul.f32 %v5673, %v5769
        %v6026 = vmul.f32 %v5674, %v5770
        %v6027 = vmul.f32 %v5675, %v5771
        %v6028 = vmul.f32 %v5676, %v5772
        %v6029 = vmul.f32 %v5677, %v5773
        %v6030 = vmul.f32 %v5678, %v5774
        %v6031 = vmul.f32 %v5679, %v5775
        %v6032 = vmul.f32 %v5680, %v5776
        %v6033 = vmul.f32 %v5681, %v5777
        %v6034 = vmul.f32 %v5682, %v5778
        %v6035 = vmul.f32 %v5683, %v5779
        %v6036 = vmul.f32 %v5684, %v5780
        %v6037 = vmul.f32 %v5685, %v5781
        %v6038 = vmul.f32 %v5686, %v5782
        %v6039 = vmul.f32 %v5687, %v5783
        %vm6040 = vcmp.ge.s32.totalorder %v871, 64
        %vm6041 = vcmp.ge.s32.totalorder %v3128, 64
        %vm6042 = vcmp.ge.s32.totalorder %v3129, 64
        %vm6043 = vcmp.ge.s32.totalorder %v3130, 64
        %vm6044 = vcmp.ge.s32.totalorder %v3131, 64
        %vm6045 = vcmp.ge.s32.totalorder %v3132, 64
        %vm6046 = vcmp.ge.s32.totalorder %v3133, 64
        %vm6047 = vcmp.ge.s32.totalorder %v3134, 64
        %vm6048 = vcmp.ge.s32.totalorder %v3135, 64
        %vm6049 = vcmp.ge.s32.totalorder %v3136, 64
        %vm6050 = vcmp.ge.s32.totalorder %v3137, 64
        %vm6051 = vcmp.ge.s32.totalorder %v3138, 64
        %vm6052 = vcmp.ge.s32.totalorder %v3139, 64
        %vm6053 = vcmp.ge.s32.totalorder %v3140, 64
        %vm6054 = vcmp.ge.s32.totalorder %v3141, 64
        %vm6055 = vcmp.ge.s32.totalorder %v3142, 64
        %vm6056 = vcmp.ge.s32.totalorder %v3143, 64
        %vm6057 = vcmp.ge.s32.totalorder %v3144, 64
        %vm6058 = vcmp.ge.s32.totalorder %v3145, 64
        %vm6059 = vcmp.ge.s32.totalorder %v3146, 64
        %vm6060 = vcmp.ge.s32.totalorder %v3147, 64
        %vm6061 = vcmp.ge.s32.totalorder %v3148, 64
        %vm6062 = vcmp.ge.s32.totalorder %v3149, 64
        %vm6063 = vcmp.ge.s32.totalorder %v3150, 64
        %vm6064 = vcmp.ge.s32.totalorder %v3151, 64
        %vm6065 = vcmp.ge.s32.totalorder %v3152, 64
        %vm6066 = vcmp.ge.s32.totalorder %v3153, 64
        %vm6067 = vcmp.ge.s32.totalorder %v3154, 64
        %vm6068 = vcmp.ge.s32.totalorder %v3155, 64
        %vm6069 = vcmp.ge.s32.totalorder %v3156, 64
        %vm6070 = vcmp.ge.s32.totalorder %v3157, 64
        %vm6071 = vcmp.ge.s32.totalorder %v3158, 64
        %v6072 = vsel %vm6040, %v6024, 1.0
        %v6073 = vsel %vm6040, %v6025, 1.0
        %v6074 = vsel %vm6041, %v6026, 1.0
        %v6075 = vsel %vm6041, %v6027, 1.0
        %v6076 = vsel %vm6042, %v6028, 1.0
        %v6077 = vsel %vm6042, %v6029, 1.0
        %v6078 = vsel %vm6043, %v6030, 1.0
        %v6079 = vsel %vm6043, %v6031, 1.0
        %v6080 = vsel %vm6044, %v6032, 1.0
        %v6081 = vsel %vm6044, %v6033, 1.0
        %v6082 = vsel %vm6045, %v6034, 1.0
        %v6083 = vsel %vm6045, %v6035, 1.0
        %v6084 = vsel %vm6046, %v6036, 1.0
        %v6085 = vsel %vm6046, %v6037, 1.0
        %v6086 = vsel %vm6047, %v6038, 1.0
        %v6087 = vsel %vm6047, %v6039, 1.0
        %v6088 = vsel %vm6048, %v5976, 1.0
        %v6089 = vsel %vm6048, %v5977, 1.0
        %v6090 = vsel %vm6049, %v5978, 1.0
        %v6091 = vsel %vm6049, %v5979, 1.0
        %v6092 = vsel %vm6050, %v5980, 1.0
        %v6093 = vsel %vm6050, %v5981, 1.0
        %v6094 = vsel %vm6051, %v5982, 1.0
        %v6095 = vsel %vm6051, %v5983, 1.0
        %v6096 = vsel %vm6052, %v5984, 1.0
        %v6097 = vsel %vm6052, %v5985, 1.0
        %v6098 = vsel %vm6053, %v5986, 1.0
        %v6099 = vsel %vm6053, %v5987, 1.0
        %v6100 = vsel %vm6054, %v5988, 1.0
        %v6101 = vsel %vm6054, %v5989, 1.0
        %v6102 = vsel %vm6055, %v5990, 1.0
        %v6103 = vsel %vm6055, %v5991, 1.0
        %v6104 = vsel %vm6056, %v5992, 1.0
        %v6105 = vsel %vm6056, %v5993, 1.0
        %v6106 = vsel %vm6057, %v5994, 1.0
        %v6107 = vsel %vm6057, %v5995, 1.0
        %v6108 = vsel %vm6058, %v5996, 1.0
        %v6109 = vsel %vm6058, %v5997, 1.0
        %v6110 = vsel %vm6059, %v5998, 1.0
        %v6111 = vsel %vm6059, %v5999, 1.0
        %v6112 = vsel %vm6060, %v6000, 1.0
        %v6113 = vsel %vm6060, %v6001, 1.0
        %v6114 = vsel %vm6061, %v6002, 1.0
        %v6115 = vsel %vm6061, %v6003, 1.0
        %v6116 = vsel %vm6062, %v6004, 1.0
        %v6117 = vsel %vm6062, %v6005, 1.0
        %v6118 = vsel %vm6063, %v6006, 1.0
        %v6119 = vsel %vm6063, %v6007, 1.0
        %v6120 = vsel %vm6064, %v6008, 1.0
        %v6121 = vsel %vm6064, %v6009, 1.0
        %v6122 = vsel %vm6065, %v6010, 1.0
        %v6123 = vsel %vm6065, %v6011, 1.0
        %v6124 = vsel %vm6066, %v6012, 1.0
        %v6125 = vsel %vm6066, %v6013, 1.0
        %v6126 = vsel %vm6067, %v6014, 1.0
        %v6127 = vsel %vm6067, %v6015, 1.0
        %v6128 = vsel %vm6068, %v6016, 1.0
        %v6129 = vsel %vm6068, %v6017, 1.0
        %v6130 = vsel %vm6069, %v6018, 1.0
        %v6131 = vsel %vm6069, %v6019, 1.0
        %v6132 = vsel %vm6070, %v6020, 1.0
        %v6133 = vsel %vm6070, %v6021, 1.0
        %v6134 = vsel %vm6071, %v6022, 1.0
        %v6135 = vsel %vm6071, %v6023, 1.0
        %v6136 = vsel %vm6040, %v5960, 0.0
        %v6137 = vsel %vm6040, %v5961, 0.0
        %v6138 = vsel %vm6041, %v5962, 0.0
        %v6139 = vsel %vm6041, %v5963, 0.0
        %v6140 = vsel %vm6042, %v5964, 0.0
        %v6141 = vsel %vm6042, %v5965, 0.0
        %v6142 = vsel %vm6043, %v5966, 0.0
        %v6143 = vsel %vm6043, %v5967, 0.0
        %v6144 = vsel %vm6044, %v5968, 0.0
        %v6145 = vsel %vm6044, %v5969, 0.0
        %v6146 = vsel %vm6045, %v5970, 0.0
        %v6147 = vsel %vm6045, %v5971, 0.0
        %v6148 = vsel %vm6046, %v5972, 0.0
        %v6149 = vsel %vm6046, %v5973, 0.0
        %v6150 = vsel %vm6047, %v5974, 0.0
        %v6151 = vsel %vm6047, %v5975, 0.0
        %v6152 = vsel %vm6048, %v5912, 0.0
        %v6153 = vsel %vm6048, %v5913, 0.0
        %v6154 = vsel %vm6049, %v5914, 0.0
        %v6155 = vsel %vm6049, %v5915, 0.0
        %v6156 = vsel %vm6050, %v5916, 0.0
        %v6157 = vsel %vm6050, %v5917, 0.0
        %v6158 = vsel %vm6051, %v5918, 0.0
        %v6159 = vsel %vm6051, %v5919, 0.0
        %v6160 = vsel %vm6052, %v5920, 0.0
        %v6161 = vsel %vm6052, %v5921, 0.0
        %v6162 = vsel %vm6053, %v5922, 0.0
        %v6163 = vsel %vm6053, %v5923, 0.0
        %v6164 = vsel %vm6054, %v5924, 0.0
        %v6165 = vsel %vm6054, %v5925, 0.0
        %v6166 = vsel %vm6055, %v5926, 0.0
        %v6167 = vsel %vm6055, %v5927, 0.0
        %v6168 = vsel %vm6056, %v5928, 0.0
        %v6169 = vsel %vm6056, %v5929, 0.0
        %v6170 = vsel %vm6057, %v5930, 0.0
        %v6171 = vsel %vm6057, %v5931, 0.0
        %v6172 = vsel %vm6058, %v5932, 0.0
        %v6173 = vsel %vm6058, %v5933, 0.0
        %v6174 = vsel %vm6059, %v5934, 0.0
        %v6175 = vsel %vm6059, %v5935, 0.0
        %v6176 = vsel %vm6060, %v5936, 0.0
        %v6177 = vsel %vm6060, %v5937, 0.0
        %v6178 = vsel %vm6061, %v5938, 0.0
        %v6179 = vsel %vm6061, %v5939, 0.0
        %v6180 = vsel %vm6062, %v5940, 0.0
        %v6181 = vsel %vm6062, %v5941, 0.0
        %v6182 = vsel %vm6063, %v5942, 0.0
        %v6183 = vsel %vm6063, %v5943, 0.0
        %v6184 = vsel %vm6064, %v5944, 0.0
        %v6185 = vsel %vm6064, %v5945, 0.0
        %v6186 = vsel %vm6065, %v5946, 0.0
        %v6187 = vsel %vm6065, %v5947, 0.0
        %v6188 = vsel %vm6066, %v5948, 0.0
        %v6189 = vsel %vm6066, %v5949, 0.0
        %v6190 = vsel %vm6067, %v5950, 0.0
        %v6191 = vsel %vm6067, %v5951, 0.0
        %v6192 = vsel %vm6068, %v5952, 0.0
        %v6193 = vsel %vm6068, %v5953, 0.0
        %v6194 = vsel %vm6069, %v5954, 0.0
        %v6195 = vsel %vm6069, %v5955, 0.0
        %v6196 = vsel %vm6070, %v5956, 0.0
        %v6197 = vsel %vm6070, %v5957, 0.0
        %v6198 = vsel %vm6071, %v5958, 0.0
        %v6199 = vsel %vm6071, %v5959, 0.0
        %v6200 = vmul.f32 %v5976, %v6136
        %v6201 = vmul.f32 %v5977, %v6137
        %v6202 = vmul.f32 %v5978, %v6138
        %v6203 = vmul.f32 %v5979, %v6139
        %v6204 = vmul.f32 %v5980, %v6140
        %v6205 = vmul.f32 %v5981, %v6141
        %v6206 = vmul.f32 %v5982, %v6142
        %v6207 = vmul.f32 %v5983, %v6143
        %v6208 = vmul.f32 %v5984, %v6144
        %v6209 = vmul.f32 %v5985, %v6145
        %v6210 = vmul.f32 %v5986, %v6146
        %v6211 = vmul.f32 %v5987, %v6147
        %v6212 = vmul.f32 %v5988, %v6148
        %v6213 = vmul.f32 %v5989, %v6149
        %v6214 = vmul.f32 %v5990, %v6150
        %v6215 = vmul.f32 %v5991, %v6151
        %v6216 = vmul.f32 %v5992, %v6152
        %v6217 = vmul.f32 %v5993, %v6153
        %v6218 = vmul.f32 %v5994, %v6154
        %v6219 = vmul.f32 %v5995, %v6155
        %v6220 = vmul.f32 %v5996, %v6156
        %v6221 = vmul.f32 %v5997, %v6157
        %v6222 = vmul.f32 %v5998, %v6158
        %v6223 = vmul.f32 %v5999, %v6159
        %v6224 = vmul.f32 %v6000, %v6160
        %v6225 = vmul.f32 %v6001, %v6161
        %v6226 = vmul.f32 %v6002, %v6162
        %v6227 = vmul.f32 %v6003, %v6163
        %v6228 = vmul.f32 %v6004, %v6164
        %v6229 = vmul.f32 %v6005, %v6165
        %v6230 = vmul.f32 %v6006, %v6166
        %v6231 = vmul.f32 %v6007, %v6167
        %v6232 = vmul.f32 %v6008, %v6168
        %v6233 = vmul.f32 %v6009, %v6169
        %v6234 = vmul.f32 %v6010, %v6170
        %v6235 = vmul.f32 %v6011, %v6171
        %v6236 = vmul.f32 %v6012, %v6172
        %v6237 = vmul.f32 %v6013, %v6173
        %v6238 = vmul.f32 %v6014, %v6174
        %v6239 = vmul.f32 %v6015, %v6175
        %v6240 = vmul.f32 %v6016, %v6176
        %v6241 = vmul.f32 %v6017, %v6177
        %v6242 = vmul.f32 %v6018, %v6178
        %v6243 = vmul.f32 %v6019, %v6179
        %v6244 = vmul.f32 %v6020, %v6180
        %v6245 = vmul.f32 %v6021, %v6181
        %v6246 = vmul.f32 %v6022, %v6182
        %v6247 = vmul.f32 %v6023, %v6183
        %v6248 = vmul.f32 %v6024, %v6184
        %v6249 = vmul.f32 %v6025, %v6185
        %v6250 = vmul.f32 %v6026, %v6186
        %v6251 = vmul.f32 %v6027, %v6187
        %v6252 = vmul.f32 %v6028, %v6188
        %v6253 = vmul.f32 %v6029, %v6189
        %v6254 = vmul.f32 %v6030, %v6190
        %v6255 = vmul.f32 %v6031, %v6191
        %v6256 = vmul.f32 %v6032, %v6192
        %v6257 = vmul.f32 %v6033, %v6193
        %v6258 = vmul.f32 %v6034, %v6194
        %v6259 = vmul.f32 %v6035, %v6195
        %v6260 = vmul.f32 %v6036, %v6196
        %v6261 = vmul.f32 %v6037, %v6197
        %v6262 = vmul.f32 %v6038, %v6198
        %v6263 = vmul.f32 %v6039, %v6199
        %v6264 = vadd.f32 %v6200, %v5912
        %v6265 = vadd.f32 %v6201, %v5913
        %v6266 = vadd.f32 %v6202, %v5914
        %v6267 = vadd.f32 %v6203, %v5915
        %v6268 = vadd.f32 %v6204, %v5916
        %v6269 = vadd.f32 %v6205, %v5917
        %v6270 = vadd.f32 %v6206, %v5918
        %v6271 = vadd.f32 %v6207, %v5919
        %v6272 = vadd.f32 %v6208, %v5920
        %v6273 = vadd.f32 %v6209, %v5921
        %v6274 = vadd.f32 %v6210, %v5922
        %v6275 = vadd.f32 %v6211, %v5923
        %v6276 = vadd.f32 %v6212, %v5924
        %v6277 = vadd.f32 %v6213, %v5925
        %v6278 = vadd.f32 %v6214, %v5926
        %v6279 = vadd.f32 %v6215, %v5927
        %v6280 = vadd.f32 %v6216, %v5928
        %v6281 = vadd.f32 %v6217, %v5929
        %v6282 = vadd.f32 %v6218, %v5930
        %v6283 = vadd.f32 %v6219, %v5931
        %v6284 = vadd.f32 %v6220, %v5932
        %v6285 = vadd.f32 %v6221, %v5933
        %v6286 = vadd.f32 %v6222, %v5934
        %v6287 = vadd.f32 %v6223, %v5935
        %v6288 = vadd.f32 %v6224, %v5936
        %v6289 = vadd.f32 %v6225, %v5937
        %v6290 = vadd.f32 %v6226, %v5938
        %v6291 = vadd.f32 %v6227, %v5939
        %v6292 = vadd.f32 %v6228, %v5940
        %v6293 = vadd.f32 %v6229, %v5941
        %v6294 = vadd.f32 %v6230, %v5942
        %v6295 = vadd.f32 %v6231, %v5943
        %v6296 = vadd.f32 %v6232, %v5944
        %v6297 = vadd.f32 %v6233, %v5945
        %v6298 = vadd.f32 %v6234, %v5946
        %v6299 = vadd.f32 %v6235, %v5947
        %v6300 = vadd.f32 %v6236, %v5948
        %v6301 = vadd.f32 %v6237, %v5949
        %v6302 = vadd.f32 %v6238, %v5950
        %v6303 = vadd.f32 %v6239, %v5951
        %v6304 = vadd.f32 %v6240, %v5952
        %v6305 = vadd.f32 %v6241, %v5953
        %v6306 = vadd.f32 %v6242, %v5954
        %v6307 = vadd.f32 %v6243, %v5955
        %v6308 = vadd.f32 %v6244, %v5956
        %v6309 = vadd.f32 %v6245, %v5957
        %v6310 = vadd.f32 %v6246, %v5958
        %v6311 = vadd.f32 %v6247, %v5959
        %v6312 = vadd.f32 %v6248, %v5960
        %v6313 = vadd.f32 %v6249, %v5961
        %v6314 = vadd.f32 %v6250, %v5962
        %v6315 = vadd.f32 %v6251, %v5963
        %v6316 = vadd.f32 %v6252, %v5964
        %v6317 = vadd.f32 %v6253, %v5965
        %v6318 = vadd.f32 %v6254, %v5966
        %v6319 = vadd.f32 %v6255, %v5967
        %v6320 = vadd.f32 %v6256, %v5968
        %v6321 = vadd.f32 %v6257, %v5969
        %v6322 = vadd.f32 %v6258, %v5970
        %v6323 = vadd.f32 %v6259, %v5971
        %v6324 = vadd.f32 %v6260, %v5972
        %v6325 = vadd.f32 %v6261, %v5973
        %v6326 = vadd.f32 %v6262, %v5974
        %v6327 = vadd.f32 %v6263, %v5975
        %v6328 = vmul.f32 %v5976, %v6072
        %v6329 = vmul.f32 %v5977, %v6073
        %v6330 = vmul.f32 %v5978, %v6074
        %v6331 = vmul.f32 %v5979, %v6075
        %v6332 = vmul.f32 %v5980, %v6076
        %v6333 = vmul.f32 %v5981, %v6077
        %v6334 = vmul.f32 %v5982, %v6078
        %v6335 = vmul.f32 %v5983, %v6079
        %v6336 = vmul.f32 %v5984, %v6080
        %v6337 = vmul.f32 %v5985, %v6081
        %v6338 = vmul.f32 %v5986, %v6082
        %v6339 = vmul.f32 %v5987, %v6083
        %v6340 = vmul.f32 %v5988, %v6084
        %v6341 = vmul.f32 %v5989, %v6085
        %v6342 = vmul.f32 %v5990, %v6086
        %v6343 = vmul.f32 %v5991, %v6087
        %v6344 = vmul.f32 %v5992, %v6088
        %v6345 = vmul.f32 %v5993, %v6089
        %v6346 = vmul.f32 %v5994, %v6090
        %v6347 = vmul.f32 %v5995, %v6091
        %v6348 = vmul.f32 %v5996, %v6092
        %v6349 = vmul.f32 %v5997, %v6093
        %v6350 = vmul.f32 %v5998, %v6094
        %v6351 = vmul.f32 %v5999, %v6095
        %v6352 = vmul.f32 %v6000, %v6096
        %v6353 = vmul.f32 %v6001, %v6097
        %v6354 = vmul.f32 %v6002, %v6098
        %v6355 = vmul.f32 %v6003, %v6099
        %v6356 = vmul.f32 %v6004, %v6100
        %v6357 = vmul.f32 %v6005, %v6101
        %v6358 = vmul.f32 %v6006, %v6102
        %v6359 = vmul.f32 %v6007, %v6103
        %v6360 = vmul.f32 %v6008, %v6104
        %v6361 = vmul.f32 %v6009, %v6105
        %v6362 = vmul.f32 %v6010, %v6106
        %v6363 = vmul.f32 %v6011, %v6107
        %v6364 = vmul.f32 %v6012, %v6108
        %v6365 = vmul.f32 %v6013, %v6109
        %v6366 = vmul.f32 %v6014, %v6110
        %v6367 = vmul.f32 %v6015, %v6111
        %v6368 = vmul.f32 %v6016, %v6112
        %v6369 = vmul.f32 %v6017, %v6113
        %v6370 = vmul.f32 %v6018, %v6114
        %v6371 = vmul.f32 %v6019, %v6115
        %v6372 = vmul.f32 %v6020, %v6116
        %v6373 = vmul.f32 %v6021, %v6117
        %v6374 = vmul.f32 %v6022, %v6118
        %v6375 = vmul.f32 %v6023, %v6119
        %v6376 = vmul.f32 %v6024, %v6120
        %v6377 = vmul.f32 %v6025, %v6121
        %v6378 = vmul.f32 %v6026, %v6122
        %v6379 = vmul.f32 %v6027, %v6123
        %v6380 = vmul.f32 %v6028, %v6124
        %v6381 = vmul.f32 %v6029, %v6125
        %v6382 = vmul.f32 %v6030, %v6126
        %v6383 = vmul.f32 %v6031, %v6127
        %v6384 = vmul.f32 %v6032, %v6128
        %v6385 = vmul.f32 %v6033, %v6129
        %v6386 = vmul.f32 %v6034, %v6130
        %v6387 = vmul.f32 %v6035, %v6131
        %v6388 = vmul.f32 %v6036, %v6132
        %v6389 = vmul.f32 %v6037, %v6133
        %v6390 = vmul.f32 %v6038, %v6134
        %v6391 = vmul.f32 %v6039, %v6135
        %vm6392 = vcmp.ge.s32.totalorder %v871, 128
        %vm6393 = vcmp.ge.s32.totalorder %v3128, 128
        %vm6394 = vcmp.ge.s32.totalorder %v3129, 128
        %vm6395 = vcmp.ge.s32.totalorder %v3130, 128
        %vm6396 = vcmp.ge.s32.totalorder %v3131, 128
        %vm6397 = vcmp.ge.s32.totalorder %v3132, 128
        %vm6398 = vcmp.ge.s32.totalorder %v3133, 128
        %vm6399 = vcmp.ge.s32.totalorder %v3134, 128
        %vm6400 = vcmp.ge.s32.totalorder %v3135, 128
        %vm6401 = vcmp.ge.s32.totalorder %v3136, 128
        %vm6402 = vcmp.ge.s32.totalorder %v3137, 128
        %vm6403 = vcmp.ge.s32.totalorder %v3138, 128
        %vm6404 = vcmp.ge.s32.totalorder %v3139, 128
        %vm6405 = vcmp.ge.s32.totalorder %v3140, 128
        %vm6406 = vcmp.ge.s32.totalorder %v3141, 128
        %vm6407 = vcmp.ge.s32.totalorder %v3142, 128
        %vm6408 = vcmp.ge.s32.totalorder %v3143, 128
        %vm6409 = vcmp.ge.s32.totalorder %v3144, 128
        %vm6410 = vcmp.ge.s32.totalorder %v3145, 128
        %vm6411 = vcmp.ge.s32.totalorder %v3146, 128
        %vm6412 = vcmp.ge.s32.totalorder %v3147, 128
        %vm6413 = vcmp.ge.s32.totalorder %v3148, 128
        %vm6414 = vcmp.ge.s32.totalorder %v3149, 128
        %vm6415 = vcmp.ge.s32.totalorder %v3150, 128
        %vm6416 = vcmp.ge.s32.totalorder %v3151, 128
        %vm6417 = vcmp.ge.s32.totalorder %v3152, 128
        %vm6418 = vcmp.ge.s32.totalorder %v3153, 128
        %vm6419 = vcmp.ge.s32.totalorder %v3154, 128
        %vm6420 = vcmp.ge.s32.totalorder %v3155, 128
        %vm6421 = vcmp.ge.s32.totalorder %v3156, 128
        %vm6422 = vcmp.ge.s32.totalorder %v3157, 128
        %vm6423 = vcmp.ge.s32.totalorder %v3158, 128
        %v6424 = vsel %vm6392, %v6360, 1.0
        %v6425 = vsel %vm6392, %v6361, 1.0
        %v6426 = vsel %vm6393, %v6362, 1.0
        %v6427 = vsel %vm6393, %v6363, 1.0
        %v6428 = vsel %vm6394, %v6364, 1.0
        %v6429 = vsel %vm6394, %v6365, 1.0
        %v6430 = vsel %vm6395, %v6366, 1.0
        %v6431 = vsel %vm6395, %v6367, 1.0
        %v6432 = vsel %vm6396, %v6368, 1.0
        %v6433 = vsel %vm6396, %v6369, 1.0
        %v6434 = vsel %vm6397, %v6370, 1.0
        %v6435 = vsel %vm6397, %v6371, 1.0
        %v6436 = vsel %vm6398, %v6372, 1.0
        %v6437 = vsel %vm6398, %v6373, 1.0
        %v6438 = vsel %vm6399, %v6374, 1.0
        %v6439 = vsel %vm6399, %v6375, 1.0
        %v6440 = vsel %vm6400, %v6376, 1.0
        %v6441 = vsel %vm6400, %v6377, 1.0
        %v6442 = vsel %vm6401, %v6378, 1.0
        %v6443 = vsel %vm6401, %v6379, 1.0
        %v6444 = vsel %vm6402, %v6380, 1.0
        %v6445 = vsel %vm6402, %v6381, 1.0
        %v6446 = vsel %vm6403, %v6382, 1.0
        %v6447 = vsel %vm6403, %v6383, 1.0
        %v6448 = vsel %vm6404, %v6384, 1.0
        %v6449 = vsel %vm6404, %v6385, 1.0
        %v6450 = vsel %vm6405, %v6386, 1.0
        %v6451 = vsel %vm6405, %v6387, 1.0
        %v6452 = vsel %vm6406, %v6388, 1.0
        %v6453 = vsel %vm6406, %v6389, 1.0
        %v6454 = vsel %vm6407, %v6390, 1.0
        %v6455 = vsel %vm6407, %v6391, 1.0
        %v6456 = vsel %vm6408, %v6328, 1.0
        %v6457 = vsel %vm6408, %v6329, 1.0
        %v6458 = vsel %vm6409, %v6330, 1.0
        %v6459 = vsel %vm6409, %v6331, 1.0
        %v6460 = vsel %vm6410, %v6332, 1.0
        %v6461 = vsel %vm6410, %v6333, 1.0
        %v6462 = vsel %vm6411, %v6334, 1.0
        %v6463 = vsel %vm6411, %v6335, 1.0
        %v6464 = vsel %vm6412, %v6336, 1.0
        %v6465 = vsel %vm6412, %v6337, 1.0
        %v6466 = vsel %vm6413, %v6338, 1.0
        %v6467 = vsel %vm6413, %v6339, 1.0
        %v6468 = vsel %vm6414, %v6340, 1.0
        %v6469 = vsel %vm6414, %v6341, 1.0
        %v6470 = vsel %vm6415, %v6342, 1.0
        %v6471 = vsel %vm6415, %v6343, 1.0
        %v6472 = vsel %vm6416, %v6344, 1.0
        %v6473 = vsel %vm6416, %v6345, 1.0
        %v6474 = vsel %vm6417, %v6346, 1.0
        %v6475 = vsel %vm6417, %v6347, 1.0
        %v6476 = vsel %vm6418, %v6348, 1.0
        %v6477 = vsel %vm6418, %v6349, 1.0
        %v6478 = vsel %vm6419, %v6350, 1.0
        %v6479 = vsel %vm6419, %v6351, 1.0
        %v6480 = vsel %vm6420, %v6352, 1.0
        %v6481 = vsel %vm6420, %v6353, 1.0
        %v6482 = vsel %vm6421, %v6354, 1.0
        %v6483 = vsel %vm6421, %v6355, 1.0
        %v6484 = vsel %vm6422, %v6356, 1.0
        %v6485 = vsel %vm6422, %v6357, 1.0
        %v6486 = vsel %vm6423, %v6358, 1.0
        %v6487 = vsel %vm6423, %v6359, 1.0
        %v6488 = vsel %vm6392, %v6296, 0.0
        %v6489 = vsel %vm6392, %v6297, 0.0
        %v6490 = vsel %vm6393, %v6298, 0.0
        %v6491 = vsel %vm6393, %v6299, 0.0
        %v6492 = vsel %vm6394, %v6300, 0.0
        %v6493 = vsel %vm6394, %v6301, 0.0
        %v6494 = vsel %vm6395, %v6302, 0.0
        %v6495 = vsel %vm6395, %v6303, 0.0
        %v6496 = vsel %vm6396, %v6304, 0.0
        %v6497 = vsel %vm6396, %v6305, 0.0
        %v6498 = vsel %vm6397, %v6306, 0.0
        %v6499 = vsel %vm6397, %v6307, 0.0
        %v6500 = vsel %vm6398, %v6308, 0.0
        %v6501 = vsel %vm6398, %v6309, 0.0
        %v6502 = vsel %vm6399, %v6310, 0.0
        %v6503 = vsel %vm6399, %v6311, 0.0
        %v6504 = vsel %vm6400, %v6312, 0.0
        %v6505 = vsel %vm6400, %v6313, 0.0
        %v6506 = vsel %vm6401, %v6314, 0.0
        %v6507 = vsel %vm6401, %v6315, 0.0
        %v6508 = vsel %vm6402, %v6316, 0.0
        %v6509 = vsel %vm6402, %v6317, 0.0
        %v6510 = vsel %vm6403, %v6318, 0.0
        %v6511 = vsel %vm6403, %v6319, 0.0
        %v6512 = vsel %vm6404, %v6320, 0.0
        %v6513 = vsel %vm6404, %v6321, 0.0
        %v6514 = vsel %vm6405, %v6322, 0.0
        %v6515 = vsel %vm6405, %v6323, 0.0
        %v6516 = vsel %vm6406, %v6324, 0.0
        %v6517 = vsel %vm6406, %v6325, 0.0
        %v6518 = vsel %vm6407, %v6326, 0.0
        %v6519 = vsel %vm6407, %v6327, 0.0
        %v6520 = vsel %vm6408, %v6264, 0.0
        %v6521 = vsel %vm6408, %v6265, 0.0
        %v6522 = vsel %vm6409, %v6266, 0.0
        %v6523 = vsel %vm6409, %v6267, 0.0
        %v6524 = vsel %vm6410, %v6268, 0.0
        %v6525 = vsel %vm6410, %v6269, 0.0
        %v6526 = vsel %vm6411, %v6270, 0.0
        %v6527 = vsel %vm6411, %v6271, 0.0
        %v6528 = vsel %vm6412, %v6272, 0.0
        %v6529 = vsel %vm6412, %v6273, 0.0
        %v6530 = vsel %vm6413, %v6274, 0.0
        %v6531 = vsel %vm6413, %v6275, 0.0
        %v6532 = vsel %vm6414, %v6276, 0.0
        %v6533 = vsel %vm6414, %v6277, 0.0
        %v6534 = vsel %vm6415, %v6278, 0.0
        %v6535 = vsel %vm6415, %v6279, 0.0
        %v6536 = vsel %vm6416, %v6280, 0.0
        %v6537 = vsel %vm6416, %v6281, 0.0
        %v6538 = vsel %vm6417, %v6282, 0.0
        %v6539 = vsel %vm6417, %v6283, 0.0
        %v6540 = vsel %vm6418, %v6284, 0.0
        %v6541 = vsel %vm6418, %v6285, 0.0
        %v6542 = vsel %vm6419, %v6286, 0.0
        %v6543 = vsel %vm6419, %v6287, 0.0
        %v6544 = vsel %vm6420, %v6288, 0.0
        %v6545 = vsel %vm6420, %v6289, 0.0
        %v6546 = vsel %vm6421, %v6290, 0.0
        %v6547 = vsel %vm6421, %v6291, 0.0
        %v6548 = vsel %vm6422, %v6292, 0.0
        %v6549 = vsel %vm6422, %v6293, 0.0
        %v6550 = vsel %vm6423, %v6294, 0.0
        %v6551 = vsel %vm6423, %v6295, 0.0
        %v6552 = vmul.f32 %v6328, %v6488
        %v6553 = vmul.f32 %v6329, %v6489
        %v6554 = vmul.f32 %v6330, %v6490
        %v6555 = vmul.f32 %v6331, %v6491
        %v6556 = vmul.f32 %v6332, %v6492
        %v6557 = vmul.f32 %v6333, %v6493
        %v6558 = vmul.f32 %v6334, %v6494
        %v6559 = vmul.f32 %v6335, %v6495
        %v6560 = vmul.f32 %v6336, %v6496
        %v6561 = vmul.f32 %v6337, %v6497
        %v6562 = vmul.f32 %v6338, %v6498
        %v6563 = vmul.f32 %v6339, %v6499
        %v6564 = vmul.f32 %v6340, %v6500
        %v6565 = vmul.f32 %v6341, %v6501
        %v6566 = vmul.f32 %v6342, %v6502
        %v6567 = vmul.f32 %v6343, %v6503
        %v6568 = vmul.f32 %v6344, %v6504
        %v6569 = vmul.f32 %v6345, %v6505
        %v6570 = vmul.f32 %v6346, %v6506
        %v6571 = vmul.f32 %v6347, %v6507
        %v6572 = vmul.f32 %v6348, %v6508
        %v6573 = vmul.f32 %v6349, %v6509
        %v6574 = vmul.f32 %v6350, %v6510
        %v6575 = vmul.f32 %v6351, %v6511
        %v6576 = vmul.f32 %v6352, %v6512
        %v6577 = vmul.f32 %v6353, %v6513
        %v6578 = vmul.f32 %v6354, %v6514
        %v6579 = vmul.f32 %v6355, %v6515
        %v6580 = vmul.f32 %v6356, %v6516
        %v6581 = vmul.f32 %v6357, %v6517
        %v6582 = vmul.f32 %v6358, %v6518
        %v6583 = vmul.f32 %v6359, %v6519
        %v6584 = vmul.f32 %v6360, %v6520
        %v6585 = vmul.f32 %v6361, %v6521
        %v6586 = vmul.f32 %v6362, %v6522
        %v6587 = vmul.f32 %v6363, %v6523
        %v6588 = vmul.f32 %v6364, %v6524
        %v6589 = vmul.f32 %v6365, %v6525
        %v6590 = vmul.f32 %v6366, %v6526
        %v6591 = vmul.f32 %v6367, %v6527
        %v6592 = vmul.f32 %v6368, %v6528
        %v6593 = vmul.f32 %v6369, %v6529
        %v6594 = vmul.f32 %v6370, %v6530
        %v6595 = vmul.f32 %v6371, %v6531
        %v6596 = vmul.f32 %v6372, %v6532
        %v6597 = vmul.f32 %v6373, %v6533
        %v6598 = vmul.f32 %v6374, %v6534
        %v6599 = vmul.f32 %v6375, %v6535
        %v6600 = vmul.f32 %v6376, %v6536
        %v6601 = vmul.f32 %v6377, %v6537
        %v6602 = vmul.f32 %v6378, %v6538
        %v6603 = vmul.f32 %v6379, %v6539
        %v6604 = vmul.f32 %v6380, %v6540
        %v6605 = vmul.f32 %v6381, %v6541
        %v6606 = vmul.f32 %v6382, %v6542
        %v6607 = vmul.f32 %v6383, %v6543
        %v6608 = vmul.f32 %v6384, %v6544
        %v6609 = vmul.f32 %v6385, %v6545
        %v6610 = vmul.f32 %v6386, %v6546
        %v6611 = vmul.f32 %v6387, %v6547
        %v6612 = vmul.f32 %v6388, %v6548
        %v6613 = vmul.f32 %v6389, %v6549
        %v6614 = vmul.f32 %v6390, %v6550
        %v6615 = vmul.f32 %v6391, %v6551
        %v6616 = vadd.f32 %v6552, %v6264
        %v6617 = vadd.f32 %v6553, %v6265
        %v6618 = vadd.f32 %v6554, %v6266
        %v6619 = vadd.f32 %v6555, %v6267
        %v6620 = vadd.f32 %v6556, %v6268
        %v6621 = vadd.f32 %v6557, %v6269
        %v6622 = vadd.f32 %v6558, %v6270
        %v6623 = vadd.f32 %v6559, %v6271
        %v6624 = vadd.f32 %v6560, %v6272
        %v6625 = vadd.f32 %v6561, %v6273
        %v6626 = vadd.f32 %v6562, %v6274
        %v6627 = vadd.f32 %v6563, %v6275
        %v6628 = vadd.f32 %v6564, %v6276
        %v6629 = vadd.f32 %v6565, %v6277
        %v6630 = vadd.f32 %v6566, %v6278
        %v6631 = vadd.f32 %v6567, %v6279
        %v6632 = vadd.f32 %v6568, %v6280
        %v6633 = vadd.f32 %v6569, %v6281
        %v6634 = vadd.f32 %v6570, %v6282
        %v6635 = vadd.f32 %v6571, %v6283
        %v6636 = vadd.f32 %v6572, %v6284
        %v6637 = vadd.f32 %v6573, %v6285
        %v6638 = vadd.f32 %v6574, %v6286
        %v6639 = vadd.f32 %v6575, %v6287
        %v6640 = vadd.f32 %v6576, %v6288
        %v6641 = vadd.f32 %v6577, %v6289
        %v6642 = vadd.f32 %v6578, %v6290
        %v6643 = vadd.f32 %v6579, %v6291
        %v6644 = vadd.f32 %v6580, %v6292
        %v6645 = vadd.f32 %v6581, %v6293
        %v6646 = vadd.f32 %v6582, %v6294
        %v6647 = vadd.f32 %v6583, %v6295
        %v6648 = vadd.f32 %v6584, %v6296
        %v6649 = vadd.f32 %v6585, %v6297
        %v6650 = vadd.f32 %v6586, %v6298
        %v6651 = vadd.f32 %v6587, %v6299
        %v6652 = vadd.f32 %v6588, %v6300
        %v6653 = vadd.f32 %v6589, %v6301
        %v6654 = vadd.f32 %v6590, %v6302
        %v6655 = vadd.f32 %v6591, %v6303
        %v6656 = vadd.f32 %v6592, %v6304
        %v6657 = vadd.f32 %v6593, %v6305
        %v6658 = vadd.f32 %v6594, %v6306
        %v6659 = vadd.f32 %v6595, %v6307
        %v6660 = vadd.f32 %v6596, %v6308
        %v6661 = vadd.f32 %v6597, %v6309
        %v6662 = vadd.f32 %v6598, %v6310
        %v6663 = vadd.f32 %v6599, %v6311
        %v6664 = vadd.f32 %v6600, %v6312
        %v6665 = vadd.f32 %v6601, %v6313
        %v6666 = vadd.f32 %v6602, %v6314
        %v6667 = vadd.f32 %v6603, %v6315
        %v6668 = vadd.f32 %v6604, %v6316
        %v6669 = vadd.f32 %v6605, %v6317
        %v6670 = vadd.f32 %v6606, %v6318
        %v6671 = vadd.f32 %v6607, %v6319
        %v6672 = vadd.f32 %v6608, %v6320
        %v6673 = vadd.f32 %v6609, %v6321
        %v6674 = vadd.f32 %v6610, %v6322
        %v6675 = vadd.f32 %v6611, %v6323
        %v6676 = vadd.f32 %v6612, %v6324
        %v6677 = vadd.f32 %v6613, %v6325
        %v6678 = vadd.f32 %v6614, %v6326
        %v6679 = vadd.f32 %v6615, %v6327
        %v6680 = vmul.f32 %v6328, %v6424
        %v6681 = vmul.f32 %v6329, %v6425
        %v6682 = vmul.f32 %v6330, %v6426
        %v6683 = vmul.f32 %v6331, %v6427
        %v6684 = vmul.f32 %v6332, %v6428
        %v6685 = vmul.f32 %v6333, %v6429
        %v6686 = vmul.f32 %v6334, %v6430
        %v6687 = vmul.f32 %v6335, %v6431
        %v6688 = vmul.f32 %v6336, %v6432
        %v6689 = vmul.f32 %v6337, %v6433
        %v6690 = vmul.f32 %v6338, %v6434
        %v6691 = vmul.f32 %v6339, %v6435
        %v6692 = vmul.f32 %v6340, %v6436
        %v6693 = vmul.f32 %v6341, %v6437
        %v6694 = vmul.f32 %v6342, %v6438
        %v6695 = vmul.f32 %v6343, %v6439
        %v6696 = vmul.f32 %v6344, %v6440
        %v6697 = vmul.f32 %v6345, %v6441
        %v6698 = vmul.f32 %v6346, %v6442
        %v6699 = vmul.f32 %v6347, %v6443
        %v6700 = vmul.f32 %v6348, %v6444
        %v6701 = vmul.f32 %v6349, %v6445
        %v6702 = vmul.f32 %v6350, %v6446
        %v6703 = vmul.f32 %v6351, %v6447
        %v6704 = vmul.f32 %v6352, %v6448
        %v6705 = vmul.f32 %v6353, %v6449
        %v6706 = vmul.f32 %v6354, %v6450
        %v6707 = vmul.f32 %v6355, %v6451
        %v6708 = vmul.f32 %v6356, %v6452
        %v6709 = vmul.f32 %v6357, %v6453
        %v6710 = vmul.f32 %v6358, %v6454
        %v6711 = vmul.f32 %v6359, %v6455
        %v6712 = vmul.f32 %v6360, %v6456
        %v6713 = vmul.f32 %v6361, %v6457
        %v6714 = vmul.f32 %v6362, %v6458
        %v6715 = vmul.f32 %v6363, %v6459
        %v6716 = vmul.f32 %v6364, %v6460
        %v6717 = vmul.f32 %v6365, %v6461
        %v6718 = vmul.f32 %v6366, %v6462
        %v6719 = vmul.f32 %v6367, %v6463
        %v6720 = vmul.f32 %v6368, %v6464
        %v6721 = vmul.f32 %v6369, %v6465
        %v6722 = vmul.f32 %v6370, %v6466
        %v6723 = vmul.f32 %v6371, %v6467
        %v6724 = vmul.f32 %v6372, %v6468
        %v6725 = vmul.f32 %v6373, %v6469
        %v6726 = vmul.f32 %v6374, %v6470
        %v6727 = vmul.f32 %v6375, %v6471
        %v6728 = vmul.f32 %v6376, %v6472
        %v6729 = vmul.f32 %v6377, %v6473
        %v6730 = vmul.f32 %v6378, %v6474
        %v6731 = vmul.f32 %v6379, %v6475
        %v6732 = vmul.f32 %v6380, %v6476
        %v6733 = vmul.f32 %v6381, %v6477
        %v6734 = vmul.f32 %v6382, %v6478
        %v6735 = vmul.f32 %v6383, %v6479
        %v6736 = vmul.f32 %v6384, %v6480
        %v6737 = vmul.f32 %v6385, %v6481
        %v6738 = vmul.f32 %v6386, %v6482
        %v6739 = vmul.f32 %v6387, %v6483
        %v6740 = vmul.f32 %v6388, %v6484
        %v6741 = vmul.f32 %v6389, %v6485
        %v6742 = vmul.f32 %v6390, %v6486
        %v6743 = vmul.f32 %v6391, %v6487
        %v6744 = vld [vmem:[#allocation2] sm:$0x3]
        %v6746 = vlaneseq
        %v6747 = vshrl.u32 %v6746, 7
        %v6748 = vsub.s32 0, %v6747
        %v6749 = vrot.slane %v6744, %v6748
        %v6750 = vlaneseq
        %v6751 = vshrl.u32 %v6750, 7
        %v6752 = vsub.s32 1, %v6751
        %v6753 = vrot.slane %v6744, %v6752
        %v6756 = vmul.f32 %v6680, %v6749
        %v6757 = vmul.f32 %v6681, %v6753
        %v6758 = vmul.f32 %v6682, %v6749
        %v6759 = vmul.f32 %v6683, %v6753
        %v6760 = vmul.f32 %v6684, %v6749
        %v6761 = vmul.f32 %v6685, %v6753
        %v6762 = vmul.f32 %v6686, %v6749
        %v6763 = vmul.f32 %v6687, %v6753
        %v6764 = vmul.f32 %v6688, %v6749
        %v6765 = vmul.f32 %v6689, %v6753
        %v6766 = vmul.f32 %v6690, %v6749
        %v6767 = vmul.f32 %v6691, %v6753
        %v6768 = vmul.f32 %v6692, %v6749
        %v6769 = vmul.f32 %v6693, %v6753
        %v6770 = vmul.f32 %v6694, %v6749
        %v6771 = vmul.f32 %v6695, %v6753
        %v6772 = vmul.f32 %v6696, %v6749
        %v6773 = vmul.f32 %v6697, %v6753
        %v6774 = vmul.f32 %v6698, %v6749
        %v6775 = vmul.f32 %v6699, %v6753
        %v6776 = vmul.f32 %v6700, %v6749
        %v6777 = vmul.f32 %v6701, %v6753
        %v6778 = vmul.f32 %v6702, %v6749
        %v6779 = vmul.f32 %v6703, %v6753
        %v6780 = vmul.f32 %v6704, %v6749
        %v6781 = vmul.f32 %v6705, %v6753
        %v6782 = vmul.f32 %v6706, %v6749
        %v6783 = vmul.f32 %v6707, %v6753
        %v6784 = vmul.f32 %v6708, %v6749
        %v6785 = vmul.f32 %v6709, %v6753
        %v6786 = vmul.f32 %v6710, %v6749
        %v6787 = vmul.f32 %v6711, %v6753
        %v6788 = vmul.f32 %v6712, %v6749
        %v6789 = vmul.f32 %v6713, %v6753
        %v6790 = vmul.f32 %v6714, %v6749
        %v6791 = vmul.f32 %v6715, %v6753
        %v6792 = vmul.f32 %v6716, %v6749
        %v6793 = vmul.f32 %v6717, %v6753
        %v6794 = vmul.f32 %v6718, %v6749
        %v6795 = vmul.f32 %v6719, %v6753
        %v6796 = vmul.f32 %v6720, %v6749
        %v6797 = vmul.f32 %v6721, %v6753
        %v6798 = vmul.f32 %v6722, %v6749
        %v6799 = vmul.f32 %v6723, %v6753
        %v6800 = vmul.f32 %v6724, %v6749
        %v6801 = vmul.f32 %v6725, %v6753
        %v6802 = vmul.f32 %v6726, %v6749
        %v6803 = vmul.f32 %v6727, %v6753
        %v6804 = vmul.f32 %v6728, %v6749
        %v6805 = vmul.f32 %v6729, %v6753
        %v6806 = vmul.f32 %v6730, %v6749
        %v6807 = vmul.f32 %v6731, %v6753
        %v6808 = vmul.f32 %v6732, %v6749
        %v6809 = vmul.f32 %v6733, %v6753
        %v6810 = vmul.f32 %v6734, %v6749
        %v6811 = vmul.f32 %v6735, %v6753
        %v6812 = vmul.f32 %v6736, %v6749
        %v6813 = vmul.f32 %v6737, %v6753
        %v6814 = vmul.f32 %v6738, %v6749
        %v6815 = vmul.f32 %v6739, %v6753
        %v6816 = vmul.f32 %v6740, %v6749
        %v6817 = vmul.f32 %v6741, %v6753
        %v6818 = vmul.f32 %v6742, %v6749
        %v6819 = vmul.f32 %v6743, %v6753
        %v6820 = vadd.f32 %v6616, %v6756
        %v6821 = vadd.f32 %v6617, %v6757
        %v6822 = vadd.f32 %v6618, %v6758
        %v6823 = vadd.f32 %v6619, %v6759
        %v6824 = vadd.f32 %v6620, %v6760
        %v6825 = vadd.f32 %v6621, %v6761
        %v6826 = vadd.f32 %v6622, %v6762
        %v6827 = vadd.f32 %v6623, %v6763
        %v6828 = vadd.f32 %v6624, %v6764
        %v6829 = vadd.f32 %v6625, %v6765
        %v6830 = vadd.f32 %v6626, %v6766
        %v6831 = vadd.f32 %v6627, %v6767
        %v6832 = vadd.f32 %v6628, %v6768
        %v6833 = vadd.f32 %v6629, %v6769
        %v6834 = vadd.f32 %v6630, %v6770
        %v6835 = vadd.f32 %v6631, %v6771
        %v6836 = vadd.f32 %v6632, %v6772
        %v6837 = vadd.f32 %v6633, %v6773
        %v6838 = vadd.f32 %v6634, %v6774
        %v6839 = vadd.f32 %v6635, %v6775
        %v6840 = vadd.f32 %v6636, %v6776
        %v6841 = vadd.f32 %v6637, %v6777
        %v6842 = vadd.f32 %v6638, %v6778
        %v6843 = vadd.f32 %v6639, %v6779
        %v6844 = vadd.f32 %v6640, %v6780
        %v6845 = vadd.f32 %v6641, %v6781
        %v6846 = vadd.f32 %v6642, %v6782
        %v6847 = vadd.f32 %v6643, %v6783
        %v6848 = vadd.f32 %v6644, %v6784
        %v6849 = vadd.f32 %v6645, %v6785
        %v6850 = vadd.f32 %v6646, %v6786
        %v6851 = vadd.f32 %v6647, %v6787
        %v6852 = vadd.f32 %v6648, %v6788
        %v6853 = vadd.f32 %v6649, %v6789
        %v6854 = vadd.f32 %v6650, %v6790
        %v6855 = vadd.f32 %v6651, %v6791
        %v6856 = vadd.f32 %v6652, %v6792
        %v6857 = vadd.f32 %v6653, %v6793
        %v6858 = vadd.f32 %v6654, %v6794
        %v6859 = vadd.f32 %v6655, %v6795
        %v6860 = vadd.f32 %v6656, %v6796
        %v6861 = vadd.f32 %v6657, %v6797
        %v6862 = vadd.f32 %v6658, %v6798
        %v6863 = vadd.f32 %v6659, %v6799
        %v6864 = vadd.f32 %v6660, %v6800
        %v6865 = vadd.f32 %v6661, %v6801
        %v6866 = vadd.f32 %v6662, %v6802
        %v6867 = vadd.f32 %v6663, %v6803
        %v6868 = vadd.f32 %v6664, %v6804
        %v6869 = vadd.f32 %v6665, %v6805
        %v6870 = vadd.f32 %v6666, %v6806
        %v6871 = vadd.f32 %v6667, %v6807
        %v6872 = vadd.f32 %v6668, %v6808
        %v6873 = vadd.f32 %v6669, %v6809
        %v6874 = vadd.f32 %v6670, %v6810
        %v6875 = vadd.f32 %v6671, %v6811
        %v6876 = vadd.f32 %v6672, %v6812
        %v6877 = vadd.f32 %v6673, %v6813
        %v6878 = vadd.f32 %v6674, %v6814
        %v6879 = vadd.f32 %v6675, %v6815
        %v6880 = vadd.f32 %v6676, %v6816
        %v6881 = vadd.f32 %v6677, %v6817
        %v6882 = vadd.f32 %v6678, %v6818
        %v6883 = vadd.f32 %v6679, %v6819
        %v6886 = vcombine.high %v6882, %v6883
        %v6888 = vunpack.c.l.s4 1966171168
        %v6889 = vunpack.c.0.s8 %v6888
        %v6890 = vlaneseq
        %v6891 = vshrl.u32 %v6890, 7
        %v6892 = vsub.s32 %v6889, %v6891
        %v6893 = vrot.slane %v6886, %v6892
        %v6894 = vcombine.high %v6893, %v6893
        %v6896 = vunpack.c.l.s4 1966171168
        %v6897 = vunpack.c.0.s8 %v6896
        %v6898 = vlaneseq
        %v6899 = vshrl.u32 %v6898, 7
        %v6900 = vsub.s32 %v6897, %v6899
        %v6901 = vrot.slane %v6894, %v6900
        %v6902 = vcombine.high %v6901, %v6901
        %v6904 = vlaneseq
        %vm6905 = vcmp.ge.s32.totalorder %v6904, 0
        %vm6906 = vcmp.lt.s32.totalorder %v6904, 256
        %vm6907 = vmand %vm6905, %vm6906
        %6908 = vst.msk [vmem:[#allocation2] sm:$0x3] %vm6907, %v6902
        %v6909 = vmul.f32 %v6820, %v2670
        %v6910 = vmul.f32 %v6821, %v2672
        %v6911 = vmul.f32 %v6822, %v2674
        %v6912 = vmul.f32 %v6823, %v2676
        %v6913 = vmul.f32 %v6824, %v2680
        %v6914 = vmul.f32 %v6825, %v2682
        %v6915 = vmul.f32 %v6826, %v2684
        %v6916 = vmul.f32 %v6827, %v2686
        %v6917 = vmul.f32 %v6828, %v2690
        %v6918 = vmul.f32 %v6829, %v2692
        %v6919 = vmul.f32 %v6830, %v2694
        %v6920 = vmul.f32 %v6831, %v2696
        %v6921 = vmul.f32 %v6832, %v2700
        %v6922 = vmul.f32 %v6833, %v2702
        %v6923 = vmul.f32 %v6834, %v2704
        %v6924 = vmul.f32 %v6835, %v2706
        %v6925 = vmul.f32 %v6836, %v2710
        %v6926 = vmul.f32 %v6837, %v2712
        %v6927 = vmul.f32 %v6838, %v2714
        %v6928 = vmul.f32 %v6839, %v2716
        %v6929 = vmul.f32 %v6840, %v2720
        %v6930 = vmul.f32 %v6841, %v2722
        %v6931 = vmul.f32 %v6842, %v2724
        %v6932 = vmul.f32 %v6843, %v2726
        %v6933 = vmul.f32 %v6844, %v2730
        %v6934 = vmul.f32 %v6845, %v2732
        %v6935 = vmul.f32 %v6846, %v2734
        %v6936 = vmul.f32 %v6847, %v2736
        %v6937 = vmul.f32 %v6848, %v2740
        %v6938 = vmul.f32 %v6849, %v2742
        %v6939 = vmul.f32 %v6850, %v2744
        %v6940 = vmul.f32 %v6851, %v2746
        %v6941 = vmul.f32 %v6852, %v2750
        %v6942 = vmul.f32 %v6853, %v2752
        %v6943 = vmul.f32 %v6854, %v2754
        %v6944 = vmul.f32 %v6855, %v2756
        %v6945 = vmul.f32 %v6856, %v2760
        %v6946 = vmul.f32 %v6857, %v2762
        %v6947 = vmul.f32 %v6858, %v2764
        %v6948 = vmul.f32 %v6859, %v2766
        %v6949 = vmul.f32 %v6860, %v2770
        %v6950 = vmul.f32 %v6861, %v2772
        %v6951 = vmul.f32 %v6862, %v2774
        %v6952 = vmul.f32 %v6863, %v2776
        %v6953 = vmul.f32 %v6864, %v2780
        %v6954 = vmul.f32 %v6865, %v2782
        %v6955 = vmul.f32 %v6866, %v2784
        %v6956 = vmul.f32 %v6867, %v2786
        %v6957 = vmul.f32 %v6868, %v2790
        %v6958 = vmul.f32 %v6869, %v2792
        %v6959 = vmul.f32 %v6870, %v2794
        %v6960 = vmul.f32 %v6871, %v2796
        %v6961 = vmul.f32 %v6872, %v2800
        %v6962 = vmul.f32 %v6873, %v2802
        %v6963 = vmul.f32 %v6874, %v2804
        %v6964 = vmul.f32 %v6875, %v2806
        %v6965 = vmul.f32 %v6876, %v2810
        %v6966 = vmul.f32 %v6877, %v2812
        %v6967 = vmul.f32 %v6878, %v2814
        %v6968 = vmul.f32 %v6879, %v2816
        %v6969 = vmul.f32 %v6880, %v2820
        %v6970 = vmul.f32 %v6881, %v2822
        %v6971 = vmul.f32 %v6882, %v2824
        %v6972 = vmul.f32 %v6883, %v2826
        %v6973 = vadd.f32 %v6909, %v6910
        %v6974 = vadd.f32 %v6911, %v6912
        %v6975 = vadd.f32 %v6913, %v6914
        %v6976 = vadd.f32 %v6915, %v6916
        %v6977 = vadd.f32 %v6917, %v6918
        %v6978 = vadd.f32 %v6919, %v6920
        %v6979 = vadd.f32 %v6921, %v6922
        %v6980 = vadd.f32 %v6923, %v6924
        %v6981 = vadd.f32 %v6925, %v6926
        %v6982 = vadd.f32 %v6927, %v6928
        %v6983 = vadd.f32 %v6929, %v6930
        %v6984 = vadd.f32 %v6931, %v6932
        %v6985 = vadd.f32 %v6933, %v6934
        %v6986 = vadd.f32 %v6935, %v6936
        %v6987 = vadd.f32 %v6937, %v6938
        %v6988 = vadd.f32 %v6939, %v6940
        %v6989 = vadd.f32 %v6941, %v6942
        %v6990 = vadd.f32 %v6943, %v6944
        %v6991 = vadd.f32 %v6945, %v6946
        %v6992 = vadd.f32 %v6947, %v6948
        %v6993 = vadd.f32 %v6949, %v6950
        %v6994 = vadd.f32 %v6951, %v6952
        %v6995 = vadd.f32 %v6953, %v6954
        %v6996 = vadd.f32 %v6955, %v6956
        %v6997 = vadd.f32 %v6957, %v6958
        %v6998 = vadd.f32 %v6959, %v6960
        %v6999 = vadd.f32 %v6961, %v6962
        %v7000 = vadd.f32 %v6963, %v6964
        %v7001 = vadd.f32 %v6965, %v6966
        %v7002 = vadd.f32 %v6967, %v6968
        %v7003 = vadd.f32 %v6969, %v6970
        %v7004 = vadd.f32 %v6971, %v6972
        %v7005 = vld [vmem:[%s9] sm:$0x1]
        %v7007 = vlaneseq
        %v7008 = vshrl.u32 %v7007, 7
        %v7009 = vsub.s32 0, %v7008
        %v7010 = vrot.slane %v7005, %v7009
        %v7012 = vmul.f32 %v1441, %v7010
        %v7013 = vmul.f32 %v1442, %v7010
        %v7014 = vmul.f32 %v1443, %v7010
        %v7015 = vmul.f32 %v1444, %v7010
        %v7016 = vmul.f32 %v1445, %v7010
        %v7017 = vmul.f32 %v1446, %v7010
        %v7018 = vmul.f32 %v1447, %v7010
        %v7019 = vmul.f32 %v1448, %v7010
        %v7020 = vmul.f32 %v1449, %v7010
        %v7021 = vmul.f32 %v1450, %v7010
        %v7022 = vmul.f32 %v1451, %v7010
        %v7023 = vmul.f32 %v1452, %v7010
        %v7024 = vmul.f32 %v1453, %v7010
        %v7025 = vmul.f32 %v1454, %v7010
        %v7026 = vmul.f32 %v1455, %v7010
        %v7027 = vmul.f32 %v1456, %v7010
        %v7028 = vmul.f32 %v1457, %v7010
        %v7029 = vmul.f32 %v1458, %v7010
        %v7030 = vmul.f32 %v1459, %v7010
        %v7031 = vmul.f32 %v1460, %v7010
        %v7032 = vmul.f32 %v1461, %v7010
        %v7033 = vmul.f32 %v1462, %v7010
        %v7034 = vmul.f32 %v1463, %v7010
        %v7035 = vmul.f32 %v1464, %v7010
        %v7036 = vmul.f32 %v1465, %v7010
        %v7037 = vmul.f32 %v1466, %v7010
        %v7038 = vmul.f32 %v1467, %v7010
        %v7039 = vmul.f32 %v1468, %v7010
        %v7040 = vmul.f32 %v1469, %v7010
        %v7041 = vmul.f32 %v1470, %v7010
        %v7042 = vmul.f32 %v1471, %v7010
        %v7043 = vmul.f32 %v1472, %v7010
        %v7044 = vadd.f32 %v6973, %v7012
        %v7045 = vadd.f32 %v6974, %v7013
        %v7046 = vadd.f32 %v6975, %v7014
        %v7047 = vadd.f32 %v6976, %v7015
        %v7048 = vadd.f32 %v6977, %v7016
        %v7049 = vadd.f32 %v6978, %v7017
        %v7050 = vadd.f32 %v6979, %v7018
        %v7051 = vadd.f32 %v6980, %v7019
        %v7052 = vadd.f32 %v6981, %v7020
        %v7053 = vadd.f32 %v6982, %v7021
        %v7054 = vadd.f32 %v6983, %v7022
        %v7055 = vadd.f32 %v6984, %v7023
        %v7056 = vadd.f32 %v6985, %v7024
        %v7057 = vadd.f32 %v6986, %v7025
        %v7058 = vadd.f32 %v6987, %v7026
        %v7059 = vadd.f32 %v6988, %v7027
        %v7060 = vadd.f32 %v6989, %v7028
        %v7061 = vadd.f32 %v6990, %v7029
        %v7062 = vadd.f32 %v6991, %v7030
        %v7063 = vadd.f32 %v6992, %v7031
        %v7064 = vadd.f32 %v6993, %v7032
        %v7065 = vadd.f32 %v6994, %v7033
        %v7066 = vadd.f32 %v6995, %v7034
        %v7067 = vadd.f32 %v6996, %v7035
        %v7068 = vadd.f32 %v6997, %v7036
        %v7069 = vadd.f32 %v6998, %v7037
        %v7070 = vadd.f32 %v6999, %v7038
        %v7071 = vadd.f32 %v7000, %v7039
        %v7072 = vadd.f32 %v7001, %v7040
        %v7073 = vadd.f32 %v7002, %v7041
        %v7074 = vadd.f32 %v7003, %v7042
        %v7075 = vadd.f32 %v7004, %v7043
        %v7076 = vmul.f32 %v672, 0.5
        %v7077 = vmul.f32 %v676, 0.5
        %v7078 = vmul.f32 %v682, 0.5
        %v7079 = vmul.f32 %v686, 0.5
        %v7080 = vmul.f32 %v692, 0.5
        %v7081 = vmul.f32 %v696, 0.5
        %v7082 = vmul.f32 %v702, 0.5
        %v7083 = vmul.f32 %v706, 0.5
        %v7084 = vmul.f32 %v712, 0.5
        %v7085 = vmul.f32 %v716, 0.5
        %v7086 = vmul.f32 %v722, 0.5
        %v7087 = vmul.f32 %v726, 0.5
        %v7088 = vmul.f32 %v732, 0.5
        %v7089 = vmul.f32 %v736, 0.5
        %v7090 = vmul.f32 %v742, 0.5
        %v7091 = vmul.f32 %v746, 0.5
        %v7092 = vmul.f32 %v752, 0.5
        %v7093 = vmul.f32 %v756, 0.5
        %v7094 = vmul.f32 %v762, 0.5
        %v7095 = vmul.f32 %v766, 0.5
        %v7096 = vmul.f32 %v772, 0.5
        %v7097 = vmul.f32 %v776, 0.5
        %v7098 = vmul.f32 %v782, 0.5
        %v7099 = vmul.f32 %v786, 0.5
        %v7100 = vmul.f32 %v792, 0.5
        %v7101 = vmul.f32 %v796, 0.5
        %v7102 = vmul.f32 %v802, 0.5
        %v7103 = vmul.f32 %v806, 0.5
        %v7104 = vmul.f32 %v812, 0.5
        %v7105 = vmul.f32 %v816, 0.5
        %v7106 = vmul.f32 %v822, 0.5
        %v7107 = vmul.f32 %v826, 0.5
        %v7108 = vtanh.pop %v7076
        %v7109 = vtanh.pop %v7077
        %v7110 = vtanh.pop %v7078
        %v7111 = vtanh.pop %v7079
        %v7112 = vtanh.pop %v7080
        %v7113 = vtanh.pop %v7081
        %v7114 = vtanh.pop %v7082
        %v7115 = vtanh.pop %v7083
        %v7116 = vtanh.pop %v7084
        %v7117 = vtanh.pop %v7085
        %v7118 = vtanh.pop %v7086
        %v7119 = vtanh.pop %v7087
        %v7120 = vtanh.pop %v7088
        %v7121 = vtanh.pop %v7089
        %v7122 = vtanh.pop %v7090
        %v7123 = vtanh.pop %v7091
        %v7124 = vtanh.pop %v7092
        %v7125 = vtanh.pop %v7093
        %v7126 = vtanh.pop %v7094
        %v7127 = vtanh.pop %v7095
        %v7128 = vtanh.pop %v7096
        %v7129 = vtanh.pop %v7097
        %v7130 = vtanh.pop %v7098
        %v7131 = vtanh.pop %v7099
        %v7132 = vtanh.pop %v7100
        %v7133 = vtanh.pop %v7101
        %v7134 = vtanh.pop %v7102
        %v7135 = vtanh.pop %v7103
        %v7136 = vtanh.pop %v7104
        %v7137 = vtanh.pop %v7105
        %v7138 = vtanh.pop %v7106
        %v7139 = vtanh.pop %v7107
        %v7140 = vmul.f32 %v7108, 0.5
        %v7141 = vmul.f32 %v7109, 0.5
        %v7142 = vmul.f32 %v7110, 0.5
        %v7143 = vmul.f32 %v7111, 0.5
        %v7144 = vmul.f32 %v7112, 0.5
        %v7145 = vmul.f32 %v7113, 0.5
        %v7146 = vmul.f32 %v7114, 0.5
        %v7147 = vmul.f32 %v7115, 0.5
        %v7148 = vmul.f32 %v7116, 0.5
        %v7149 = vmul.f32 %v7117, 0.5
        %v7150 = vmul.f32 %v7118, 0.5
        %v7151 = vmul.f32 %v7119, 0.5
        %v7152 = vmul.f32 %v7120, 0.5
        %v7153 = vmul.f32 %v7121, 0.5
        %v7154 = vmul.f32 %v7122, 0.5
        %v7155 = vmul.f32 %v7123, 0.5
        %v7156 = vmul.f32 %v7124, 0.5
        %v7157 = vmul.f32 %v7125, 0.5
        %v7158 = vmul.f32 %v7126, 0.5
        %v7159 = vmul.f32 %v7127, 0.5
        %v7160 = vmul.f32 %v7128, 0.5
        %v7161 = vmul.f32 %v7129, 0.5
        %v7162 = vmul.f32 %v7130, 0.5
        %v7163 = vmul.f32 %v7131, 0.5
        %v7164 = vmul.f32 %v7132, 0.5
        %v7165 = vmul.f32 %v7133, 0.5
        %v7166 = vmul.f32 %v7134, 0.5
        %v7167 = vmul.f32 %v7135, 0.5
        %v7168 = vmul.f32 %v7136, 0.5
        %v7169 = vmul.f32 %v7137, 0.5
        %v7170 = vmul.f32 %v7138, 0.5
        %v7171 = vmul.f32 %v7139, 0.5
        %v7172 = vadd.f32 %v7140, 0.5
        %v7173 = vadd.f32 %v7141, 0.5
        %v7174 = vadd.f32 %v7142, 0.5
        %v7175 = vadd.f32 %v7143, 0.5
        %v7176 = vadd.f32 %v7144, 0.5
        %v7177 = vadd.f32 %v7145, 0.5
        %v7178 = vadd.f32 %v7146, 0.5
        %v7179 = vadd.f32 %v7147, 0.5
        %v7180 = vadd.f32 %v7148, 0.5
        %v7181 = vadd.f32 %v7149, 0.5
        %v7182 = vadd.f32 %v7150, 0.5
        %v7183 = vadd.f32 %v7151, 0.5
        %v7184 = vadd.f32 %v7152, 0.5
        %v7185 = vadd.f32 %v7153, 0.5
        %v7186 = vadd.f32 %v7154, 0.5
        %v7187 = vadd.f32 %v7155, 0.5
        %v7188 = vadd.f32 %v7156, 0.5
        %v7189 = vadd.f32 %v7157, 0.5
        %v7190 = vadd.f32 %v7158, 0.5
        %v7191 = vadd.f32 %v7159, 0.5
        %v7192 = vadd.f32 %v7160, 0.5
        %v7193 = vadd.f32 %v7161, 0.5
        %v7194 = vadd.f32 %v7162, 0.5
        %v7195 = vadd.f32 %v7163, 0.5
        %v7196 = vadd.f32 %v7164, 0.5
        %v7197 = vadd.f32 %v7165, 0.5
        %v7198 = vadd.f32 %v7166, 0.5
        %v7199 = vadd.f32 %v7167, 0.5
        %v7200 = vadd.f32 %v7168, 0.5
        %v7201 = vadd.f32 %v7169, 0.5
        %v7202 = vadd.f32 %v7170, 0.5
        %v7203 = vadd.f32 %v7171, 0.5
        %v7204 = vmul.f32 %v672, %v7172
        %v7205 = vmul.f32 %v676, %v7173
        %v7206 = vmul.f32 %v682, %v7174
        %v7207 = vmul.f32 %v686, %v7175
        %v7208 = vmul.f32 %v692, %v7176
        %v7209 = vmul.f32 %v696, %v7177
        %v7210 = vmul.f32 %v702, %v7178
        %v7211 = vmul.f32 %v706, %v7179
        %v7212 = vmul.f32 %v712, %v7180
        %v7213 = vmul.f32 %v716, %v7181
        %v7214 = vmul.f32 %v722, %v7182
        %v7215 = vmul.f32 %v726, %v7183
        %v7216 = vmul.f32 %v732, %v7184
        %v7217 = vmul.f32 %v736, %v7185
        %v7218 = vmul.f32 %v742, %v7186
        %v7219 = vmul.f32 %v746, %v7187
        %v7220 = vmul.f32 %v752, %v7188
        %v7221 = vmul.f32 %v756, %v7189
        %v7222 = vmul.f32 %v762, %v7190
        %v7223 = vmul.f32 %v766, %v7191
        %v7224 = vmul.f32 %v772, %v7192
        %v7225 = vmul.f32 %v776, %v7193
        %v7226 = vmul.f32 %v782, %v7194
        %v7227 = vmul.f32 %v786, %v7195
        %v7228 = vmul.f32 %v792, %v7196
        %v7229 = vmul.f32 %v796, %v7197
        %v7230 = vmul.f32 %v802, %v7198
        %v7231 = vmul.f32 %v806, %v7199
        %v7232 = vmul.f32 %v812, %v7200
        %v7233 = vmul.f32 %v816, %v7201
        %v7234 = vmul.f32 %v822, %v7202
        %v7235 = vmul.f32 %v826, %v7203
        %v7236 = vmul.f32 %v7044, %v7204
        %v7237 = vmul.f32 %v7045, %v7205
        %v7238 = vmul.f32 %v7046, %v7206
        %v7239 = vmul.f32 %v7047, %v7207
        %v7240 = vmul.f32 %v7048, %v7208
        %v7241 = vmul.f32 %v7049, %v7209
        %v7242 = vmul.f32 %v7050, %v7210
        %v7243 = vmul.f32 %v7051, %v7211
        %v7244 = vmul.f32 %v7052, %v7212
        %v7245 = vmul.f32 %v7053, %v7213
        %v7246 = vmul.f32 %v7054, %v7214
        %v7247 = vmul.f32 %v7055, %v7215
        %v7248 = vmul.f32 %v7056, %v7216
        %v7249 = vmul.f32 %v7057, %v7217
        %v7250 = vmul.f32 %v7058, %v7218
        %v7251 = vmul.f32 %v7059, %v7219
        %v7252 = vmul.f32 %v7060, %v7220
        %v7253 = vmul.f32 %v7061, %v7221
        %v7254 = vmul.f32 %v7062, %v7222
        %v7255 = vmul.f32 %v7063, %v7223
        %v7256 = vmul.f32 %v7064, %v7224
        %v7257 = vmul.f32 %v7065, %v7225
        %v7258 = vmul.f32 %v7066, %v7226
        %v7259 = vmul.f32 %v7067, %v7227
        %v7260 = vmul.f32 %v7068, %v7228
        %v7261 = vmul.f32 %v7069, %v7229
        %v7262 = vmul.f32 %v7070, %v7230
        %v7263 = vmul.f32 %v7071, %v7231
        %v7264 = vmul.f32 %v7072, %v7232
        %v7265 = vmul.f32 %v7073, %v7233
        %v7266 = vmul.f32 %v7074, %v7234
        %v7267 = vmul.f32 %v7075, %v7235
        %v7268 = vpack.c.bf16 %v7237, %v7236
        %v7269 = vpack.c.bf16 %v7239, %v7238
        %v7270 = vpack.c.bf16 %v7241, %v7240
        %v7271 = vpack.c.bf16 %v7243, %v7242
        %v7272 = vpack.c.bf16 %v7245, %v7244
        %v7273 = vpack.c.bf16 %v7247, %v7246
        %v7274 = vpack.c.bf16 %v7249, %v7248
        %v7275 = vpack.c.bf16 %v7251, %v7250
        %v7276 = vpack.c.bf16 %v7253, %v7252
        %v7277 = vpack.c.bf16 %v7255, %v7254
        %v7278 = vpack.c.bf16 %v7257, %v7256
        %v7279 = vpack.c.bf16 %v7259, %v7258
        %v7280 = vpack.c.bf16 %v7261, %v7260
        %v7281 = vpack.c.bf16 %v7263, %v7262
        %v7282 = vpack.c.bf16 %v7265, %v7264
        %v7283 = vpack.c.bf16 %v7267, %v7266
        %v7284 = vld [vmem:[#allocation13] sm:$0xf]
        %v7285 = vld [vmem:[#allocation13 + $0x4] sm:$0xf]
        %v7286 = vld [vmem:[#allocation13 + $0x8] sm:$0xf]
        %v7287 = vld [vmem:[#allocation13 + $0xc] sm:$0xf]
        %v7288 = vld [vmem:[#allocation13 + $0x10] sm:$0xf]
        %v7289 = vld [vmem:[#allocation13 + $0x14] sm:$0xf]
        %v7290 = vld [vmem:[#allocation13 + $0x18] sm:$0xf]
        %v7291 = vld [vmem:[#allocation13 + $0x1c] sm:$0xf]
        %v7292 = vld [vmem:[#allocation13 + $0x20] sm:$0xf]
        %v7293 = vld [vmem:[#allocation13 + $0x24] sm:$0xf]
        %v7294 = vld [vmem:[#allocation13 + $0x28] sm:$0xf]
        %v7295 = vld [vmem:[#allocation13 + $0x2c] sm:$0xf]
        %v7296 = vld [vmem:[#allocation13 + $0x30] sm:$0xf]
        %v7297 = vld [vmem:[#allocation13 + $0x34] sm:$0xf]
        %v7298 = vld [vmem:[#allocation13 + $0x38] sm:$0xf]
        %v7299 = vld [vmem:[#allocation13 + $0x3c] sm:$0xf]
        %v7316 = vunpack.c.l.b16 %v7284
        %v7317 = vunpack.c.l.b16 %v7285
        %v7318 = vunpack.c.l.b16 %v7286
        %v7319 = vunpack.c.l.b16 %v7287
        %v7320 = vunpack.c.l.b16 %v7288
        %v7321 = vunpack.c.l.b16 %v7289
        %v7322 = vunpack.c.l.b16 %v7290
        %v7323 = vunpack.c.l.b16 %v7291
        %v7324 = vunpack.c.l.b16 %v7292
        %v7325 = vunpack.c.l.b16 %v7293
        %v7326 = vunpack.c.l.b16 %v7294
        %v7327 = vunpack.c.l.b16 %v7295
        %v7328 = vunpack.c.l.b16 %v7296
        %v7329 = vunpack.c.l.b16 %v7297
        %v7330 = vunpack.c.l.b16 %v7298
        %v7331 = vunpack.c.l.b16 %v7299
        %v7332 = vpack.c.b16 %v7317, %v7316
        %v7333 = vpack.c.b16 %v7319, %v7318
        %v7334 = vpack.c.b16 %v7321, %v7320
        %v7335 = vpack.c.b16 %v7323, %v7322
        %v7336 = vpack.c.b16 %v7325, %v7324
        %v7337 = vpack.c.b16 %v7327, %v7326
        %v7338 = vpack.c.b16 %v7329, %v7328
        %v7339 = vpack.c.b16 %v7331, %v7330
        %7348 = vmatprep.subr.bf16.mxu0 0
        %7349 = vmatpush1.bf16.msra.mxu0 %v7332
        %7350 = vmatprep.subr.bf16.mxu0 0
        %7351 = vmatpush1.bf16.msra.mxu0 %v7333
        %7352 = vmatprep.subr.bf16.mxu0 0
        %7353 = vmatpush1.bf16.msra.mxu0 %v7334
        %7354 = vmatprep.subr.bf16.mxu0 0
        %7355 = vmatpush1.bf16.msra.mxu0 %v7335
        %7356 = vmatprep.subr.bf16.mxu0 0
        %7357 = vmatpush1.bf16.msra.mxu0 %v7336
        %7358 = vmatprep.subr.bf16.mxu0 0
        %7359 = vmatpush1.bf16.msra.mxu0 %v7337
        %7360 = vmatprep.subr.bf16.mxu0 0
        %7361 = vmatpush1.bf16.msra.mxu0 %v7338
        %7362 = vmatprep.subr.bf16.mxu0 0
        %7363 = vmatpush1.bf16.msra.mxu0 %v7339
        %7364 = vmatprep.subr.bf16.mxu0 0
        %7365 = vmatpush1.bf16.msra.mxu0 0
        %7366 = vmatprep.subr.bf16.mxu0 0
        %7367 = vmatpush1.bf16.msra.mxu0 0
        %7368 = vmatprep.subr.bf16.mxu0 0
        %7369 = vmatpush1.bf16.msra.mxu0 0
        %7370 = vmatprep.subr.bf16.mxu0 0
        %7371 = vmatpush1.bf16.msra.mxu0 0
        %7372 = vmatprep.subr.bf16.mxu0 0
        %7373 = vmatpush1.bf16.msra.mxu0 0
        %7374 = vmatprep.subr.bf16.mxu0 0
        %7375 = vmatpush1.bf16.msra.mxu0 0
        %7376 = vmatprep.subr.bf16.mxu0 0
        %7377 = vmatpush1.bf16.msra.mxu0 0
        %7378 = vmatprep.subr.bf16.mxu0 0
        %7379 = vmatpush1.bf16.msra.mxu0 0
        %7380 = vmatprep.mubr.bf16.mxu0 0
        %7381 = vmatmul.mubr.bf16.gmra.mrb[0].mxu0 %v7268
        %v7382 = vpop.f32.mrb[0].mxu0
        %v7383 = vadd.f32 0.0, %v7382
        %v7384 = vpop.f32.mrb[0].mxu0
        %v7385 = vpop.f32.mrb[0].mxu0
        %v7386 = vadd.f32 0.0, %v7385
        %v7387 = vpop.f32.mrb[0].mxu0
        %7388 = vmatprep.mubr.bf16.mxu0 0
        %7389 = vmatmul.mubr.bf16.gmra.mrb[0].mxu0 %v7269
        %v7390 = vpop.f32.mrb[0].mxu0
        %v7391 = vadd.f32 0.0, %v7390
        %v7392 = vpop.f32.mrb[0].mxu0
        %v7393 = vpop.f32.mrb[0].mxu0
        %v7394 = vadd.f32 0.0, %v7393
        %v7395 = vpop.f32.mrb[0].mxu0
        %7396 = vmatprep.mubr.bf16.mxu0 0
        %7397 = vmatmul.mubr.bf16.gmra.mrb[0].mxu0 %v7270
        %v7398 = vpop.f32.mrb[0].mxu0
        %v7399 = vadd.f32 0.0, %v7398
        %v7400 = vpop.f32.mrb[0].mxu0
        %v7401 = vpop.f32.mrb[0].mxu0
        %v7402 = vadd.f32 0.0, %v7401
        %v7403 = vpop.f32.mrb[0].mxu0
        %7404 = vmatprep.mubr.bf16.mxu0 0
        %7405 = vmatmul.mubr.bf16.gmra.mrb[0].mxu0 %v7271
        %v7406 = vpop.f32.mrb[0].mxu0
        %v7407 = vadd.f32 0.0, %v7406
        %v7408 = vpop.f32.mrb[0].mxu0
        %v7409 = vpop.f32.mrb[0].mxu0
        %v7410 = vadd.f32 0.0, %v7409
        %v7411 = vpop.f32.mrb[0].mxu0
        %7412 = vmatprep.mubr.bf16.mxu0 0
        %7413 = vmatmul.mubr.bf16.gmra.mrb[0].mxu0 %v7272
        %v7414 = vpop.f32.mrb[0].mxu0
        %v7415 = vadd.f32 0.0, %v7414
        %v7416 = vpop.f32.mrb[0].mxu0
        %v7417 = vpop.f32.mrb[0].mxu0
        %v7418 = vadd.f32 0.0, %v7417
        %v7419 = vpop.f32.mrb[0].mxu0
        %7420 = vmatprep.mubr.bf16.mxu0 0
        %7421 = vmatmul.mubr.bf16.gmra.mrb[0].mxu0 %v7273
        %v7422 = vpop.f32.mrb[0].mxu0
        %v7423 = vadd.f32 0.0, %v7422
        %v7424 = vpop.f32.mrb[0].mxu0
        %v7425 = vpop.f32.mrb[0].mxu0
        %v7426 = vadd.f32 0.0, %v7425
        %v7427 = vpop.f32.mrb[0].mxu0
        %7428 = vmatprep.mubr.bf16.mxu0 0
        %7429 = vmatmul.mubr.bf16.gmra.mrb[0].mxu0 %v7274
        %v7430 = vpop.f32.mrb[0].mxu0
        %v7431 = vadd.f32 0.0, %v7430
        %v7432 = vpop.f32.mrb[0].mxu0
        %v7433 = vpop.f32.mrb[0].mxu0
        %v7434 = vadd.f32 0.0, %v7433
        %v7435 = vpop.f32.mrb[0].mxu0
        %7436 = vmatprep.mubr.bf16.mxu0 0
        %7437 = vmatmul.mubr.bf16.gmra.mrb[0].mxu0 %v7275
        %v7438 = vpop.f32.mrb[0].mxu0
        %v7439 = vadd.f32 0.0, %v7438
        %v7440 = vpop.f32.mrb[0].mxu0
        %v7441 = vpop.f32.mrb[0].mxu0
        %v7442 = vadd.f32 0.0, %v7441
        %v7443 = vpop.f32.mrb[0].mxu0
        %7444 = vmatprep.mubr.bf16.mxu0 0
        %7445 = vmatmul.mubr.bf16.gmra.mrb[0].mxu0 %v7276
        %v7446 = vpop.f32.mrb[0].mxu0
        %v7447 = vadd.f32 0.0, %v7446
        %v7448 = vpop.f32.mrb[0].mxu0
        %v7449 = vpop.f32.mrb[0].mxu0
        %v7450 = vadd.f32 0.0, %v7449
        %v7451 = vpop.f32.mrb[0].mxu0
        %7452 = vmatprep.mubr.bf16.mxu0 0
        %7453 = vmatmul.mubr.bf16.gmra.mrb[0].mxu0 %v7277
        %v7454 = vpop.f32.mrb[0].mxu0
        %v7455 = vadd.f32 0.0, %v7454
        %v7456 = vpop.f32.mrb[0].mxu0
        %v7457 = vpop.f32.mrb[0].mxu0
        %v7458 = vadd.f32 0.0, %v7457
        %v7459 = vpop.f32.mrb[0].mxu0
        %7460 = vmatprep.mubr.bf16.mxu0 0
        %7461 = vmatmul.mubr.bf16.gmra.mrb[0].mxu0 %v7278
        %v7462 = vpop.f32.mrb[0].mxu0
        %v7463 = vadd.f32 0.0, %v7462
        %v7464 = vpop.f32.mrb[0].mxu0
        %v7465 = vpop.f32.mrb[0].mxu0
        %v7466 = vadd.f32 0.0, %v7465
        %v7467 = vpop.f32.mrb[0].mxu0
        %7468 = vmatprep.mubr.bf16.mxu0 0
        %7469 = vmatmul.mubr.bf16.gmra.mrb[0].mxu0 %v7279
        %v7470 = vpop.f32.mrb[0].mxu0
        %v7471 = vadd.f32 0.0, %v7470
        %v7472 = vpop.f32.mrb[0].mxu0
        %v7473 = vpop.f32.mrb[0].mxu0
        %v7474 = vadd.f32 0.0, %v7473
        %v7475 = vpop.f32.mrb[0].mxu0
        %7476 = vmatprep.mubr.bf16.mxu0 0
        %7477 = vmatmul.mubr.bf16.gmra.mrb[0].mxu0 %v7280
        %v7478 = vpop.f32.mrb[0].mxu0
        %v7479 = vadd.f32 0.0, %v7478
        %v7480 = vpop.f32.mrb[0].mxu0
        %v7481 = vpop.f32.mrb[0].mxu0
        %v7482 = vadd.f32 0.0, %v7481
        %v7483 = vpop.f32.mrb[0].mxu0
        %7484 = vmatprep.mubr.bf16.mxu0 0
        %7485 = vmatmul.mubr.bf16.gmra.mrb[0].mxu0 %v7281
        %v7486 = vpop.f32.mrb[0].mxu0
        %v7487 = vadd.f32 0.0, %v7486
        %v7488 = vpop.f32.mrb[0].mxu0
        %v7489 = vpop.f32.mrb[0].mxu0
        %v7490 = vadd.f32 0.0, %v7489
        %v7491 = vpop.f32.mrb[0].mxu0
        %7492 = vmatprep.mubr.bf16.mxu0 0
        %7493 = vmatmul.mubr.bf16.gmra.mrb[0].mxu0 %v7282
        %v7494 = vpop.f32.mrb[0].mxu0
        %v7495 = vadd.f32 0.0, %v7494
        %v7496 = vpop.f32.mrb[0].mxu0
        %v7497 = vpop.f32.mrb[0].mxu0
        %v7498 = vadd.f32 0.0, %v7497
        %v7499 = vpop.f32.mrb[0].mxu0
        %7500 = vmatprep.mubr.bf16.mxu0 0
        %7501 = vmatmul.mubr.bf16.gmra.mrb[0].mxu0 %v7283
        %v7502 = vpop.f32.mrb[0].mxu0
        %v7503 = vadd.f32 0.0, %v7502
        %v7504 = vpop.f32.mrb[0].mxu0
        %v7505 = vpop.f32.mrb[0].mxu0
        %v7506 = vadd.f32 0.0, %v7505
        %v7507 = vpop.f32.mrb[0].mxu0
        %7508 = vdwg.mxu0
        %vm7509 = vweird.f32 %v7383
        %vm7510 = vweird.f32 %v7386
        %vm7511 = vweird.f32 %v7391
        %vm7512 = vweird.f32 %v7394
        %vm7513 = vweird.f32 %v7399
        %vm7514 = vweird.f32 %v7402
        %vm7515 = vweird.f32 %v7407
        %vm7516 = vweird.f32 %v7410
        %vm7517 = vweird.f32 %v7415
        %vm7518 = vweird.f32 %v7418
        %vm7519 = vweird.f32 %v7423
        %vm7520 = vweird.f32 %v7426
        %vm7521 = vweird.f32 %v7431
        %vm7522 = vweird.f32 %v7434
        %vm7523 = vweird.f32 %v7439
        %vm7524 = vweird.f32 %v7442
        %vm7525 = vweird.f32 %v7447
        %vm7526 = vweird.f32 %v7450
        %vm7527 = vweird.f32 %v7455
        %vm7528 = vweird.f32 %v7458
        %vm7529 = vweird.f32 %v7463
        %vm7530 = vweird.f32 %v7466
        %vm7531 = vweird.f32 %v7471
        %vm7532 = vweird.f32 %v7474
        %vm7533 = vweird.f32 %v7479
        %vm7534 = vweird.f32 %v7482
        %vm7535 = vweird.f32 %v7487
        %vm7536 = vweird.f32 %v7490
        %vm7537 = vweird.f32 %v7495
        %vm7538 = vweird.f32 %v7498
        %vm7539 = vweird.f32 %v7503
        %vm7540 = vweird.f32 %v7506
        %vm7541 = vmxor %vm7509, 1
        %vm7542 = vmxor %vm7510, 1
        %vm7543 = vmxor %vm7511, 1
        %vm7544 = vmxor %vm7512, 1
        %vm7545 = vmxor %vm7513, 1
        %vm7546 = vmxor %vm7514, 1
        %vm7547 = vmxor %vm7515, 1
        %vm7548 = vmxor %vm7516, 1
        %vm7549 = vmxor %vm7517, 1
        %vm7550 = vmxor %vm7518, 1
        %vm7551 = vmxor %vm7519, 1
        %vm7552 = vmxor %vm7520, 1
        %vm7553 = vmxor %vm7521, 1
        %vm7554 = vmxor %vm7522, 1
        %vm7555 = vmxor %vm7523, 1
        %vm7556 = vmxor %vm7524, 1
        %vm7557 = vmxor %vm7525, 1
        %vm7558 = vmxor %vm7526, 1
        %vm7559 = vmxor %vm7527, 1
        %vm7560 = vmxor %vm7528, 1
        %vm7561 = vmxor %vm7529, 1
        %vm7562 = vmxor %vm7530, 1
        %vm7563 = vmxor %vm7531, 1
        %vm7564 = vmxor %vm7532, 1
        %vm7565 = vmxor %vm7533, 1
        %vm7566 = vmxor %vm7534, 1
        %vm7567 = vmxor %vm7535, 1
        %vm7568 = vmxor %vm7536, 1
        %vm7569 = vmxor %vm7537, 1
        %vm7570 = vmxor %vm7538, 1
        %vm7571 = vmxor %vm7539, 1
        %vm7572 = vmxor %vm7540, 1
        %v7573 = vsel %vm7541, %v7383, 0.0
        %v7574 = vsel %vm7542, %v7386, 0.0
        %v7575 = vsel %vm7543, %v7391, 0.0
        %v7576 = vsel %vm7544, %v7394, 0.0
        %v7577 = vsel %vm7545, %v7399, 0.0
        %v7578 = vsel %vm7546, %v7402, 0.0
        %v7579 = vsel %vm7547, %v7407, 0.0
        %v7580 = vsel %vm7548, %v7410, 0.0
        %v7581 = vsel %vm7549, %v7415, 0.0
        %v7582 = vsel %vm7550, %v7418, 0.0
        %v7583 = vsel %vm7551, %v7423, 0.0
        %v7584 = vsel %vm7552, %v7426, 0.0
        %v7585 = vsel %vm7553, %v7431, 0.0
        %v7586 = vsel %vm7554, %v7434, 0.0
        %v7587 = vsel %vm7555, %v7439, 0.0
        %v7588 = vsel %vm7556, %v7442, 0.0
        %v7589 = vsel %vm7557, %v7447, 0.0
        %v7590 = vsel %vm7558, %v7450, 0.0
        %v7591 = vsel %vm7559, %v7455, 0.0
        %v7592 = vsel %vm7560, %v7458, 0.0
        %v7593 = vsel %vm7561, %v7463, 0.0
        %v7594 = vsel %vm7562, %v7466, 0.0
        %v7595 = vsel %vm7563, %v7471, 0.0
        %v7596 = vsel %vm7564, %v7474, 0.0
        %v7597 = vsel %vm7565, %v7479, 0.0
        %v7598 = vsel %vm7566, %v7482, 0.0
        %v7599 = vsel %vm7567, %v7487, 0.0
        %v7600 = vsel %vm7568, %v7490, 0.0
        %v7601 = vsel %vm7569, %v7495, 0.0
        %v7602 = vsel %vm7570, %v7498, 0.0
        %v7603 = vsel %vm7571, %v7503, 0.0
        %v7604 = vsel %vm7572, %v7506, 0.0
        %7605 = vst [vmem:[%s477] sm:$0xff] %v7573
        %7606 = vst [vmem:[%s477 + $0x8] sm:$0xff] %v7574
        %7607 = vst [vmem:[%s477 + $0x10] sm:$0xff] %v7575
        %7608 = vst [vmem:[%s477 + $0x18] sm:$0xff] %v7576
        %7609 = vst [vmem:[%s477 + $0x20] sm:$0xff] %v7577
        %7610 = vst [vmem:[%s477 + $0x28] sm:$0xff] %v7578
        %7611 = vst [vmem:[%s477 + $0x30] sm:$0xff] %v7579
        %7612 = vst [vmem:[%s477 + $0x38] sm:$0xff] %v7580
        %7613 = vst [vmem:[%s477 + $0x40] sm:$0xff] %v7581
        %7614 = vst [vmem:[%s477 + $0x48] sm:$0xff] %v7582
        %7615 = vst [vmem:[%s477 + $0x50] sm:$0xff] %v7583
        %7616 = vst [vmem:[%s477 + $0x58] sm:$0xff] %v7584
        %7617 = vst [vmem:[%s477 + $0x60] sm:$0xff] %v7585
        %7618 = vst [vmem:[%s477 + $0x68] sm:$0xff] %v7586
        %7619 = vst [vmem:[%s477 + $0x70] sm:$0xff] %v7587
        %7620 = vst [vmem:[%s477 + $0x78] sm:$0xff] %v7588
        %7621 = vst [vmem:[%s477 + $0x80] sm:$0xff] %v7589
        %7622 = vst [vmem:[%s477 + $0x88] sm:$0xff] %v7590
        %7623 = vst [vmem:[%s477 + $0x90] sm:$0xff] %v7591
        %7624 = vst [vmem:[%s477 + $0x98] sm:$0xff] %v7592
        %7625 = vst [vmem:[%s477 + $0xa0] sm:$0xff] %v7593
        %7626 = vst [vmem:[%s477 + $0xa8] sm:$0xff] %v7594
        %7627 = vst [vmem:[%s477 + $0xb0] sm:$0xff] %v7595
        %7628 = vst [vmem:[%s477 + $0xb8] sm:$0xff] %v7596
        %7629 = vst [vmem:[%s477 + $0xc0] sm:$0xff] %v7597
        %7630 = vst [vmem:[%s477 + $0xc8] sm:$0xff] %v7598
        %7631 = vst [vmem:[%s477 + $0xd0] sm:$0xff] %v7599
        %7632 = vst [vmem:[%s477 + $0xd8] sm:$0xff] %v7600
        %7633 = vst [vmem:[%s477 + $0xe0] sm:$0xff] %v7601
        %7634 = vst [vmem:[%s477 + $0xe8] sm:$0xff] %v7602
        %7635 = vst [vmem:[%s477 + $0xf0] sm:$0xff] %v7603
        %7636 = vst [vmem:[%s477 + $0xf8] sm:$0xff] %v7604
        %s7637 = sand.u32 %s275, 1
        %s7638 = scalar_lea.sflag [#allocation6], %s7637
        %s7639 = sand.u32 %s275, 1
        %s7640 = smul.addr %s7639, 256
        %s7641 = scalar_lea.vmem [#allocation15], %s7640
        // Predicated region
        $region93: #{tpu_custom_call.1} parent=63 // pred_check
          %p7642 = pneg %p285
        $region94: #{tpu_custom_call.1} parent=63 // pred_check_branch
          %7644 = sbr.rel (%p7642) target = $region96
        $region95: #{tpu_custom_call.1} parent=63 // pred_region
          %s7645 = smul.u32 32, %s31
          %s7647 = ssub.s32 4096, 4096
          %7648 = vsyncadd %s7638, %s7647
          %s7649 = smul.addr %s7645, 128
          %s7650 = scalar_lea.hbm %s11, %s7649
          %s7651 = sshll.u32 %s7641, 4
          %s7652 = int_to_ptr.vmem [resolvable:$true] %s7651
          %7657 = dma.vmem_to_hbm [thread:$0]  %s7652, 4096, %s7650, %s7638, 128, 128, 8
        $region96: #{tpu_custom_call.1} parent=63 // pred_fallthru
          _
      $region64: #{tpu_custom_call.1} parent=5 // pred_fallthru
        _
      %p7658 = scmp.le.s32.totalorder 2, %s26
      // Predicated region
      $region97: #{tpu_custom_call.1} parent=5 // pred_check
        %p7659 = pneg %p7658
      $region98: #{tpu_custom_call.1} parent=5 // pred_check_branch
        %7661 = sbr.rel (%p7659) target = $region100
      $region99: #{tpu_custom_call.1} parent=5 // pred_region
        %s7662 = ssub.s32 %s26, 2
        // Predicated region
        $region101: #{tpu_custom_call.1} parent=99 // pred_check
          %p7663 = pneg %p291
        $region102: #{tpu_custom_call.1} parent=99 // pred_check_branch
          %7665 = sbr.rel (%p7663) target = $region104
        $region103: #{tpu_custom_call.1} parent=99 // pred_region
          %s7666 = sand.u32 %s276, 1
          %s7667 = scalar_lea.sflag [#allocation6], %s7666
          %s7668 = sand.u32 %s276, 1
          %s7669 = smul.addr %s7668, 256
          %s7670 = scalar_lea.vmem [#allocation15], %s7669
          %7671 = dma.done %s7667, 4096
        $region104: #{tpu_custom_call.1} parent=99 // pred_fallthru
          _
      $region100: #{tpu_custom_call.1} parent=5 // pred_fallthru
        _
    $region6: #{tpu_custom_call.1} parent=1 // loop_footer
      %s30 = sadd.s32 1, %s26
    $region7: #{tpu_custom_call.1} parent=1 // loop_footer_branch
      %25 = sbr.rel target = $region3
    $region8: #{tpu_custom_call.1} parent=1 // loop_exit
      _
    %7672 = vsyncpa [#allocation5], 1
    %s7673 = scalar_lea.sflag [#allocation5], 1
    %7674 = vsyncpa %s7673, 1
    %7675 = vsyncpa [#allocation8], 1
    %7676 = vsyncpa [#allocation11], 1
    %7677 = vsyncpa [#allocation14], 1
    %7678 = vsyncpa [#allocation6], 1
    %s7679 = scalar_lea.sflag [#allocation6], 1
    %7680 = vsyncpa %s7679, 1

</llo_original>
